<compile_context>
chip_gen: v6e
topology: v6e:2x2x1
jax: 0.10.0
libtpu: 0.0.40
codegen_flags: <defaults>
</compile_context>

<pallas_src>
import functools

import jax
import jax.numpy as jnp
from jax import lax
from jax.experimental import pallas as pl
from jax.experimental.pallas import tpu as pltpu


def _round_up(x, m):
    return (x + m - 1) // m * m


def conv2p1d_forward(x_ncdhw, ws, wt, *, t_chunk=None,
                     compute_dtype=jnp.bfloat16, out_dtype=None):
    """Fused Conv2p1D forward (stride 1, 'same' padding, bias=False, bn=False).

    x_ncdhw: (N, C_in, T, H, W)          PyTorch NCDHW input
    ws     : (C_mid, C_in, 1, Ks, Ks)    conv_spatial weight (PyTorch OIDHW)
    wt     : (C_out, C_mid, Kt, 1, 1)    conv_time    weight (PyTorch OIDHW)
    t_chunk: output frames per grid step (None -> whole T per step)
    returns: (N, C_out, T, H, W)
    """
    N, C, T, H, W = x_ncdhw.shape
    M, O = ws.shape[0], wt.shape[0]
    Ks, Kt = ws.shape[-1], wt.shape[2]
    assert ws.shape == (M, C, 1, Ks, Ks) and wt.shape == (O, M, Kt, 1, 1)
    # Only the module-default configuration (stride 1, padding = kernel // 2).
    assert Ks % 2 == 1 and Kt % 2 == 1, "odd kernels with 'same' padding only"
    pad_s, pad_t = Ks // 2, Kt // 2
    out_dtype = x_ncdhw.dtype if out_dtype is None else out_dtype

    Hp, Wp = H + 2 * pad_s, W + 2 * pad_s
    HWp = H * Wp                           # valid flat width per frame (extra cols stripped later)
    max_off = (Ks - 1) * Wp + (Ks - 1)     # largest tap offset inside a flattened frame
    # Per-frame lane stride: holds the padded frame, keeps every tap read of a
    # valid pixel inside the frame slot, and is a multiple of 128 (lane tile).
    Lf = _round_up(max(Hp * Wp, HWp + max_off), 128)

    # ---- T-chunk grid axis: Tc output frames / step, Tcp = Tc + 2*pad_t mid frames ----
    Tc = T if t_chunk is None else min(int(t_chunk), T)
    assert T % Tc == 0, f"t_chunk={Tc} must divide T={T}"
    nC = T // Tc
    Tcp = Tc + 2 * pad_t
    Lchunk = (Tcp + 1) * Lf                # +1 zero frame of slack for the tap shifts
    TcLf, TcpLf = Tc * Lf, Tcp * Lf
    KK = Ks * Ks

    # ---- input prep: NO transposes, NCDHW order preserved ----
    x = x_ncdhw.astype(compute_dtype)
    # one pad for time (pad_t front, pad_t + 1 slack back) and space
    x = jnp.pad(x, ((0, 0), (0, 0), (pad_t, pad_t + 1), (pad_s, pad_s), (pad_s, pad_s)))
    Tpf = T + 2 * pad_t + 1
    x = x.reshape(N, C, Tpf, Hp * Wp)
    x = jnp.pad(x, ((0, 0), (0, 0), (0, 0), (0, Lf - Hp * Wp)))   # frame stride -> Lf
    # halo-duplicated T-chunks: (2*pad_t + 1)/Tc extra input bytes, but every
    # in-kernel slice start is a Python constant (no dynamic lane offsets).
    x = jnp.concatenate(
        [x[:, None, :, c * Tc: c * Tc + Tcp + 1] for c in range(nC)], axis=1)
    x = x.reshape(N, nC, C, Lchunk)

    # ---- weights: tap-/step-major, tiny, VMEM resident for the whole grid ----
    # ws: (M,C,1,Ks,Ks) -> (Ks*Ks, M, C), tap index ky*Ks + kx.
    ws_taps = jnp.transpose(ws[:, :, 0], (2, 3, 0, 1)).reshape(KK, M, C).astype(compute_dtype)
    # wt: (O,M,Kt,1,1) -> (Kt, O, M)
    wt_taps = jnp.transpose(wt[:, :, :, 0, 0], (2, 0, 1)).astype(compute_dtype)

    tap_offsets = tuple(ky * Wp + kx for ky in range(Ks) for kx in range(Ks))

    def kernel(x_ref, ws_ref, wt_ref, o_ref, acc_ref, y_ref):
        # x_ref : (1, 1, C, Lchunk)  compute_dtype -- one halo'd T-chunk of one sample
        # ws_ref: (KK, M, C)         compute_dtype
        # wt_ref: (Kt, O, M)         compute_dtype
        # o_ref : (1, O, Tc*Lf)      out_dtype
        # acc_ref: (M, Tcp*Lf) f32   -- spatial-conv accumulator (VMEM, never in HBM)
        # y_ref : (M, Tcp*Lf)        compute_dtype -- ReLU'd mid activations (never in HBM)

        # Spatial (1,Ks,Ks) conv: Ks*Ks tap-accumulating matmuls, each over ALL
        # Tcp frames at once (frames contiguous along lanes).  Tap operands are
        # read directly from the input ref -- no im2col scratch, one tap live
        # at a time.  KK/Kt are tiny & static -> Python unroll on purpose.
        acc_ref[...] = jnp.dot(ws_ref[0], x_ref[0, 0, :, 0:TcpLf],
                               preferred_element_type=jnp.float32)
        for k in range(1, KK):
            off = tap_offsets[k]
            acc_ref[...] += jnp.dot(ws_ref[k], x_ref[0, 0, :, off:off + TcpLf],
                                    preferred_element_type=jnp.float32)

        # fused ReLU + cast; single full-width lane-dense store
        y_ref[...] = jnp.maximum(acc_ref[...], 0.0).astype(y_ref.dtype)

        # Temporal (Kt,1,1) conv: Kt accumulating matmuls over all Tc output
        # frames at once; every operand slice is lane-aligned (Lf % 128 == 0).
        out = jnp.dot(wt_ref[0], y_ref[:, 0:TcLf], preferred_element_type=jnp.float32)
        for dt in range(1, Kt):
            out = out + jnp.dot(wt_ref[dt], y_ref[:, dt * Lf: dt * Lf + TcLf],
                                preferred_element_type=jnp.float32)
        o_ref[0] = out.astype(o_ref.dtype)

    out = pl.pallas_call(
        kernel,
        out_shape=jax.ShapeDtypeStruct((N, O, T * Lf), out_dtype),
        grid=(N, nC),
        in_specs=[
            pl.BlockSpec((1, 1, C, Lchunk), lambda n, c: (n, c, 0, 0)),
            pl.BlockSpec((KK, M, C), lambda n, c: (0, 0, 0)),
            pl.BlockSpec((Kt, O, M), lambda n, c: (0, 0, 0)),
        ],
        out_specs=pl.BlockSpec((1, O, TcLf), lambda n, c: (n, 0, c)),
        scratch_shapes=[
            pltpu.VMEM((M, TcpLf), jnp.float32),     # spatial accumulator
            pltpu.VMEM((M, TcpLf), compute_dtype),   # ReLU'd mid activations
        ],
        compiler_params=pltpu.CompilerParams(
            # N is split across TensorCores; the chunk axis gives each core
            # several pipeline steps and bounds per-step VMEM (tune t_chunk
            # down at production sizes for v7x's 64 MiB VMEM).
            dimension_semantics=("parallel", "arbitrary"),
            vmem_limit_bytes=32 * 1024 * 1024,
        ),
    )(x, ws_taps, wt_taps)

    # strip the per-frame lane padding / padded columns; already NCDHW-ordered.
    out = out.reshape(N, O, T, Lf)[..., :HWp]
    out = out.reshape(N, O, T, H, Wp)[..., :W]
    return out


# ----------------------------------------------------------------------------
# Pure-JAX reference (lax conv) for the correctness check
# ----------------------------------------------------------------------------
def conv2p1d_reference(x, ws, wt):
    dn = ("NCDHW", "OIDHW", "NCDHW")
    ps, pt = ws.shape[-1] // 2, wt.shape[2] // 2
    y = lax.conv_general_dilated(
        x, ws, window_strides=(1, 1, 1),
        padding=((0, 0), (ps, ps), (ps, ps)), dimension_numbers=dn)
    y = jnp.maximum(y, 0.0)
    return lax.conv_general_dilated(
        y, wt, window_strides=(1, 1, 1),
        padding=((pt, pt), (0, 0), (0, 0)), dimension_numbers=dn)


if __name__ == "__main__":
    key = jax.random.PRNGKey(0)
    N, Cin, T, H, W = 2, 4, 8, 16, 16
    Cout, t_kernel, s_kernel = 8, 3, 3

    # mid_channels as computed in Conv2p1D.__init__ with mid_channels=-1
    n_conv3d = Cin * Cout * (t_kernel * s_kernel * s_kernel)
    n_conv2p1d = Cin * s_kernel ** 2 + t_kernel * Cout
    Mid = n_conv3d // n_conv2p1d   # = 14 for these sizes

    kx_, kw1, kw2 = jax.random.split(key, 3)
    x = jax.random.normal(kx_, (N, Cin, T, H, W), jnp.float32)
    ws = jax.random.normal(kw1, (Mid, Cin, 1, s_kernel, s_kernel), jnp.float32) * 0.1
    wt = jax.random.normal(kw2, (Cout, Mid, t_kernel, 1, 1), jnp.float32) * 0.1

    # t_chunk=4 -> grid (2, 2): exercises the chunked/pipelined path.
    fwd = jax.jit(functools.partial(conv2p1d_forward, t_chunk=4))
    out = jax.block_until_ready(fwd(x, ws, wt))

    ref = conv2p1d_reference(x, ws, wt)
    assert out.shape == (N, Cout, T, H, W), out.shape
    max_err = float(jnp.max(jnp.abs(out - ref)))
    # bf16 dot operands / bf16 intermediate with f32 accumulation vs f32 reference
    assert jnp.allclose(out, ref, rtol=2e-2, atol=2e-2), max_err

    print("KERNEL_OK")
</pallas_src>

<mosaic_0001>
module attributes {stable_mosaic.version = 11 : i64} {
  func.func @kernel(%arg0: i32, %arg1: i32, %arg2: memref<1x1x4x2688xbf16, #tpu.memory_space<vmem>>, %arg3: memref<9x14x4xbf16, #tpu.memory_space<vmem>>, %arg4: memref<3x8x14xbf16, #tpu.memory_space<vmem>>, %arg5: memref<1x8x1536xf32, #tpu.memory_space<vmem>>, %arg6: memref<14x2304xf32, #tpu.memory_space<vmem>>, %arg7: memref<14x2304xbf16, #tpu.memory_space<vmem>>) attributes {dimension_semantics = [#tpu.dimension_semantics<parallel>, #tpu.dimension_semantics<arbitrary>], iteration_bounds = array<i64: 2, 2>, scalar_prefetch = 0 : i64, scratch_operands = 2 : i64, tpu.core_type = #tpu.core_type<tc>, window_params = [{transform_indices = @transform_0, window_bounds = array<i64: 1, 1, 4, 2688>}, {pipeline_mode = #tpu.pipeline_mode<synchronous>, transform_indices = @transform_1, window_bounds = array<i64: 9, 14, 4>}, {pipeline_mode = #tpu.pipeline_mode<synchronous>, transform_indices = @transform_2, window_bounds = array<i64: 3, 8, 14>}, {transform_indices = @transform_3, window_bounds = array<i64: 1, 8, 1536>}]} {
    %c0 = arith.constant 0 : index
    %c0_0 = arith.constant 0 : index
    %c0_1 = arith.constant 0 : index
    %0 = vector.load %arg3[%c0, %c0_0, %c0_1] : memref<9x14x4xbf16, #tpu.memory_space<vmem>>, vector<1x14x4xbf16>
    %1 = vector.shape_cast %0 : vector<1x14x4xbf16> to vector<14x4xbf16>
    %c0_2 = arith.constant 0 : index
    %c0_3 = arith.constant 0 : index
    %c0_4 = arith.constant 0 : index
    %c0_5 = arith.constant 0 : index
    %2 = vector.load %arg2[%c0_2, %c0_3, %c0_4, %c0_5] : memref<1x1x4x2688xbf16, #tpu.memory_space<vmem>>, vector<1x1x4x2304xbf16>
    %3 = vector.shape_cast %2 : vector<1x1x4x2304xbf16> to vector<4x2304xbf16>
    %cst = arith.constant dense<0.000000e+00> : vector<14x2304xf32>
    %4 = tpu.matmul %1, %3, %cst {dimension_numbers = #tpu.dot_dimension_numbers<[1], [0], [0], [1], [0, 0, 1, 1], [], []>} : vector<14x4xbf16>, vector<4x2304xbf16>, vector<14x2304xf32> -> vector<14x2304xf32>
    %c0_6 = arith.constant 0 : index
    %c0_7 = arith.constant 0 : index
    %5 = vector.load %arg6[%c0_6, %c0_7] : memref<14x2304xf32, #tpu.memory_space<vmem>>, vector<14x2304xf32>
    tpu.vector_store %arg6[%c0_6, %c0_7], %4 {strides = array<i32>} : memref<14x2304xf32, #tpu.memory_space<vmem>>, vector<14x2304xf32>,
    %c0_8 = arith.constant 0 : index
    %c0_9 = arith.constant 0 : index
    %6 = vector.load %arg6[%c0_8, %c0_9] : memref<14x2304xf32, #tpu.memory_space<vmem>>, vector<14x2304xf32>
    %c1 = arith.constant 1 : index
    %c0_10 = arith.constant 0 : index
    %c0_11 = arith.constant 0 : index
    %7 = vector.load %arg3[%c1, %c0_10, %c0_11] : memref<9x14x4xbf16, #tpu.memory_space<vmem>>, vector<1x14x4xbf16>
    %8 = vector.shape_cast %7 : vector<1x14x4xbf16> to vector<14x4xbf16>
    %c0_12 = arith.constant 0 : index
    %c0_13 = arith.constant 0 : index
    %c0_14 = arith.constant 0 : index
    %c1_15 = arith.constant 1 : index
    %9 = vector.load %arg2[%c0_12, %c0_13, %c0_14, %c1_15] : memref<1x1x4x2688xbf16, #tpu.memory_space<vmem>>, vector<1x1x4x2304xbf16>
    %10 = vector.shape_cast %9 : vector<1x1x4x2304xbf16> to vector<4x2304xbf16>
    %cst_16 = arith.constant dense<0.000000e+00> : vector<14x2304xf32>
    %11 = tpu.matmul %8, %10, %cst_16 {dimension_numbers = #tpu.dot_dimension_numbers<[1], [0], [0], [1], [0, 0, 1, 1], [], []>} : vector<14x4xbf16>, vector<4x2304xbf16>, vector<14x2304xf32> -> vector<14x2304xf32>
    %12 = arith.addf %6, %11 : vector<14x2304xf32>
    %c0_17 = arith.constant 0 : index
    %c0_18 = arith.constant 0 : index
    %13 = vector.load %arg6[%c0_17, %c0_18] : memref<14x2304xf32, #tpu.memory_space<vmem>>, vector<14x2304xf32>
    tpu.vector_store %arg6[%c0_17, %c0_18], %12 {strides = array<i32>} : memref<14x2304xf32, #tpu.memory_space<vmem>>, vector<14x2304xf32>,
    %c0_19 = arith.constant 0 : index
    %c0_20 = arith.constant 0 : index
    %14 = vector.load %arg6[%c0_19, %c0_20] : memref<14x2304xf32, #tpu.memory_space<vmem>>, vector<14x2304xf32>
    %c2 = arith.constant 2 : index
    %c0_21 = arith.constant 0 : index
    %c0_22 = arith.constant 0 : index
    %15 = vector.load %arg3[%c2, %c0_21, %c0_22] : memref<9x14x4xbf16, #tpu.memory_space<vmem>>, vector<1x14x4xbf16>
    %16 = vector.shape_cast %15 : vector<1x14x4xbf16> to vector<14x4xbf16>
    %c0_23 = arith.constant 0 : index
    %c0_24 = arith.constant 0 : index
    %c0_25 = arith.constant 0 : index
    %c2_26 = arith.constant 2 : index
    %17 = vector.load %arg2[%c0_23, %c0_24, %c0_25, %c2_26] : memref<1x1x4x2688xbf16, #tpu.memory_space<vmem>>, vector<1x1x4x2304xbf16>
    %18 = vector.shape_cast %17 : vector<1x1x4x2304xbf16> to vector<4x2304xbf16>
    %cst_27 = arith.constant dense<0.000000e+00> : vector<14x2304xf32>
    %19 = tpu.matmul %16, %18, %cst_27 {dimension_numbers = #tpu.dot_dimension_numbers<[1], [0], [0], [1], [0, 0, 1, 1], [], []>} : vector<14x4xbf16>, vector<4x2304xbf16>, vector<14x2304xf32> -> vector<14x2304xf32>
    %20 = arith.addf %14, %19 : vector<14x2304xf32>
    %c0_28 = arith.constant 0 : index
    %c0_29 = arith.constant 0 : index
    %21 = vector.load %arg6[%c0_28, %c0_29] : memref<14x2304xf32, #tpu.memory_space<vmem>>, vector<14x2304xf32>
    tpu.vector_store %arg6[%c0_28, %c0_29], %20 {strides = array<i32>} : memref<14x2304xf32, #tpu.memory_space<vmem>>, vector<14x2304xf32>,
    %c0_30 = arith.constant 0 : index
    %c0_31 = arith.constant 0 : index
    %22 = vector.load %arg6[%c0_30, %c0_31] : memref<14x2304xf32, #tpu.memory_space<vmem>>, vector<14x2304xf32>
    %c3 = arith.constant 3 : index
    %c0_32 = arith.constant 0 : index
    %c0_33 = arith.constant 0 : index
    %23 = vector.load %arg3[%c3, %c0_32, %c0_33] : memref<9x14x4xbf16, #tpu.memory_space<vmem>>, vector<1x14x4xbf16>
    %24 = vector.shape_cast %23 : vector<1x14x4xbf16> to vector<14x4xbf16>
    %c0_34 = arith.constant 0 : index
    %c0_35 = arith.constant 0 : index
    %c0_36 = arith.constant 0 : index
    %c18 = arith.constant 18 : index
    %25 = vector.load %arg2[%c0_34, %c0_35, %c0_36, %c18] : memref<1x1x4x2688xbf16, #tpu.memory_space<vmem>>, vector<1x1x4x2304xbf16>
    %26 = vector.shape_cast %25 : vector<1x1x4x2304xbf16> to vector<4x2304xbf16>
    %cst_37 = arith.constant dense<0.000000e+00> : vector<14x2304xf32>
    %27 = tpu.matmul %24, %26, %cst_37 {dimension_numbers = #tpu.dot_dimension_numbers<[1], [0], [0], [1], [0, 0, 1, 1], [], []>} : vector<14x4xbf16>, vector<4x2304xbf16>, vector<14x2304xf32> -> vector<14x2304xf32>
    %28 = arith.addf %22, %27 : vector<14x2304xf32>
    %c0_38 = arith.constant 0 : index
    %c0_39 = arith.constant 0 : index
    %29 = vector.load %arg6[%c0_38, %c0_39] : memref<14x2304xf32, #tpu.memory_space<vmem>>, vector<14x2304xf32>
    tpu.vector_store %arg6[%c0_38, %c0_39], %28 {strides = array<i32>} : memref<14x2304xf32, #tpu.memory_space<vmem>>, vector<14x2304xf32>,
    %c0_40 = arith.constant 0 : index
    %c0_41 = arith.constant 0 : index
    %30 = vector.load %arg6[%c0_40, %c0_41] : memref<14x2304xf32, #tpu.memory_space<vmem>>, vector<14x2304xf32>
    %c4 = arith.constant 4 : index
    %c0_42 = arith.constant 0 : index
    %c0_43 = arith.constant 0 : index
    %31 = vector.load %arg3[%c4, %c0_42, %c0_43] : memref<9x14x4xbf16, #tpu.memory_space<vmem>>, vector<1x14x4xbf16>
    %32 = vector.shape_cast %31 : vector<1x14x4xbf16> to vector<14x4xbf16>
    %c0_44 = arith.constant 0 : index
    %c0_45 = arith.constant 0 : index
    %c0_46 = arith.constant 0 : index
    %c19 = arith.constant 19 : index
    %33 = vector.load %arg2[%c0_44, %c0_45, %c0_46, %c19] : memref<1x1x4x2688xbf16, #tpu.memory_space<vmem>>, vector<1x1x4x2304xbf16>
    %34 = vector.shape_cast %33 : vector<1x1x4x2304xbf16> to vector<4x2304xbf16>
    %cst_47 = arith.constant dense<0.000000e+00> : vector<14x2304xf32>
    %35 = tpu.matmul %32, %34, %cst_47 {dimension_numbers = #tpu.dot_dimension_numbers<[1], [0], [0], [1], [0, 0, 1, 1], [], []>} : vector<14x4xbf16>, vector<4x2304xbf16>, vector<14x2304xf32> -> vector<14x2304xf32>
    %36 = arith.addf %30, %35 : vector<14x2304xf32>
    %c0_48 = arith.constant 0 : index
    %c0_49 = arith.constant 0 : index
    %37 = vector.load %arg6[%c0_48, %c0_49] : memref<14x2304xf32, #tpu.memory_space<vmem>>, vector<14x2304xf32>
    tpu.vector_store %arg6[%c0_48, %c0_49], %36 {strides = array<i32>} : memref<14x2304xf32, #tpu.memory_space<vmem>>, vector<14x2304xf32>,
    %c0_50 = arith.constant 0 : index
    %c0_51 = arith.constant 0 : index
    %38 = vector.load %arg6[%c0_50, %c0_51] : memref<14x2304xf32, #tpu.memory_space<vmem>>, vector<14x2304xf32>
    %c5 = arith.constant 5 : index
    %c0_52 = arith.constant 0 : index
    %c0_53 = arith.constant 0 : index
    %39 = vector.load %arg3[%c5, %c0_52, %c0_53] : memref<9x14x4xbf16, #tpu.memory_space<vmem>>, vector<1x14x4xbf16>
    %40 = vector.shape_cast %39 : vector<1x14x4xbf16> to vector<14x4xbf16>
    %c0_54 = arith.constant 0 : index
    %c0_55 = arith.constant 0 : index
    %c0_56 = arith.constant 0 : index
    %c20 = arith.constant 20 : index
    %41 = vector.load %arg2[%c0_54, %c0_55, %c0_56, %c20] : memref<1x1x4x2688xbf16, #tpu.memory_space<vmem>>, vector<1x1x4x2304xbf16>
    %42 = vector.shape_cast %41 : vector<1x1x4x2304xbf16> to vector<4x2304xbf16>
    %cst_57 = arith.constant dense<0.000000e+00> : vector<14x2304xf32>
    %43 = tpu.matmul %40, %42, %cst_57 {dimension_numbers = #tpu.dot_dimension_numbers<[1], [0], [0], [1], [0, 0, 1, 1], [], []>} : vector<14x4xbf16>, vector<4x2304xbf16>, vector<14x2304xf32> -> vector<14x2304xf32>
    %44 = arith.addf %38, %43 : vector<14x2304xf32>
    %c0_58 = arith.constant 0 : index
    %c0_59 = arith.constant 0 : index
    %45 = vector.load %arg6[%c0_58, %c0_59] : memref<14x2304xf32, #tpu.memory_space<vmem>>, vector<14x2304xf32>
    tpu.vector_store %arg6[%c0_58, %c0_59], %44 {strides = array<i32>} : memref<14x2304xf32, #tpu.memory_space<vmem>>, vector<14x2304xf32>,
    %c0_60 = arith.constant 0 : index
    %c0_61 = arith.constant 0 : index
    %46 = vector.load %arg6[%c0_60, %c0_61] : memref<14x2304xf32, #tpu.memory_space<vmem>>, vector<14x2304xf32>
    %c6 = arith.constant 6 : index
    %c0_62 = arith.constant 0 : index
    %c0_63 = arith.constant 0 : index
    %47 = vector.load %arg3[%c6, %c0_62, %c0_63] : memref<9x14x4xbf16, #tpu.memory_space<vmem>>, vector<1x14x4xbf16>
    %48 = vector.shape_cast %47 : vector<1x14x4xbf16> to vector<14x4xbf16>
    %c0_64 = arith.constant 0 : index
    %c0_65 = arith.constant 0 : index
    %c0_66 = arith.constant 0 : index
    %c36 = arith.constant 36 : index
    %49 = vector.load %arg2[%c0_64, %c0_65, %c0_66, %c36] : memref<1x1x4x2688xbf16, #tpu.memory_space<vmem>>, vector<1x1x4x2304xbf16>
    %50 = vector.shape_cast %49 : vector<1x1x4x2304xbf16> to vector<4x2304xbf16>
    %cst_67 = arith.constant dense<0.000000e+00> : vector<14x2304xf32>
    %51 = tpu.matmul %48, %50, %cst_67 {dimension_numbers = #tpu.dot_dimension_numbers<[1], [0], [0], [1], [0, 0, 1, 1], [], []>} : vector<14x4xbf16>, vector<4x2304xbf16>, vector<14x2304xf32> -> vector<14x2304xf32>
    %52 = arith.addf %46, %51 : vector<14x2304xf32>
    %c0_68 = arith.constant 0 : index
    %c0_69 = arith.constant 0 : index
    %53 = vector.load %arg6[%c0_68, %c0_69] : memref<14x2304xf32, #tpu.memory_space<vmem>>, vector<14x2304xf32>
    tpu.vector_store %arg6[%c0_68, %c0_69], %52 {strides = array<i32>} : memref<14x2304xf32, #tpu.memory_space<vmem>>, vector<14x2304xf32>,
    %c0_70 = arith.constant 0 : index
    %c0_71 = arith.constant 0 : index
    %54 = vector.load %arg6[%c0_70, %c0_71] : memref<14x2304xf32, #tpu.memory_space<vmem>>, vector<14x2304xf32>
    %c7 = arith.constant 7 : index
    %c0_72 = arith.constant 0 : index
    %c0_73 = arith.constant 0 : index
    %55 = vector.load %arg3[%c7, %c0_72, %c0_73] : memref<9x14x4xbf16, #tpu.memory_space<vmem>>, vector<1x14x4xbf16>
    %56 = vector.shape_cast %55 : vector<1x14x4xbf16> to vector<14x4xbf16>
    %c0_74 = arith.constant 0 : index
    %c0_75 = arith.constant 0 : index
    %c0_76 = arith.constant 0 : index
    %c37 = arith.constant 37 : index
    %57 = vector.load %arg2[%c0_74, %c0_75, %c0_76, %c37] : memref<1x1x4x2688xbf16, #tpu.memory_space<vmem>>, vector<1x1x4x2304xbf16>
    %58 = vector.shape_cast %57 : vector<1x1x4x2304xbf16> to vector<4x2304xbf16>
    %cst_77 = arith.constant dense<0.000000e+00> : vector<14x2304xf32>
    %59 = tpu.matmul %56, %58, %cst_77 {dimension_numbers = #tpu.dot_dimension_numbers<[1], [0], [0], [1], [0, 0, 1, 1], [], []>} : vector<14x4xbf16>, vector<4x2304xbf16>, vector<14x2304xf32> -> vector<14x2304xf32>
    %60 = arith.addf %54, %59 : vector<14x2304xf32>
    %c0_78 = arith.constant 0 : index
    %c0_79 = arith.constant 0 : index
    %61 = vector.load %arg6[%c0_78, %c0_79] : memref<14x2304xf32, #tpu.memory_space<vmem>>, vector<14x2304xf32>
    tpu.vector_store %arg6[%c0_78, %c0_79], %60 {strides = array<i32>} : memref<14x2304xf32, #tpu.memory_space<vmem>>, vector<14x2304xf32>,
    %c0_80 = arith.constant 0 : index
    %c0_81 = arith.constant 0 : index
    %62 = vector.load %arg6[%c0_80, %c0_81] : memref<14x2304xf32, #tpu.memory_space<vmem>>, vector<14x2304xf32>
    %c8 = arith.constant 8 : index
    %c0_82 = arith.constant 0 : index
    %c0_83 = arith.constant 0 : index
    %63 = vector.load %arg3[%c8, %c0_82, %c0_83] : memref<9x14x4xbf16, #tpu.memory_space<vmem>>, vector<1x14x4xbf16>
    %64 = vector.shape_cast %63 : vector<1x14x4xbf16> to vector<14x4xbf16>
    %c0_84 = arith.constant 0 : index
    %c0_85 = arith.constant 0 : index
    %c0_86 = arith.constant 0 : index
    %c38 = arith.constant 38 : index
    %65 = vector.load %arg2[%c0_84, %c0_85, %c0_86, %c38] : memref<1x1x4x2688xbf16, #tpu.memory_space<vmem>>, vector<1x1x4x2304xbf16>
    %66 = vector.shape_cast %65 : vector<1x1x4x2304xbf16> to vector<4x2304xbf16>
    %cst_87 = arith.constant dense<0.000000e+00> : vector<14x2304xf32>
    %67 = tpu.matmul %64, %66, %cst_87 {dimension_numbers = #tpu.dot_dimension_numbers<[1], [0], [0], [1], [0, 0, 1, 1], [], []>} : vector<14x4xbf16>, vector<4x2304xbf16>, vector<14x2304xf32> -> vector<14x2304xf32>
    %68 = arith.addf %62, %67 : vector<14x2304xf32>
    %c0_88 = arith.constant 0 : index
    %c0_89 = arith.constant 0 : index
    %69 = vector.load %arg6[%c0_88, %c0_89] : memref<14x2304xf32, #tpu.memory_space<vmem>>, vector<14x2304xf32>
    tpu.vector_store %arg6[%c0_88, %c0_89], %68 {strides = array<i32>} : memref<14x2304xf32, #tpu.memory_space<vmem>>, vector<14x2304xf32>,
    %c0_90 = arith.constant 0 : index
    %c0_91 = arith.constant 0 : index
    %70 = vector.load %arg6[%c0_90, %c0_91] : memref<14x2304xf32, #tpu.memory_space<vmem>>, vector<14x2304xf32>
    %cst_92 = arith.constant 0.000000e+00 : f32
    %71 = vector.broadcast %cst_92 : f32 to vector<14x2304xf32>
    %72 = arith.maximumf %70, %71 : vector<14x2304xf32>
    %73 = arith.truncf %72 : vector<14x2304xf32> to vector<14x2304xbf16>
    %c0_93 = arith.constant 0 : index
    %c0_94 = arith.constant 0 : index
    %74 = vector.load %arg7[%c0_93, %c0_94] : memref<14x2304xbf16, #tpu.memory_space<vmem>>, vector<14x2304xbf16>
    tpu.vector_store %arg7[%c0_93, %c0_94], %73 {strides = array<i32>} : memref<14x2304xbf16, #tpu.memory_space<vmem>>, vector<14x2304xbf16>,
    %c0_95 = arith.constant 0 : index
    %c0_96 = arith.constant 0 : index
    %c0_97 = arith.constant 0 : index
    %75 = vector.load %arg4[%c0_95, %c0_96, %c0_97] : memref<3x8x14xbf16, #tpu.memory_space<vmem>>, vector<1x8x14xbf16>
    %76 = vector.shape_cast %75 : vector<1x8x14xbf16> to vector<8x14xbf16>
    %c0_98 = arith.constant 0 : index
    %c0_99 = arith.constant 0 : index
    %77 = vector.load %arg7[%c0_98, %c0_99] : memref<14x2304xbf16, #tpu.memory_space<vmem>>, vector<14x1536xbf16>
    %cst_100 = arith.constant dense<0.000000e+00> : vector<8x1536xf32>
    %78 = tpu.matmul %76, %77, %cst_100 {dimension_numbers = #tpu.dot_dimension_numbers<[1], [0], [0], [1], [0, 0, 1, 1], [], []>} : vector<8x14xbf16>, vector<14x1536xbf16>, vector<8x1536xf32> -> vector<8x1536xf32>
    %c1_101 = arith.constant 1 : index
    %c0_102 = arith.constant 0 : index
    %c0_103 = arith.constant 0 : index
    %79 = vector.load %arg4[%c1_101, %c0_102, %c0_103] : memref<3x8x14xbf16, #tpu.memory_space<vmem>>, vector<1x8x14xbf16>
    %80 = vector.shape_cast %79 : vector<1x8x14xbf16> to vector<8x14xbf16>
    %c0_104 = arith.constant 0 : index
    %c384 = arith.constant 384 : index
    %81 = vector.load %arg7[%c0_104, %c384] : memref<14x2304xbf16, #tpu.memory_space<vmem>>, vector<14x1536xbf16>
    %cst_105 = arith.constant dense<0.000000e+00> : vector<8x1536xf32>
    %82 = tpu.matmul %80, %81, %cst_105 {dimension_numbers = #tpu.dot_dimension_numbers<[1], [0], [0], [1], [0, 0, 1, 1], [], []>} : vector<8x14xbf16>, vector<14x1536xbf16>, vector<8x1536xf32> -> vector<8x1536xf32>
    %83 = arith.addf %78, %82 : vector<8x1536xf32>
    %c2_106 = arith.constant 2 : index
    %c0_107 = arith.constant 0 : index
    %c0_108 = arith.constant 0 : index
    %84 = vector.load %arg4[%c2_106, %c0_107, %c0_108] : memref<3x8x14xbf16, #tpu.memory_space<vmem>>, vector<1x8x14xbf16>
    %85 = vector.shape_cast %84 : vector<1x8x14xbf16> to vector<8x14xbf16>
    %c0_109 = arith.constant 0 : index
    %c768 = arith.constant 768 : index
    %86 = vector.load %arg7[%c0_109, %c768] : memref<14x2304xbf16, #tpu.memory_space<vmem>>, vector<14x1536xbf16>
    %cst_110 = arith.constant dense<0.000000e+00> : vector<8x1536xf32>
    %87 = tpu.matmul %85, %86, %cst_110 {dimension_numbers = #tpu.dot_dimension_numbers<[1], [0], [0], [1], [0, 0, 1, 1], [], []>} : vector<8x14xbf16>, vector<14x1536xbf16>, vector<8x1536xf32> -> vector<8x1536xf32>
    %88 = arith.addf %83, %87 : vector<8x1536xf32>
    %c0_111 = arith.constant 0 : index
    %c0_112 = arith.constant 0 : index
    %c0_113 = arith.constant 0 : index
    %89 = vector.load %arg5[%c0_111, %c0_112, %c0_113] : memref<1x8x1536xf32, #tpu.memory_space<vmem>>, vector<1x8x1536xf32>
    %90 = vector.shape_cast %89 : vector<1x8x1536xf32> to vector<8x1536xf32>
    %91 = vector.shape_cast %88 : vector<8x1536xf32> to vector<1x8x1536xf32>
    tpu.vector_store %arg5[%c0_111, %c0_112, %c0_113], %91 {strides = array<i32>} : memref<1x8x1536xf32, #tpu.memory_space<vmem>>, vector<1x8x1536xf32>,
    return
  }
  func.func @transform_0(%arg0: i32, %arg1: i32) -> (i32, i32, i32, i32) {
    %c0_i32 = arith.constant 0 : i32
    %c0_i32_0 = arith.constant 0 : i32
    %c0_i32_1 = arith.constant 0 : i32
    return %arg0, %arg1, %c0_i32, %c0_i32_0 : i32, i32, i32, i32
  }
  func.func @transform_1(%arg0: i32, %arg1: i32) -> (i32, i32, i32) {
    %c0_i32 = arith.constant 0 : i32
    %c0_i32_0 = arith.constant 0 : i32
    %c0_i32_1 = arith.constant 0 : i32
    %c0_i32_2 = arith.constant 0 : i32
    return %c0_i32, %c0_i32_0, %c0_i32_1 : i32, i32, i32
  }
  func.func @transform_2(%arg0: i32, %arg1: i32) -> (i32, i32, i32) {
    %c0_i32 = arith.constant 0 : i32
    %c0_i32_0 = arith.constant 0 : i32
    %c0_i32_1 = arith.constant 0 : i32
    %c0_i32_2 = arith.constant 0 : i32
    return %c0_i32, %c0_i32_0, %c0_i32_1 : i32, i32, i32
  }
  func.func @transform_3(%arg0: i32, %arg1: i32) -> (i32, i32, i32) {
    %c0_i32 = arith.constant 0 : i32
    %c0_i32_0 = arith.constant 0 : i32
    return %arg0, %c0_i32, %arg1 : i32, i32, i32
  }
}

</mosaic_0001>

<llo_original>
// kernel: conv2p1d_forward.1
$region0: #{conv2p1d_forward.1}
  #allocation0 [shape = 'u32[]', space=smem, size = 0x4, offset = 0x4, fixed_abs, tag = 'smem constant byte address 0x4 - core index']
  #allocation1 [shape = 'u32[144,128]{1,0:T(1,128)}', space=vmem, size = 0x12000, scoped, tag = 'internal scratch']
  #allocation2 [shape = 'f32[14,2304]{1,0:T(8,128)}', space=vmem, size = 0x24000, scoped, tag = 'scratch operand']
  #allocation3 [shape = 'bf16[14,2304]{1,0:T(8,128)(2,1)}', space=vmem, size = 0x12000, scoped, tag = 'scratch operand']
  %s0 = inlined_call_operand.vmem [shape: bf16[2,2,4,2688], index: 0, kind: input, shape index: {}]
  %s1 = inlined_call_operand.vmem [shape: bf16[9,14,4], index: 1, kind: input, shape index: {}]
  %s2 = inlined_call_operand.vmem [shape: bf16[3,8,14], index: 2, kind: input, shape index: {}]
  %s3 = inlined_call_operand.vmem [shape: f32[2,8,3072], index: 3, kind: output, shape index: {}]
  %s4 = sld [smem:[#allocation0]]
  $region45: #{conv2p1d_forward.1} parent=0
    _
  %s6 = ssub.s32 1, %s4
  %s7 = scalar_select 0, %s6, %s4
  loop: start=0, step=1, limit=6
  $region2: #{conv2p1d_forward.1} parent=0 // loop_pre_header
    _
  $region3: #{conv2p1d_forward.1} parent=0 // loop_header
    %s9 = sphi 0, %s13
    %p10 = scmp.ge.s32.totalorder %s9, 6
    %s16 = sphi 0, %s28
    %s17 = sphi 0, %s24
    %s18 = sphi 0, %s16
    %s19 = sphi 0, %s17
    %s20 = sphi 0, %s18
    %s21 = sphi 0, %s19
    %s33 = sphi 0, %s35
    %s36 = sphi 0, %s33
    %s37 = sphi 0, %s36
    %s53 = sphi 0, %s37
    %s57 = sphi 0, %s57
    %s59 = sphi 0, %s57
    %s60 = sphi 0, %s59
    %s74 = sphi 0, %s60
    %s78 = sphi 0, %s78
    %s80 = sphi 0, %s78
    %s81 = sphi 0, %s80
    %s95 = sphi 0, %s81
    %s103 = sphi 0, %s105
    %s106 = sphi 0, %s103
    %s107 = sphi 0, %s106
    %s123 = sphi 0, %s107
  $region4: #{conv2p1d_forward.1} parent=0 // loop_header_branch
    %12 = sbr.rel (%p10) target = $region8
  $region5: #{conv2p1d_forward.1} parent=0 // loop_body
    %s14 = ssub.s32 %s9, 1
    %s15 = ssub.s32 %s9, 2
    %s22 = sadd.s32 1, %s17
    %p23 = scmp.ge.s32.totalorder %s22, 2
    %s24 = scalar_select %p23, 0, %s22
    %s25 = sadd.s32 1, %s16
    %s26 = scalar_select %p23, %s25, %s16
    %p27 = scmp.ge.s32.totalorder %s26, 2
    %s28 = scalar_select %p27, 0, %s26
    %s29 = ssub.s32 %s16, %s28
    %s30 = ssub.s32 %s17, %s24
    %s31 = sor.u32 %s29, %s30
    %p32 = scmp.eq.s32.totalorder %s31, 0
    %s34 = sadd.s32 %s33, 1
    %s35 = scalar_select %p32, %s33, %s34
    %p38 = pneg %p32
    %p39 = scmp.eq.s32.totalorder %s9, 3
    %p40 = por %p38, %p39
    %p41 = scmp.ne.s32.totalorder %s33, %s36
    %p42 = scmp.eq.s32.totalorder %s9, 0
    %p43 = por %p41, %p42
    %p44 = scmp.ne.s32.totalorder %s33, %s36
    %p45 = scmp.eq.s32.totalorder %s14, 3
    %p46 = por %p44, %p45
    %p47 = scmp.ne.s32.totalorder %s36, %s37
    %p48 = scmp.eq.s32.totalorder %s14, 0
    %p49 = por %p47, %p48
    %p50 = scmp.ne.s32.totalorder %s36, %s37
    %p51 = scmp.eq.s32.totalorder %s15, 3
    %p52 = por %p50, %p51
    %p54 = scmp.ne.s32.totalorder %s37, %s53
    %p55 = scmp.eq.s32.totalorder %s15, 0
    %p56 = por %p54, %p55
    %s58 = sadd.s32 %s57, 1
    %p61 = scmp.eq.s32.totalorder %s9, 3
    %p62 = scmp.ne.s32.totalorder %s57, %s59
    %p63 = scmp.eq.s32.totalorder %s9, 0
    %p64 = por %p62, %p63
    %p65 = scmp.ne.s32.totalorder %s57, %s59
    %p66 = scmp.eq.s32.totalorder %s14, 3
    %p67 = por %p65, %p66
    %p68 = scmp.ne.s32.totalorder %s59, %s60
    %p69 = scmp.eq.s32.totalorder %s14, 0
    %p70 = por %p68, %p69
    %p71 = scmp.ne.s32.totalorder %s59, %s60
    %p72 = scmp.eq.s32.totalorder %s15, 3
    %p73 = por %p71, %p72
    %p75 = scmp.ne.s32.totalorder %s60, %s74
    %p76 = scmp.eq.s32.totalorder %s15, 0
    %p77 = por %p75, %p76
    %s79 = sadd.s32 %s78, 1
    %p82 = scmp.eq.s32.totalorder %s9, 3
    %p83 = scmp.ne.s32.totalorder %s78, %s80
    %p84 = scmp.eq.s32.totalorder %s9, 0
    %p85 = por %p83, %p84
    %p86 = scmp.ne.s32.totalorder %s78, %s80
    %p87 = scmp.eq.s32.totalorder %s14, 3
    %p88 = por %p86, %p87
    %p89 = scmp.ne.s32.totalorder %s80, %s81
    %p90 = scmp.eq.s32.totalorder %s14, 0
    %p91 = por %p89, %p90
    %p92 = scmp.ne.s32.totalorder %s80, %s81
    %p93 = scmp.eq.s32.totalorder %s15, 3
    %p94 = por %p92, %p93
    %p96 = scmp.ne.s32.totalorder %s81, %s95
    %p97 = scmp.eq.s32.totalorder %s15, 0
    %p98 = por %p96, %p97
    %s99 = ssub.s32 %s16, %s28
    %s100 = ssub.s32 %s17, %s24
    %s101 = sor.u32 %s99, %s100
    %p102 = scmp.eq.s32.totalorder %s101, 0
    %s104 = sadd.s32 %s103, 1
    %s105 = scalar_select %p102, %s103, %s104
    %p108 = pneg %p102
    %p109 = scmp.eq.s32.totalorder %s9, 3
    %p110 = por %p108, %p109
    %p111 = scmp.ne.s32.totalorder %s103, %s106
    %p112 = scmp.eq.s32.totalorder %s9, 0
    %p113 = por %p111, %p112
    %p114 = scmp.ne.s32.totalorder %s103, %s106
    %p115 = scmp.eq.s32.totalorder %s14, 3
    %p116 = por %p114, %p115
    %p117 = scmp.ne.s32.totalorder %s106, %s107
    %p118 = scmp.eq.s32.totalorder %s14, 0
    %p119 = por %p117, %p118
    %p120 = scmp.ne.s32.totalorder %s106, %s107
    %p121 = scmp.eq.s32.totalorder %s15, 3
    %p122 = por %p120, %p121
    %p124 = scmp.ne.s32.totalorder %s107, %s123
    %p125 = scmp.eq.s32.totalorder %s15, 0
    %p126 = por %p124, %p125
    %p127 = scmp.le.s32.totalorder 1, %s9
    %p128 = scmp.lt.s32.totalorder %s9, 5
    %p129 = pnand %p127, %p128
    %p130 = pneg %p129
    // Predicated region
    $region9: #{conv2p1d_forward.1} parent=5 // pred_check
      _
    $region10: #{conv2p1d_forward.1} parent=5 // pred_check_branch
      %132 = sbr.rel (%p129) target = $region12
    $region11: #{conv2p1d_forward.1} parent=5 // pred_region
      %s133 = ssub.s32 %s9, 1
      // Predicated region
      $region13: #{conv2p1d_forward.1} parent=11 // pred_check
        %p134 = pneg %p70
      $region14: #{conv2p1d_forward.1} parent=11 // pred_check_branch
        %136 = sbr.rel (%p134) target = $region16
      $region15: #{conv2p1d_forward.1} parent=11 // pred_region
        _
      $region16: #{conv2p1d_forward.1} parent=11 // pred_fallthru
        _
      // Predicated region
      $region17: #{conv2p1d_forward.1} parent=11 // pred_check
        %p137 = pneg %p91
      $region18: #{conv2p1d_forward.1} parent=11 // pred_check_branch
        %139 = sbr.rel (%p137) target = $region20
      $region19: #{conv2p1d_forward.1} parent=11 // pred_region
        _
      $region20: #{conv2p1d_forward.1} parent=11 // pred_fallthru
        _
    $region12: #{conv2p1d_forward.1} parent=5 // pred_fallthru
      _
    %p140 = scmp.lt.s32.totalorder %s9, 4
    // Predicated region
    $region21: #{conv2p1d_forward.1} parent=5 // pred_check
      %p141 = pneg %p140
    $region22: #{conv2p1d_forward.1} parent=5 // pred_check_branch
      %143 = sbr.rel (%p141) target = $region24
    $region23: #{conv2p1d_forward.1} parent=5 // pred_region
      // Predicated region
      $region25: #{conv2p1d_forward.1} parent=23 // pred_check
        %p144 = pneg %p43
      $region26: #{conv2p1d_forward.1} parent=23 // pred_check_branch
        %146 = sbr.rel (%p144) target = $region28
      $region27: #{conv2p1d_forward.1} parent=23 // pred_region
        %p147 = scmp.lt.s32.totalorder %s16, 1
        %s148 = scalar_select %p147, %s16, 1
        %p149 = scmp.lt.s32.totalorder %s17, 1
        %s150 = scalar_select %p149, %s17, 1
        %s151 = smul.addr %s150, 21
        %s152 = smul.addr %s148, 42
        %s153 = sadd.s32 %s151, %s152
        %s154 = smul.addr %s153, 2
        %s155 = scalar_lea.vmem %s0, %s154
      $region28: #{conv2p1d_forward.1} parent=23 // pred_fallthru
        _
    $region24: #{conv2p1d_forward.1} parent=5 // pred_fallthru
      _
    %p156 = scmp.le.s32.totalorder 1, %s9
    %p157 = scmp.lt.s32.totalorder %s9, 5
    %p158 = pnand %p156, %p157
    %p159 = pneg %p158
    // Predicated region
    $region29: #{conv2p1d_forward.1} parent=5 // pred_check
      _
    $region30: #{conv2p1d_forward.1} parent=5 // pred_check_branch
      %161 = sbr.rel (%p158) target = $region32
    $region31: #{conv2p1d_forward.1} parent=5 // pred_region
      %s162 = ssub.s32 %s9, 1
      %p163 = scmp.lt.s32.totalorder %s18, 1
      %s164 = scalar_select %p163, %s18, 1
      %p165 = scmp.lt.s32.totalorder %s19, 1
      %s166 = scalar_select %p165, %s19, 1
      %s167 = smul.addr %s166, 21
      %s168 = smul.addr %s164, 42
      %s169 = sadd.s32 %s167, %s168
      %s170 = smul.addr %s169, 2
      %s171 = scalar_lea.vmem %s0, %s170
      %p172 = pneg %p49
      %p173 = pneg %p46
      %p174 = pneg %p70
      %p175 = pneg %p67
      %p176 = pneg %p91
      %p177 = pneg %p88
      %p178 = pneg %p119
      %p179 = pneg %p116
      %s180 = smul.u32 12, %s19
      %p181 = scmp.lt.s32.totalorder %s18, 1
      %s182 = scalar_select %p181, %s18, 1
      %p183 = scmp.lt.s32.totalorder %s180, 23
      %s184 = scalar_select %p183, %s180, 23
      %s185 = smul.addr %s182, 24
      %s186 = sadd.s32 %s184, %s185
      %s187 = smul.addr %s186, 8
      %s188 = scalar_lea.vmem %s3, %s187
      %p189 = scmp.lt.s32.totalorder %s18, 1
      %s190 = scalar_select %p189, %s18, 1
      %p191 = scmp.lt.s32.totalorder %s19, 1
      %s192 = scalar_select %p191, %s19, 1
      %s193 = smul.addr %s192, 21
      %s194 = smul.addr %s190, 42
      %s195 = sadd.s32 %s193, %s194
      %s196 = smul.addr %s195, 2
      %s197 = scalar_lea.vmem %s0, %s196
      %s198 = smul.u32 12, %s19
      %p199 = scmp.lt.s32.totalorder %s18, 1
      %s200 = scalar_select %p199, %s18, 1
      %p201 = scmp.lt.s32.totalorder %s198, 23
      %s202 = scalar_select %p201, %s198, 23
      %s203 = smul.addr %s200, 24
      %s204 = sadd.s32 %s202, %s203
      %s205 = smul.addr %s204, 8
      %s206 = scalar_lea.vmem %s3, %s205
      %s207 = smul.u32 12, %s19
      %v209 = vld [vmem:[%s1] sm:$0xf]
      %v210 = vld [vmem:[%s1 + $0x4] sm:$0x7]
      %v211 = vld [vmem:[%s197] sm:$0xff]
      %v212 = vld [vmem:[%s197 + $0x8] sm:$0xff]
      %v213 = vld [vmem:[%s197 + $0x10] sm:$0xff]
      %v214 = vld [vmem:[%s197 + $0x18] sm:$0xff]
      %v215 = vld [vmem:[%s197 + $0x20] sm:$0xf]
      %v218 = vunpack.c.l.b16 %v209
      %v219 = vunpack.c.l.b16 %v210
      %v220 = vpack.c.b16 %v219, %v218
      %v226 = vcombine.high %v211, %v211
      %v228 = vunpack.c.l.s4 1983009808
      %v229 = vunpack.c.0.s8 %v228
      %v230 = vlaneseq
      %v231 = vshrl.u32 %v230, 7
      %v232 = vsub.s32 %v229, %v231
      %v233 = vrot.slane %v211, %v232
      %v235 = vunpack.c.l.s4 1983009808
      %v236 = vunpack.c.0.s8 %v235
      %v237 = vlaneseq
      %v238 = vshrl.u32 %v237, 7
      %v239 = vsub.s32 %v236, %v238
      %v240 = vrot.slane %v226, %v239
      %v241 = vcombine.high %v233, %v233
      %v242 = vcombine.high %v240, %v240
      %v243 = vcombine.high %v212, %v212
      %v245 = vunpack.c.l.s4 1983009808
      %v246 = vunpack.c.0.s8 %v245
      %v247 = vlaneseq
      %v248 = vshrl.u32 %v247, 7
      %v249 = vsub.s32 %v246, %v248
      %v250 = vrot.slane %v212, %v249
      %v252 = vunpack.c.l.s4 1983009808
      %v253 = vunpack.c.0.s8 %v252
      %v254 = vlaneseq
      %v255 = vshrl.u32 %v254, 7
      %v256 = vsub.s32 %v253, %v255
      %v257 = vrot.slane %v243, %v256
      %v258 = vcombine.high %v250, %v250
      %v259 = vcombine.high %v257, %v257
      %v260 = vcombine.high %v213, %v213
      %v262 = vunpack.c.l.s4 1983009808
      %v263 = vunpack.c.0.s8 %v262
      %v264 = vlaneseq
      %v265 = vshrl.u32 %v264, 7
      %v266 = vsub.s32 %v263, %v265
      %v267 = vrot.slane %v213, %v266
      %v269 = vunpack.c.l.s4 1983009808
      %v270 = vunpack.c.0.s8 %v269
      %v271 = vlaneseq
      %v272 = vshrl.u32 %v271, 7
      %v273 = vsub.s32 %v270, %v272
      %v274 = vrot.slane %v260, %v273
      %v275 = vcombine.high %v267, %v267
      %v276 = vcombine.high %v274, %v274
      %v277 = vcombine.high %v214, %v214
      %v279 = vunpack.c.l.s4 1983009808
      %v280 = vunpack.c.0.s8 %v279
      %v281 = vlaneseq
      %v282 = vshrl.u32 %v281, 7
      %v283 = vsub.s32 %v280, %v282
      %v284 = vrot.slane %v214, %v283
      %v286 = vunpack.c.l.s4 1983009808
      %v287 = vunpack.c.0.s8 %v286
      %v288 = vlaneseq
      %v289 = vshrl.u32 %v288, 7
      %v290 = vsub.s32 %v287, %v289
      %v291 = vrot.slane %v277, %v290
      %v292 = vcombine.high %v284, %v284
      %v293 = vcombine.high %v291, %v291
      %v295 = vunpack.c.l.s4 1983009808
      %v296 = vunpack.c.0.s8 %v295
      %v297 = vlaneseq
      %v298 = vshrl.u32 %v297, 7
      %v299 = vsub.s32 %v296, %v298
      %v300 = vrot.slane %v215, %v299
      %v301 = vcombine.high %v300, %v300
      %vm302 = vcmask 31744
      %v304 = vsel %vm302, %v220, 0
      %vm306 = vcmask 1041408
      %v308 = vsel %vm306, %v233, 0
      %v311 = vsel %vm306, %v241, 0
      %v314 = vsel %vm306, %v240, 0
      %v317 = vsel %vm306, %v242, 0
      %v320 = vsel %vm306, %v250, 0
      %v323 = vsel %vm306, %v258, 0
      %v326 = vsel %vm306, %v257, 0
      %v329 = vsel %vm306, %v259, 0
      %v332 = vsel %vm306, %v267, 0
      %v335 = vsel %vm306, %v275, 0
      %v338 = vsel %vm306, %v274, 0
      %v341 = vsel %vm306, %v276, 0
      %v344 = vsel %vm306, %v284, 0
      %v347 = vsel %vm306, %v292, 0
      %v350 = vsel %vm306, %v291, 0
      %v353 = vsel %vm306, %v293, 0
      %v356 = vsel %vm306, %v300, 0
      %v359 = vsel %vm306, %v301, 0
      %361 = vmatprep.subr.bf16.mxu0 0
      %362 = vmatpush1.bf16.msra.mxu0 0
      %363 = vmatprep.subr.bf16.mxu0 0
      %364 = vmatpush1.bf16.msra.mxu0 0
      %365 = vmatprep.subr.bf16.mxu0 0
      %366 = vmatpush1.bf16.msra.mxu0 0
      %367 = vmatprep.subr.bf16.mxu0 0
      %368 = vmatpush1.bf16.msra.mxu0 0
      %369 = vmatprep.subr.bf16.mxu0 0
      %370 = vmatpush1.bf16.msra.mxu0 0
      %371 = vmatprep.subr.bf16.mxu0 0
      %372 = vmatpush1.bf16.msra.mxu0 0
      %373 = vmatprep.subr.bf16.mxu0 0
      %374 = vmatpush1.bf16.msra.mxu0 0
      %375 = vmatprep.subr.bf16.mxu0 %v311
      %376 = vmatpush1.bf16.msra.mxu0 %v308
      %377 = vmatprep.subr.bf16.mxu0 0
      %378 = vmatpush2.bf16.msra.mxu0 0
      %379 = vmatprep.subr.bf16.mxu0 0
      %380 = vmatpush2.bf16.msra.mxu0 0
      %381 = vmatprep.subr.bf16.mxu0 0
      %382 = vmatpush2.bf16.msra.mxu0 0
      %383 = vmatprep.subr.bf16.mxu0 0
      %384 = vmatpush2.bf16.msra.mxu0 0
      %385 = vmatprep.subr.bf16.mxu0 0
      %386 = vmatpush2.bf16.msra.mxu0 0
      %387 = vmatprep.subr.bf16.mxu0 0
      %388 = vmatpush2.bf16.msra.mxu0 0
      %389 = vmatprep.subr.bf16.mxu0 0
      %390 = vmatpush2.bf16.msra.mxu0 0
      %391 = vmatprep.subr.bf16.mxu0 0
      %392 = vmatpush2.bf16.msra.mxu0 0
      %393 = vmatprep.mubr.bf16.mxu0 0
      %394 = vmatmul.mubr.bf16.gmra.mxu0 %v304
      %v395 = vpop.f32.mrf.mxu0
      %v396 = vadd.f32 0.0, %v395
      %v397 = vpop.f32.mrf.mxu0
      %v398 = vadd.f32 0.0, %v397
      %v399 = vpop.f32.mrf.mxu0
      %v400 = vadd.f32 0.0, %v399
      %v401 = vpop.f32.mrf.mxu0
      %v402 = vadd.f32 0.0, %v401
      %403 = vdwg.mxu0
      %404 = vmatprep.subr.bf16.mxu0 0
      %405 = vmatpush1.bf16.msra.mxu0 0
      %406 = vmatprep.subr.bf16.mxu0 0
      %407 = vmatpush1.bf16.msra.mxu0 0
      %408 = vmatprep.subr.bf16.mxu0 0
      %409 = vmatpush1.bf16.msra.mxu0 0
      %410 = vmatprep.subr.bf16.mxu0 0
      %411 = vmatpush1.bf16.msra.mxu0 0
      %412 = vmatprep.subr.bf16.mxu0 0
      %413 = vmatpush1.bf16.msra.mxu0 0
      %414 = vmatprep.subr.bf16.mxu0 0
      %415 = vmatpush1.bf16.msra.mxu0 0
      %416 = vmatprep.subr.bf16.mxu0 0
      %417 = vmatpush1.bf16.msra.mxu0 0
      %418 = vmatprep.subr.bf16.mxu0 %v317
      %419 = vmatpush1.bf16.msra.mxu0 %v314
      %420 = vmatprep.subr.bf16.mxu0 0
      %421 = vmatpush2.bf16.msra.mxu0 0
      %422 = vmatprep.subr.bf16.mxu0 0
      %423 = vmatpush2.bf16.msra.mxu0 0
      %424 = vmatprep.subr.bf16.mxu0 0
      %425 = vmatpush2.bf16.msra.mxu0 0
      %426 = vmatprep.subr.bf16.mxu0 0
      %427 = vmatpush2.bf16.msra.mxu0 0
      %428 = vmatprep.subr.bf16.mxu0 0
      %429 = vmatpush2.bf16.msra.mxu0 0
      %430 = vmatprep.subr.bf16.mxu0 0
      %431 = vmatpush2.bf16.msra.mxu0 0
      %432 = vmatprep.subr.bf16.mxu0 0
      %433 = vmatpush2.bf16.msra.mxu0 0
      %434 = vmatprep.subr.bf16.mxu0 0
      %435 = vmatpush2.bf16.msra.mxu0 0
      %436 = vmatprep.mubr.bf16.mxu0 0
      %437 = vmatmul.mubr.bf16.gmra.mxu0 %v304
      %v438 = vpop.f32.mrf.mxu0
      %v439 = vadd.f32 0.0, %v438
      %v440 = vpop.f32.mrf.mxu0
      %v441 = vadd.f32 0.0, %v440
      %v442 = vpop.f32.mrf.mxu0
      %v443 = vadd.f32 0.0, %v442
      %v444 = vpop.f32.mrf.mxu0
      %v445 = vadd.f32 0.0, %v444
      %446 = vdwg.mxu0
      %447 = vmatprep.subr.bf16.mxu0 0
      %448 = vmatpush1.bf16.msra.mxu0 0
      %449 = vmatprep.subr.bf16.mxu0 0
      %450 = vmatpush1.bf16.msra.mxu0 0
      %451 = vmatprep.subr.bf16.mxu0 0
      %452 = vmatpush1.bf16.msra.mxu0 0
      %453 = vmatprep.subr.bf16.mxu0 0
      %454 = vmatpush1.bf16.msra.mxu0 0
      %455 = vmatprep.subr.bf16.mxu0 0
      %456 = vmatpush1.bf16.msra.mxu0 0
      %457 = vmatprep.subr.bf16.mxu0 0
      %458 = vmatpush1.bf16.msra.mxu0 0
      %459 = vmatprep.subr.bf16.mxu0 0
      %460 = vmatpush1.bf16.msra.mxu0 0
      %461 = vmatprep.subr.bf16.mxu0 %v323
      %462 = vmatpush1.bf16.msra.mxu0 %v320
      %463 = vmatprep.subr.bf16.mxu0 0
      %464 = vmatpush2.bf16.msra.mxu0 0
      %465 = vmatprep.subr.bf16.mxu0 0
      %466 = vmatpush2.bf16.msra.mxu0 0
      %467 = vmatprep.subr.bf16.mxu0 0
      %468 = vmatpush2.bf16.msra.mxu0 0
      %469 = vmatprep.subr.bf16.mxu0 0
      %470 = vmatpush2.bf16.msra.mxu0 0
      %471 = vmatprep.subr.bf16.mxu0 0
      %472 = vmatpush2.bf16.msra.mxu0 0
      %473 = vmatprep.subr.bf16.mxu0 0
      %474 = vmatpush2.bf16.msra.mxu0 0
      %475 = vmatprep.subr.bf16.mxu0 0
      %476 = vmatpush2.bf16.msra.mxu0 0
      %477 = vmatprep.subr.bf16.mxu0 0
      %478 = vmatpush2.bf16.msra.mxu0 0
      %479 = vmatprep.mubr.bf16.mxu0 0
      %480 = vmatmul.mubr.bf16.gmra.mxu0 %v304
      %v481 = vpop.f32.mrf.mxu0
      %v482 = vadd.f32 0.0, %v481
      %v483 = vpop.f32.mrf.mxu0
      %v484 = vadd.f32 0.0, %v483
      %v485 = vpop.f32.mrf.mxu0
      %v486 = vadd.f32 0.0, %v485
      %v487 = vpop.f32.mrf.mxu0
      %v488 = vadd.f32 0.0, %v487
      %489 = vdwg.mxu0
      %490 = vmatprep.subr.bf16.mxu0 0
      %491 = vmatpush1.bf16.msra.mxu0 0
      %492 = vmatprep.subr.bf16.mxu0 0
      %493 = vmatpush1.bf16.msra.mxu0 0
      %494 = vmatprep.subr.bf16.mxu0 0
      %495 = vmatpush1.bf16.msra.mxu0 0
      %496 = vmatprep.subr.bf16.mxu0 0
      %497 = vmatpush1.bf16.msra.mxu0 0
      %498 = vmatprep.subr.bf16.mxu0 0
      %499 = vmatpush1.bf16.msra.mxu0 0
      %500 = vmatprep.subr.bf16.mxu0 0
      %501 = vmatpush1.bf16.msra.mxu0 0
      %502 = vmatprep.subr.bf16.mxu0 0
      %503 = vmatpush1.bf16.msra.mxu0 0
      %504 = vmatprep.subr.bf16.mxu0 %v329
      %505 = vmatpush1.bf16.msra.mxu0 %v326
      %506 = vmatprep.subr.bf16.mxu0 0
      %507 = vmatpush2.bf16.msra.mxu0 0
      %508 = vmatprep.subr.bf16.mxu0 0
      %509 = vmatpush2.bf16.msra.mxu0 0
      %510 = vmatprep.subr.bf16.mxu0 0
      %511 = vmatpush2.bf16.msra.mxu0 0
      %512 = vmatprep.subr.bf16.mxu0 0
      %513 = vmatpush2.bf16.msra.mxu0 0
      %514 = vmatprep.subr.bf16.mxu0 0
      %515 = vmatpush2.bf16.msra.mxu0 0
      %516 = vmatprep.subr.bf16.mxu0 0
      %517 = vmatpush2.bf16.msra.mxu0 0
      %518 = vmatprep.subr.bf16.mxu0 0
      %519 = vmatpush2.bf16.msra.mxu0 0
      %520 = vmatprep.subr.bf16.mxu0 0
      %521 = vmatpush2.bf16.msra.mxu0 0
      %522 = vmatprep.mubr.bf16.mxu0 0
      %523 = vmatmul.mubr.bf16.gmra.mxu0 %v304
      %v524 = vpop.f32.mrf.mxu0
      %v525 = vadd.f32 0.0, %v524
      %v526 = vpop.f32.mrf.mxu0
      %v527 = vadd.f32 0.0, %v526
      %v528 = vpop.f32.mrf.mxu0
      %v529 = vadd.f32 0.0, %v528
      %v530 = vpop.f32.mrf.mxu0
      %v531 = vadd.f32 0.0, %v530
      %532 = vdwg.mxu0
      %533 = vmatprep.subr.bf16.mxu0 0
      %534 = vmatpush1.bf16.msra.mxu0 0
      %535 = vmatprep.subr.bf16.mxu0 0
      %536 = vmatpush1.bf16.msra.mxu0 0
      %537 = vmatprep.subr.bf16.mxu0 0
      %538 = vmatpush1.bf16.msra.mxu0 0
      %539 = vmatprep.subr.bf16.mxu0 0
      %540 = vmatpush1.bf16.msra.mxu0 0
      %541 = vmatprep.subr.bf16.mxu0 0
      %542 = vmatpush1.bf16.msra.mxu0 0
      %543 = vmatprep.subr.bf16.mxu0 0
      %544 = vmatpush1.bf16.msra.mxu0 0
      %545 = vmatprep.subr.bf16.mxu0 0
      %546 = vmatpush1.bf16.msra.mxu0 0
      %547 = vmatprep.subr.bf16.mxu0 %v335
      %548 = vmatpush1.bf16.msra.mxu0 %v332
      %549 = vmatprep.subr.bf16.mxu0 0
      %550 = vmatpush2.bf16.msra.mxu0 0
      %551 = vmatprep.subr.bf16.mxu0 0
      %552 = vmatpush2.bf16.msra.mxu0 0
      %553 = vmatprep.subr.bf16.mxu0 0
      %554 = vmatpush2.bf16.msra.mxu0 0
      %555 = vmatprep.subr.bf16.mxu0 0
      %556 = vmatpush2.bf16.msra.mxu0 0
      %557 = vmatprep.subr.bf16.mxu0 0
      %558 = vmatpush2.bf16.msra.mxu0 0
      %559 = vmatprep.subr.bf16.mxu0 0
      %560 = vmatpush2.bf16.msra.mxu0 0
      %561 = vmatprep.subr.bf16.mxu0 0
      %562 = vmatpush2.bf16.msra.mxu0 0
      %563 = vmatprep.subr.bf16.mxu0 0
      %564 = vmatpush2.bf16.msra.mxu0 0
      %565 = vmatprep.mubr.bf16.mxu0 0
      %566 = vmatmul.mubr.bf16.gmra.mxu0 %v304
      %v567 = vpop.f32.mrf.mxu0
      %v568 = vadd.f32 0.0, %v567
      %v569 = vpop.f32.mrf.mxu0
      %v570 = vadd.f32 0.0, %v569
      %v571 = vpop.f32.mrf.mxu0
      %v572 = vadd.f32 0.0, %v571
      %v573 = vpop.f32.mrf.mxu0
      %v574 = vadd.f32 0.0, %v573
      %575 = vdwg.mxu0
      %576 = vmatprep.subr.bf16.mxu0 0
      %577 = vmatpush1.bf16.msra.mxu0 0
      %578 = vmatprep.subr.bf16.mxu0 0
      %579 = vmatpush1.bf16.msra.mxu0 0
      %580 = vmatprep.subr.bf16.mxu0 0
      %581 = vmatpush1.bf16.msra.mxu0 0
      %582 = vmatprep.subr.bf16.mxu0 0
      %583 = vmatpush1.bf16.msra.mxu0 0
      %584 = vmatprep.subr.bf16.mxu0 0
      %585 = vmatpush1.bf16.msra.mxu0 0
      %586 = vmatprep.subr.bf16.mxu0 0
      %587 = vmatpush1.bf16.msra.mxu0 0
      %588 = vmatprep.subr.bf16.mxu0 0
      %589 = vmatpush1.bf16.msra.mxu0 0
      %590 = vmatprep.subr.bf16.mxu0 %v341
      %591 = vmatpush1.bf16.msra.mxu0 %v338
      %592 = vmatprep.subr.bf16.mxu0 0
      %593 = vmatpush2.bf16.msra.mxu0 0
      %594 = vmatprep.subr.bf16.mxu0 0
      %595 = vmatpush2.bf16.msra.mxu0 0
      %596 = vmatprep.subr.bf16.mxu0 0
      %597 = vmatpush2.bf16.msra.mxu0 0
      %598 = vmatprep.subr.bf16.mxu0 0
      %599 = vmatpush2.bf16.msra.mxu0 0
      %600 = vmatprep.subr.bf16.mxu0 0
      %601 = vmatpush2.bf16.msra.mxu0 0
      %602 = vmatprep.subr.bf16.mxu0 0
      %603 = vmatpush2.bf16.msra.mxu0 0
      %604 = vmatprep.subr.bf16.mxu0 0
      %605 = vmatpush2.bf16.msra.mxu0 0
      %606 = vmatprep.subr.bf16.mxu0 0
      %607 = vmatpush2.bf16.msra.mxu0 0
      %608 = vmatprep.mubr.bf16.mxu0 0
      %609 = vmatmul.mubr.bf16.gmra.mxu0 %v304
      %v610 = vpop.f32.mrf.mxu0
      %v611 = vadd.f32 0.0, %v610
      %v612 = vpop.f32.mrf.mxu0
      %v613 = vadd.f32 0.0, %v612
      %v614 = vpop.f32.mrf.mxu0
      %v615 = vadd.f32 0.0, %v614
      %v616 = vpop.f32.mrf.mxu0
      %v617 = vadd.f32 0.0, %v616
      %618 = vdwg.mxu0
      %619 = vmatprep.subr.bf16.mxu0 0
      %620 = vmatpush1.bf16.msra.mxu0 0
      %621 = vmatprep.subr.bf16.mxu0 0
      %622 = vmatpush1.bf16.msra.mxu0 0
      %623 = vmatprep.subr.bf16.mxu0 0
      %624 = vmatpush1.bf16.msra.mxu0 0
      %625 = vmatprep.subr.bf16.mxu0 0
      %626 = vmatpush1.bf16.msra.mxu0 0
      %627 = vmatprep.subr.bf16.mxu0 0
      %628 = vmatpush1.bf16.msra.mxu0 0
      %629 = vmatprep.subr.bf16.mxu0 0
      %630 = vmatpush1.bf16.msra.mxu0 0
      %631 = vmatprep.subr.bf16.mxu0 0
      %632 = vmatpush1.bf16.msra.mxu0 0
      %633 = vmatprep.subr.bf16.mxu0 %v347
      %634 = vmatpush1.bf16.msra.mxu0 %v344
      %635 = vmatprep.subr.bf16.mxu0 0
      %636 = vmatpush2.bf16.msra.mxu0 0
      %637 = vmatprep.subr.bf16.mxu0 0
      %638 = vmatpush2.bf16.msra.mxu0 0
      %639 = vmatprep.subr.bf16.mxu0 0
      %640 = vmatpush2.bf16.msra.mxu0 0
      %641 = vmatprep.subr.bf16.mxu0 0
      %642 = vmatpush2.bf16.msra.mxu0 0
      %643 = vmatprep.subr.bf16.mxu0 0
      %644 = vmatpush2.bf16.msra.mxu0 0
      %645 = vmatprep.subr.bf16.mxu0 0
      %646 = vmatpush2.bf16.msra.mxu0 0
      %647 = vmatprep.subr.bf16.mxu0 0
      %648 = vmatpush2.bf16.msra.mxu0 0
      %649 = vmatprep.subr.bf16.mxu0 0
      %650 = vmatpush2.bf16.msra.mxu0 0
      %651 = vmatprep.mubr.bf16.mxu0 0
      %652 = vmatmul.mubr.bf16.gmra.mxu0 %v304
      %v653 = vpop.f32.mrf.mxu0
      %v654 = vadd.f32 0.0, %v653
      %v655 = vpop.f32.mrf.mxu0
      %v656 = vadd.f32 0.0, %v655
      %v657 = vpop.f32.mrf.mxu0
      %v658 = vadd.f32 0.0, %v657
      %v659 = vpop.f32.mrf.mxu0
      %v660 = vadd.f32 0.0, %v659
      %661 = vdwg.mxu0
      %662 = vmatprep.subr.bf16.mxu0 0
      %663 = vmatpush1.bf16.msra.mxu0 0
      %664 = vmatprep.subr.bf16.mxu0 0
      %665 = vmatpush1.bf16.msra.mxu0 0
      %666 = vmatprep.subr.bf16.mxu0 0
      %667 = vmatpush1.bf16.msra.mxu0 0
      %668 = vmatprep.subr.bf16.mxu0 0
      %669 = vmatpush1.bf16.msra.mxu0 0
      %670 = vmatprep.subr.bf16.mxu0 0
      %671 = vmatpush1.bf16.msra.mxu0 0
      %672 = vmatprep.subr.bf16.mxu0 0
      %673 = vmatpush1.bf16.msra.mxu0 0
      %674 = vmatprep.subr.bf16.mxu0 0
      %675 = vmatpush1.bf16.msra.mxu0 0
      %676 = vmatprep.subr.bf16.mxu0 %v353
      %677 = vmatpush1.bf16.msra.mxu0 %v350
      %678 = vmatprep.subr.bf16.mxu0 0
      %679 = vmatpush2.bf16.msra.mxu0 0
      %680 = vmatprep.subr.bf16.mxu0 0
      %681 = vmatpush2.bf16.msra.mxu0 0
      %682 = vmatprep.subr.bf16.mxu0 0
      %683 = vmatpush2.bf16.msra.mxu0 0
      %684 = vmatprep.subr.bf16.mxu0 0
      %685 = vmatpush2.bf16.msra.mxu0 0
      %686 = vmatprep.subr.bf16.mxu0 0
      %687 = vmatpush2.bf16.msra.mxu0 0
      %688 = vmatprep.subr.bf16.mxu0 0
      %689 = vmatpush2.bf16.msra.mxu0 0
      %690 = vmatprep.subr.bf16.mxu0 0
      %691 = vmatpush2.bf16.msra.mxu0 0
      %692 = vmatprep.subr.bf16.mxu0 0
      %693 = vmatpush2.bf16.msra.mxu0 0
      %694 = vmatprep.mubr.bf16.mxu0 0
      %695 = vmatmul.mubr.bf16.gmra.mxu0 %v304
      %v696 = vpop.f32.mrf.mxu0
      %v697 = vadd.f32 0.0, %v696
      %v698 = vpop.f32.mrf.mxu0
      %v699 = vadd.f32 0.0, %v698
      %v700 = vpop.f32.mrf.mxu0
      %v701 = vadd.f32 0.0, %v700
      %v702 = vpop.f32.mrf.mxu0
      %v703 = vadd.f32 0.0, %v702
      %704 = vdwg.mxu0
      %705 = vmatprep.subr.bf16.mxu0 0
      %706 = vmatpush1.bf16.msra.mxu0 0
      %707 = vmatprep.subr.bf16.mxu0 0
      %708 = vmatpush1.bf16.msra.mxu0 0
      %709 = vmatprep.subr.bf16.mxu0 0
      %710 = vmatpush1.bf16.msra.mxu0 0
      %711 = vmatprep.subr.bf16.mxu0 0
      %712 = vmatpush1.bf16.msra.mxu0 0
      %713 = vmatprep.subr.bf16.mxu0 0
      %714 = vmatpush1.bf16.msra.mxu0 0
      %715 = vmatprep.subr.bf16.mxu0 0
      %716 = vmatpush1.bf16.msra.mxu0 0
      %717 = vmatprep.subr.bf16.mxu0 0
      %718 = vmatpush1.bf16.msra.mxu0 0
      %719 = vmatprep.subr.bf16.mxu0 %v359
      %720 = vmatpush1.bf16.msra.mxu0 %v356
      %721 = vmatprep.subr.bf16.mxu0 0
      %722 = vmatpush2.bf16.msra.mxu0 0
      %723 = vmatprep.subr.bf16.mxu0 0
      %724 = vmatpush2.bf16.msra.mxu0 0
      %725 = vmatprep.subr.bf16.mxu0 0
      %726 = vmatpush2.bf16.msra.mxu0 0
      %727 = vmatprep.subr.bf16.mxu0 0
      %728 = vmatpush2.bf16.msra.mxu0 0
      %729 = vmatprep.subr.bf16.mxu0 0
      %730 = vmatpush2.bf16.msra.mxu0 0
      %731 = vmatprep.subr.bf16.mxu0 0
      %732 = vmatpush2.bf16.msra.mxu0 0
      %733 = vmatprep.subr.bf16.mxu0 0
      %734 = vmatpush2.bf16.msra.mxu0 0
      %735 = vmatprep.subr.bf16.mxu0 0
      %736 = vmatpush2.bf16.msra.mxu0 0
      %737 = vmatprep.mubr.bf16.mxu0 0
      %738 = vmatmul.mubr.bf16.gmra.mxu0 %v304
      %v739 = vpop.f32.mrf.mxu0
      %v740 = vadd.f32 0.0, %v739
      %v741 = vpop.f32.mrf.mxu0
      %v742 = vadd.f32 0.0, %v741
      %v743 = vpop.f32.mrf.mxu0
      %v744 = vadd.f32 0.0, %v743
      %v745 = vpop.f32.mrf.mxu0
      %v746 = vadd.f32 0.0, %v745
      %747 = vdwg.mxu0
      %748 = vst [vmem:[#allocation2] sm:$0xff] %v396
      %749 = vst [vmem:[#allocation2 + $0x8] sm:$0xff] %v398
      %750 = vst [vmem:[#allocation2 + $0x10] sm:$0xff] %v439
      %751 = vst [vmem:[#allocation2 + $0x18] sm:$0xff] %v441
      %752 = vst [vmem:[#allocation2 + $0x20] sm:$0xff] %v482
      %753 = vst [vmem:[#allocation2 + $0x28] sm:$0xff] %v484
      %754 = vst [vmem:[#allocation2 + $0x30] sm:$0xff] %v525
      %755 = vst [vmem:[#allocation2 + $0x38] sm:$0xff] %v527
      %756 = vst [vmem:[#allocation2 + $0x40] sm:$0xff] %v568
      %757 = vst [vmem:[#allocation2 + $0x48] sm:$0xff] %v570
      %758 = vst [vmem:[#allocation2 + $0x50] sm:$0xff] %v611
      %759 = vst [vmem:[#allocation2 + $0x58] sm:$0xff] %v613
      %760 = vst [vmem:[#allocation2 + $0x60] sm:$0xff] %v654
      %761 = vst [vmem:[#allocation2 + $0x68] sm:$0xff] %v656
      %762 = vst [vmem:[#allocation2 + $0x70] sm:$0xff] %v697
      %763 = vst [vmem:[#allocation2 + $0x78] sm:$0xff] %v699
      %764 = vst [vmem:[#allocation2 + $0x80] sm:$0xff] %v740
      %765 = vst [vmem:[#allocation2 + $0x88] sm:$0xff] %v742
      %766 = vst [vmem:[#allocation2 + $0x90] sm:$0x3f] %v400
      %767 = vst [vmem:[#allocation2 + $0x98] sm:$0x3f] %v402
      %768 = vst [vmem:[#allocation2 + $0xa0] sm:$0x3f] %v443
      %769 = vst [vmem:[#allocation2 + $0xa8] sm:$0x3f] %v445
      %770 = vst [vmem:[#allocation2 + $0xb0] sm:$0x3f] %v486
      %771 = vst [vmem:[#allocation2 + $0xb8] sm:$0x3f] %v488
      %772 = vst [vmem:[#allocation2 + $0xc0] sm:$0x3f] %v529
      %773 = vst [vmem:[#allocation2 + $0xc8] sm:$0x3f] %v531
      %774 = vst [vmem:[#allocation2 + $0xd0] sm:$0x3f] %v572
      %775 = vst [vmem:[#allocation2 + $0xd8] sm:$0x3f] %v574
      %776 = vst [vmem:[#allocation2 + $0xe0] sm:$0x3f] %v615
      %777 = vst [vmem:[#allocation2 + $0xe8] sm:$0x3f] %v617
      %778 = vst [vmem:[#allocation2 + $0xf0] sm:$0x3f] %v658
      %779 = vst [vmem:[#allocation2 + $0xf8] sm:$0x3f] %v660
      %780 = vst [vmem:[#allocation2 + $0x100] sm:$0x3f] %v701
      %781 = vst [vmem:[#allocation2 + $0x108] sm:$0x3f] %v703
      %782 = vst [vmem:[#allocation2 + $0x110] sm:$0x3f] %v744
      %783 = vst [vmem:[#allocation2 + $0x118] sm:$0x3f] %v746
      %v784 = vld [vmem:[#allocation2] sm:$0xff]
      %v785 = vld [vmem:[#allocation2 + $0x8] sm:$0xff]
      %v786 = vld [vmem:[#allocation2 + $0x10] sm:$0xff]
      %v787 = vld [vmem:[#allocation2 + $0x18] sm:$0xff]
      %v788 = vld [vmem:[#allocation2 + $0x20] sm:$0xff]
      %v789 = vld [vmem:[#allocation2 + $0x28] sm:$0xff]
      %v790 = vld [vmem:[#allocation2 + $0x30] sm:$0xff]
      %v791 = vld [vmem:[#allocation2 + $0x38] sm:$0xff]
      %v792 = vld [vmem:[#allocation2 + $0x40] sm:$0xff]
      %v793 = vld [vmem:[#allocation2 + $0x48] sm:$0xff]
      %v794 = vld [vmem:[#allocation2 + $0x50] sm:$0xff]
      %v795 = vld [vmem:[#allocation2 + $0x58] sm:$0xff]
      %v796 = vld [vmem:[#allocation2 + $0x60] sm:$0xff]
      %v797 = vld [vmem:[#allocation2 + $0x68] sm:$0xff]
      %v798 = vld [vmem:[#allocation2 + $0x70] sm:$0xff]
      %v799 = vld [vmem:[#allocation2 + $0x78] sm:$0xff]
      %v800 = vld [vmem:[#allocation2 + $0x80] sm:$0xff]
      %v801 = vld [vmem:[#allocation2 + $0x88] sm:$0xff]
      %v802 = vld [vmem:[#allocation2 + $0x90] sm:$0x3f]
      %v803 = vld [vmem:[#allocation2 + $0x98] sm:$0x3f]
      %v804 = vld [vmem:[#allocation2 + $0xa0] sm:$0x3f]
      %v805 = vld [vmem:[#allocation2 + $0xa8] sm:$0x3f]
      %v806 = vld [vmem:[#allocation2 + $0xb0] sm:$0x3f]
      %v807 = vld [vmem:[#allocation2 + $0xb8] sm:$0x3f]
      %v808 = vld [vmem:[#allocation2 + $0xc0] sm:$0x3f]
      %v809 = vld [vmem:[#allocation2 + $0xc8] sm:$0x3f]
      %v810 = vld [vmem:[#allocation2 + $0xd0] sm:$0x3f]
      %v811 = vld [vmem:[#allocation2 + $0xd8] sm:$0x3f]
      %v812 = vld [vmem:[#allocation2 + $0xe0] sm:$0x3f]
      %v813 = vld [vmem:[#allocation2 + $0xe8] sm:$0x3f]
      %v814 = vld [vmem:[#allocation2 + $0xf0] sm:$0x3f]
      %v815 = vld [vmem:[#allocation2 + $0xf8] sm:$0x3f]
      %v816 = vld [vmem:[#allocation2 + $0x100] sm:$0x3f]
      %v817 = vld [vmem:[#allocation2 + $0x108] sm:$0x3f]
      %v818 = vld [vmem:[#allocation2 + $0x110] sm:$0x3f]
      %v819 = vld [vmem:[#allocation2 + $0x118] sm:$0x3f]
      %s820 = scalar_lea.vmem %s1, 8
      %v821 = vld [vmem:[%s820] sm:$0xf]
      %v822 = vld [vmem:[%s820 + $0x4] sm:$0x7]
      %v823 = vld [vmem:[%s197] sm:$0xff]
      %v824 = vld [vmem:[%s197 + $0x8] sm:$0xff]
      %v825 = vld [vmem:[%s197 + $0x10] sm:$0xff]
      %v826 = vld [vmem:[%s197 + $0x18] sm:$0xff]
      %v827 = vld [vmem:[%s197 + $0x20] sm:$0x3f]
      %v830 = vunpack.c.l.b16 %v821
      %v831 = vunpack.c.l.b16 %v822
      %v832 = vpack.c.b16 %v831, %v830
      %v838 = vcombine.high %v823, %v823
      %v840 = vunpack.c.l.s4 1983009808
      %v841 = vunpack.c.0.s8 %v840
      %v842 = vlaneseq
      %v843 = vshrl.u32 %v842, 7
      %v844 = vsub.s32 %v841, %v843
      %v845 = vrot.slane %v823, %v844
      %v847 = vunpack.c.l.s4 1983009808
      %v848 = vunpack.c.0.s8 %v847
      %v849 = vlaneseq
      %v850 = vshrl.u32 %v849, 7
      %v851 = vsub.s32 %v848, %v850
      %v852 = vrot.slane %v838, %v851
      %v853 = vcombine.high %v845, %v845
      %v854 = vcombine.high %v852, %v852
      %v855 = vcombine.high %v824, %v824
      %v857 = vunpack.c.l.s4 1983009808
      %v858 = vunpack.c.0.s8 %v857
      %v859 = vlaneseq
      %v860 = vshrl.u32 %v859, 7
      %v861 = vsub.s32 %v858, %v860
      %v862 = vrot.slane %v824, %v861
      %v864 = vunpack.c.l.s4 1983009808
      %v865 = vunpack.c.0.s8 %v864
      %v866 = vlaneseq
      %v867 = vshrl.u32 %v866, 7
      %v868 = vsub.s32 %v865, %v867
      %v869 = vrot.slane %v855, %v868
      %v870 = vcombine.high %v862, %v862
      %v871 = vcombine.high %v869, %v869
      %v872 = vcombine.high %v825, %v825
      %v874 = vunpack.c.l.s4 1983009808
      %v875 = vunpack.c.0.s8 %v874
      %v876 = vlaneseq
      %v877 = vshrl.u32 %v876, 7
      %v878 = vsub.s32 %v875, %v877
      %v879 = vrot.slane %v825, %v878
      %v881 = vunpack.c.l.s4 1983009808
      %v882 = vunpack.c.0.s8 %v881
      %v883 = vlaneseq
      %v884 = vshrl.u32 %v883, 7
      %v885 = vsub.s32 %v882, %v884
      %v886 = vrot.slane %v872, %v885
      %v887 = vcombine.high %v879, %v879
      %v888 = vcombine.high %v886, %v886
      %v889 = vcombine.high %v826, %v826
      %v891 = vunpack.c.l.s4 1983009808
      %v892 = vunpack.c.0.s8 %v891
      %v893 = vlaneseq
      %v894 = vshrl.u32 %v893, 7
      %v895 = vsub.s32 %v892, %v894
      %v896 = vrot.slane %v826, %v895
      %v898 = vunpack.c.l.s4 1983009808
      %v899 = vunpack.c.0.s8 %v898
      %v900 = vlaneseq
      %v901 = vshrl.u32 %v900, 7
      %v902 = vsub.s32 %v899, %v901
      %v903 = vrot.slane %v889, %v902
      %v904 = vcombine.high %v896, %v896
      %v905 = vcombine.high %v903, %v903
      %v906 = vcombine.high %v827, %v827
      %v908 = vunpack.c.l.s4 1983009808
      %v909 = vunpack.c.0.s8 %v908
      %v910 = vlaneseq
      %v911 = vshrl.u32 %v910, 7
      %v912 = vsub.s32 %v909, %v911
      %v913 = vrot.slane %v827, %v912
      %v915 = vunpack.c.l.s4 1983009808
      %v916 = vunpack.c.0.s8 %v915
      %v917 = vlaneseq
      %v918 = vshrl.u32 %v917, 7
      %v919 = vsub.s32 %v916, %v918
      %v920 = vrot.slane %v906, %v919
      %v921 = vcombine.high %v913, %v913
      %922 = vrot.lane.b32.xlu0 %v845, 127
      %v923 = vpop.permute.xlu0 %922
      %924 = vrot.lane.b32.xlu0 %v853, 127
      %v925 = vpop.permute.xlu0 %924
      %926 = vrot.lane.b32.xlu0 %v852, 127
      %v927 = vpop.permute.xlu0 %926
      %928 = vrot.lane.b32.xlu0 %v854, 127
      %v929 = vpop.permute.xlu0 %928
      %930 = vrot.lane.b32.xlu0 %v862, 127
      %v931 = vpop.permute.xlu0 %930
      %932 = vrot.lane.b32.xlu0 %v870, 127
      %v933 = vpop.permute.xlu0 %932
      %934 = vrot.lane.b32.xlu0 %v869, 127
      %v935 = vpop.permute.xlu0 %934
      %936 = vrot.lane.b32.xlu0 %v871, 127
      %v937 = vpop.permute.xlu0 %936
      %938 = vrot.lane.b32.xlu0 %v879, 127
      %v939 = vpop.permute.xlu0 %938
      %940 = vrot.lane.b32.xlu0 %v887, 127
      %v941 = vpop.permute.xlu0 %940
      %942 = vrot.lane.b32.xlu0 %v886, 127
      %v943 = vpop.permute.xlu0 %942
      %944 = vrot.lane.b32.xlu0 %v888, 127
      %v945 = vpop.permute.xlu0 %944
      %946 = vrot.lane.b32.xlu0 %v896, 127
      %v947 = vpop.permute.xlu0 %946
      %948 = vrot.lane.b32.xlu0 %v904, 127
      %v949 = vpop.permute.xlu0 %948
      %950 = vrot.lane.b32.xlu0 %v903, 127
      %v951 = vpop.permute.xlu0 %950
      %952 = vrot.lane.b32.xlu0 %v905, 127
      %v953 = vpop.permute.xlu0 %952
      %954 = vrot.lane.b32.xlu0 %v913, 127
      %v955 = vpop.permute.xlu0 %954
      %956 = vrot.lane.b32.xlu0 %v921, 127
      %v957 = vpop.permute.xlu0 %956
      %958 = vrot.lane.b32.xlu0 %v920, 127
      %v959 = vpop.permute.xlu0 %958
      %vm960 = vcmask 1039360
      %v961 = vsel %vm960, %v923, %v925
      %v962 = vsel %vm960, %v925, %v927
      %v963 = vsel %vm960, %v927, %v929
      %v964 = vsel %vm960, %v929, %v931
      %v965 = vsel %vm960, %v931, %v933
      %v966 = vsel %vm960, %v933, %v935
      %v967 = vsel %vm960, %v935, %v937
      %v968 = vsel %vm960, %v937, %v939
      %v969 = vsel %vm960, %v939, %v941
      %v970 = vsel %vm960, %v941, %v943
      %v971 = vsel %vm960, %v943, %v945
      %v972 = vsel %vm960, %v945, %v947
      %v973 = vsel %vm960, %v947, %v949
      %v974 = vsel %vm960, %v949, %v951
      %v975 = vsel %vm960, %v951, %v953
      %v976 = vsel %vm960, %v953, %v955
      %v977 = vsel %vm960, %v955, %v957
      %v978 = vsel %vm960, %v957, %v959
      %v980 = vsel %vm302, %v832, 0
      %v983 = vsel %vm306, %v961, 0
      %v986 = vsel %vm306, %v962, 0
      %v989 = vsel %vm306, %v963, 0
      %v992 = vsel %vm306, %v964, 0
      %v995 = vsel %vm306, %v965, 0
      %v998 = vsel %vm306, %v966, 0
      %v1001 = vsel %vm306, %v967, 0
      %v1004 = vsel %vm306, %v968, 0
      %v1007 = vsel %vm306, %v969, 0
      %v1010 = vsel %vm306, %v970, 0
      %v1013 = vsel %vm306, %v971, 0
      %v1016 = vsel %vm306, %v972, 0
      %v1019 = vsel %vm306, %v973, 0
      %v1022 = vsel %vm306, %v974, 0
      %v1025 = vsel %vm306, %v975, 0
      %v1028 = vsel %vm306, %v976, 0
      %v1031 = vsel %vm306, %v977, 0
      %v1034 = vsel %vm306, %v978, 0
      %1036 = vmatprep.subr.bf16.mxu0 0
      %1037 = vmatpush1.bf16.msra.mxu0 0
      %1038 = vmatprep.subr.bf16.mxu0 0
      %1039 = vmatpush1.bf16.msra.mxu0 0
      %1040 = vmatprep.subr.bf16.mxu0 0
      %1041 = vmatpush1.bf16.msra.mxu0 0
      %1042 = vmatprep.subr.bf16.mxu0 0
      %1043 = vmatpush1.bf16.msra.mxu0 0
      %1044 = vmatprep.subr.bf16.mxu0 0
      %1045 = vmatpush1.bf16.msra.mxu0 0
      %1046 = vmatprep.subr.bf16.mxu0 0
      %1047 = vmatpush1.bf16.msra.mxu0 0
      %1048 = vmatprep.subr.bf16.mxu0 0
      %1049 = vmatpush1.bf16.msra.mxu0 0
      %1050 = vmatprep.subr.bf16.mxu0 %v986
      %1051 = vmatpush1.bf16.msra.mxu0 %v983
      %1052 = vmatprep.subr.bf16.mxu0 0
      %1053 = vmatpush2.bf16.msra.mxu0 0
      %1054 = vmatprep.subr.bf16.mxu0 0
      %1055 = vmatpush2.bf16.msra.mxu0 0
      %1056 = vmatprep.subr.bf16.mxu0 0
      %1057 = vmatpush2.bf16.msra.mxu0 0
      %1058 = vmatprep.subr.bf16.mxu0 0
      %1059 = vmatpush2.bf16.msra.mxu0 0
      %1060 = vmatprep.subr.bf16.mxu0 0
      %1061 = vmatpush2.bf16.msra.mxu0 0
      %1062 = vmatprep.subr.bf16.mxu0 0
      %1063 = vmatpush2.bf16.msra.mxu0 0
      %1064 = vmatprep.subr.bf16.mxu0 0
      %1065 = vmatpush2.bf16.msra.mxu0 0
      %1066 = vmatprep.subr.bf16.mxu0 0
      %1067 = vmatpush2.bf16.msra.mxu0 0
      %1068 = vmatprep.mubr.bf16.mxu0 0
      %1069 = vmatmul.mubr.bf16.gmra.mxu0 %v980
      %v1070 = vpop.f32.mrf.mxu0
      %v1071 = vadd.f32 0.0, %v1070
      %v1072 = vpop.f32.mrf.mxu0
      %v1073 = vadd.f32 0.0, %v1072
      %v1074 = vpop.f32.mrf.mxu0
      %v1075 = vadd.f32 0.0, %v1074
      %v1076 = vpop.f32.mrf.mxu0
      %v1077 = vadd.f32 0.0, %v1076
      %1078 = vdwg.mxu0
      %1079 = vmatprep.subr.bf16.mxu0 0
      %1080 = vmatpush1.bf16.msra.mxu0 0
      %1081 = vmatprep.subr.bf16.mxu0 0
      %1082 = vmatpush1.bf16.msra.mxu0 0
      %1083 = vmatprep.subr.bf16.mxu0 0
      %1084 = vmatpush1.bf16.msra.mxu0 0
      %1085 = vmatprep.subr.bf16.mxu0 0
      %1086 = vmatpush1.bf16.msra.mxu0 0
      %1087 = vmatprep.subr.bf16.mxu0 0
      %1088 = vmatpush1.bf16.msra.mxu0 0
      %1089 = vmatprep.subr.bf16.mxu0 0
      %1090 = vmatpush1.bf16.msra.mxu0 0
      %1091 = vmatprep.subr.bf16.mxu0 0
      %1092 = vmatpush1.bf16.msra.mxu0 0
      %1093 = vmatprep.subr.bf16.mxu0 %v992
      %1094 = vmatpush1.bf16.msra.mxu0 %v989
      %1095 = vmatprep.subr.bf16.mxu0 0
      %1096 = vmatpush2.bf16.msra.mxu0 0
      %1097 = vmatprep.subr.bf16.mxu0 0
      %1098 = vmatpush2.bf16.msra.mxu0 0
      %1099 = vmatprep.subr.bf16.mxu0 0
      %1100 = vmatpush2.bf16.msra.mxu0 0
      %1101 = vmatprep.subr.bf16.mxu0 0
      %1102 = vmatpush2.bf16.msra.mxu0 0
      %1103 = vmatprep.subr.bf16.mxu0 0
      %1104 = vmatpush2.bf16.msra.mxu0 0
      %1105 = vmatprep.subr.bf16.mxu0 0
      %1106 = vmatpush2.bf16.msra.mxu0 0
      %1107 = vmatprep.subr.bf16.mxu0 0
      %1108 = vmatpush2.bf16.msra.mxu0 0
      %1109 = vmatprep.subr.bf16.mxu0 0
      %1110 = vmatpush2.bf16.msra.mxu0 0
      %1111 = vmatprep.mubr.bf16.mxu0 0
      %1112 = vmatmul.mubr.bf16.gmra.mxu0 %v980
      %v1113 = vpop.f32.mrf.mxu0
      %v1114 = vadd.f32 0.0, %v1113
      %v1115 = vpop.f32.mrf.mxu0
      %v1116 = vadd.f32 0.0, %v1115
      %v1117 = vpop.f32.mrf.mxu0
      %v1118 = vadd.f32 0.0, %v1117
      %v1119 = vpop.f32.mrf.mxu0
      %v1120 = vadd.f32 0.0, %v1119
      %1121 = vdwg.mxu0
      %1122 = vmatprep.subr.bf16.mxu0 0
      %1123 = vmatpush1.bf16.msra.mxu0 0
      %1124 = vmatprep.subr.bf16.mxu0 0
      %1125 = vmatpush1.bf16.msra.mxu0 0
      %1126 = vmatprep.subr.bf16.mxu0 0
      %1127 = vmatpush1.bf16.msra.mxu0 0
      %1128 = vmatprep.subr.bf16.mxu0 0
      %1129 = vmatpush1.bf16.msra.mxu0 0
      %1130 = vmatprep.subr.bf16.mxu0 0
      %1131 = vmatpush1.bf16.msra.mxu0 0
      %1132 = vmatprep.subr.bf16.mxu0 0
      %1133 = vmatpush1.bf16.msra.mxu0 0
      %1134 = vmatprep.subr.bf16.mxu0 0
      %1135 = vmatpush1.bf16.msra.mxu0 0
      %1136 = vmatprep.subr.bf16.mxu0 %v998
      %1137 = vmatpush1.bf16.msra.mxu0 %v995
      %1138 = vmatprep.subr.bf16.mxu0 0
      %1139 = vmatpush2.bf16.msra.mxu0 0
      %1140 = vmatprep.subr.bf16.mxu0 0
      %1141 = vmatpush2.bf16.msra.mxu0 0
      %1142 = vmatprep.subr.bf16.mxu0 0
      %1143 = vmatpush2.bf16.msra.mxu0 0
      %1144 = vmatprep.subr.bf16.mxu0 0
      %1145 = vmatpush2.bf16.msra.mxu0 0
      %1146 = vmatprep.subr.bf16.mxu0 0
      %1147 = vmatpush2.bf16.msra.mxu0 0
      %1148 = vmatprep.subr.bf16.mxu0 0
      %1149 = vmatpush2.bf16.msra.mxu0 0
      %1150 = vmatprep.subr.bf16.mxu0 0
      %1151 = vmatpush2.bf16.msra.mxu0 0
      %1152 = vmatprep.subr.bf16.mxu0 0
      %1153 = vmatpush2.bf16.msra.mxu0 0
      %1154 = vmatprep.mubr.bf16.mxu0 0
      %1155 = vmatmul.mubr.bf16.gmra.mxu0 %v980
      %v1156 = vpop.f32.mrf.mxu0
      %v1157 = vadd.f32 0.0, %v1156
      %v1158 = vpop.f32.mrf.mxu0
      %v1159 = vadd.f32 0.0, %v1158
      %v1160 = vpop.f32.mrf.mxu0
      %v1161 = vadd.f32 0.0, %v1160
      %v1162 = vpop.f32.mrf.mxu0
      %v1163 = vadd.f32 0.0, %v1162
      %1164 = vdwg.mxu0
      %1165 = vmatprep.subr.bf16.mxu0 0
      %1166 = vmatpush1.bf16.msra.mxu0 0
      %1167 = vmatprep.subr.bf16.mxu0 0
      %1168 = vmatpush1.bf16.msra.mxu0 0
      %1169 = vmatprep.subr.bf16.mxu0 0
      %1170 = vmatpush1.bf16.msra.mxu0 0
      %1171 = vmatprep.subr.bf16.mxu0 0
      %1172 = vmatpush1.bf16.msra.mxu0 0
      %1173 = vmatprep.subr.bf16.mxu0 0
      %1174 = vmatpush1.bf16.msra.mxu0 0
      %1175 = vmatprep.subr.bf16.mxu0 0
      %1176 = vmatpush1.bf16.msra.mxu0 0
      %1177 = vmatprep.subr.bf16.mxu0 0
      %1178 = vmatpush1.bf16.msra.mxu0 0
      %1179 = vmatprep.subr.bf16.mxu0 %v1004
      %1180 = vmatpush1.bf16.msra.mxu0 %v1001
      %1181 = vmatprep.subr.bf16.mxu0 0
      %1182 = vmatpush2.bf16.msra.mxu0 0
      %1183 = vmatprep.subr.bf16.mxu0 0
      %1184 = vmatpush2.bf16.msra.mxu0 0
      %1185 = vmatprep.subr.bf16.mxu0 0
      %1186 = vmatpush2.bf16.msra.mxu0 0
      %1187 = vmatprep.subr.bf16.mxu0 0
      %1188 = vmatpush2.bf16.msra.mxu0 0
      %1189 = vmatprep.subr.bf16.mxu0 0
      %1190 = vmatpush2.bf16.msra.mxu0 0
      %1191 = vmatprep.subr.bf16.mxu0 0
      %1192 = vmatpush2.bf16.msra.mxu0 0
      %1193 = vmatprep.subr.bf16.mxu0 0
      %1194 = vmatpush2.bf16.msra.mxu0 0
      %1195 = vmatprep.subr.bf16.mxu0 0
      %1196 = vmatpush2.bf16.msra.mxu0 0
      %1197 = vmatprep.mubr.bf16.mxu0 0
      %1198 = vmatmul.mubr.bf16.gmra.mxu0 %v980
      %v1199 = vpop.f32.mrf.mxu0
      %v1200 = vadd.f32 0.0, %v1199
      %v1201 = vpop.f32.mrf.mxu0
      %v1202 = vadd.f32 0.0, %v1201
      %v1203 = vpop.f32.mrf.mxu0
      %v1204 = vadd.f32 0.0, %v1203
      %v1205 = vpop.f32.mrf.mxu0
      %v1206 = vadd.f32 0.0, %v1205
      %1207 = vdwg.mxu0
      %1208 = vmatprep.subr.bf16.mxu0 0
      %1209 = vmatpush1.bf16.msra.mxu0 0
      %1210 = vmatprep.subr.bf16.mxu0 0
      %1211 = vmatpush1.bf16.msra.mxu0 0
      %1212 = vmatprep.subr.bf16.mxu0 0
      %1213 = vmatpush1.bf16.msra.mxu0 0
      %1214 = vmatprep.subr.bf16.mxu0 0
      %1215 = vmatpush1.bf16.msra.mxu0 0
      %1216 = vmatprep.subr.bf16.mxu0 0
      %1217 = vmatpush1.bf16.msra.mxu0 0
      %1218 = vmatprep.subr.bf16.mxu0 0
      %1219 = vmatpush1.bf16.msra.mxu0 0
      %1220 = vmatprep.subr.bf16.mxu0 0
      %1221 = vmatpush1.bf16.msra.mxu0 0
      %1222 = vmatprep.subr.bf16.mxu0 %v1010
      %1223 = vmatpush1.bf16.msra.mxu0 %v1007
      %1224 = vmatprep.subr.bf16.mxu0 0
      %1225 = vmatpush2.bf16.msra.mxu0 0
      %1226 = vmatprep.subr.bf16.mxu0 0
      %1227 = vmatpush2.bf16.msra.mxu0 0
      %1228 = vmatprep.subr.bf16.mxu0 0
      %1229 = vmatpush2.bf16.msra.mxu0 0
      %1230 = vmatprep.subr.bf16.mxu0 0
      %1231 = vmatpush2.bf16.msra.mxu0 0
      %1232 = vmatprep.subr.bf16.mxu0 0
      %1233 = vmatpush2.bf16.msra.mxu0 0
      %1234 = vmatprep.subr.bf16.mxu0 0
      %1235 = vmatpush2.bf16.msra.mxu0 0
      %1236 = vmatprep.subr.bf16.mxu0 0
      %1237 = vmatpush2.bf16.msra.mxu0 0
      %1238 = vmatprep.subr.bf16.mxu0 0
      %1239 = vmatpush2.bf16.msra.mxu0 0
      %1240 = vmatprep.mubr.bf16.mxu0 0
      %1241 = vmatmul.mubr.bf16.gmra.mxu0 %v980
      %v1242 = vpop.f32.mrf.mxu0
      %v1243 = vadd.f32 0.0, %v1242
      %v1244 = vpop.f32.mrf.mxu0
      %v1245 = vadd.f32 0.0, %v1244
      %v1246 = vpop.f32.mrf.mxu0
      %v1247 = vadd.f32 0.0, %v1246
      %v1248 = vpop.f32.mrf.mxu0
      %v1249 = vadd.f32 0.0, %v1248
      %1250 = vdwg.mxu0
      %1251 = vmatprep.subr.bf16.mxu0 0
      %1252 = vmatpush1.bf16.msra.mxu0 0
      %1253 = vmatprep.subr.bf16.mxu0 0
      %1254 = vmatpush1.bf16.msra.mxu0 0
      %1255 = vmatprep.subr.bf16.mxu0 0
      %1256 = vmatpush1.bf16.msra.mxu0 0
      %1257 = vmatprep.subr.bf16.mxu0 0
      %1258 = vmatpush1.bf16.msra.mxu0 0
      %1259 = vmatprep.subr.bf16.mxu0 0
      %1260 = vmatpush1.bf16.msra.mxu0 0
      %1261 = vmatprep.subr.bf16.mxu0 0
      %1262 = vmatpush1.bf16.msra.mxu0 0
      %1263 = vmatprep.subr.bf16.mxu0 0
      %1264 = vmatpush1.bf16.msra.mxu0 0
      %1265 = vmatprep.subr.bf16.mxu0 %v1016
      %1266 = vmatpush1.bf16.msra.mxu0 %v1013
      %1267 = vmatprep.subr.bf16.mxu0 0
      %1268 = vmatpush2.bf16.msra.mxu0 0
      %1269 = vmatprep.subr.bf16.mxu0 0
      %1270 = vmatpush2.bf16.msra.mxu0 0
      %1271 = vmatprep.subr.bf16.mxu0 0
      %1272 = vmatpush2.bf16.msra.mxu0 0
      %1273 = vmatprep.subr.bf16.mxu0 0
      %1274 = vmatpush2.bf16.msra.mxu0 0
      %1275 = vmatprep.subr.bf16.mxu0 0
      %1276 = vmatpush2.bf16.msra.mxu0 0
      %1277 = vmatprep.subr.bf16.mxu0 0
      %1278 = vmatpush2.bf16.msra.mxu0 0
      %1279 = vmatprep.subr.bf16.mxu0 0
      %1280 = vmatpush2.bf16.msra.mxu0 0
      %1281 = vmatprep.subr.bf16.mxu0 0
      %1282 = vmatpush2.bf16.msra.mxu0 0
      %1283 = vmatprep.mubr.bf16.mxu0 0
      %1284 = vmatmul.mubr.bf16.gmra.mxu0 %v980
      %v1285 = vpop.f32.mrf.mxu0
      %v1286 = vadd.f32 0.0, %v1285
      %v1287 = vpop.f32.mrf.mxu0
      %v1288 = vadd.f32 0.0, %v1287
      %v1289 = vpop.f32.mrf.mxu0
      %v1290 = vadd.f32 0.0, %v1289
      %v1291 = vpop.f32.mrf.mxu0
      %v1292 = vadd.f32 0.0, %v1291
      %1293 = vdwg.mxu0
      %1294 = vmatprep.subr.bf16.mxu0 0
      %1295 = vmatpush1.bf16.msra.mxu0 0
      %1296 = vmatprep.subr.bf16.mxu0 0
      %1297 = vmatpush1.bf16.msra.mxu0 0
      %1298 = vmatprep.subr.bf16.mxu0 0
      %1299 = vmatpush1.bf16.msra.mxu0 0
      %1300 = vmatprep.subr.bf16.mxu0 0
      %1301 = vmatpush1.bf16.msra.mxu0 0
      %1302 = vmatprep.subr.bf16.mxu0 0
      %1303 = vmatpush1.bf16.msra.mxu0 0
      %1304 = vmatprep.subr.bf16.mxu0 0
      %1305 = vmatpush1.bf16.msra.mxu0 0
      %1306 = vmatprep.subr.bf16.mxu0 0
      %1307 = vmatpush1.bf16.msra.mxu0 0
      %1308 = vmatprep.subr.bf16.mxu0 %v1022
      %1309 = vmatpush1.bf16.msra.mxu0 %v1019
      %1310 = vmatprep.subr.bf16.mxu0 0
      %1311 = vmatpush2.bf16.msra.mxu0 0
      %1312 = vmatprep.subr.bf16.mxu0 0
      %1313 = vmatpush2.bf16.msra.mxu0 0
      %1314 = vmatprep.subr.bf16.mxu0 0
      %1315 = vmatpush2.bf16.msra.mxu0 0
      %1316 = vmatprep.subr.bf16.mxu0 0
      %1317 = vmatpush2.bf16.msra.mxu0 0
      %1318 = vmatprep.subr.bf16.mxu0 0
      %1319 = vmatpush2.bf16.msra.mxu0 0
      %1320 = vmatprep.subr.bf16.mxu0 0
      %1321 = vmatpush2.bf16.msra.mxu0 0
      %1322 = vmatprep.subr.bf16.mxu0 0
      %1323 = vmatpush2.bf16.msra.mxu0 0
      %1324 = vmatprep.subr.bf16.mxu0 0
      %1325 = vmatpush2.bf16.msra.mxu0 0
      %1326 = vmatprep.mubr.bf16.mxu0 0
      %1327 = vmatmul.mubr.bf16.gmra.mxu0 %v980
      %v1328 = vpop.f32.mrf.mxu0
      %v1329 = vadd.f32 0.0, %v1328
      %v1330 = vpop.f32.mrf.mxu0
      %v1331 = vadd.f32 0.0, %v1330
      %v1332 = vpop.f32.mrf.mxu0
      %v1333 = vadd.f32 0.0, %v1332
      %v1334 = vpop.f32.mrf.mxu0
      %v1335 = vadd.f32 0.0, %v1334
      %1336 = vdwg.mxu0
      %1337 = vmatprep.subr.bf16.mxu0 0
      %1338 = vmatpush1.bf16.msra.mxu0 0
      %1339 = vmatprep.subr.bf16.mxu0 0
      %1340 = vmatpush1.bf16.msra.mxu0 0
      %1341 = vmatprep.subr.bf16.mxu0 0
      %1342 = vmatpush1.bf16.msra.mxu0 0
      %1343 = vmatprep.subr.bf16.mxu0 0
      %1344 = vmatpush1.bf16.msra.mxu0 0
      %1345 = vmatprep.subr.bf16.mxu0 0
      %1346 = vmatpush1.bf16.msra.mxu0 0
      %1347 = vmatprep.subr.bf16.mxu0 0
      %1348 = vmatpush1.bf16.msra.mxu0 0
      %1349 = vmatprep.subr.bf16.mxu0 0
      %1350 = vmatpush1.bf16.msra.mxu0 0
      %1351 = vmatprep.subr.bf16.mxu0 %v1028
      %1352 = vmatpush1.bf16.msra.mxu0 %v1025
      %1353 = vmatprep.subr.bf16.mxu0 0
      %1354 = vmatpush2.bf16.msra.mxu0 0
      %1355 = vmatprep.subr.bf16.mxu0 0
      %1356 = vmatpush2.bf16.msra.mxu0 0
      %1357 = vmatprep.subr.bf16.mxu0 0
      %1358 = vmatpush2.bf16.msra.mxu0 0
      %1359 = vmatprep.subr.bf16.mxu0 0
      %1360 = vmatpush2.bf16.msra.mxu0 0
      %1361 = vmatprep.subr.bf16.mxu0 0
      %1362 = vmatpush2.bf16.msra.mxu0 0
      %1363 = vmatprep.subr.bf16.mxu0 0
      %1364 = vmatpush2.bf16.msra.mxu0 0
      %1365 = vmatprep.subr.bf16.mxu0 0
      %1366 = vmatpush2.bf16.msra.mxu0 0
      %1367 = vmatprep.subr.bf16.mxu0 0
      %1368 = vmatpush2.bf16.msra.mxu0 0
      %1369 = vmatprep.mubr.bf16.mxu0 0
      %1370 = vmatmul.mubr.bf16.gmra.mxu0 %v980
      %v1371 = vpop.f32.mrf.mxu0
      %v1372 = vadd.f32 0.0, %v1371
      %v1373 = vpop.f32.mrf.mxu0
      %v1374 = vadd.f32 0.0, %v1373
      %v1375 = vpop.f32.mrf.mxu0
      %v1376 = vadd.f32 0.0, %v1375
      %v1377 = vpop.f32.mrf.mxu0
      %v1378 = vadd.f32 0.0, %v1377
      %1379 = vdwg.mxu0
      %1380 = vmatprep.subr.bf16.mxu0 0
      %1381 = vmatpush1.bf16.msra.mxu0 0
      %1382 = vmatprep.subr.bf16.mxu0 0
      %1383 = vmatpush1.bf16.msra.mxu0 0
      %1384 = vmatprep.subr.bf16.mxu0 0
      %1385 = vmatpush1.bf16.msra.mxu0 0
      %1386 = vmatprep.subr.bf16.mxu0 0
      %1387 = vmatpush1.bf16.msra.mxu0 0
      %1388 = vmatprep.subr.bf16.mxu0 0
      %1389 = vmatpush1.bf16.msra.mxu0 0
      %1390 = vmatprep.subr.bf16.mxu0 0
      %1391 = vmatpush1.bf16.msra.mxu0 0
      %1392 = vmatprep.subr.bf16.mxu0 0
      %1393 = vmatpush1.bf16.msra.mxu0 0
      %1394 = vmatprep.subr.bf16.mxu0 %v1034
      %1395 = vmatpush1.bf16.msra.mxu0 %v1031
      %1396 = vmatprep.subr.bf16.mxu0 0
      %1397 = vmatpush2.bf16.msra.mxu0 0
      %1398 = vmatprep.subr.bf16.mxu0 0
      %1399 = vmatpush2.bf16.msra.mxu0 0
      %1400 = vmatprep.subr.bf16.mxu0 0
      %1401 = vmatpush2.bf16.msra.mxu0 0
      %1402 = vmatprep.subr.bf16.mxu0 0
      %1403 = vmatpush2.bf16.msra.mxu0 0
      %1404 = vmatprep.subr.bf16.mxu0 0
      %1405 = vmatpush2.bf16.msra.mxu0 0
      %1406 = vmatprep.subr.bf16.mxu0 0
      %1407 = vmatpush2.bf16.msra.mxu0 0
      %1408 = vmatprep.subr.bf16.mxu0 0
      %1409 = vmatpush2.bf16.msra.mxu0 0
      %1410 = vmatprep.subr.bf16.mxu0 0
      %1411 = vmatpush2.bf16.msra.mxu0 0
      %1412 = vmatprep.mubr.bf16.mxu0 0
      %1413 = vmatmul.mubr.bf16.gmra.mxu0 %v980
      %v1414 = vpop.f32.mrf.mxu0
      %v1415 = vadd.f32 0.0, %v1414
      %v1416 = vpop.f32.mrf.mxu0
      %v1417 = vadd.f32 0.0, %v1416
      %v1418 = vpop.f32.mrf.mxu0
      %v1419 = vadd.f32 0.0, %v1418
      %v1420 = vpop.f32.mrf.mxu0
      %v1421 = vadd.f32 0.0, %v1420
      %1422 = vdwg.mxu0
      %v1423 = vadd.f32 %v784, %v1071
      %v1424 = vadd.f32 %v785, %v1073
      %v1425 = vadd.f32 %v786, %v1114
      %v1426 = vadd.f32 %v787, %v1116
      %v1427 = vadd.f32 %v788, %v1157
      %v1428 = vadd.f32 %v789, %v1159
      %v1429 = vadd.f32 %v790, %v1200
      %v1430 = vadd.f32 %v791, %v1202
      %v1431 = vadd.f32 %v792, %v1243
      %v1432 = vadd.f32 %v793, %v1245
      %v1433 = vadd.f32 %v794, %v1286
      %v1434 = vadd.f32 %v795, %v1288
      %v1435 = vadd.f32 %v796, %v1329
      %v1436 = vadd.f32 %v797, %v1331
      %v1437 = vadd.f32 %v798, %v1372
      %v1438 = vadd.f32 %v799, %v1374
      %v1439 = vadd.f32 %v800, %v1415
      %v1440 = vadd.f32 %v801, %v1417
      %v1441 = vadd.f32 %v802, %v1075
      %v1442 = vadd.f32 %v803, %v1077
      %v1443 = vadd.f32 %v804, %v1118
      %v1444 = vadd.f32 %v805, %v1120
      %v1445 = vadd.f32 %v806, %v1161
      %v1446 = vadd.f32 %v807, %v1163
      %v1447 = vadd.f32 %v808, %v1204
      %v1448 = vadd.f32 %v809, %v1206
      %v1449 = vadd.f32 %v810, %v1247
      %v1450 = vadd.f32 %v811, %v1249
      %v1451 = vadd.f32 %v812, %v1290
      %v1452 = vadd.f32 %v813, %v1292
      %v1453 = vadd.f32 %v814, %v1333
      %v1454 = vadd.f32 %v815, %v1335
      %v1455 = vadd.f32 %v816, %v1376
      %v1456 = vadd.f32 %v817, %v1378
      %v1457 = vadd.f32 %v818, %v1419
      %v1458 = vadd.f32 %v819, %v1421
      %1459 = vst [vmem:[#allocation2] sm:$0xff] %v1423
      %1460 = vst [vmem:[#allocation2 + $0x8] sm:$0xff] %v1424
      %1461 = vst [vmem:[#allocation2 + $0x10] sm:$0xff] %v1425
      %1462 = vst [vmem:[#allocation2 + $0x18] sm:$0xff] %v1426
      %1463 = vst [vmem:[#allocation2 + $0x20] sm:$0xff] %v1427
      %1464 = vst [vmem:[#allocation2 + $0x28] sm:$0xff] %v1428
      %1465 = vst [vmem:[#allocation2 + $0x30] sm:$0xff] %v1429
      %1466 = vst [vmem:[#allocation2 + $0x38] sm:$0xff] %v1430
      %1467 = vst [vmem:[#allocation2 + $0x40] sm:$0xff] %v1431
      %1468 = vst [vmem:[#allocation2 + $0x48] sm:$0xff] %v1432
      %1469 = vst [vmem:[#allocation2 + $0x50] sm:$0xff] %v1433
      %1470 = vst [vmem:[#allocation2 + $0x58] sm:$0xff] %v1434
      %1471 = vst [vmem:[#allocation2 + $0x60] sm:$0xff] %v1435
      %1472 = vst [vmem:[#allocation2 + $0x68] sm:$0xff] %v1436
      %1473 = vst [vmem:[#allocation2 + $0x70] sm:$0xff] %v1437
      %1474 = vst [vmem:[#allocation2 + $0x78] sm:$0xff] %v1438
      %1475 = vst [vmem:[#allocation2 + $0x80] sm:$0xff] %v1439
      %1476 = vst [vmem:[#allocation2 + $0x88] sm:$0xff] %v1440
      %1477 = vst [vmem:[#allocation2 + $0x90] sm:$0x3f] %v1441
      %1478 = vst [vmem:[#allocation2 + $0x98] sm:$0x3f] %v1442
      %1479 = vst [vmem:[#allocation2 + $0xa0] sm:$0x3f] %v1443
      %1480 = vst [vmem:[#allocation2 + $0xa8] sm:$0x3f] %v1444
      %1481 = vst [vmem:[#allocation2 + $0xb0] sm:$0x3f] %v1445
      %1482 = vst [vmem:[#allocation2 + $0xb8] sm:$0x3f] %v1446
      %1483 = vst [vmem:[#allocation2 + $0xc0] sm:$0x3f] %v1447
      %1484 = vst [vmem:[#allocation2 + $0xc8] sm:$0x3f] %v1448
      %1485 = vst [vmem:[#allocation2 + $0xd0] sm:$0x3f] %v1449
      %1486 = vst [vmem:[#allocation2 + $0xd8] sm:$0x3f] %v1450
      %1487 = vst [vmem:[#allocation2 + $0xe0] sm:$0x3f] %v1451
      %1488 = vst [vmem:[#allocation2 + $0xe8] sm:$0x3f] %v1452
      %1489 = vst [vmem:[#allocation2 + $0xf0] sm:$0x3f] %v1453
      %1490 = vst [vmem:[#allocation2 + $0xf8] sm:$0x3f] %v1454
      %1491 = vst [vmem:[#allocation2 + $0x100] sm:$0x3f] %v1455
      %1492 = vst [vmem:[#allocation2 + $0x108] sm:$0x3f] %v1456
      %1493 = vst [vmem:[#allocation2 + $0x110] sm:$0x3f] %v1457
      %1494 = vst [vmem:[#allocation2 + $0x118] sm:$0x3f] %v1458
      %v1495 = vld [vmem:[#allocation2] sm:$0xff]
      %v1496 = vld [vmem:[#allocation2 + $0x8] sm:$0xff]
      %v1497 = vld [vmem:[#allocation2 + $0x10] sm:$0xff]
      %v1498 = vld [vmem:[#allocation2 + $0x18] sm:$0xff]
      %v1499 = vld [vmem:[#allocation2 + $0x20] sm:$0xff]
      %v1500 = vld [vmem:[#allocation2 + $0x28] sm:$0xff]
      %v1501 = vld [vmem:[#allocation2 + $0x30] sm:$0xff]
      %v1502 = vld [vmem:[#allocation2 + $0x38] sm:$0xff]
      %v1503 = vld [vmem:[#allocation2 + $0x40] sm:$0xff]
      %v1504 = vld [vmem:[#allocation2 + $0x48] sm:$0xff]
      %v1505 = vld [vmem:[#allocation2 + $0x50] sm:$0xff]
      %v1506 = vld [vmem:[#allocation2 + $0x58] sm:$0xff]
      %v1507 = vld [vmem:[#allocation2 + $0x60] sm:$0xff]
      %v1508 = vld [vmem:[#allocation2 + $0x68] sm:$0xff]
      %v1509 = vld [vmem:[#allocation2 + $0x70] sm:$0xff]
      %v1510 = vld [vmem:[#allocation2 + $0x78] sm:$0xff]
      %v1511 = vld [vmem:[#allocation2 + $0x80] sm:$0xff]
      %v1512 = vld [vmem:[#allocation2 + $0x88] sm:$0xff]
      %v1513 = vld [vmem:[#allocation2 + $0x90] sm:$0x3f]
      %v1514 = vld [vmem:[#allocation2 + $0x98] sm:$0x3f]
      %v1515 = vld [vmem:[#allocation2 + $0xa0] sm:$0x3f]
      %v1516 = vld [vmem:[#allocation2 + $0xa8] sm:$0x3f]
      %v1517 = vld [vmem:[#allocation2 + $0xb0] sm:$0x3f]
      %v1518 = vld [vmem:[#allocation2 + $0xb8] sm:$0x3f]
      %v1519 = vld [vmem:[#allocation2 + $0xc0] sm:$0x3f]
      %v1520 = vld [vmem:[#allocation2 + $0xc8] sm:$0x3f]
      %v1521 = vld [vmem:[#allocation2 + $0xd0] sm:$0x3f]
      %v1522 = vld [vmem:[#allocation2 + $0xd8] sm:$0x3f]
      %v1523 = vld [vmem:[#allocation2 + $0xe0] sm:$0x3f]
      %v1524 = vld [vmem:[#allocation2 + $0xe8] sm:$0x3f]
      %v1525 = vld [vmem:[#allocation2 + $0xf0] sm:$0x3f]
      %v1526 = vld [vmem:[#allocation2 + $0xf8] sm:$0x3f]
      %v1527 = vld [vmem:[#allocation2 + $0x100] sm:$0x3f]
      %v1528 = vld [vmem:[#allocation2 + $0x108] sm:$0x3f]
      %v1529 = vld [vmem:[#allocation2 + $0x110] sm:$0x3f]
      %v1530 = vld [vmem:[#allocation2 + $0x118] sm:$0x3f]
      %s1531 = scalar_lea.vmem %s1, 16
      %v1532 = vld [vmem:[%s1531] sm:$0xf]
      %v1533 = vld [vmem:[%s1531 + $0x4] sm:$0x7]
      %v1534 = vld [vmem:[%s197] sm:$0xff]
      %v1535 = vld [vmem:[%s197 + $0x8] sm:$0xff]
      %v1536 = vld [vmem:[%s197 + $0x10] sm:$0xff]
      %v1537 = vld [vmem:[%s197 + $0x18] sm:$0xff]
      %v1538 = vld [vmem:[%s197 + $0x20] sm:$0x3f]
      %v1541 = vunpack.c.l.b16 %v1532
      %v1542 = vunpack.c.l.b16 %v1533
      %v1543 = vpack.c.b16 %v1542, %v1541
      %v1549 = vcombine.high %v1534, %v1534
      %v1551 = vunpack.c.l.s4 1983009808
      %v1552 = vunpack.c.0.s8 %v1551
      %v1553 = vlaneseq
      %v1554 = vshrl.u32 %v1553, 7
      %v1555 = vsub.s32 %v1552, %v1554
      %v1556 = vrot.slane %v1534, %v1555
      %v1558 = vunpack.c.l.s4 1983009808
      %v1559 = vunpack.c.0.s8 %v1558
      %v1560 = vlaneseq
      %v1561 = vshrl.u32 %v1560, 7
      %v1562 = vsub.s32 %v1559, %v1561
      %v1563 = vrot.slane %v1549, %v1562
      %v1564 = vcombine.high %v1556, %v1556
      %v1565 = vcombine.high %v1563, %v1563
      %v1566 = vcombine.high %v1535, %v1535
      %v1568 = vunpack.c.l.s4 1983009808
      %v1569 = vunpack.c.0.s8 %v1568
      %v1570 = vlaneseq
      %v1571 = vshrl.u32 %v1570, 7
      %v1572 = vsub.s32 %v1569, %v1571
      %v1573 = vrot.slane %v1535, %v1572
      %v1575 = vunpack.c.l.s4 1983009808
      %v1576 = vunpack.c.0.s8 %v1575
      %v1577 = vlaneseq
      %v1578 = vshrl.u32 %v1577, 7
      %v1579 = vsub.s32 %v1576, %v1578
      %v1580 = vrot.slane %v1566, %v1579
      %v1581 = vcombine.high %v1573, %v1573
      %v1582 = vcombine.high %v1580, %v1580
      %v1583 = vcombine.high %v1536, %v1536
      %v1585 = vunpack.c.l.s4 1983009808
      %v1586 = vunpack.c.0.s8 %v1585
      %v1587 = vlaneseq
      %v1588 = vshrl.u32 %v1587, 7
      %v1589 = vsub.s32 %v1586, %v1588
      %v1590 = vrot.slane %v1536, %v1589
      %v1592 = vunpack.c.l.s4 1983009808
      %v1593 = vunpack.c.0.s8 %v1592
      %v1594 = vlaneseq
      %v1595 = vshrl.u32 %v1594, 7
      %v1596 = vsub.s32 %v1593, %v1595
      %v1597 = vrot.slane %v1583, %v1596
      %v1598 = vcombine.high %v1590, %v1590
      %v1599 = vcombine.high %v1597, %v1597
      %v1600 = vcombine.high %v1537, %v1537
      %v1602 = vunpack.c.l.s4 1983009808
      %v1603 = vunpack.c.0.s8 %v1602
      %v1604 = vlaneseq
      %v1605 = vshrl.u32 %v1604, 7
      %v1606 = vsub.s32 %v1603, %v1605
      %v1607 = vrot.slane %v1537, %v1606
      %v1609 = vunpack.c.l.s4 1983009808
      %v1610 = vunpack.c.0.s8 %v1609
      %v1611 = vlaneseq
      %v1612 = vshrl.u32 %v1611, 7
      %v1613 = vsub.s32 %v1610, %v1612
      %v1614 = vrot.slane %v1600, %v1613
      %v1615 = vcombine.high %v1607, %v1607
      %v1616 = vcombine.high %v1614, %v1614
      %v1617 = vcombine.high %v1538, %v1538
      %v1619 = vunpack.c.l.s4 1983009808
      %v1620 = vunpack.c.0.s8 %v1619
      %v1621 = vlaneseq
      %v1622 = vshrl.u32 %v1621, 7
      %v1623 = vsub.s32 %v1620, %v1622
      %v1624 = vrot.slane %v1538, %v1623
      %v1626 = vunpack.c.l.s4 1983009808
      %v1627 = vunpack.c.0.s8 %v1626
      %v1628 = vlaneseq
      %v1629 = vshrl.u32 %v1628, 7
      %v1630 = vsub.s32 %v1627, %v1629
      %v1631 = vrot.slane %v1617, %v1630
      %v1632 = vcombine.high %v1624, %v1624
      %1633 = vrot.lane.b32.xlu0 %v1556, 126
      %v1634 = vpop.permute.xlu0 %1633
      %1635 = vrot.lane.b32.xlu0 %v1564, 126
      %v1636 = vpop.permute.xlu0 %1635
      %1637 = vrot.lane.b32.xlu0 %v1563, 126
      %v1638 = vpop.permute.xlu0 %1637
      %1639 = vrot.lane.b32.xlu0 %v1565, 126
      %v1640 = vpop.permute.xlu0 %1639
      %1641 = vrot.lane.b32.xlu0 %v1573, 126
      %v1642 = vpop.permute.xlu0 %1641
      %1643 = vrot.lane.b32.xlu0 %v1581, 126
      %v1644 = vpop.permute.xlu0 %1643
      %1645 = vrot.lane.b32.xlu0 %v1580, 126
      %v1646 = vpop.permute.xlu0 %1645
      %1647 = vrot.lane.b32.xlu0 %v1582, 126
      %v1648 = vpop.permute.xlu0 %1647
      %1649 = vrot.lane.b32.xlu0 %v1590, 126
      %v1650 = vpop.permute.xlu0 %1649
      %1651 = vrot.lane.b32.xlu0 %v1598, 126
      %v1652 = vpop.permute.xlu0 %1651
      %1653 = vrot.lane.b32.xlu0 %v1597, 126
      %v1654 = vpop.permute.xlu0 %1653
      %1655 = vrot.lane.b32.xlu0 %v1599, 126
      %v1656 = vpop.permute.xlu0 %1655
      %1657 = vrot.lane.b32.xlu0 %v1607, 126
      %v1658 = vpop.permute.xlu0 %1657
      %1659 = vrot.lane.b32.xlu0 %v1615, 126
      %v1660 = vpop.permute.xlu0 %1659
      %1661 = vrot.lane.b32.xlu0 %v1614, 126
      %v1662 = vpop.permute.xlu0 %1661
      %1663 = vrot.lane.b32.xlu0 %v1616, 126
      %v1664 = vpop.permute.xlu0 %1663
      %1665 = vrot.lane.b32.xlu0 %v1624, 126
      %v1666 = vpop.permute.xlu0 %1665
      %1667 = vrot.lane.b32.xlu0 %v1632, 126
      %v1668 = vpop.permute.xlu0 %1667
      %1669 = vrot.lane.b32.xlu0 %v1631, 126
      %v1670 = vpop.permute.xlu0 %1669
      %vm1671 = vcmask 1031168
      %v1672 = vsel %vm1671, %v1634, %v1636
      %v1673 = vsel %vm1671, %v1636, %v1638
      %v1674 = vsel %vm1671, %v1638, %v1640
      %v1675 = vsel %vm1671, %v1640, %v1642
      %v1676 = vsel %vm1671, %v1642, %v1644
      %v1677 = vsel %vm1671, %v1644, %v1646
      %v1678 = vsel %vm1671, %v1646, %v1648
      %v1679 = vsel %vm1671, %v1648, %v1650
      %v1680 = vsel %vm1671, %v1650, %v1652
      %v1681 = vsel %vm1671, %v1652, %v1654
      %v1682 = vsel %vm1671, %v1654, %v1656
      %v1683 = vsel %vm1671, %v1656, %v1658
      %v1684 = vsel %vm1671, %v1658, %v1660
      %v1685 = vsel %vm1671, %v1660, %v1662
      %v1686 = vsel %vm1671, %v1662, %v1664
      %v1687 = vsel %vm1671, %v1664, %v1666
      %v1688 = vsel %vm1671, %v1666, %v1668
      %v1689 = vsel %vm1671, %v1668, %v1670
      %v1691 = vsel %vm302, %v1543, 0
      %v1694 = vsel %vm306, %v1672, 0
      %v1697 = vsel %vm306, %v1673, 0
      %v1700 = vsel %vm306, %v1674, 0
      %v1703 = vsel %vm306, %v1675, 0
      %v1706 = vsel %vm306, %v1676, 0
      %v1709 = vsel %vm306, %v1677, 0
      %v1712 = vsel %vm306, %v1678, 0
      %v1715 = vsel %vm306, %v1679, 0
      %v1718 = vsel %vm306, %v1680, 0
      %v1721 = vsel %vm306, %v1681, 0
      %v1724 = vsel %vm306, %v1682, 0
      %v1727 = vsel %vm306, %v1683, 0
      %v1730 = vsel %vm306, %v1684, 0
      %v1733 = vsel %vm306, %v1685, 0
      %v1736 = vsel %vm306, %v1686, 0
      %v1739 = vsel %vm306, %v1687, 0
      %v1742 = vsel %vm306, %v1688, 0
      %v1745 = vsel %vm306, %v1689, 0
      %1747 = vmatprep.subr.bf16.mxu0 0
      %1748 = vmatpush1.bf16.msra.mxu0 0
      %1749 = vmatprep.subr.bf16.mxu0 0
      %1750 = vmatpush1.bf16.msra.mxu0 0
      %1751 = vmatprep.subr.bf16.mxu0 0
      %1752 = vmatpush1.bf16.msra.mxu0 0
      %1753 = vmatprep.subr.bf16.mxu0 0
      %1754 = vmatpush1.bf16.msra.mxu0 0
      %1755 = vmatprep.subr.bf16.mxu0 0
      %1756 = vmatpush1.bf16.msra.mxu0 0
      %1757 = vmatprep.subr.bf16.mxu0 0
      %1758 = vmatpush1.bf16.msra.mxu0 0
      %1759 = vmatprep.subr.bf16.mxu0 0
      %1760 = vmatpush1.bf16.msra.mxu0 0
      %1761 = vmatprep.subr.bf16.mxu0 %v1697
      %1762 = vmatpush1.bf16.msra.mxu0 %v1694
      %1763 = vmatprep.subr.bf16.mxu0 0
      %1764 = vmatpush2.bf16.msra.mxu0 0
      %1765 = vmatprep.subr.bf16.mxu0 0
      %1766 = vmatpush2.bf16.msra.mxu0 0
      %1767 = vmatprep.subr.bf16.mxu0 0
      %1768 = vmatpush2.bf16.msra.mxu0 0
      %1769 = vmatprep.subr.bf16.mxu0 0
      %1770 = vmatpush2.bf16.msra.mxu0 0
      %1771 = vmatprep.subr.bf16.mxu0 0
      %1772 = vmatpush2.bf16.msra.mxu0 0
      %1773 = vmatprep.subr.bf16.mxu0 0
      %1774 = vmatpush2.bf16.msra.mxu0 0
      %1775 = vmatprep.subr.bf16.mxu0 0
      %1776 = vmatpush2.bf16.msra.mxu0 0
      %1777 = vmatprep.subr.bf16.mxu0 0
      %1778 = vmatpush2.bf16.msra.mxu0 0
      %1779 = vmatprep.mubr.bf16.mxu0 0
      %1780 = vmatmul.mubr.bf16.gmra.mxu0 %v1691
      %v1781 = vpop.f32.mrf.mxu0
      %v1782 = vadd.f32 0.0, %v1781
      %v1783 = vpop.f32.mrf.mxu0
      %v1784 = vadd.f32 0.0, %v1783
      %v1785 = vpop.f32.mrf.mxu0
      %v1786 = vadd.f32 0.0, %v1785
      %v1787 = vpop.f32.mrf.mxu0
      %v1788 = vadd.f32 0.0, %v1787
      %1789 = vdwg.mxu0
      %1790 = vmatprep.subr.bf16.mxu0 0
      %1791 = vmatpush1.bf16.msra.mxu0 0
      %1792 = vmatprep.subr.bf16.mxu0 0
      %1793 = vmatpush1.bf16.msra.mxu0 0
      %1794 = vmatprep.subr.bf16.mxu0 0
      %1795 = vmatpush1.bf16.msra.mxu0 0
      %1796 = vmatprep.subr.bf16.mxu0 0
      %1797 = vmatpush1.bf16.msra.mxu0 0
      %1798 = vmatprep.subr.bf16.mxu0 0
      %1799 = vmatpush1.bf16.msra.mxu0 0
      %1800 = vmatprep.subr.bf16.mxu0 0
      %1801 = vmatpush1.bf16.msra.mxu0 0
      %1802 = vmatprep.subr.bf16.mxu0 0
      %1803 = vmatpush1.bf16.msra.mxu0 0
      %1804 = vmatprep.subr.bf16.mxu0 %v1703
      %1805 = vmatpush1.bf16.msra.mxu0 %v1700
      %1806 = vmatprep.subr.bf16.mxu0 0
      %1807 = vmatpush2.bf16.msra.mxu0 0
      %1808 = vmatprep.subr.bf16.mxu0 0
      %1809 = vmatpush2.bf16.msra.mxu0 0
      %1810 = vmatprep.subr.bf16.mxu0 0
      %1811 = vmatpush2.bf16.msra.mxu0 0
      %1812 = vmatprep.subr.bf16.mxu0 0
      %1813 = vmatpush2.bf16.msra.mxu0 0
      %1814 = vmatprep.subr.bf16.mxu0 0
      %1815 = vmatpush2.bf16.msra.mxu0 0
      %1816 = vmatprep.subr.bf16.mxu0 0
      %1817 = vmatpush2.bf16.msra.mxu0 0
      %1818 = vmatprep.subr.bf16.mxu0 0
      %1819 = vmatpush2.bf16.msra.mxu0 0
      %1820 = vmatprep.subr.bf16.mxu0 0
      %1821 = vmatpush2.bf16.msra.mxu0 0
      %1822 = vmatprep.mubr.bf16.mxu0 0
      %1823 = vmatmul.mubr.bf16.gmra.mxu0 %v1691
      %v1824 = vpop.f32.mrf.mxu0
      %v1825 = vadd.f32 0.0, %v1824
      %v1826 = vpop.f32.mrf.mxu0
      %v1827 = vadd.f32 0.0, %v1826
      %v1828 = vpop.f32.mrf.mxu0
      %v1829 = vadd.f32 0.0, %v1828
      %v1830 = vpop.f32.mrf.mxu0
      %v1831 = vadd.f32 0.0, %v1830
      %1832 = vdwg.mxu0
      %1833 = vmatprep.subr.bf16.mxu0 0
      %1834 = vmatpush1.bf16.msra.mxu0 0
      %1835 = vmatprep.subr.bf16.mxu0 0
      %1836 = vmatpush1.bf16.msra.mxu0 0
      %1837 = vmatprep.subr.bf16.mxu0 0
      %1838 = vmatpush1.bf16.msra.mxu0 0
      %1839 = vmatprep.subr.bf16.mxu0 0
      %1840 = vmatpush1.bf16.msra.mxu0 0
      %1841 = vmatprep.subr.bf16.mxu0 0
      %1842 = vmatpush1.bf16.msra.mxu0 0
      %1843 = vmatprep.subr.bf16.mxu0 0
      %1844 = vmatpush1.bf16.msra.mxu0 0
      %1845 = vmatprep.subr.bf16.mxu0 0
      %1846 = vmatpush1.bf16.msra.mxu0 0
      %1847 = vmatprep.subr.bf16.mxu0 %v1709
      %1848 = vmatpush1.bf16.msra.mxu0 %v1706
      %1849 = vmatprep.subr.bf16.mxu0 0
      %1850 = vmatpush2.bf16.msra.mxu0 0
      %1851 = vmatprep.subr.bf16.mxu0 0
      %1852 = vmatpush2.bf16.msra.mxu0 0
      %1853 = vmatprep.subr.bf16.mxu0 0
      %1854 = vmatpush2.bf16.msra.mxu0 0
      %1855 = vmatprep.subr.bf16.mxu0 0
      %1856 = vmatpush2.bf16.msra.mxu0 0
      %1857 = vmatprep.subr.bf16.mxu0 0
      %1858 = vmatpush2.bf16.msra.mxu0 0
      %1859 = vmatprep.subr.bf16.mxu0 0
      %1860 = vmatpush2.bf16.msra.mxu0 0
      %1861 = vmatprep.subr.bf16.mxu0 0
      %1862 = vmatpush2.bf16.msra.mxu0 0
      %1863 = vmatprep.subr.bf16.mxu0 0
      %1864 = vmatpush2.bf16.msra.mxu0 0
      %1865 = vmatprep.mubr.bf16.mxu0 0
      %1866 = vmatmul.mubr.bf16.gmra.mxu0 %v1691
      %v1867 = vpop.f32.mrf.mxu0
      %v1868 = vadd.f32 0.0, %v1867
      %v1869 = vpop.f32.mrf.mxu0
      %v1870 = vadd.f32 0.0, %v1869
      %v1871 = vpop.f32.mrf.mxu0
      %v1872 = vadd.f32 0.0, %v1871
      %v1873 = vpop.f32.mrf.mxu0
      %v1874 = vadd.f32 0.0, %v1873
      %1875 = vdwg.mxu0
      %1876 = vmatprep.subr.bf16.mxu0 0
      %1877 = vmatpush1.bf16.msra.mxu0 0
      %1878 = vmatprep.subr.bf16.mxu0 0
      %1879 = vmatpush1.bf16.msra.mxu0 0
      %1880 = vmatprep.subr.bf16.mxu0 0
      %1881 = vmatpush1.bf16.msra.mxu0 0
      %1882 = vmatprep.subr.bf16.mxu0 0
      %1883 = vmatpush1.bf16.msra.mxu0 0
      %1884 = vmatprep.subr.bf16.mxu0 0
      %1885 = vmatpush1.bf16.msra.mxu0 0
      %1886 = vmatprep.subr.bf16.mxu0 0
      %1887 = vmatpush1.bf16.msra.mxu0 0
      %1888 = vmatprep.subr.bf16.mxu0 0
      %1889 = vmatpush1.bf16.msra.mxu0 0
      %1890 = vmatprep.subr.bf16.mxu0 %v1715
      %1891 = vmatpush1.bf16.msra.mxu0 %v1712
      %1892 = vmatprep.subr.bf16.mxu0 0
      %1893 = vmatpush2.bf16.msra.mxu0 0
      %1894 = vmatprep.subr.bf16.mxu0 0
      %1895 = vmatpush2.bf16.msra.mxu0 0
      %1896 = vmatprep.subr.bf16.mxu0 0
      %1897 = vmatpush2.bf16.msra.mxu0 0
      %1898 = vmatprep.subr.bf16.mxu0 0
      %1899 = vmatpush2.bf16.msra.mxu0 0
      %1900 = vmatprep.subr.bf16.mxu0 0
      %1901 = vmatpush2.bf16.msra.mxu0 0
      %1902 = vmatprep.subr.bf16.mxu0 0
      %1903 = vmatpush2.bf16.msra.mxu0 0
      %1904 = vmatprep.subr.bf16.mxu0 0
      %1905 = vmatpush2.bf16.msra.mxu0 0
      %1906 = vmatprep.subr.bf16.mxu0 0
      %1907 = vmatpush2.bf16.msra.mxu0 0
      %1908 = vmatprep.mubr.bf16.mxu0 0
      %1909 = vmatmul.mubr.bf16.gmra.mxu0 %v1691
      %v1910 = vpop.f32.mrf.mxu0
      %v1911 = vadd.f32 0.0, %v1910
      %v1912 = vpop.f32.mrf.mxu0
      %v1913 = vadd.f32 0.0, %v1912
      %v1914 = vpop.f32.mrf.mxu0
      %v1915 = vadd.f32 0.0, %v1914
      %v1916 = vpop.f32.mrf.mxu0
      %v1917 = vadd.f32 0.0, %v1916
      %1918 = vdwg.mxu0
      %1919 = vmatprep.subr.bf16.mxu0 0
      %1920 = vmatpush1.bf16.msra.mxu0 0
      %1921 = vmatprep.subr.bf16.mxu0 0
      %1922 = vmatpush1.bf16.msra.mxu0 0
      %1923 = vmatprep.subr.bf16.mxu0 0
      %1924 = vmatpush1.bf16.msra.mxu0 0
      %1925 = vmatprep.subr.bf16.mxu0 0
      %1926 = vmatpush1.bf16.msra.mxu0 0
      %1927 = vmatprep.subr.bf16.mxu0 0
      %1928 = vmatpush1.bf16.msra.mxu0 0
      %1929 = vmatprep.subr.bf16.mxu0 0
      %1930 = vmatpush1.bf16.msra.mxu0 0
      %1931 = vmatprep.subr.bf16.mxu0 0
      %1932 = vmatpush1.bf16.msra.mxu0 0
      %1933 = vmatprep.subr.bf16.mxu0 %v1721
      %1934 = vmatpush1.bf16.msra.mxu0 %v1718
      %1935 = vmatprep.subr.bf16.mxu0 0
      %1936 = vmatpush2.bf16.msra.mxu0 0
      %1937 = vmatprep.subr.bf16.mxu0 0
      %1938 = vmatpush2.bf16.msra.mxu0 0
      %1939 = vmatprep.subr.bf16.mxu0 0
      %1940 = vmatpush2.bf16.msra.mxu0 0
      %1941 = vmatprep.subr.bf16.mxu0 0
      %1942 = vmatpush2.bf16.msra.mxu0 0
      %1943 = vmatprep.subr.bf16.mxu0 0
      %1944 = vmatpush2.bf16.msra.mxu0 0
      %1945 = vmatprep.subr.bf16.mxu0 0
      %1946 = vmatpush2.bf16.msra.mxu0 0
      %1947 = vmatprep.subr.bf16.mxu0 0
      %1948 = vmatpush2.bf16.msra.mxu0 0
      %1949 = vmatprep.subr.bf16.mxu0 0
      %1950 = vmatpush2.bf16.msra.mxu0 0
      %1951 = vmatprep.mubr.bf16.mxu0 0
      %1952 = vmatmul.mubr.bf16.gmra.mxu0 %v1691
      %v1953 = vpop.f32.mrf.mxu0
      %v1954 = vadd.f32 0.0, %v1953
      %v1955 = vpop.f32.mrf.mxu0
      %v1956 = vadd.f32 0.0, %v1955
      %v1957 = vpop.f32.mrf.mxu0
      %v1958 = vadd.f32 0.0, %v1957
      %v1959 = vpop.f32.mrf.mxu0
      %v1960 = vadd.f32 0.0, %v1959
      %1961 = vdwg.mxu0
      %1962 = vmatprep.subr.bf16.mxu0 0
      %1963 = vmatpush1.bf16.msra.mxu0 0
      %1964 = vmatprep.subr.bf16.mxu0 0
      %1965 = vmatpush1.bf16.msra.mxu0 0
      %1966 = vmatprep.subr.bf16.mxu0 0
      %1967 = vmatpush1.bf16.msra.mxu0 0
      %1968 = vmatprep.subr.bf16.mxu0 0
      %1969 = vmatpush1.bf16.msra.mxu0 0
      %1970 = vmatprep.subr.bf16.mxu0 0
      %1971 = vmatpush1.bf16.msra.mxu0 0
      %1972 = vmatprep.subr.bf16.mxu0 0
      %1973 = vmatpush1.bf16.msra.mxu0 0
      %1974 = vmatprep.subr.bf16.mxu0 0
      %1975 = vmatpush1.bf16.msra.mxu0 0
      %1976 = vmatprep.subr.bf16.mxu0 %v1727
      %1977 = vmatpush1.bf16.msra.mxu0 %v1724
      %1978 = vmatprep.subr.bf16.mxu0 0
      %1979 = vmatpush2.bf16.msra.mxu0 0
      %1980 = vmatprep.subr.bf16.mxu0 0
      %1981 = vmatpush2.bf16.msra.mxu0 0
      %1982 = vmatprep.subr.bf16.mxu0 0
      %1983 = vmatpush2.bf16.msra.mxu0 0
      %1984 = vmatprep.subr.bf16.mxu0 0
      %1985 = vmatpush2.bf16.msra.mxu0 0
      %1986 = vmatprep.subr.bf16.mxu0 0
      %1987 = vmatpush2.bf16.msra.mxu0 0
      %1988 = vmatprep.subr.bf16.mxu0 0
      %1989 = vmatpush2.bf16.msra.mxu0 0
      %1990 = vmatprep.subr.bf16.mxu0 0
      %1991 = vmatpush2.bf16.msra.mxu0 0
      %1992 = vmatprep.subr.bf16.mxu0 0
      %1993 = vmatpush2.bf16.msra.mxu0 0
      %1994 = vmatprep.mubr.bf16.mxu0 0
      %1995 = vmatmul.mubr.bf16.gmra.mxu0 %v1691
      %v1996 = vpop.f32.mrf.mxu0
      %v1997 = vadd.f32 0.0, %v1996
      %v1998 = vpop.f32.mrf.mxu0
      %v1999 = vadd.f32 0.0, %v1998
      %v2000 = vpop.f32.mrf.mxu0
      %v2001 = vadd.f32 0.0, %v2000
      %v2002 = vpop.f32.mrf.mxu0
      %v2003 = vadd.f32 0.0, %v2002
      %2004 = vdwg.mxu0
      %2005 = vmatprep.subr.bf16.mxu0 0
      %2006 = vmatpush1.bf16.msra.mxu0 0
      %2007 = vmatprep.subr.bf16.mxu0 0
      %2008 = vmatpush1.bf16.msra.mxu0 0
      %2009 = vmatprep.subr.bf16.mxu0 0
      %2010 = vmatpush1.bf16.msra.mxu0 0
      %2011 = vmatprep.subr.bf16.mxu0 0
      %2012 = vmatpush1.bf16.msra.mxu0 0
      %2013 = vmatprep.subr.bf16.mxu0 0
      %2014 = vmatpush1.bf16.msra.mxu0 0
      %2015 = vmatprep.subr.bf16.mxu0 0
      %2016 = vmatpush1.bf16.msra.mxu0 0
      %2017 = vmatprep.subr.bf16.mxu0 0
      %2018 = vmatpush1.bf16.msra.mxu0 0
      %2019 = vmatprep.subr.bf16.mxu0 %v1733
      %2020 = vmatpush1.bf16.msra.mxu0 %v1730
      %2021 = vmatprep.subr.bf16.mxu0 0
      %2022 = vmatpush2.bf16.msra.mxu0 0
      %2023 = vmatprep.subr.bf16.mxu0 0
      %2024 = vmatpush2.bf16.msra.mxu0 0
      %2025 = vmatprep.subr.bf16.mxu0 0
      %2026 = vmatpush2.bf16.msra.mxu0 0
      %2027 = vmatprep.subr.bf16.mxu0 0
      %2028 = vmatpush2.bf16.msra.mxu0 0
      %2029 = vmatprep.subr.bf16.mxu0 0
      %2030 = vmatpush2.bf16.msra.mxu0 0
      %2031 = vmatprep.subr.bf16.mxu0 0
      %2032 = vmatpush2.bf16.msra.mxu0 0
      %2033 = vmatprep.subr.bf16.mxu0 0
      %2034 = vmatpush2.bf16.msra.mxu0 0
      %2035 = vmatprep.subr.bf16.mxu0 0
      %2036 = vmatpush2.bf16.msra.mxu0 0
      %2037 = vmatprep.mubr.bf16.mxu0 0
      %2038 = vmatmul.mubr.bf16.gmra.mxu0 %v1691
      %v2039 = vpop.f32.mrf.mxu0
      %v2040 = vadd.f32 0.0, %v2039
      %v2041 = vpop.f32.mrf.mxu0
      %v2042 = vadd.f32 0.0, %v2041
      %v2043 = vpop.f32.mrf.mxu0
      %v2044 = vadd.f32 0.0, %v2043
      %v2045 = vpop.f32.mrf.mxu0
      %v2046 = vadd.f32 0.0, %v2045
      %2047 = vdwg.mxu0
      %2048 = vmatprep.subr.bf16.mxu0 0
      %2049 = vmatpush1.bf16.msra.mxu0 0
      %2050 = vmatprep.subr.bf16.mxu0 0
      %2051 = vmatpush1.bf16.msra.mxu0 0
      %2052 = vmatprep.subr.bf16.mxu0 0
      %2053 = vmatpush1.bf16.msra.mxu0 0
      %2054 = vmatprep.subr.bf16.mxu0 0
      %2055 = vmatpush1.bf16.msra.mxu0 0
      %2056 = vmatprep.subr.bf16.mxu0 0
      %2057 = vmatpush1.bf16.msra.mxu0 0
      %2058 = vmatprep.subr.bf16.mxu0 0
      %2059 = vmatpush1.bf16.msra.mxu0 0
      %2060 = vmatprep.subr.bf16.mxu0 0
      %2061 = vmatpush1.bf16.msra.mxu0 0
      %2062 = vmatprep.subr.bf16.mxu0 %v1739
      %2063 = vmatpush1.bf16.msra.mxu0 %v1736
      %2064 = vmatprep.subr.bf16.mxu0 0
      %2065 = vmatpush2.bf16.msra.mxu0 0
      %2066 = vmatprep.subr.bf16.mxu0 0
      %2067 = vmatpush2.bf16.msra.mxu0 0
      %2068 = vmatprep.subr.bf16.mxu0 0
      %2069 = vmatpush2.bf16.msra.mxu0 0
      %2070 = vmatprep.subr.bf16.mxu0 0
      %2071 = vmatpush2.bf16.msra.mxu0 0
      %2072 = vmatprep.subr.bf16.mxu0 0
      %2073 = vmatpush2.bf16.msra.mxu0 0
      %2074 = vmatprep.subr.bf16.mxu0 0
      %2075 = vmatpush2.bf16.msra.mxu0 0
      %2076 = vmatprep.subr.bf16.mxu0 0
      %2077 = vmatpush2.bf16.msra.mxu0 0
      %2078 = vmatprep.subr.bf16.mxu0 0
      %2079 = vmatpush2.bf16.msra.mxu0 0
      %2080 = vmatprep.mubr.bf16.mxu0 0
      %2081 = vmatmul.mubr.bf16.gmra.mxu0 %v1691
      %v2082 = vpop.f32.mrf.mxu0
      %v2083 = vadd.f32 0.0, %v2082
      %v2084 = vpop.f32.mrf.mxu0
      %v2085 = vadd.f32 0.0, %v2084
      %v2086 = vpop.f32.mrf.mxu0
      %v2087 = vadd.f32 0.0, %v2086
      %v2088 = vpop.f32.mrf.mxu0
      %v2089 = vadd.f32 0.0, %v2088
      %2090 = vdwg.mxu0
      %2091 = vmatprep.subr.bf16.mxu0 0
      %2092 = vmatpush1.bf16.msra.mxu0 0
      %2093 = vmatprep.subr.bf16.mxu0 0
      %2094 = vmatpush1.bf16.msra.mxu0 0
      %2095 = vmatprep.subr.bf16.mxu0 0
      %2096 = vmatpush1.bf16.msra.mxu0 0
      %2097 = vmatprep.subr.bf16.mxu0 0
      %2098 = vmatpush1.bf16.msra.mxu0 0
      %2099 = vmatprep.subr.bf16.mxu0 0
      %2100 = vmatpush1.bf16.msra.mxu0 0
      %2101 = vmatprep.subr.bf16.mxu0 0
      %2102 = vmatpush1.bf16.msra.mxu0 0
      %2103 = vmatprep.subr.bf16.mxu0 0
      %2104 = vmatpush1.bf16.msra.mxu0 0
      %2105 = vmatprep.subr.bf16.mxu0 %v1745
      %2106 = vmatpush1.bf16.msra.mxu0 %v1742
      %2107 = vmatprep.subr.bf16.mxu0 0
      %2108 = vmatpush2.bf16.msra.mxu0 0
      %2109 = vmatprep.subr.bf16.mxu0 0
      %2110 = vmatpush2.bf16.msra.mxu0 0
      %2111 = vmatprep.subr.bf16.mxu0 0
      %2112 = vmatpush2.bf16.msra.mxu0 0
      %2113 = vmatprep.subr.bf16.mxu0 0
      %2114 = vmatpush2.bf16.msra.mxu0 0
      %2115 = vmatprep.subr.bf16.mxu0 0
      %2116 = vmatpush2.bf16.msra.mxu0 0
      %2117 = vmatprep.subr.bf16.mxu0 0
      %2118 = vmatpush2.bf16.msra.mxu0 0
      %2119 = vmatprep.subr.bf16.mxu0 0
      %2120 = vmatpush2.bf16.msra.mxu0 0
      %2121 = vmatprep.subr.bf16.mxu0 0
      %2122 = vmatpush2.bf16.msra.mxu0 0
      %2123 = vmatprep.mubr.bf16.mxu0 0
      %2124 = vmatmul.mubr.bf16.gmra.mxu0 %v1691
      %v2125 = vpop.f32.mrf.mxu0
      %v2126 = vadd.f32 0.0, %v2125
      %v2127 = vpop.f32.mrf.mxu0
      %v2128 = vadd.f32 0.0, %v2127
      %v2129 = vpop.f32.mrf.mxu0
      %v2130 = vadd.f32 0.0, %v2129
      %v2131 = vpop.f32.mrf.mxu0
      %v2132 = vadd.f32 0.0, %v2131
      %2133 = vdwg.mxu0
      %v2134 = vadd.f32 %v1495, %v1782
      %v2135 = vadd.f32 %v1496, %v1784
      %v2136 = vadd.f32 %v1497, %v1825
      %v2137 = vadd.f32 %v1498, %v1827
      %v2138 = vadd.f32 %v1499, %v1868
      %v2139 = vadd.f32 %v1500, %v1870
      %v2140 = vadd.f32 %v1501, %v1911
      %v2141 = vadd.f32 %v1502, %v1913
      %v2142 = vadd.f32 %v1503, %v1954
      %v2143 = vadd.f32 %v1504, %v1956
      %v2144 = vadd.f32 %v1505, %v1997
      %v2145 = vadd.f32 %v1506, %v1999
      %v2146 = vadd.f32 %v1507, %v2040
      %v2147 = vadd.f32 %v1508, %v2042
      %v2148 = vadd.f32 %v1509, %v2083
      %v2149 = vadd.f32 %v1510, %v2085
      %v2150 = vadd.f32 %v1511, %v2126
      %v2151 = vadd.f32 %v1512, %v2128
      %v2152 = vadd.f32 %v1513, %v1786
      %v2153 = vadd.f32 %v1514, %v1788
      %v2154 = vadd.f32 %v1515, %v1829
      %v2155 = vadd.f32 %v1516, %v1831
      %v2156 = vadd.f32 %v1517, %v1872
      %v2157 = vadd.f32 %v1518, %v1874
      %v2158 = vadd.f32 %v1519, %v1915
      %v2159 = vadd.f32 %v1520, %v1917
      %v2160 = vadd.f32 %v1521, %v1958
      %v2161 = vadd.f32 %v1522, %v1960
      %v2162 = vadd.f32 %v1523, %v2001
      %v2163 = vadd.f32 %v1524, %v2003
      %v2164 = vadd.f32 %v1525, %v2044
      %v2165 = vadd.f32 %v1526, %v2046
      %v2166 = vadd.f32 %v1527, %v2087
      %v2167 = vadd.f32 %v1528, %v2089
      %v2168 = vadd.f32 %v1529, %v2130
      %v2169 = vadd.f32 %v1530, %v2132
      %2170 = vst [vmem:[#allocation2] sm:$0xff] %v2134
      %2171 = vst [vmem:[#allocation2 + $0x8] sm:$0xff] %v2135
      %2172 = vst [vmem:[#allocation2 + $0x10] sm:$0xff] %v2136
      %2173 = vst [vmem:[#allocation2 + $0x18] sm:$0xff] %v2137
      %2174 = vst [vmem:[#allocation2 + $0x20] sm:$0xff] %v2138
      %2175 = vst [vmem:[#allocation2 + $0x28] sm:$0xff] %v2139
      %2176 = vst [vmem:[#allocation2 + $0x30] sm:$0xff] %v2140
      %2177 = vst [vmem:[#allocation2 + $0x38] sm:$0xff] %v2141
      %2178 = vst [vmem:[#allocation2 + $0x40] sm:$0xff] %v2142
      %2179 = vst [vmem:[#allocation2 + $0x48] sm:$0xff] %v2143
      %2180 = vst [vmem:[#allocation2 + $0x50] sm:$0xff] %v2144
      %2181 = vst [vmem:[#allocation2 + $0x58] sm:$0xff] %v2145
      %2182 = vst [vmem:[#allocation2 + $0x60] sm:$0xff] %v2146
      %2183 = vst [vmem:[#allocation2 + $0x68] sm:$0xff] %v2147
      %2184 = vst [vmem:[#allocation2 + $0x70] sm:$0xff] %v2148
      %2185 = vst [vmem:[#allocation2 + $0x78] sm:$0xff] %v2149
      %2186 = vst [vmem:[#allocation2 + $0x80] sm:$0xff] %v2150
      %2187 = vst [vmem:[#allocation2 + $0x88] sm:$0xff] %v2151
      %2188 = vst [vmem:[#allocation2 + $0x90] sm:$0x3f] %v2152
      %2189 = vst [vmem:[#allocation2 + $0x98] sm:$0x3f] %v2153
      %2190 = vst [vmem:[#allocation2 + $0xa0] sm:$0x3f] %v2154
      %2191 = vst [vmem:[#allocation2 + $0xa8] sm:$0x3f] %v2155
      %2192 = vst [vmem:[#allocation2 + $0xb0] sm:$0x3f] %v2156
      %2193 = vst [vmem:[#allocation2 + $0xb8] sm:$0x3f] %v2157
      %2194 = vst [vmem:[#allocation2 + $0xc0] sm:$0x3f] %v2158
      %2195 = vst [vmem:[#allocation2 + $0xc8] sm:$0x3f] %v2159
      %2196 = vst [vmem:[#allocation2 + $0xd0] sm:$0x3f] %v2160
      %2197 = vst [vmem:[#allocation2 + $0xd8] sm:$0x3f] %v2161
      %2198 = vst [vmem:[#allocation2 + $0xe0] sm:$0x3f] %v2162
      %2199 = vst [vmem:[#allocation2 + $0xe8] sm:$0x3f] %v2163
      %2200 = vst [vmem:[#allocation2 + $0xf0] sm:$0x3f] %v2164
      %2201 = vst [vmem:[#allocation2 + $0xf8] sm:$0x3f] %v2165
      %2202 = vst [vmem:[#allocation2 + $0x100] sm:$0x3f] %v2166
      %2203 = vst [vmem:[#allocation2 + $0x108] sm:$0x3f] %v2167
      %2204 = vst [vmem:[#allocation2 + $0x110] sm:$0x3f] %v2168
      %2205 = vst [vmem:[#allocation2 + $0x118] sm:$0x3f] %v2169
      %v2206 = vld [vmem:[#allocation2] sm:$0xff]
      %v2207 = vld [vmem:[#allocation2 + $0x8] sm:$0xff]
      %v2208 = vld [vmem:[#allocation2 + $0x10] sm:$0xff]
      %v2209 = vld [vmem:[#allocation2 + $0x18] sm:$0xff]
      %v2210 = vld [vmem:[#allocation2 + $0x20] sm:$0xff]
      %v2211 = vld [vmem:[#allocation2 + $0x28] sm:$0xff]
      %v2212 = vld [vmem:[#allocation2 + $0x30] sm:$0xff]
      %v2213 = vld [vmem:[#allocation2 + $0x38] sm:$0xff]
      %v2214 = vld [vmem:[#allocation2 + $0x40] sm:$0xff]
      %v2215 = vld [vmem:[#allocation2 + $0x48] sm:$0xff]
      %v2216 = vld [vmem:[#allocation2 + $0x50] sm:$0xff]
      %v2217 = vld [vmem:[#allocation2 + $0x58] sm:$0xff]
      %v2218 = vld [vmem:[#allocation2 + $0x60] sm:$0xff]
      %v2219 = vld [vmem:[#allocation2 + $0x68] sm:$0xff]
      %v2220 = vld [vmem:[#allocation2 + $0x70] sm:$0xff]
      %v2221 = vld [vmem:[#allocation2 + $0x78] sm:$0xff]
      %v2222 = vld [vmem:[#allocation2 + $0x80] sm:$0xff]
      %v2223 = vld [vmem:[#allocation2 + $0x88] sm:$0xff]
      %v2224 = vld [vmem:[#allocation2 + $0x90] sm:$0x3f]
      %v2225 = vld [vmem:[#allocation2 + $0x98] sm:$0x3f]
      %v2226 = vld [vmem:[#allocation2 + $0xa0] sm:$0x3f]
      %v2227 = vld [vmem:[#allocation2 + $0xa8] sm:$0x3f]
      %v2228 = vld [vmem:[#allocation2 + $0xb0] sm:$0x3f]
      %v2229 = vld [vmem:[#allocation2 + $0xb8] sm:$0x3f]
      %v2230 = vld [vmem:[#allocation2 + $0xc0] sm:$0x3f]
      %v2231 = vld [vmem:[#allocation2 + $0xc8] sm:$0x3f]
      %v2232 = vld [vmem:[#allocation2 + $0xd0] sm:$0x3f]
      %v2233 = vld [vmem:[#allocation2 + $0xd8] sm:$0x3f]
      %v2234 = vld [vmem:[#allocation2 + $0xe0] sm:$0x3f]
      %v2235 = vld [vmem:[#allocation2 + $0xe8] sm:$0x3f]
      %v2236 = vld [vmem:[#allocation2 + $0xf0] sm:$0x3f]
      %v2237 = vld [vmem:[#allocation2 + $0xf8] sm:$0x3f]
      %v2238 = vld [vmem:[#allocation2 + $0x100] sm:$0x3f]
      %v2239 = vld [vmem:[#allocation2 + $0x108] sm:$0x3f]
      %v2240 = vld [vmem:[#allocation2 + $0x110] sm:$0x3f]
      %v2241 = vld [vmem:[#allocation2 + $0x118] sm:$0x3f]
      %s2242 = scalar_lea.vmem %s1, 24
      %v2243 = vld [vmem:[%s2242] sm:$0xf]
      %v2244 = vld [vmem:[%s2242 + $0x4] sm:$0x7]
      %v2245 = vld [vmem:[%s197] sm:$0xff]
      %v2246 = vld [vmem:[%s197 + $0x8] sm:$0xff]
      %v2247 = vld [vmem:[%s197 + $0x10] sm:$0xff]
      %v2248 = vld [vmem:[%s197 + $0x18] sm:$0xff]
      %v2249 = vld [vmem:[%s197 + $0x20] sm:$0x3f]
      %v2252 = vunpack.c.l.b16 %v2243
      %v2253 = vunpack.c.l.b16 %v2244
      %v2254 = vpack.c.b16 %v2253, %v2252
      %v2260 = vcombine.high %v2245, %v2245
      %v2262 = vunpack.c.l.s4 1983009808
      %v2263 = vunpack.c.0.s8 %v2262
      %v2264 = vlaneseq
      %v2265 = vshrl.u32 %v2264, 7
      %v2266 = vsub.s32 %v2263, %v2265
      %v2267 = vrot.slane %v2245, %v2266
      %v2269 = vunpack.c.l.s4 1983009808
      %v2270 = vunpack.c.0.s8 %v2269
      %v2271 = vlaneseq
      %v2272 = vshrl.u32 %v2271, 7
      %v2273 = vsub.s32 %v2270, %v2272
      %v2274 = vrot.slane %v2260, %v2273
      %v2275 = vcombine.high %v2267, %v2267
      %v2276 = vcombine.high %v2274, %v2274
      %v2277 = vcombine.high %v2246, %v2246
      %v2279 = vunpack.c.l.s4 1983009808
      %v2280 = vunpack.c.0.s8 %v2279
      %v2281 = vlaneseq
      %v2282 = vshrl.u32 %v2281, 7
      %v2283 = vsub.s32 %v2280, %v2282
      %v2284 = vrot.slane %v2246, %v2283
      %v2286 = vunpack.c.l.s4 1983009808
      %v2287 = vunpack.c.0.s8 %v2286
      %v2288 = vlaneseq
      %v2289 = vshrl.u32 %v2288, 7
      %v2290 = vsub.s32 %v2287, %v2289
      %v2291 = vrot.slane %v2277, %v2290
      %v2292 = vcombine.high %v2284, %v2284
      %v2293 = vcombine.high %v2291, %v2291
      %v2294 = vcombine.high %v2247, %v2247
      %v2296 = vunpack.c.l.s4 1983009808
      %v2297 = vunpack.c.0.s8 %v2296
      %v2298 = vlaneseq
      %v2299 = vshrl.u32 %v2298, 7
      %v2300 = vsub.s32 %v2297, %v2299
      %v2301 = vrot.slane %v2247, %v2300
      %v2303 = vunpack.c.l.s4 1983009808
      %v2304 = vunpack.c.0.s8 %v2303
      %v2305 = vlaneseq
      %v2306 = vshrl.u32 %v2305, 7
      %v2307 = vsub.s32 %v2304, %v2306
      %v2308 = vrot.slane %v2294, %v2307
      %v2309 = vcombine.high %v2301, %v2301
      %v2310 = vcombine.high %v2308, %v2308
      %v2311 = vcombine.high %v2248, %v2248
      %v2313 = vunpack.c.l.s4 1983009808
      %v2314 = vunpack.c.0.s8 %v2313
      %v2315 = vlaneseq
      %v2316 = vshrl.u32 %v2315, 7
      %v2317 = vsub.s32 %v2314, %v2316
      %v2318 = vrot.slane %v2248, %v2317
      %v2320 = vunpack.c.l.s4 1983009808
      %v2321 = vunpack.c.0.s8 %v2320
      %v2322 = vlaneseq
      %v2323 = vshrl.u32 %v2322, 7
      %v2324 = vsub.s32 %v2321, %v2323
      %v2325 = vrot.slane %v2311, %v2324
      %v2326 = vcombine.high %v2318, %v2318
      %v2327 = vcombine.high %v2325, %v2325
      %v2328 = vcombine.high %v2249, %v2249
      %v2330 = vunpack.c.l.s4 1983009808
      %v2331 = vunpack.c.0.s8 %v2330
      %v2332 = vlaneseq
      %v2333 = vshrl.u32 %v2332, 7
      %v2334 = vsub.s32 %v2331, %v2333
      %v2335 = vrot.slane %v2249, %v2334
      %v2337 = vunpack.c.l.s4 1983009808
      %v2338 = vunpack.c.0.s8 %v2337
      %v2339 = vlaneseq
      %v2340 = vshrl.u32 %v2339, 7
      %v2341 = vsub.s32 %v2338, %v2340
      %v2342 = vrot.slane %v2328, %v2341
      %v2343 = vcombine.high %v2335, %v2335
      %2344 = vrot.lane.b32.xlu0 %v2267, 110
      %v2345 = vpop.permute.xlu0 %2344
      %2346 = vrot.lane.b32.xlu0 %v2275, 110
      %v2347 = vpop.permute.xlu0 %2346
      %2348 = vrot.lane.b32.xlu0 %v2274, 110
      %v2349 = vpop.permute.xlu0 %2348
      %2350 = vrot.lane.b32.xlu0 %v2276, 110
      %v2351 = vpop.permute.xlu0 %2350
      %2352 = vrot.lane.b32.xlu0 %v2284, 110
      %v2353 = vpop.permute.xlu0 %2352
      %2354 = vrot.lane.b32.xlu0 %v2292, 110
      %v2355 = vpop.permute.xlu0 %2354
      %2356 = vrot.lane.b32.xlu0 %v2291, 110
      %v2357 = vpop.permute.xlu0 %2356
      %2358 = vrot.lane.b32.xlu0 %v2293, 110
      %v2359 = vpop.permute.xlu0 %2358
      %2360 = vrot.lane.b32.xlu0 %v2301, 110
      %v2361 = vpop.permute.xlu0 %2360
      %2362 = vrot.lane.b32.xlu0 %v2309, 110
      %v2363 = vpop.permute.xlu0 %2362
      %2364 = vrot.lane.b32.xlu0 %v2308, 110
      %v2365 = vpop.permute.xlu0 %2364
      %2366 = vrot.lane.b32.xlu0 %v2310, 110
      %v2367 = vpop.permute.xlu0 %2366
      %2368 = vrot.lane.b32.xlu0 %v2318, 110
      %v2369 = vpop.permute.xlu0 %2368
      %2370 = vrot.lane.b32.xlu0 %v2326, 110
      %v2371 = vpop.permute.xlu0 %2370
      %2372 = vrot.lane.b32.xlu0 %v2325, 110
      %v2373 = vpop.permute.xlu0 %2372
      %2374 = vrot.lane.b32.xlu0 %v2327, 110
      %v2375 = vpop.permute.xlu0 %2374
      %2376 = vrot.lane.b32.xlu0 %v2335, 110
      %v2377 = vpop.permute.xlu0 %2376
      %2378 = vrot.lane.b32.xlu0 %v2343, 110
      %v2379 = vpop.permute.xlu0 %2378
      %2380 = vrot.lane.b32.xlu0 %v2342, 110
      %v2381 = vpop.permute.xlu0 %2380
      %vm2382 = vcmask 900096
      %v2383 = vsel %vm2382, %v2345, %v2347
      %v2384 = vsel %vm2382, %v2347, %v2349
      %v2385 = vsel %vm2382, %v2349, %v2351
      %v2386 = vsel %vm2382, %v2351, %v2353
      %v2387 = vsel %vm2382, %v2353, %v2355
      %v2388 = vsel %vm2382, %v2355, %v2357
      %v2389 = vsel %vm2382, %v2357, %v2359
      %v2390 = vsel %vm2382, %v2359, %v2361
      %v2391 = vsel %vm2382, %v2361, %v2363
      %v2392 = vsel %vm2382, %v2363, %v2365
      %v2393 = vsel %vm2382, %v2365, %v2367
      %v2394 = vsel %vm2382, %v2367, %v2369
      %v2395 = vsel %vm2382, %v2369, %v2371
      %v2396 = vsel %vm2382, %v2371, %v2373
      %v2397 = vsel %vm2382, %v2373, %v2375
      %v2398 = vsel %vm2382, %v2375, %v2377
      %v2399 = vsel %vm2382, %v2377, %v2379
      %v2400 = vsel %vm2382, %v2379, %v2381
      %v2402 = vsel %vm302, %v2254, 0
      %v2405 = vsel %vm306, %v2383, 0
      %v2408 = vsel %vm306, %v2384, 0
      %v2411 = vsel %vm306, %v2385, 0
      %v2414 = vsel %vm306, %v2386, 0
      %v2417 = vsel %vm306, %v2387, 0
      %v2420 = vsel %vm306, %v2388, 0
      %v2423 = vsel %vm306, %v2389, 0
      %v2426 = vsel %vm306, %v2390, 0
      %v2429 = vsel %vm306, %v2391, 0
      %v2432 = vsel %vm306, %v2392, 0
      %v2435 = vsel %vm306, %v2393, 0
      %v2438 = vsel %vm306, %v2394, 0
      %v2441 = vsel %vm306, %v2395, 0
      %v2444 = vsel %vm306, %v2396, 0
      %v2447 = vsel %vm306, %v2397, 0
      %v2450 = vsel %vm306, %v2398, 0
      %v2453 = vsel %vm306, %v2399, 0
      %v2456 = vsel %vm306, %v2400, 0
      %2458 = vmatprep.subr.bf16.mxu0 0
      %2459 = vmatpush1.bf16.msra.mxu0 0
      %2460 = vmatprep.subr.bf16.mxu0 0
      %2461 = vmatpush1.bf16.msra.mxu0 0
      %2462 = vmatprep.subr.bf16.mxu0 0
      %2463 = vmatpush1.bf16.msra.mxu0 0
      %2464 = vmatprep.subr.bf16.mxu0 0
      %2465 = vmatpush1.bf16.msra.mxu0 0
      %2466 = vmatprep.subr.bf16.mxu0 0
      %2467 = vmatpush1.bf16.msra.mxu0 0
      %2468 = vmatprep.subr.bf16.mxu0 0
      %2469 = vmatpush1.bf16.msra.mxu0 0
      %2470 = vmatprep.subr.bf16.mxu0 0
      %2471 = vmatpush1.bf16.msra.mxu0 0
      %2472 = vmatprep.subr.bf16.mxu0 %v2408
      %2473 = vmatpush1.bf16.msra.mxu0 %v2405
      %2474 = vmatprep.subr.bf16.mxu0 0
      %2475 = vmatpush2.bf16.msra.mxu0 0
      %2476 = vmatprep.subr.bf16.mxu0 0
      %2477 = vmatpush2.bf16.msra.mxu0 0
      %2478 = vmatprep.subr.bf16.mxu0 0
      %2479 = vmatpush2.bf16.msra.mxu0 0
      %2480 = vmatprep.subr.bf16.mxu0 0
      %2481 = vmatpush2.bf16.msra.mxu0 0
      %2482 = vmatprep.subr.bf16.mxu0 0
      %2483 = vmatpush2.bf16.msra.mxu0 0
      %2484 = vmatprep.subr.bf16.mxu0 0
      %2485 = vmatpush2.bf16.msra.mxu0 0
      %2486 = vmatprep.subr.bf16.mxu0 0
      %2487 = vmatpush2.bf16.msra.mxu0 0
      %2488 = vmatprep.subr.bf16.mxu0 0
      %2489 = vmatpush2.bf16.msra.mxu0 0
      %2490 = vmatprep.mubr.bf16.mxu0 0
      %2491 = vmatmul.mubr.bf16.gmra.mxu0 %v2402
      %v2492 = vpop.f32.mrf.mxu0
      %v2493 = vadd.f32 0.0, %v2492
      %v2494 = vpop.f32.mrf.mxu0
      %v2495 = vadd.f32 0.0, %v2494
      %v2496 = vpop.f32.mrf.mxu0
      %v2497 = vadd.f32 0.0, %v2496
      %v2498 = vpop.f32.mrf.mxu0
      %v2499 = vadd.f32 0.0, %v2498
      %2500 = vdwg.mxu0
      %2501 = vmatprep.subr.bf16.mxu0 0
      %2502 = vmatpush1.bf16.msra.mxu0 0
      %2503 = vmatprep.subr.bf16.mxu0 0
      %2504 = vmatpush1.bf16.msra.mxu0 0
      %2505 = vmatprep.subr.bf16.mxu0 0
      %2506 = vmatpush1.bf16.msra.mxu0 0
      %2507 = vmatprep.subr.bf16.mxu0 0
      %2508 = vmatpush1.bf16.msra.mxu0 0
      %2509 = vmatprep.subr.bf16.mxu0 0
      %2510 = vmatpush1.bf16.msra.mxu0 0
      %2511 = vmatprep.subr.bf16.mxu0 0
      %2512 = vmatpush1.bf16.msra.mxu0 0
      %2513 = vmatprep.subr.bf16.mxu0 0
      %2514 = vmatpush1.bf16.msra.mxu0 0
      %2515 = vmatprep.subr.bf16.mxu0 %v2414
      %2516 = vmatpush1.bf16.msra.mxu0 %v2411
      %2517 = vmatprep.subr.bf16.mxu0 0
      %2518 = vmatpush2.bf16.msra.mxu0 0
      %2519 = vmatprep.subr.bf16.mxu0 0
      %2520 = vmatpush2.bf16.msra.mxu0 0
      %2521 = vmatprep.subr.bf16.mxu0 0
      %2522 = vmatpush2.bf16.msra.mxu0 0
      %2523 = vmatprep.subr.bf16.mxu0 0
      %2524 = vmatpush2.bf16.msra.mxu0 0
      %2525 = vmatprep.subr.bf16.mxu0 0
      %2526 = vmatpush2.bf16.msra.mxu0 0
      %2527 = vmatprep.subr.bf16.mxu0 0
      %2528 = vmatpush2.bf16.msra.mxu0 0
      %2529 = vmatprep.subr.bf16.mxu0 0
      %2530 = vmatpush2.bf16.msra.mxu0 0
      %2531 = vmatprep.subr.bf16.mxu0 0
      %2532 = vmatpush2.bf16.msra.mxu0 0
      %2533 = vmatprep.mubr.bf16.mxu0 0
      %2534 = vmatmul.mubr.bf16.gmra.mxu0 %v2402
      %v2535 = vpop.f32.mrf.mxu0
      %v2536 = vadd.f32 0.0, %v2535
      %v2537 = vpop.f32.mrf.mxu0
      %v2538 = vadd.f32 0.0, %v2537
      %v2539 = vpop.f32.mrf.mxu0
      %v2540 = vadd.f32 0.0, %v2539
      %v2541 = vpop.f32.mrf.mxu0
      %v2542 = vadd.f32 0.0, %v2541
      %2543 = vdwg.mxu0
      %2544 = vmatprep.subr.bf16.mxu0 0
      %2545 = vmatpush1.bf16.msra.mxu0 0
      %2546 = vmatprep.subr.bf16.mxu0 0
      %2547 = vmatpush1.bf16.msra.mxu0 0
      %2548 = vmatprep.subr.bf16.mxu0 0
      %2549 = vmatpush1.bf16.msra.mxu0 0
      %2550 = vmatprep.subr.bf16.mxu0 0
      %2551 = vmatpush1.bf16.msra.mxu0 0
      %2552 = vmatprep.subr.bf16.mxu0 0
      %2553 = vmatpush1.bf16.msra.mxu0 0
      %2554 = vmatprep.subr.bf16.mxu0 0
      %2555 = vmatpush1.bf16.msra.mxu0 0
      %2556 = vmatprep.subr.bf16.mxu0 0
      %2557 = vmatpush1.bf16.msra.mxu0 0
      %2558 = vmatprep.subr.bf16.mxu0 %v2420
      %2559 = vmatpush1.bf16.msra.mxu0 %v2417
      %2560 = vmatprep.subr.bf16.mxu0 0
      %2561 = vmatpush2.bf16.msra.mxu0 0
      %2562 = vmatprep.subr.bf16.mxu0 0
      %2563 = vmatpush2.bf16.msra.mxu0 0
      %2564 = vmatprep.subr.bf16.mxu0 0
      %2565 = vmatpush2.bf16.msra.mxu0 0
      %2566 = vmatprep.subr.bf16.mxu0 0
      %2567 = vmatpush2.bf16.msra.mxu0 0
      %2568 = vmatprep.subr.bf16.mxu0 0
      %2569 = vmatpush2.bf16.msra.mxu0 0
      %2570 = vmatprep.subr.bf16.mxu0 0
      %2571 = vmatpush2.bf16.msra.mxu0 0
      %2572 = vmatprep.subr.bf16.mxu0 0
      %2573 = vmatpush2.bf16.msra.mxu0 0
      %2574 = vmatprep.subr.bf16.mxu0 0
      %2575 = vmatpush2.bf16.msra.mxu0 0
      %2576 = vmatprep.mubr.bf16.mxu0 0
      %2577 = vmatmul.mubr.bf16.gmra.mxu0 %v2402
      %v2578 = vpop.f32.mrf.mxu0
      %v2579 = vadd.f32 0.0, %v2578
      %v2580 = vpop.f32.mrf.mxu0
      %v2581 = vadd.f32 0.0, %v2580
      %v2582 = vpop.f32.mrf.mxu0
      %v2583 = vadd.f32 0.0, %v2582
      %v2584 = vpop.f32.mrf.mxu0
      %v2585 = vadd.f32 0.0, %v2584
      %2586 = vdwg.mxu0
      %2587 = vmatprep.subr.bf16.mxu0 0
      %2588 = vmatpush1.bf16.msra.mxu0 0
      %2589 = vmatprep.subr.bf16.mxu0 0
      %2590 = vmatpush1.bf16.msra.mxu0 0
      %2591 = vmatprep.subr.bf16.mxu0 0
      %2592 = vmatpush1.bf16.msra.mxu0 0
      %2593 = vmatprep.subr.bf16.mxu0 0
      %2594 = vmatpush1.bf16.msra.mxu0 0
      %2595 = vmatprep.subr.bf16.mxu0 0
      %2596 = vmatpush1.bf16.msra.mxu0 0
      %2597 = vmatprep.subr.bf16.mxu0 0
      %2598 = vmatpush1.bf16.msra.mxu0 0
      %2599 = vmatprep.subr.bf16.mxu0 0
      %2600 = vmatpush1.bf16.msra.mxu0 0
      %2601 = vmatprep.subr.bf16.mxu0 %v2426
      %2602 = vmatpush1.bf16.msra.mxu0 %v2423
      %2603 = vmatprep.subr.bf16.mxu0 0
      %2604 = vmatpush2.bf16.msra.mxu0 0
      %2605 = vmatprep.subr.bf16.mxu0 0
      %2606 = vmatpush2.bf16.msra.mxu0 0
      %2607 = vmatprep.subr.bf16.mxu0 0
      %2608 = vmatpush2.bf16.msra.mxu0 0
      %2609 = vmatprep.subr.bf16.mxu0 0
      %2610 = vmatpush2.bf16.msra.mxu0 0
      %2611 = vmatprep.subr.bf16.mxu0 0
      %2612 = vmatpush2.bf16.msra.mxu0 0
      %2613 = vmatprep.subr.bf16.mxu0 0
      %2614 = vmatpush2.bf16.msra.mxu0 0
      %2615 = vmatprep.subr.bf16.mxu0 0
      %2616 = vmatpush2.bf16.msra.mxu0 0
      %2617 = vmatprep.subr.bf16.mxu0 0
      %2618 = vmatpush2.bf16.msra.mxu0 0
      %2619 = vmatprep.mubr.bf16.mxu0 0
      %2620 = vmatmul.mubr.bf16.gmra.mxu0 %v2402
      %v2621 = vpop.f32.mrf.mxu0
      %v2622 = vadd.f32 0.0, %v2621
      %v2623 = vpop.f32.mrf.mxu0
      %v2624 = vadd.f32 0.0, %v2623
      %v2625 = vpop.f32.mrf.mxu0
      %v2626 = vadd.f32 0.0, %v2625
      %v2627 = vpop.f32.mrf.mxu0
      %v2628 = vadd.f32 0.0, %v2627
      %2629 = vdwg.mxu0
      %2630 = vmatprep.subr.bf16.mxu0 0
      %2631 = vmatpush1.bf16.msra.mxu0 0
      %2632 = vmatprep.subr.bf16.mxu0 0
      %2633 = vmatpush1.bf16.msra.mxu0 0
      %2634 = vmatprep.subr.bf16.mxu0 0
      %2635 = vmatpush1.bf16.msra.mxu0 0
      %2636 = vmatprep.subr.bf16.mxu0 0
      %2637 = vmatpush1.bf16.msra.mxu0 0
      %2638 = vmatprep.subr.bf16.mxu0 0
      %2639 = vmatpush1.bf16.msra.mxu0 0
      %2640 = vmatprep.subr.bf16.mxu0 0
      %2641 = vmatpush1.bf16.msra.mxu0 0
      %2642 = vmatprep.subr.bf16.mxu0 0
      %2643 = vmatpush1.bf16.msra.mxu0 0
      %2644 = vmatprep.subr.bf16.mxu0 %v2432
      %2645 = vmatpush1.bf16.msra.mxu0 %v2429
      %2646 = vmatprep.subr.bf16.mxu0 0
      %2647 = vmatpush2.bf16.msra.mxu0 0
      %2648 = vmatprep.subr.bf16.mxu0 0
      %2649 = vmatpush2.bf16.msra.mxu0 0
      %2650 = vmatprep.subr.bf16.mxu0 0
      %2651 = vmatpush2.bf16.msra.mxu0 0
      %2652 = vmatprep.subr.bf16.mxu0 0
      %2653 = vmatpush2.bf16.msra.mxu0 0
      %2654 = vmatprep.subr.bf16.mxu0 0
      %2655 = vmatpush2.bf16.msra.mxu0 0
      %2656 = vmatprep.subr.bf16.mxu0 0
      %2657 = vmatpush2.bf16.msra.mxu0 0
      %2658 = vmatprep.subr.bf16.mxu0 0
      %2659 = vmatpush2.bf16.msra.mxu0 0
      %2660 = vmatprep.subr.bf16.mxu0 0
      %2661 = vmatpush2.bf16.msra.mxu0 0
      %2662 = vmatprep.mubr.bf16.mxu0 0
      %2663 = vmatmul.mubr.bf16.gmra.mxu0 %v2402
      %v2664 = vpop.f32.mrf.mxu0
      %v2665 = vadd.f32 0.0, %v2664
      %v2666 = vpop.f32.mrf.mxu0
      %v2667 = vadd.f32 0.0, %v2666
      %v2668 = vpop.f32.mrf.mxu0
      %v2669 = vadd.f32 0.0, %v2668
      %v2670 = vpop.f32.mrf.mxu0
      %v2671 = vadd.f32 0.0, %v2670
      %2672 = vdwg.mxu0
      %2673 = vmatprep.subr.bf16.mxu0 0
      %2674 = vmatpush1.bf16.msra.mxu0 0
      %2675 = vmatprep.subr.bf16.mxu0 0
      %2676 = vmatpush1.bf16.msra.mxu0 0
      %2677 = vmatprep.subr.bf16.mxu0 0
      %2678 = vmatpush1.bf16.msra.mxu0 0
      %2679 = vmatprep.subr.bf16.mxu0 0
      %2680 = vmatpush1.bf16.msra.mxu0 0
      %2681 = vmatprep.subr.bf16.mxu0 0
      %2682 = vmatpush1.bf16.msra.mxu0 0
      %2683 = vmatprep.subr.bf16.mxu0 0
      %2684 = vmatpush1.bf16.msra.mxu0 0
      %2685 = vmatprep.subr.bf16.mxu0 0
      %2686 = vmatpush1.bf16.msra.mxu0 0
      %2687 = vmatprep.subr.bf16.mxu0 %v2438
      %2688 = vmatpush1.bf16.msra.mxu0 %v2435
      %2689 = vmatprep.subr.bf16.mxu0 0
      %2690 = vmatpush2.bf16.msra.mxu0 0
      %2691 = vmatprep.subr.bf16.mxu0 0
      %2692 = vmatpush2.bf16.msra.mxu0 0
      %2693 = vmatprep.subr.bf16.mxu0 0
      %2694 = vmatpush2.bf16.msra.mxu0 0
      %2695 = vmatprep.subr.bf16.mxu0 0
      %2696 = vmatpush2.bf16.msra.mxu0 0
      %2697 = vmatprep.subr.bf16.mxu0 0
      %2698 = vmatpush2.bf16.msra.mxu0 0
      %2699 = vmatprep.subr.bf16.mxu0 0
      %2700 = vmatpush2.bf16.msra.mxu0 0
      %2701 = vmatprep.subr.bf16.mxu0 0
      %2702 = vmatpush2.bf16.msra.mxu0 0
      %2703 = vmatprep.subr.bf16.mxu0 0
      %2704 = vmatpush2.bf16.msra.mxu0 0
      %2705 = vmatprep.mubr.bf16.mxu0 0
      %2706 = vmatmul.mubr.bf16.gmra.mxu0 %v2402
      %v2707 = vpop.f32.mrf.mxu0
      %v2708 = vadd.f32 0.0, %v2707
      %v2709 = vpop.f32.mrf.mxu0
      %v2710 = vadd.f32 0.0, %v2709
      %v2711 = vpop.f32.mrf.mxu0
      %v2712 = vadd.f32 0.0, %v2711
      %v2713 = vpop.f32.mrf.mxu0
      %v2714 = vadd.f32 0.0, %v2713
      %2715 = vdwg.mxu0
      %2716 = vmatprep.subr.bf16.mxu0 0
      %2717 = vmatpush1.bf16.msra.mxu0 0
      %2718 = vmatprep.subr.bf16.mxu0 0
      %2719 = vmatpush1.bf16.msra.mxu0 0
      %2720 = vmatprep.subr.bf16.mxu0 0
      %2721 = vmatpush1.bf16.msra.mxu0 0
      %2722 = vmatprep.subr.bf16.mxu0 0
      %2723 = vmatpush1.bf16.msra.mxu0 0
      %2724 = vmatprep.subr.bf16.mxu0 0
      %2725 = vmatpush1.bf16.msra.mxu0 0
      %2726 = vmatprep.subr.bf16.mxu0 0
      %2727 = vmatpush1.bf16.msra.mxu0 0
      %2728 = vmatprep.subr.bf16.mxu0 0
      %2729 = vmatpush1.bf16.msra.mxu0 0
      %2730 = vmatprep.subr.bf16.mxu0 %v2444
      %2731 = vmatpush1.bf16.msra.mxu0 %v2441
      %2732 = vmatprep.subr.bf16.mxu0 0
      %2733 = vmatpush2.bf16.msra.mxu0 0
      %2734 = vmatprep.subr.bf16.mxu0 0
      %2735 = vmatpush2.bf16.msra.mxu0 0
      %2736 = vmatprep.subr.bf16.mxu0 0
      %2737 = vmatpush2.bf16.msra.mxu0 0
      %2738 = vmatprep.subr.bf16.mxu0 0
      %2739 = vmatpush2.bf16.msra.mxu0 0
      %2740 = vmatprep.subr.bf16.mxu0 0
      %2741 = vmatpush2.bf16.msra.mxu0 0
      %2742 = vmatprep.subr.bf16.mxu0 0
      %2743 = vmatpush2.bf16.msra.mxu0 0
      %2744 = vmatprep.subr.bf16.mxu0 0
      %2745 = vmatpush2.bf16.msra.mxu0 0
      %2746 = vmatprep.subr.bf16.mxu0 0
      %2747 = vmatpush2.bf16.msra.mxu0 0
      %2748 = vmatprep.mubr.bf16.mxu0 0
      %2749 = vmatmul.mubr.bf16.gmra.mxu0 %v2402
      %v2750 = vpop.f32.mrf.mxu0
      %v2751 = vadd.f32 0.0, %v2750
      %v2752 = vpop.f32.mrf.mxu0
      %v2753 = vadd.f32 0.0, %v2752
      %v2754 = vpop.f32.mrf.mxu0
      %v2755 = vadd.f32 0.0, %v2754
      %v2756 = vpop.f32.mrf.mxu0
      %v2757 = vadd.f32 0.0, %v2756
      %2758 = vdwg.mxu0
      %2759 = vmatprep.subr.bf16.mxu0 0
      %2760 = vmatpush1.bf16.msra.mxu0 0
      %2761 = vmatprep.subr.bf16.mxu0 0
      %2762 = vmatpush1.bf16.msra.mxu0 0
      %2763 = vmatprep.subr.bf16.mxu0 0
      %2764 = vmatpush1.bf16.msra.mxu0 0
      %2765 = vmatprep.subr.bf16.mxu0 0
      %2766 = vmatpush1.bf16.msra.mxu0 0
      %2767 = vmatprep.subr.bf16.mxu0 0
      %2768 = vmatpush1.bf16.msra.mxu0 0
      %2769 = vmatprep.subr.bf16.mxu0 0
      %2770 = vmatpush1.bf16.msra.mxu0 0
      %2771 = vmatprep.subr.bf16.mxu0 0
      %2772 = vmatpush1.bf16.msra.mxu0 0
      %2773 = vmatprep.subr.bf16.mxu0 %v2450
      %2774 = vmatpush1.bf16.msra.mxu0 %v2447
      %2775 = vmatprep.subr.bf16.mxu0 0
      %2776 = vmatpush2.bf16.msra.mxu0 0
      %2777 = vmatprep.subr.bf16.mxu0 0
      %2778 = vmatpush2.bf16.msra.mxu0 0
      %2779 = vmatprep.subr.bf16.mxu0 0
      %2780 = vmatpush2.bf16.msra.mxu0 0
      %2781 = vmatprep.subr.bf16.mxu0 0
      %2782 = vmatpush2.bf16.msra.mxu0 0
      %2783 = vmatprep.subr.bf16.mxu0 0
      %2784 = vmatpush2.bf16.msra.mxu0 0
      %2785 = vmatprep.subr.bf16.mxu0 0
      %2786 = vmatpush2.bf16.msra.mxu0 0
      %2787 = vmatprep.subr.bf16.mxu0 0
      %2788 = vmatpush2.bf16.msra.mxu0 0
      %2789 = vmatprep.subr.bf16.mxu0 0
      %2790 = vmatpush2.bf16.msra.mxu0 0
      %2791 = vmatprep.mubr.bf16.mxu0 0
      %2792 = vmatmul.mubr.bf16.gmra.mxu0 %v2402
      %v2793 = vpop.f32.mrf.mxu0
      %v2794 = vadd.f32 0.0, %v2793
      %v2795 = vpop.f32.mrf.mxu0
      %v2796 = vadd.f32 0.0, %v2795
      %v2797 = vpop.f32.mrf.mxu0
      %v2798 = vadd.f32 0.0, %v2797
      %v2799 = vpop.f32.mrf.mxu0
      %v2800 = vadd.f32 0.0, %v2799
      %2801 = vdwg.mxu0
      %2802 = vmatprep.subr.bf16.mxu0 0
      %2803 = vmatpush1.bf16.msra.mxu0 0
      %2804 = vmatprep.subr.bf16.mxu0 0
      %2805 = vmatpush1.bf16.msra.mxu0 0
      %2806 = vmatprep.subr.bf16.mxu0 0
      %2807 = vmatpush1.bf16.msra.mxu0 0
      %2808 = vmatprep.subr.bf16.mxu0 0
      %2809 = vmatpush1.bf16.msra.mxu0 0
      %2810 = vmatprep.subr.bf16.mxu0 0
      %2811 = vmatpush1.bf16.msra.mxu0 0
      %2812 = vmatprep.subr.bf16.mxu0 0
      %2813 = vmatpush1.bf16.msra.mxu0 0
      %2814 = vmatprep.subr.bf16.mxu0 0
      %2815 = vmatpush1.bf16.msra.mxu0 0
      %2816 = vmatprep.subr.bf16.mxu0 %v2456
      %2817 = vmatpush1.bf16.msra.mxu0 %v2453
      %2818 = vmatprep.subr.bf16.mxu0 0
      %2819 = vmatpush2.bf16.msra.mxu0 0
      %2820 = vmatprep.subr.bf16.mxu0 0
      %2821 = vmatpush2.bf16.msra.mxu0 0
      %2822 = vmatprep.subr.bf16.mxu0 0
      %2823 = vmatpush2.bf16.msra.mxu0 0
      %2824 = vmatprep.subr.bf16.mxu0 0
      %2825 = vmatpush2.bf16.msra.mxu0 0
      %2826 = vmatprep.subr.bf16.mxu0 0
      %2827 = vmatpush2.bf16.msra.mxu0 0
      %2828 = vmatprep.subr.bf16.mxu0 0
      %2829 = vmatpush2.bf16.msra.mxu0 0
      %2830 = vmatprep.subr.bf16.mxu0 0
      %2831 = vmatpush2.bf16.msra.mxu0 0
      %2832 = vmatprep.subr.bf16.mxu0 0
      %2833 = vmatpush2.bf16.msra.mxu0 0
      %2834 = vmatprep.mubr.bf16.mxu0 0
      %2835 = vmatmul.mubr.bf16.gmra.mxu0 %v2402
      %v2836 = vpop.f32.mrf.mxu0
      %v2837 = vadd.f32 0.0, %v2836
      %v2838 = vpop.f32.mrf.mxu0
      %v2839 = vadd.f32 0.0, %v2838
      %v2840 = vpop.f32.mrf.mxu0
      %v2841 = vadd.f32 0.0, %v2840
      %v2842 = vpop.f32.mrf.mxu0
      %v2843 = vadd.f32 0.0, %v2842
      %2844 = vdwg.mxu0
      %v2845 = vadd.f32 %v2206, %v2493
      %v2846 = vadd.f32 %v2207, %v2495
      %v2847 = vadd.f32 %v2208, %v2536
      %v2848 = vadd.f32 %v2209, %v2538
      %v2849 = vadd.f32 %v2210, %v2579
      %v2850 = vadd.f32 %v2211, %v2581
      %v2851 = vadd.f32 %v2212, %v2622
      %v2852 = vadd.f32 %v2213, %v2624
      %v2853 = vadd.f32 %v2214, %v2665
      %v2854 = vadd.f32 %v2215, %v2667
      %v2855 = vadd.f32 %v2216, %v2708
      %v2856 = vadd.f32 %v2217, %v2710
      %v2857 = vadd.f32 %v2218, %v2751
      %v2858 = vadd.f32 %v2219, %v2753
      %v2859 = vadd.f32 %v2220, %v2794
      %v2860 = vadd.f32 %v2221, %v2796
      %v2861 = vadd.f32 %v2222, %v2837
      %v2862 = vadd.f32 %v2223, %v2839
      %v2863 = vadd.f32 %v2224, %v2497
      %v2864 = vadd.f32 %v2225, %v2499
      %v2865 = vadd.f32 %v2226, %v2540
      %v2866 = vadd.f32 %v2227, %v2542
      %v2867 = vadd.f32 %v2228, %v2583
      %v2868 = vadd.f32 %v2229, %v2585
      %v2869 = vadd.f32 %v2230, %v2626
      %v2870 = vadd.f32 %v2231, %v2628
      %v2871 = vadd.f32 %v2232, %v2669
      %v2872 = vadd.f32 %v2233, %v2671
      %v2873 = vadd.f32 %v2234, %v2712
      %v2874 = vadd.f32 %v2235, %v2714
      %v2875 = vadd.f32 %v2236, %v2755
      %v2876 = vadd.f32 %v2237, %v2757
      %v2877 = vadd.f32 %v2238, %v2798
      %v2878 = vadd.f32 %v2239, %v2800
      %v2879 = vadd.f32 %v2240, %v2841
      %v2880 = vadd.f32 %v2241, %v2843
      %2881 = vst [vmem:[#allocation2] sm:$0xff] %v2845
      %2882 = vst [vmem:[#allocation2 + $0x8] sm:$0xff] %v2846
      %2883 = vst [vmem:[#allocation2 + $0x10] sm:$0xff] %v2847
      %2884 = vst [vmem:[#allocation2 + $0x18] sm:$0xff] %v2848
      %2885 = vst [vmem:[#allocation2 + $0x20] sm:$0xff] %v2849
      %2886 = vst [vmem:[#allocation2 + $0x28] sm:$0xff] %v2850
      %2887 = vst [vmem:[#allocation2 + $0x30] sm:$0xff] %v2851
      %2888 = vst [vmem:[#allocation2 + $0x38] sm:$0xff] %v2852
      %2889 = vst [vmem:[#allocation2 + $0x40] sm:$0xff] %v2853
      %2890 = vst [vmem:[#allocation2 + $0x48] sm:$0xff] %v2854
      %2891 = vst [vmem:[#allocation2 + $0x50] sm:$0xff] %v2855
      %2892 = vst [vmem:[#allocation2 + $0x58] sm:$0xff] %v2856
      %2893 = vst [vmem:[#allocation2 + $0x60] sm:$0xff] %v2857
      %2894 = vst [vmem:[#allocation2 + $0x68] sm:$0xff] %v2858
      %2895 = vst [vmem:[#allocation2 + $0x70] sm:$0xff] %v2859
      %2896 = vst [vmem:[#allocation2 + $0x78] sm:$0xff] %v2860
      %2897 = vst [vmem:[#allocation2 + $0x80] sm:$0xff] %v2861
      %2898 = vst [vmem:[#allocation2 + $0x88] sm:$0xff] %v2862
      %2899 = vst [vmem:[#allocation2 + $0x90] sm:$0x3f] %v2863
      %2900 = vst [vmem:[#allocation2 + $0x98] sm:$0x3f] %v2864
      %2901 = vst [vmem:[#allocation2 + $0xa0] sm:$0x3f] %v2865
      %2902 = vst [vmem:[#allocation2 + $0xa8] sm:$0x3f] %v2866
      %2903 = vst [vmem:[#allocation2 + $0xb0] sm:$0x3f] %v2867
      %2904 = vst [vmem:[#allocation2 + $0xb8] sm:$0x3f] %v2868
      %2905 = vst [vmem:[#allocation2 + $0xc0] sm:$0x3f] %v2869
      %2906 = vst [vmem:[#allocation2 + $0xc8] sm:$0x3f] %v2870
      %2907 = vst [vmem:[#allocation2 + $0xd0] sm:$0x3f] %v2871
      %2908 = vst [vmem:[#allocation2 + $0xd8] sm:$0x3f] %v2872
      %2909 = vst [vmem:[#allocation2 + $0xe0] sm:$0x3f] %v2873
      %2910 = vst [vmem:[#allocation2 + $0xe8] sm:$0x3f] %v2874
      %2911 = vst [vmem:[#allocation2 + $0xf0] sm:$0x3f] %v2875
      %2912 = vst [vmem:[#allocation2 + $0xf8] sm:$0x3f] %v2876
      %2913 = vst [vmem:[#allocation2 + $0x100] sm:$0x3f] %v2877
      %2914 = vst [vmem:[#allocation2 + $0x108] sm:$0x3f] %v2878
      %2915 = vst [vmem:[#allocation2 + $0x110] sm:$0x3f] %v2879
      %2916 = vst [vmem:[#allocation2 + $0x118] sm:$0x3f] %v2880
      %v2917 = vld [vmem:[#allocation2] sm:$0xff]
      %v2918 = vld [vmem:[#allocation2 + $0x8] sm:$0xff]
      %v2919 = vld [vmem:[#allocation2 + $0x10] sm:$0xff]
      %v2920 = vld [vmem:[#allocation2 + $0x18] sm:$0xff]
      %v2921 = vld [vmem:[#allocation2 + $0x20] sm:$0xff]
      %v2922 = vld [vmem:[#allocation2 + $0x28] sm:$0xff]
      %v2923 = vld [vmem:[#allocation2 + $0x30] sm:$0xff]
      %v2924 = vld [vmem:[#allocation2 + $0x38] sm:$0xff]
      %v2925 = vld [vmem:[#allocation2 + $0x40] sm:$0xff]
      %v2926 = vld [vmem:[#allocation2 + $0x48] sm:$0xff]
      %v2927 = vld [vmem:[#allocation2 + $0x50] sm:$0xff]
      %v2928 = vld [vmem:[#allocation2 + $0x58] sm:$0xff]
      %v2929 = vld [vmem:[#allocation2 + $0x60] sm:$0xff]
      %v2930 = vld [vmem:[#allocation2 + $0x68] sm:$0xff]
      %v2931 = vld [vmem:[#allocation2 + $0x70] sm:$0xff]
      %v2932 = vld [vmem:[#allocation2 + $0x78] sm:$0xff]
      %v2933 = vld [vmem:[#allocation2 + $0x80] sm:$0xff]
      %v2934 = vld [vmem:[#allocation2 + $0x88] sm:$0xff]
      %v2935 = vld [vmem:[#allocation2 + $0x90] sm:$0x3f]
      %v2936 = vld [vmem:[#allocation2 + $0x98] sm:$0x3f]
      %v2937 = vld [vmem:[#allocation2 + $0xa0] sm:$0x3f]
      %v2938 = vld [vmem:[#allocation2 + $0xa8] sm:$0x3f]
      %v2939 = vld [vmem:[#allocation2 + $0xb0] sm:$0x3f]
      %v2940 = vld [vmem:[#allocation2 + $0xb8] sm:$0x3f]
      %v2941 = vld [vmem:[#allocation2 + $0xc0] sm:$0x3f]
      %v2942 = vld [vmem:[#allocation2 + $0xc8] sm:$0x3f]
      %v2943 = vld [vmem:[#allocation2 + $0xd0] sm:$0x3f]
      %v2944 = vld [vmem:[#allocation2 + $0xd8] sm:$0x3f]
      %v2945 = vld [vmem:[#allocation2 + $0xe0] sm:$0x3f]
      %v2946 = vld [vmem:[#allocation2 + $0xe8] sm:$0x3f]
      %v2947 = vld [vmem:[#allocation2 + $0xf0] sm:$0x3f]
      %v2948 = vld [vmem:[#allocation2 + $0xf8] sm:$0x3f]
      %v2949 = vld [vmem:[#allocation2 + $0x100] sm:$0x3f]
      %v2950 = vld [vmem:[#allocation2 + $0x108] sm:$0x3f]
      %v2951 = vld [vmem:[#allocation2 + $0x110] sm:$0x3f]
      %v2952 = vld [vmem:[#allocation2 + $0x118] sm:$0x3f]
      %s2953 = scalar_lea.vmem %s1, 32
      %v2954 = vld [vmem:[%s2953] sm:$0xf]
      %v2955 = vld [vmem:[%s2953 + $0x4] sm:$0x7]
      %v2956 = vld [vmem:[%s197] sm:$0xff]
      %v2957 = vld [vmem:[%s197 + $0x8] sm:$0xff]
      %v2958 = vld [vmem:[%s197 + $0x10] sm:$0xff]
      %v2959 = vld [vmem:[%s197 + $0x18] sm:$0xff]
      %v2960 = vld [vmem:[%s197 + $0x20] sm:$0x3f]
      %v2963 = vunpack.c.l.b16 %v2954
      %v2964 = vunpack.c.l.b16 %v2955
      %v2965 = vpack.c.b16 %v2964, %v2963
      %v2971 = vcombine.high %v2956, %v2956
      %v2973 = vunpack.c.l.s4 1983009808
      %v2974 = vunpack.c.0.s8 %v2973
      %v2975 = vlaneseq
      %v2976 = vshrl.u32 %v2975, 7
      %v2977 = vsub.s32 %v2974, %v2976
      %v2978 = vrot.slane %v2956, %v2977
      %v2980 = vunpack.c.l.s4 1983009808
      %v2981 = vunpack.c.0.s8 %v2980
      %v2982 = vlaneseq
      %v2983 = vshrl.u32 %v2982, 7
      %v2984 = vsub.s32 %v2981, %v2983
      %v2985 = vrot.slane %v2971, %v2984
      %v2986 = vcombine.high %v2978, %v2978
      %v2987 = vcombine.high %v2985, %v2985
      %v2988 = vcombine.high %v2957, %v2957
      %v2990 = vunpack.c.l.s4 1983009808
      %v2991 = vunpack.c.0.s8 %v2990
      %v2992 = vlaneseq
      %v2993 = vshrl.u32 %v2992, 7
      %v2994 = vsub.s32 %v2991, %v2993
      %v2995 = vrot.slane %v2957, %v2994
      %v2997 = vunpack.c.l.s4 1983009808
      %v2998 = vunpack.c.0.s8 %v2997
      %v2999 = vlaneseq
      %v3000 = vshrl.u32 %v2999, 7
      %v3001 = vsub.s32 %v2998, %v3000
      %v3002 = vrot.slane %v2988, %v3001
      %v3003 = vcombine.high %v2995, %v2995
      %v3004 = vcombine.high %v3002, %v3002
      %v3005 = vcombine.high %v2958, %v2958
      %v3007 = vunpack.c.l.s4 1983009808
      %v3008 = vunpack.c.0.s8 %v3007
      %v3009 = vlaneseq
      %v3010 = vshrl.u32 %v3009, 7
      %v3011 = vsub.s32 %v3008, %v3010
      %v3012 = vrot.slane %v2958, %v3011
      %v3014 = vunpack.c.l.s4 1983009808
      %v3015 = vunpack.c.0.s8 %v3014
      %v3016 = vlaneseq
      %v3017 = vshrl.u32 %v3016, 7
      %v3018 = vsub.s32 %v3015, %v3017
      %v3019 = vrot.slane %v3005, %v3018
      %v3020 = vcombine.high %v3012, %v3012
      %v3021 = vcombine.high %v3019, %v3019
      %v3022 = vcombine.high %v2959, %v2959
      %v3024 = vunpack.c.l.s4 1983009808
      %v3025 = vunpack.c.0.s8 %v3024
      %v3026 = vlaneseq
      %v3027 = vshrl.u32 %v3026, 7
      %v3028 = vsub.s32 %v3025, %v3027
      %v3029 = vrot.slane %v2959, %v3028
      %v3031 = vunpack.c.l.s4 1983009808
      %v3032 = vunpack.c.0.s8 %v3031
      %v3033 = vlaneseq
      %v3034 = vshrl.u32 %v3033, 7
      %v3035 = vsub.s32 %v3032, %v3034
      %v3036 = vrot.slane %v3022, %v3035
      %v3037 = vcombine.high %v3029, %v3029
      %v3038 = vcombine.high %v3036, %v3036
      %v3039 = vcombine.high %v2960, %v2960
      %v3041 = vunpack.c.l.s4 1983009808
      %v3042 = vunpack.c.0.s8 %v3041
      %v3043 = vlaneseq
      %v3044 = vshrl.u32 %v3043, 7
      %v3045 = vsub.s32 %v3042, %v3044
      %v3046 = vrot.slane %v2960, %v3045
      %v3048 = vunpack.c.l.s4 1983009808
      %v3049 = vunpack.c.0.s8 %v3048
      %v3050 = vlaneseq
      %v3051 = vshrl.u32 %v3050, 7
      %v3052 = vsub.s32 %v3049, %v3051
      %v3053 = vrot.slane %v3039, %v3052
      %v3054 = vcombine.high %v3046, %v3046
      %3055 = vrot.lane.b32.xlu0 %v2978, 109
      %v3056 = vpop.permute.xlu0 %3055
      %3057 = vrot.lane.b32.xlu0 %v2986, 109
      %v3058 = vpop.permute.xlu0 %3057
      %3059 = vrot.lane.b32.xlu0 %v2985, 109
      %v3060 = vpop.permute.xlu0 %3059
      %3061 = vrot.lane.b32.xlu0 %v2987, 109
      %v3062 = vpop.permute.xlu0 %3061
      %3063 = vrot.lane.b32.xlu0 %v2995, 109
      %v3064 = vpop.permute.xlu0 %3063
      %3065 = vrot.lane.b32.xlu0 %v3003, 109
      %v3066 = vpop.permute.xlu0 %3065
      %3067 = vrot.lane.b32.xlu0 %v3002, 109
      %v3068 = vpop.permute.xlu0 %3067
      %3069 = vrot.lane.b32.xlu0 %v3004, 109
      %v3070 = vpop.permute.xlu0 %3069
      %3071 = vrot.lane.b32.xlu0 %v3012, 109
      %v3072 = vpop.permute.xlu0 %3071
      %3073 = vrot.lane.b32.xlu0 %v3020, 109
      %v3074 = vpop.permute.xlu0 %3073
      %3075 = vrot.lane.b32.xlu0 %v3019, 109
      %v3076 = vpop.permute.xlu0 %3075
      %3077 = vrot.lane.b32.xlu0 %v3021, 109
      %v3078 = vpop.permute.xlu0 %3077
      %3079 = vrot.lane.b32.xlu0 %v3029, 109
      %v3080 = vpop.permute.xlu0 %3079
      %3081 = vrot.lane.b32.xlu0 %v3037, 109
      %v3082 = vpop.permute.xlu0 %3081
      %3083 = vrot.lane.b32.xlu0 %v3036, 109
      %v3084 = vpop.permute.xlu0 %3083
      %3085 = vrot.lane.b32.xlu0 %v3038, 109
      %v3086 = vpop.permute.xlu0 %3085
      %3087 = vrot.lane.b32.xlu0 %v3046, 109
      %v3088 = vpop.permute.xlu0 %3087
      %3089 = vrot.lane.b32.xlu0 %v3054, 109
      %v3090 = vpop.permute.xlu0 %3089
      %3091 = vrot.lane.b32.xlu0 %v3053, 109
      %v3092 = vpop.permute.xlu0 %3091
      %vm3093 = vcmask 891904
      %v3094 = vsel %vm3093, %v3056, %v3058
      %v3095 = vsel %vm3093, %v3058, %v3060
      %v3096 = vsel %vm3093, %v3060, %v3062
      %v3097 = vsel %vm3093, %v3062, %v3064
      %v3098 = vsel %vm3093, %v3064, %v3066
      %v3099 = vsel %vm3093, %v3066, %v3068
      %v3100 = vsel %vm3093, %v3068, %v3070
      %v3101 = vsel %vm3093, %v3070, %v3072
      %v3102 = vsel %vm3093, %v3072, %v3074
      %v3103 = vsel %vm3093, %v3074, %v3076
      %v3104 = vsel %vm3093, %v3076, %v3078
      %v3105 = vsel %vm3093, %v3078, %v3080
      %v3106 = vsel %vm3093, %v3080, %v3082
      %v3107 = vsel %vm3093, %v3082, %v3084
      %v3108 = vsel %vm3093, %v3084, %v3086
      %v3109 = vsel %vm3093, %v3086, %v3088
      %v3110 = vsel %vm3093, %v3088, %v3090
      %v3111 = vsel %vm3093, %v3090, %v3092
      %v3113 = vsel %vm302, %v2965, 0
      %v3116 = vsel %vm306, %v3094, 0
      %v3119 = vsel %vm306, %v3095, 0
      %v3122 = vsel %vm306, %v3096, 0
      %v3125 = vsel %vm306, %v3097, 0
      %v3128 = vsel %vm306, %v3098, 0
      %v3131 = vsel %vm306, %v3099, 0
      %v3134 = vsel %vm306, %v3100, 0
      %v3137 = vsel %vm306, %v3101, 0
      %v3140 = vsel %vm306, %v3102, 0
      %v3143 = vsel %vm306, %v3103, 0
      %v3146 = vsel %vm306, %v3104, 0
      %v3149 = vsel %vm306, %v3105, 0
      %v3152 = vsel %vm306, %v3106, 0
      %v3155 = vsel %vm306, %v3107, 0
      %v3158 = vsel %vm306, %v3108, 0
      %v3161 = vsel %vm306, %v3109, 0
      %v3164 = vsel %vm306, %v3110, 0
      %v3167 = vsel %vm306, %v3111, 0
      %3169 = vmatprep.subr.bf16.mxu0 0
      %3170 = vmatpush1.bf16.msra.mxu0 0
      %3171 = vmatprep.subr.bf16.mxu0 0
      %3172 = vmatpush1.bf16.msra.mxu0 0
      %3173 = vmatprep.subr.bf16.mxu0 0
      %3174 = vmatpush1.bf16.msra.mxu0 0
      %3175 = vmatprep.subr.bf16.mxu0 0
      %3176 = vmatpush1.bf16.msra.mxu0 0
      %3177 = vmatprep.subr.bf16.mxu0 0
      %3178 = vmatpush1.bf16.msra.mxu0 0
      %3179 = vmatprep.subr.bf16.mxu0 0
      %3180 = vmatpush1.bf16.msra.mxu0 0
      %3181 = vmatprep.subr.bf16.mxu0 0
      %3182 = vmatpush1.bf16.msra.mxu0 0
      %3183 = vmatprep.subr.bf16.mxu0 %v3119
      %3184 = vmatpush1.bf16.msra.mxu0 %v3116
      %3185 = vmatprep.subr.bf16.mxu0 0
      %3186 = vmatpush2.bf16.msra.mxu0 0
      %3187 = vmatprep.subr.bf16.mxu0 0
      %3188 = vmatpush2.bf16.msra.mxu0 0
      %3189 = vmatprep.subr.bf16.mxu0 0
      %3190 = vmatpush2.bf16.msra.mxu0 0
      %3191 = vmatprep.subr.bf16.mxu0 0
      %3192 = vmatpush2.bf16.msra.mxu0 0
      %3193 = vmatprep.subr.bf16.mxu0 0
      %3194 = vmatpush2.bf16.msra.mxu0 0
      %3195 = vmatprep.subr.bf16.mxu0 0
      %3196 = vmatpush2.bf16.msra.mxu0 0
      %3197 = vmatprep.subr.bf16.mxu0 0
      %3198 = vmatpush2.bf16.msra.mxu0 0
      %3199 = vmatprep.subr.bf16.mxu0 0
      %3200 = vmatpush2.bf16.msra.mxu0 0
      %3201 = vmatprep.mubr.bf16.mxu0 0
      %3202 = vmatmul.mubr.bf16.gmra.mxu0 %v3113
      %v3203 = vpop.f32.mrf.mxu0
      %v3204 = vadd.f32 0.0, %v3203
      %v3205 = vpop.f32.mrf.mxu0
      %v3206 = vadd.f32 0.0, %v3205
      %v3207 = vpop.f32.mrf.mxu0
      %v3208 = vadd.f32 0.0, %v3207
      %v3209 = vpop.f32.mrf.mxu0
      %v3210 = vadd.f32 0.0, %v3209
      %3211 = vdwg.mxu0
      %3212 = vmatprep.subr.bf16.mxu0 0
      %3213 = vmatpush1.bf16.msra.mxu0 0
      %3214 = vmatprep.subr.bf16.mxu0 0
      %3215 = vmatpush1.bf16.msra.mxu0 0
      %3216 = vmatprep.subr.bf16.mxu0 0
      %3217 = vmatpush1.bf16.msra.mxu0 0
      %3218 = vmatprep.subr.bf16.mxu0 0
      %3219 = vmatpush1.bf16.msra.mxu0 0
      %3220 = vmatprep.subr.bf16.mxu0 0
      %3221 = vmatpush1.bf16.msra.mxu0 0
      %3222 = vmatprep.subr.bf16.mxu0 0
      %3223 = vmatpush1.bf16.msra.mxu0 0
      %3224 = vmatprep.subr.bf16.mxu0 0
      %3225 = vmatpush1.bf16.msra.mxu0 0
      %3226 = vmatprep.subr.bf16.mxu0 %v3125
      %3227 = vmatpush1.bf16.msra.mxu0 %v3122
      %3228 = vmatprep.subr.bf16.mxu0 0
      %3229 = vmatpush2.bf16.msra.mxu0 0
      %3230 = vmatprep.subr.bf16.mxu0 0
      %3231 = vmatpush2.bf16.msra.mxu0 0
      %3232 = vmatprep.subr.bf16.mxu0 0
      %3233 = vmatpush2.bf16.msra.mxu0 0
      %3234 = vmatprep.subr.bf16.mxu0 0
      %3235 = vmatpush2.bf16.msra.mxu0 0
      %3236 = vmatprep.subr.bf16.mxu0 0
      %3237 = vmatpush2.bf16.msra.mxu0 0
      %3238 = vmatprep.subr.bf16.mxu0 0
      %3239 = vmatpush2.bf16.msra.mxu0 0
      %3240 = vmatprep.subr.bf16.mxu0 0
      %3241 = vmatpush2.bf16.msra.mxu0 0
      %3242 = vmatprep.subr.bf16.mxu0 0
      %3243 = vmatpush2.bf16.msra.mxu0 0
      %3244 = vmatprep.mubr.bf16.mxu0 0
      %3245 = vmatmul.mubr.bf16.gmra.mxu0 %v3113
      %v3246 = vpop.f32.mrf.mxu0
      %v3247 = vadd.f32 0.0, %v3246
      %v3248 = vpop.f32.mrf.mxu0
      %v3249 = vadd.f32 0.0, %v3248
      %v3250 = vpop.f32.mrf.mxu0
      %v3251 = vadd.f32 0.0, %v3250
      %v3252 = vpop.f32.mrf.mxu0
      %v3253 = vadd.f32 0.0, %v3252
      %3254 = vdwg.mxu0
      %3255 = vmatprep.subr.bf16.mxu0 0
      %3256 = vmatpush1.bf16.msra.mxu0 0
      %3257 = vmatprep.subr.bf16.mxu0 0
      %3258 = vmatpush1.bf16.msra.mxu0 0
      %3259 = vmatprep.subr.bf16.mxu0 0
      %3260 = vmatpush1.bf16.msra.mxu0 0
      %3261 = vmatprep.subr.bf16.mxu0 0
      %3262 = vmatpush1.bf16.msra.mxu0 0
      %3263 = vmatprep.subr.bf16.mxu0 0
      %3264 = vmatpush1.bf16.msra.mxu0 0
      %3265 = vmatprep.subr.bf16.mxu0 0
      %3266 = vmatpush1.bf16.msra.mxu0 0
      %3267 = vmatprep.subr.bf16.mxu0 0
      %3268 = vmatpush1.bf16.msra.mxu0 0
      %3269 = vmatprep.subr.bf16.mxu0 %v3131
      %3270 = vmatpush1.bf16.msra.mxu0 %v3128
      %3271 = vmatprep.subr.bf16.mxu0 0
      %3272 = vmatpush2.bf16.msra.mxu0 0
      %3273 = vmatprep.subr.bf16.mxu0 0
      %3274 = vmatpush2.bf16.msra.mxu0 0
      %3275 = vmatprep.subr.bf16.mxu0 0
      %3276 = vmatpush2.bf16.msra.mxu0 0
      %3277 = vmatprep.subr.bf16.mxu0 0
      %3278 = vmatpush2.bf16.msra.mxu0 0
      %3279 = vmatprep.subr.bf16.mxu0 0
      %3280 = vmatpush2.bf16.msra.mxu0 0
      %3281 = vmatprep.subr.bf16.mxu0 0
      %3282 = vmatpush2.bf16.msra.mxu0 0
      %3283 = vmatprep.subr.bf16.mxu0 0
      %3284 = vmatpush2.bf16.msra.mxu0 0
      %3285 = vmatprep.subr.bf16.mxu0 0
      %3286 = vmatpush2.bf16.msra.mxu0 0
      %3287 = vmatprep.mubr.bf16.mxu0 0
      %3288 = vmatmul.mubr.bf16.gmra.mxu0 %v3113
      %v3289 = vpop.f32.mrf.mxu0
      %v3290 = vadd.f32 0.0, %v3289
      %v3291 = vpop.f32.mrf.mxu0
      %v3292 = vadd.f32 0.0, %v3291
      %v3293 = vpop.f32.mrf.mxu0
      %v3294 = vadd.f32 0.0, %v3293
      %v3295 = vpop.f32.mrf.mxu0
      %v3296 = vadd.f32 0.0, %v3295
      %3297 = vdwg.mxu0
      %3298 = vmatprep.subr.bf16.mxu0 0
      %3299 = vmatpush1.bf16.msra.mxu0 0
      %3300 = vmatprep.subr.bf16.mxu0 0
      %3301 = vmatpush1.bf16.msra.mxu0 0
      %3302 = vmatprep.subr.bf16.mxu0 0
      %3303 = vmatpush1.bf16.msra.mxu0 0
      %3304 = vmatprep.subr.bf16.mxu0 0
      %3305 = vmatpush1.bf16.msra.mxu0 0
      %3306 = vmatprep.subr.bf16.mxu0 0
      %3307 = vmatpush1.bf16.msra.mxu0 0
      %3308 = vmatprep.subr.bf16.mxu0 0
      %3309 = vmatpush1.bf16.msra.mxu0 0
      %3310 = vmatprep.subr.bf16.mxu0 0
      %3311 = vmatpush1.bf16.msra.mxu0 0
      %3312 = vmatprep.subr.bf16.mxu0 %v3137
      %3313 = vmatpush1.bf16.msra.mxu0 %v3134
      %3314 = vmatprep.subr.bf16.mxu0 0
      %3315 = vmatpush2.bf16.msra.mxu0 0
      %3316 = vmatprep.subr.bf16.mxu0 0
      %3317 = vmatpush2.bf16.msra.mxu0 0
      %3318 = vmatprep.subr.bf16.mxu0 0
      %3319 = vmatpush2.bf16.msra.mxu0 0
      %3320 = vmatprep.subr.bf16.mxu0 0
      %3321 = vmatpush2.bf16.msra.mxu0 0
      %3322 = vmatprep.subr.bf16.mxu0 0
      %3323 = vmatpush2.bf16.msra.mxu0 0
      %3324 = vmatprep.subr.bf16.mxu0 0
      %3325 = vmatpush2.bf16.msra.mxu0 0
      %3326 = vmatprep.subr.bf16.mxu0 0
      %3327 = vmatpush2.bf16.msra.mxu0 0
      %3328 = vmatprep.subr.bf16.mxu0 0
      %3329 = vmatpush2.bf16.msra.mxu0 0
      %3330 = vmatprep.mubr.bf16.mxu0 0
      %3331 = vmatmul.mubr.bf16.gmra.mxu0 %v3113
      %v3332 = vpop.f32.mrf.mxu0
      %v3333 = vadd.f32 0.0, %v3332
      %v3334 = vpop.f32.mrf.mxu0
      %v3335 = vadd.f32 0.0, %v3334
      %v3336 = vpop.f32.mrf.mxu0
      %v3337 = vadd.f32 0.0, %v3336
      %v3338 = vpop.f32.mrf.mxu0
      %v3339 = vadd.f32 0.0, %v3338
      %3340 = vdwg.mxu0
      %3341 = vmatprep.subr.bf16.mxu0 0
      %3342 = vmatpush1.bf16.msra.mxu0 0
      %3343 = vmatprep.subr.bf16.mxu0 0
      %3344 = vmatpush1.bf16.msra.mxu0 0
      %3345 = vmatprep.subr.bf16.mxu0 0
      %3346 = vmatpush1.bf16.msra.mxu0 0
      %3347 = vmatprep.subr.bf16.mxu0 0
      %3348 = vmatpush1.bf16.msra.mxu0 0
      %3349 = vmatprep.subr.bf16.mxu0 0
      %3350 = vmatpush1.bf16.msra.mxu0 0
      %3351 = vmatprep.subr.bf16.mxu0 0
      %3352 = vmatpush1.bf16.msra.mxu0 0
      %3353 = vmatprep.subr.bf16.mxu0 0
      %3354 = vmatpush1.bf16.msra.mxu0 0
      %3355 = vmatprep.subr.bf16.mxu0 %v3143
      %3356 = vmatpush1.bf16.msra.mxu0 %v3140
      %3357 = vmatprep.subr.bf16.mxu0 0
      %3358 = vmatpush2.bf16.msra.mxu0 0
      %3359 = vmatprep.subr.bf16.mxu0 0
      %3360 = vmatpush2.bf16.msra.mxu0 0
      %3361 = vmatprep.subr.bf16.mxu0 0
      %3362 = vmatpush2.bf16.msra.mxu0 0
      %3363 = vmatprep.subr.bf16.mxu0 0
      %3364 = vmatpush2.bf16.msra.mxu0 0
      %3365 = vmatprep.subr.bf16.mxu0 0
      %3366 = vmatpush2.bf16.msra.mxu0 0
      %3367 = vmatprep.subr.bf16.mxu0 0
      %3368 = vmatpush2.bf16.msra.mxu0 0
      %3369 = vmatprep.subr.bf16.mxu0 0
      %3370 = vmatpush2.bf16.msra.mxu0 0
      %3371 = vmatprep.subr.bf16.mxu0 0
      %3372 = vmatpush2.bf16.msra.mxu0 0
      %3373 = vmatprep.mubr.bf16.mxu0 0
      %3374 = vmatmul.mubr.bf16.gmra.mxu0 %v3113
      %v3375 = vpop.f32.mrf.mxu0
      %v3376 = vadd.f32 0.0, %v3375
      %v3377 = vpop.f32.mrf.mxu0
      %v3378 = vadd.f32 0.0, %v3377
      %v3379 = vpop.f32.mrf.mxu0
      %v3380 = vadd.f32 0.0, %v3379
      %v3381 = vpop.f32.mrf.mxu0
      %v3382 = vadd.f32 0.0, %v3381
      %3383 = vdwg.mxu0
      %3384 = vmatprep.subr.bf16.mxu0 0
      %3385 = vmatpush1.bf16.msra.mxu0 0
      %3386 = vmatprep.subr.bf16.mxu0 0
      %3387 = vmatpush1.bf16.msra.mxu0 0
      %3388 = vmatprep.subr.bf16.mxu0 0
      %3389 = vmatpush1.bf16.msra.mxu0 0
      %3390 = vmatprep.subr.bf16.mxu0 0
      %3391 = vmatpush1.bf16.msra.mxu0 0
      %3392 = vmatprep.subr.bf16.mxu0 0
      %3393 = vmatpush1.bf16.msra.mxu0 0
      %3394 = vmatprep.subr.bf16.mxu0 0
      %3395 = vmatpush1.bf16.msra.mxu0 0
      %3396 = vmatprep.subr.bf16.mxu0 0
      %3397 = vmatpush1.bf16.msra.mxu0 0
      %3398 = vmatprep.subr.bf16.mxu0 %v3149
      %3399 = vmatpush1.bf16.msra.mxu0 %v3146
      %3400 = vmatprep.subr.bf16.mxu0 0
      %3401 = vmatpush2.bf16.msra.mxu0 0
      %3402 = vmatprep.subr.bf16.mxu0 0
      %3403 = vmatpush2.bf16.msra.mxu0 0
      %3404 = vmatprep.subr.bf16.mxu0 0
      %3405 = vmatpush2.bf16.msra.mxu0 0
      %3406 = vmatprep.subr.bf16.mxu0 0
      %3407 = vmatpush2.bf16.msra.mxu0 0
      %3408 = vmatprep.subr.bf16.mxu0 0
      %3409 = vmatpush2.bf16.msra.mxu0 0
      %3410 = vmatprep.subr.bf16.mxu0 0
      %3411 = vmatpush2.bf16.msra.mxu0 0
      %3412 = vmatprep.subr.bf16.mxu0 0
      %3413 = vmatpush2.bf16.msra.mxu0 0
      %3414 = vmatprep.subr.bf16.mxu0 0
      %3415 = vmatpush2.bf16.msra.mxu0 0
      %3416 = vmatprep.mubr.bf16.mxu0 0
      %3417 = vmatmul.mubr.bf16.gmra.mxu0 %v3113
      %v3418 = vpop.f32.mrf.mxu0
      %v3419 = vadd.f32 0.0, %v3418
      %v3420 = vpop.f32.mrf.mxu0
      %v3421 = vadd.f32 0.0, %v3420
      %v3422 = vpop.f32.mrf.mxu0
      %v3423 = vadd.f32 0.0, %v3422
      %v3424 = vpop.f32.mrf.mxu0
      %v3425 = vadd.f32 0.0, %v3424
      %3426 = vdwg.mxu0
      %3427 = vmatprep.subr.bf16.mxu0 0
      %3428 = vmatpush1.bf16.msra.mxu0 0
      %3429 = vmatprep.subr.bf16.mxu0 0
      %3430 = vmatpush1.bf16.msra.mxu0 0
      %3431 = vmatprep.subr.bf16.mxu0 0
      %3432 = vmatpush1.bf16.msra.mxu0 0
      %3433 = vmatprep.subr.bf16.mxu0 0
      %3434 = vmatpush1.bf16.msra.mxu0 0
      %3435 = vmatprep.subr.bf16.mxu0 0
      %3436 = vmatpush1.bf16.msra.mxu0 0
      %3437 = vmatprep.subr.bf16.mxu0 0
      %3438 = vmatpush1.bf16.msra.mxu0 0
      %3439 = vmatprep.subr.bf16.mxu0 0
      %3440 = vmatpush1.bf16.msra.mxu0 0
      %3441 = vmatprep.subr.bf16.mxu0 %v3155
      %3442 = vmatpush1.bf16.msra.mxu0 %v3152
      %3443 = vmatprep.subr.bf16.mxu0 0
      %3444 = vmatpush2.bf16.msra.mxu0 0
      %3445 = vmatprep.subr.bf16.mxu0 0
      %3446 = vmatpush2.bf16.msra.mxu0 0
      %3447 = vmatprep.subr.bf16.mxu0 0
      %3448 = vmatpush2.bf16.msra.mxu0 0
      %3449 = vmatprep.subr.bf16.mxu0 0
      %3450 = vmatpush2.bf16.msra.mxu0 0
      %3451 = vmatprep.subr.bf16.mxu0 0
      %3452 = vmatpush2.bf16.msra.mxu0 0
      %3453 = vmatprep.subr.bf16.mxu0 0
      %3454 = vmatpush2.bf16.msra.mxu0 0
      %3455 = vmatprep.subr.bf16.mxu0 0
      %3456 = vmatpush2.bf16.msra.mxu0 0
      %3457 = vmatprep.subr.bf16.mxu0 0
      %3458 = vmatpush2.bf16.msra.mxu0 0
      %3459 = vmatprep.mubr.bf16.mxu0 0
      %3460 = vmatmul.mubr.bf16.gmra.mxu0 %v3113
      %v3461 = vpop.f32.mrf.mxu0
      %v3462 = vadd.f32 0.0, %v3461
      %v3463 = vpop.f32.mrf.mxu0
      %v3464 = vadd.f32 0.0, %v3463
      %v3465 = vpop.f32.mrf.mxu0
      %v3466 = vadd.f32 0.0, %v3465
      %v3467 = vpop.f32.mrf.mxu0
      %v3468 = vadd.f32 0.0, %v3467
      %3469 = vdwg.mxu0
      %3470 = vmatprep.subr.bf16.mxu0 0
      %3471 = vmatpush1.bf16.msra.mxu0 0
      %3472 = vmatprep.subr.bf16.mxu0 0
      %3473 = vmatpush1.bf16.msra.mxu0 0
      %3474 = vmatprep.subr.bf16.mxu0 0
      %3475 = vmatpush1.bf16.msra.mxu0 0
      %3476 = vmatprep.subr.bf16.mxu0 0
      %3477 = vmatpush1.bf16.msra.mxu0 0
      %3478 = vmatprep.subr.bf16.mxu0 0
      %3479 = vmatpush1.bf16.msra.mxu0 0
      %3480 = vmatprep.subr.bf16.mxu0 0
      %3481 = vmatpush1.bf16.msra.mxu0 0
      %3482 = vmatprep.subr.bf16.mxu0 0
      %3483 = vmatpush1.bf16.msra.mxu0 0
      %3484 = vmatprep.subr.bf16.mxu0 %v3161
      %3485 = vmatpush1.bf16.msra.mxu0 %v3158
      %3486 = vmatprep.subr.bf16.mxu0 0
      %3487 = vmatpush2.bf16.msra.mxu0 0
      %3488 = vmatprep.subr.bf16.mxu0 0
      %3489 = vmatpush2.bf16.msra.mxu0 0
      %3490 = vmatprep.subr.bf16.mxu0 0
      %3491 = vmatpush2.bf16.msra.mxu0 0
      %3492 = vmatprep.subr.bf16.mxu0 0
      %3493 = vmatpush2.bf16.msra.mxu0 0
      %3494 = vmatprep.subr.bf16.mxu0 0
      %3495 = vmatpush2.bf16.msra.mxu0 0
      %3496 = vmatprep.subr.bf16.mxu0 0
      %3497 = vmatpush2.bf16.msra.mxu0 0
      %3498 = vmatprep.subr.bf16.mxu0 0
      %3499 = vmatpush2.bf16.msra.mxu0 0
      %3500 = vmatprep.subr.bf16.mxu0 0
      %3501 = vmatpush2.bf16.msra.mxu0 0
      %3502 = vmatprep.mubr.bf16.mxu0 0
      %3503 = vmatmul.mubr.bf16.gmra.mxu0 %v3113
      %v3504 = vpop.f32.mrf.mxu0
      %v3505 = vadd.f32 0.0, %v3504
      %v3506 = vpop.f32.mrf.mxu0
      %v3507 = vadd.f32 0.0, %v3506
      %v3508 = vpop.f32.mrf.mxu0
      %v3509 = vadd.f32 0.0, %v3508
      %v3510 = vpop.f32.mrf.mxu0
      %v3511 = vadd.f32 0.0, %v3510
      %3512 = vdwg.mxu0
      %3513 = vmatprep.subr.bf16.mxu0 0
      %3514 = vmatpush1.bf16.msra.mxu0 0
      %3515 = vmatprep.subr.bf16.mxu0 0
      %3516 = vmatpush1.bf16.msra.mxu0 0
      %3517 = vmatprep.subr.bf16.mxu0 0
      %3518 = vmatpush1.bf16.msra.mxu0 0
      %3519 = vmatprep.subr.bf16.mxu0 0
      %3520 = vmatpush1.bf16.msra.mxu0 0
      %3521 = vmatprep.subr.bf16.mxu0 0
      %3522 = vmatpush1.bf16.msra.mxu0 0
      %3523 = vmatprep.subr.bf16.mxu0 0
      %3524 = vmatpush1.bf16.msra.mxu0 0
      %3525 = vmatprep.subr.bf16.mxu0 0
      %3526 = vmatpush1.bf16.msra.mxu0 0
      %3527 = vmatprep.subr.bf16.mxu0 %v3167
      %3528 = vmatpush1.bf16.msra.mxu0 %v3164
      %3529 = vmatprep.subr.bf16.mxu0 0
      %3530 = vmatpush2.bf16.msra.mxu0 0
      %3531 = vmatprep.subr.bf16.mxu0 0
      %3532 = vmatpush2.bf16.msra.mxu0 0
      %3533 = vmatprep.subr.bf16.mxu0 0
      %3534 = vmatpush2.bf16.msra.mxu0 0
      %3535 = vmatprep.subr.bf16.mxu0 0
      %3536 = vmatpush2.bf16.msra.mxu0 0
      %3537 = vmatprep.subr.bf16.mxu0 0
      %3538 = vmatpush2.bf16.msra.mxu0 0
      %3539 = vmatprep.subr.bf16.mxu0 0
      %3540 = vmatpush2.bf16.msra.mxu0 0
      %3541 = vmatprep.subr.bf16.mxu0 0
      %3542 = vmatpush2.bf16.msra.mxu0 0
      %3543 = vmatprep.subr.bf16.mxu0 0
      %3544 = vmatpush2.bf16.msra.mxu0 0
      %3545 = vmatprep.mubr.bf16.mxu0 0
      %3546 = vmatmul.mubr.bf16.gmra.mxu0 %v3113
      %v3547 = vpop.f32.mrf.mxu0
      %v3548 = vadd.f32 0.0, %v3547
      %v3549 = vpop.f32.mrf.mxu0
      %v3550 = vadd.f32 0.0, %v3549
      %v3551 = vpop.f32.mrf.mxu0
      %v3552 = vadd.f32 0.0, %v3551
      %v3553 = vpop.f32.mrf.mxu0
      %v3554 = vadd.f32 0.0, %v3553
      %3555 = vdwg.mxu0
      %v3556 = vadd.f32 %v2917, %v3204
      %v3557 = vadd.f32 %v2918, %v3206
      %v3558 = vadd.f32 %v2919, %v3247
      %v3559 = vadd.f32 %v2920, %v3249
      %v3560 = vadd.f32 %v2921, %v3290
      %v3561 = vadd.f32 %v2922, %v3292
      %v3562 = vadd.f32 %v2923, %v3333
      %v3563 = vadd.f32 %v2924, %v3335
      %v3564 = vadd.f32 %v2925, %v3376
      %v3565 = vadd.f32 %v2926, %v3378
      %v3566 = vadd.f32 %v2927, %v3419
      %v3567 = vadd.f32 %v2928, %v3421
      %v3568 = vadd.f32 %v2929, %v3462
      %v3569 = vadd.f32 %v2930, %v3464
      %v3570 = vadd.f32 %v2931, %v3505
      %v3571 = vadd.f32 %v2932, %v3507
      %v3572 = vadd.f32 %v2933, %v3548
      %v3573 = vadd.f32 %v2934, %v3550
      %v3574 = vadd.f32 %v2935, %v3208
      %v3575 = vadd.f32 %v2936, %v3210
      %v3576 = vadd.f32 %v2937, %v3251
      %v3577 = vadd.f32 %v2938, %v3253
      %v3578 = vadd.f32 %v2939, %v3294
      %v3579 = vadd.f32 %v2940, %v3296
      %v3580 = vadd.f32 %v2941, %v3337
      %v3581 = vadd.f32 %v2942, %v3339
      %v3582 = vadd.f32 %v2943, %v3380
      %v3583 = vadd.f32 %v2944, %v3382
      %v3584 = vadd.f32 %v2945, %v3423
      %v3585 = vadd.f32 %v2946, %v3425
      %v3586 = vadd.f32 %v2947, %v3466
      %v3587 = vadd.f32 %v2948, %v3468
      %v3588 = vadd.f32 %v2949, %v3509
      %v3589 = vadd.f32 %v2950, %v3511
      %v3590 = vadd.f32 %v2951, %v3552
      %v3591 = vadd.f32 %v2952, %v3554
      %3592 = vst [vmem:[#allocation2] sm:$0xff] %v3556
      %3593 = vst [vmem:[#allocation2 + $0x8] sm:$0xff] %v3557
      %3594 = vst [vmem:[#allocation2 + $0x10] sm:$0xff] %v3558
      %3595 = vst [vmem:[#allocation2 + $0x18] sm:$0xff] %v3559
      %3596 = vst [vmem:[#allocation2 + $0x20] sm:$0xff] %v3560
      %3597 = vst [vmem:[#allocation2 + $0x28] sm:$0xff] %v3561
      %3598 = vst [vmem:[#allocation2 + $0x30] sm:$0xff] %v3562
      %3599 = vst [vmem:[#allocation2 + $0x38] sm:$0xff] %v3563
      %3600 = vst [vmem:[#allocation2 + $0x40] sm:$0xff] %v3564
      %3601 = vst [vmem:[#allocation2 + $0x48] sm:$0xff] %v3565
      %3602 = vst [vmem:[#allocation2 + $0x50] sm:$0xff] %v3566
      %3603 = vst [vmem:[#allocation2 + $0x58] sm:$0xff] %v3567
      %3604 = vst [vmem:[#allocation2 + $0x60] sm:$0xff] %v3568
      %3605 = vst [vmem:[#allocation2 + $0x68] sm:$0xff] %v3569
      %3606 = vst [vmem:[#allocation2 + $0x70] sm:$0xff] %v3570
      %3607 = vst [vmem:[#allocation2 + $0x78] sm:$0xff] %v3571
      %3608 = vst [vmem:[#allocation2 + $0x80] sm:$0xff] %v3572
      %3609 = vst [vmem:[#allocation2 + $0x88] sm:$0xff] %v3573
      %3610 = vst [vmem:[#allocation2 + $0x90] sm:$0x3f] %v3574
      %3611 = vst [vmem:[#allocation2 + $0x98] sm:$0x3f] %v3575
      %3612 = vst [vmem:[#allocation2 + $0xa0] sm:$0x3f] %v3576
      %3613 = vst [vmem:[#allocation2 + $0xa8] sm:$0x3f] %v3577
      %3614 = vst [vmem:[#allocation2 + $0xb0] sm:$0x3f] %v3578
      %3615 = vst [vmem:[#allocation2 + $0xb8] sm:$0x3f] %v3579
      %3616 = vst [vmem:[#allocation2 + $0xc0] sm:$0x3f] %v3580
      %3617 = vst [vmem:[#allocation2 + $0xc8] sm:$0x3f] %v3581
      %3618 = vst [vmem:[#allocation2 + $0xd0] sm:$0x3f] %v3582
      %3619 = vst [vmem:[#allocation2 + $0xd8] sm:$0x3f] %v3583
      %3620 = vst [vmem:[#allocation2 + $0xe0] sm:$0x3f] %v3584
      %3621 = vst [vmem:[#allocation2 + $0xe8] sm:$0x3f] %v3585
      %3622 = vst [vmem:[#allocation2 + $0xf0] sm:$0x3f] %v3586
      %3623 = vst [vmem:[#allocation2 + $0xf8] sm:$0x3f] %v3587
      %3624 = vst [vmem:[#allocation2 + $0x100] sm:$0x3f] %v3588
      %3625 = vst [vmem:[#allocation2 + $0x108] sm:$0x3f] %v3589
      %3626 = vst [vmem:[#allocation2 + $0x110] sm:$0x3f] %v3590
      %3627 = vst [vmem:[#allocation2 + $0x118] sm:$0x3f] %v3591
      %v3628 = vld [vmem:[#allocation2] sm:$0xff]
      %v3629 = vld [vmem:[#allocation2 + $0x8] sm:$0xff]
      %v3630 = vld [vmem:[#allocation2 + $0x10] sm:$0xff]
      %v3631 = vld [vmem:[#allocation2 + $0x18] sm:$0xff]
      %v3632 = vld [vmem:[#allocation2 + $0x20] sm:$0xff]
      %v3633 = vld [vmem:[#allocation2 + $0x28] sm:$0xff]
      %v3634 = vld [vmem:[#allocation2 + $0x30] sm:$0xff]
      %v3635 = vld [vmem:[#allocation2 + $0x38] sm:$0xff]
      %v3636 = vld [vmem:[#allocation2 + $0x40] sm:$0xff]
      %v3637 = vld [vmem:[#allocation2 + $0x48] sm:$0xff]
      %v3638 = vld [vmem:[#allocation2 + $0x50] sm:$0xff]
      %v3639 = vld [vmem:[#allocation2 + $0x58] sm:$0xff]
      %v3640 = vld [vmem:[#allocation2 + $0x60] sm:$0xff]
      %v3641 = vld [vmem:[#allocation2 + $0x68] sm:$0xff]
      %v3642 = vld [vmem:[#allocation2 + $0x70] sm:$0xff]
      %v3643 = vld [vmem:[#allocation2 + $0x78] sm:$0xff]
      %v3644 = vld [vmem:[#allocation2 + $0x80] sm:$0xff]
      %v3645 = vld [vmem:[#allocation2 + $0x88] sm:$0xff]
      %v3646 = vld [vmem:[#allocation2 + $0x90] sm:$0x3f]
      %v3647 = vld [vmem:[#allocation2 + $0x98] sm:$0x3f]
      %v3648 = vld [vmem:[#allocation2 + $0xa0] sm:$0x3f]
      %v3649 = vld [vmem:[#allocation2 + $0xa8] sm:$0x3f]
      %v3650 = vld [vmem:[#allocation2 + $0xb0] sm:$0x3f]
      %v3651 = vld [vmem:[#allocation2 + $0xb8] sm:$0x3f]
      %v3652 = vld [vmem:[#allocation2 + $0xc0] sm:$0x3f]
      %v3653 = vld [vmem:[#allocation2 + $0xc8] sm:$0x3f]
      %v3654 = vld [vmem:[#allocation2 + $0xd0] sm:$0x3f]
      %v3655 = vld [vmem:[#allocation2 + $0xd8] sm:$0x3f]
      %v3656 = vld [vmem:[#allocation2 + $0xe0] sm:$0x3f]
      %v3657 = vld [vmem:[#allocation2 + $0xe8] sm:$0x3f]
      %v3658 = vld [vmem:[#allocation2 + $0xf0] sm:$0x3f]
      %v3659 = vld [vmem:[#allocation2 + $0xf8] sm:$0x3f]
      %v3660 = vld [vmem:[#allocation2 + $0x100] sm:$0x3f]
      %v3661 = vld [vmem:[#allocation2 + $0x108] sm:$0x3f]
      %v3662 = vld [vmem:[#allocation2 + $0x110] sm:$0x3f]
      %v3663 = vld [vmem:[#allocation2 + $0x118] sm:$0x3f]
      %s3664 = scalar_lea.vmem %s1, 40
      %v3665 = vld [vmem:[%s3664] sm:$0xf]
      %v3666 = vld [vmem:[%s3664 + $0x4] sm:$0x7]
      %v3667 = vld [vmem:[%s197] sm:$0xff]
      %v3668 = vld [vmem:[%s197 + $0x8] sm:$0xff]
      %v3669 = vld [vmem:[%s197 + $0x10] sm:$0xff]
      %v3670 = vld [vmem:[%s197 + $0x18] sm:$0xff]
      %v3671 = vld [vmem:[%s197 + $0x20] sm:$0x3f]
      %v3674 = vunpack.c.l.b16 %v3665
      %v3675 = vunpack.c.l.b16 %v3666
      %v3676 = vpack.c.b16 %v3675, %v3674
      %v3682 = vcombine.high %v3667, %v3667
      %v3684 = vunpack.c.l.s4 1983009808
      %v3685 = vunpack.c.0.s8 %v3684
      %v3686 = vlaneseq
      %v3687 = vshrl.u32 %v3686, 7
      %v3688 = vsub.s32 %v3685, %v3687
      %v3689 = vrot.slane %v3667, %v3688
      %v3691 = vunpack.c.l.s4 1983009808
      %v3692 = vunpack.c.0.s8 %v3691
      %v3693 = vlaneseq
      %v3694 = vshrl.u32 %v3693, 7
      %v3695 = vsub.s32 %v3692, %v3694
      %v3696 = vrot.slane %v3682, %v3695
      %v3697 = vcombine.high %v3689, %v3689
      %v3698 = vcombine.high %v3696, %v3696
      %v3699 = vcombine.high %v3668, %v3668
      %v3701 = vunpack.c.l.s4 1983009808
      %v3702 = vunpack.c.0.s8 %v3701
      %v3703 = vlaneseq
      %v3704 = vshrl.u32 %v3703, 7
      %v3705 = vsub.s32 %v3702, %v3704
      %v3706 = vrot.slane %v3668, %v3705
      %v3708 = vunpack.c.l.s4 1983009808
      %v3709 = vunpack.c.0.s8 %v3708
      %v3710 = vlaneseq
      %v3711 = vshrl.u32 %v3710, 7
      %v3712 = vsub.s32 %v3709, %v3711
      %v3713 = vrot.slane %v3699, %v3712
      %v3714 = vcombine.high %v3706, %v3706
      %v3715 = vcombine.high %v3713, %v3713
      %v3716 = vcombine.high %v3669, %v3669
      %v3718 = vunpack.c.l.s4 1983009808
      %v3719 = vunpack.c.0.s8 %v3718
      %v3720 = vlaneseq
      %v3721 = vshrl.u32 %v3720, 7
      %v3722 = vsub.s32 %v3719, %v3721
      %v3723 = vrot.slane %v3669, %v3722
      %v3725 = vunpack.c.l.s4 1983009808
      %v3726 = vunpack.c.0.s8 %v3725
      %v3727 = vlaneseq
      %v3728 = vshrl.u32 %v3727, 7
      %v3729 = vsub.s32 %v3726, %v3728
      %v3730 = vrot.slane %v3716, %v3729
      %v3731 = vcombine.high %v3723, %v3723
      %v3732 = vcombine.high %v3730, %v3730
      %v3733 = vcombine.high %v3670, %v3670
      %v3735 = vunpack.c.l.s4 1983009808
      %v3736 = vunpack.c.0.s8 %v3735
      %v3737 = vlaneseq
      %v3738 = vshrl.u32 %v3737, 7
      %v3739 = vsub.s32 %v3736, %v3738
      %v3740 = vrot.slane %v3670, %v3739
      %v3742 = vunpack.c.l.s4 1983009808
      %v3743 = vunpack.c.0.s8 %v3742
      %v3744 = vlaneseq
      %v3745 = vshrl.u32 %v3744, 7
      %v3746 = vsub.s32 %v3743, %v3745
      %v3747 = vrot.slane %v3733, %v3746
      %v3748 = vcombine.high %v3740, %v3740
      %v3749 = vcombine.high %v3747, %v3747
      %v3750 = vcombine.high %v3671, %v3671
      %v3752 = vunpack.c.l.s4 1983009808
      %v3753 = vunpack.c.0.s8 %v3752
      %v3754 = vlaneseq
      %v3755 = vshrl.u32 %v3754, 7
      %v3756 = vsub.s32 %v3753, %v3755
      %v3757 = vrot.slane %v3671, %v3756
      %v3759 = vunpack.c.l.s4 1983009808
      %v3760 = vunpack.c.0.s8 %v3759
      %v3761 = vlaneseq
      %v3762 = vshrl.u32 %v3761, 7
      %v3763 = vsub.s32 %v3760, %v3762
      %v3764 = vrot.slane %v3750, %v3763
      %v3765 = vcombine.high %v3757, %v3757
      %3766 = vrot.lane.b32.xlu0 %v3689, 108
      %v3767 = vpop.permute.xlu0 %3766
      %3768 = vrot.lane.b32.xlu0 %v3697, 108
      %v3769 = vpop.permute.xlu0 %3768
      %3770 = vrot.lane.b32.xlu0 %v3696, 108
      %v3771 = vpop.permute.xlu0 %3770
      %3772 = vrot.lane.b32.xlu0 %v3698, 108
      %v3773 = vpop.permute.xlu0 %3772
      %3774 = vrot.lane.b32.xlu0 %v3706, 108
      %v3775 = vpop.permute.xlu0 %3774
      %3776 = vrot.lane.b32.xlu0 %v3714, 108
      %v3777 = vpop.permute.xlu0 %3776
      %3778 = vrot.lane.b32.xlu0 %v3713, 108
      %v3779 = vpop.permute.xlu0 %3778
      %3780 = vrot.lane.b32.xlu0 %v3715, 108
      %v3781 = vpop.permute.xlu0 %3780
      %3782 = vrot.lane.b32.xlu0 %v3723, 108
      %v3783 = vpop.permute.xlu0 %3782
      %3784 = vrot.lane.b32.xlu0 %v3731, 108
      %v3785 = vpop.permute.xlu0 %3784
      %3786 = vrot.lane.b32.xlu0 %v3730, 108
      %v3787 = vpop.permute.xlu0 %3786
      %3788 = vrot.lane.b32.xlu0 %v3732, 108
      %v3789 = vpop.permute.xlu0 %3788
      %3790 = vrot.lane.b32.xlu0 %v3740, 108
      %v3791 = vpop.permute.xlu0 %3790
      %3792 = vrot.lane.b32.xlu0 %v3748, 108
      %v3793 = vpop.permute.xlu0 %3792
      %3794 = vrot.lane.b32.xlu0 %v3747, 108
      %v3795 = vpop.permute.xlu0 %3794
      %3796 = vrot.lane.b32.xlu0 %v3749, 108
      %v3797 = vpop.permute.xlu0 %3796
      %3798 = vrot.lane.b32.xlu0 %v3757, 108
      %v3799 = vpop.permute.xlu0 %3798
      %3800 = vrot.lane.b32.xlu0 %v3765, 108
      %v3801 = vpop.permute.xlu0 %3800
      %3802 = vrot.lane.b32.xlu0 %v3764, 108
      %v3803 = vpop.permute.xlu0 %3802
      %vm3804 = vcmask 883712
      %v3805 = vsel %vm3804, %v3767, %v3769
      %v3806 = vsel %vm3804, %v3769, %v3771
      %v3807 = vsel %vm3804, %v3771, %v3773
      %v3808 = vsel %vm3804, %v3773, %v3775
      %v3809 = vsel %vm3804, %v3775, %v3777
      %v3810 = vsel %vm3804, %v3777, %v3779
      %v3811 = vsel %vm3804, %v3779, %v3781
      %v3812 = vsel %vm3804, %v3781, %v3783
      %v3813 = vsel %vm3804, %v3783, %v3785
      %v3814 = vsel %vm3804, %v3785, %v3787
      %v3815 = vsel %vm3804, %v3787, %v3789
      %v3816 = vsel %vm3804, %v3789, %v3791
      %v3817 = vsel %vm3804, %v3791, %v3793
      %v3818 = vsel %vm3804, %v3793, %v3795
      %v3819 = vsel %vm3804, %v3795, %v3797
      %v3820 = vsel %vm3804, %v3797, %v3799
      %v3821 = vsel %vm3804, %v3799, %v3801
      %v3822 = vsel %vm3804, %v3801, %v3803
      %v3824 = vsel %vm302, %v3676, 0
      %v3827 = vsel %vm306, %v3805, 0
      %v3830 = vsel %vm306, %v3806, 0
      %v3833 = vsel %vm306, %v3807, 0
      %v3836 = vsel %vm306, %v3808, 0
      %v3839 = vsel %vm306, %v3809, 0
      %v3842 = vsel %vm306, %v3810, 0
      %v3845 = vsel %vm306, %v3811, 0
      %v3848 = vsel %vm306, %v3812, 0
      %v3851 = vsel %vm306, %v3813, 0
      %v3854 = vsel %vm306, %v3814, 0
      %v3857 = vsel %vm306, %v3815, 0
      %v3860 = vsel %vm306, %v3816, 0
      %v3863 = vsel %vm306, %v3817, 0
      %v3866 = vsel %vm306, %v3818, 0
      %v3869 = vsel %vm306, %v3819, 0
      %v3872 = vsel %vm306, %v3820, 0
      %v3875 = vsel %vm306, %v3821, 0
      %v3878 = vsel %vm306, %v3822, 0
      %3880 = vmatprep.subr.bf16.mxu0 0
      %3881 = vmatpush1.bf16.msra.mxu0 0
      %3882 = vmatprep.subr.bf16.mxu0 0
      %3883 = vmatpush1.bf16.msra.mxu0 0
      %3884 = vmatprep.subr.bf16.mxu0 0
      %3885 = vmatpush1.bf16.msra.mxu0 0
      %3886 = vmatprep.subr.bf16.mxu0 0
      %3887 = vmatpush1.bf16.msra.mxu0 0
      %3888 = vmatprep.subr.bf16.mxu0 0
      %3889 = vmatpush1.bf16.msra.mxu0 0
      %3890 = vmatprep.subr.bf16.mxu0 0
      %3891 = vmatpush1.bf16.msra.mxu0 0
      %3892 = vmatprep.subr.bf16.mxu0 0
      %3893 = vmatpush1.bf16.msra.mxu0 0
      %3894 = vmatprep.subr.bf16.mxu0 %v3830
      %3895 = vmatpush1.bf16.msra.mxu0 %v3827
      %3896 = vmatprep.subr.bf16.mxu0 0
      %3897 = vmatpush2.bf16.msra.mxu0 0
      %3898 = vmatprep.subr.bf16.mxu0 0
      %3899 = vmatpush2.bf16.msra.mxu0 0
      %3900 = vmatprep.subr.bf16.mxu0 0
      %3901 = vmatpush2.bf16.msra.mxu0 0
      %3902 = vmatprep.subr.bf16.mxu0 0
      %3903 = vmatpush2.bf16.msra.mxu0 0
      %3904 = vmatprep.subr.bf16.mxu0 0
      %3905 = vmatpush2.bf16.msra.mxu0 0
      %3906 = vmatprep.subr.bf16.mxu0 0
      %3907 = vmatpush2.bf16.msra.mxu0 0
      %3908 = vmatprep.subr.bf16.mxu0 0
      %3909 = vmatpush2.bf16.msra.mxu0 0
      %3910 = vmatprep.subr.bf16.mxu0 0
      %3911 = vmatpush2.bf16.msra.mxu0 0
      %3912 = vmatprep.mubr.bf16.mxu0 0
      %3913 = vmatmul.mubr.bf16.gmra.mxu0 %v3824
      %v3914 = vpop.f32.mrf.mxu0
      %v3915 = vadd.f32 0.0, %v3914
      %v3916 = vpop.f32.mrf.mxu0
      %v3917 = vadd.f32 0.0, %v3916
      %v3918 = vpop.f32.mrf.mxu0
      %v3919 = vadd.f32 0.0, %v3918
      %v3920 = vpop.f32.mrf.mxu0
      %v3921 = vadd.f32 0.0, %v3920
      %3922 = vdwg.mxu0
      %3923 = vmatprep.subr.bf16.mxu0 0
      %3924 = vmatpush1.bf16.msra.mxu0 0
      %3925 = vmatprep.subr.bf16.mxu0 0
      %3926 = vmatpush1.bf16.msra.mxu0 0
      %3927 = vmatprep.subr.bf16.mxu0 0
      %3928 = vmatpush1.bf16.msra.mxu0 0
      %3929 = vmatprep.subr.bf16.mxu0 0
      %3930 = vmatpush1.bf16.msra.mxu0 0
      %3931 = vmatprep.subr.bf16.mxu0 0
      %3932 = vmatpush1.bf16.msra.mxu0 0
      %3933 = vmatprep.subr.bf16.mxu0 0
      %3934 = vmatpush1.bf16.msra.mxu0 0
      %3935 = vmatprep.subr.bf16.mxu0 0
      %3936 = vmatpush1.bf16.msra.mxu0 0
      %3937 = vmatprep.subr.bf16.mxu0 %v3836
      %3938 = vmatpush1.bf16.msra.mxu0 %v3833
      %3939 = vmatprep.subr.bf16.mxu0 0
      %3940 = vmatpush2.bf16.msra.mxu0 0
      %3941 = vmatprep.subr.bf16.mxu0 0
      %3942 = vmatpush2.bf16.msra.mxu0 0
      %3943 = vmatprep.subr.bf16.mxu0 0
      %3944 = vmatpush2.bf16.msra.mxu0 0
      %3945 = vmatprep.subr.bf16.mxu0 0
      %3946 = vmatpush2.bf16.msra.mxu0 0
      %3947 = vmatprep.subr.bf16.mxu0 0
      %3948 = vmatpush2.bf16.msra.mxu0 0
      %3949 = vmatprep.subr.bf16.mxu0 0
      %3950 = vmatpush2.bf16.msra.mxu0 0
      %3951 = vmatprep.subr.bf16.mxu0 0
      %3952 = vmatpush2.bf16.msra.mxu0 0
      %3953 = vmatprep.subr.bf16.mxu0 0
      %3954 = vmatpush2.bf16.msra.mxu0 0
      %3955 = vmatprep.mubr.bf16.mxu0 0
      %3956 = vmatmul.mubr.bf16.gmra.mxu0 %v3824
      %v3957 = vpop.f32.mrf.mxu0
      %v3958 = vadd.f32 0.0, %v3957
      %v3959 = vpop.f32.mrf.mxu0
      %v3960 = vadd.f32 0.0, %v3959
      %v3961 = vpop.f32.mrf.mxu0
      %v3962 = vadd.f32 0.0, %v3961
      %v3963 = vpop.f32.mrf.mxu0
      %v3964 = vadd.f32 0.0, %v3963
      %3965 = vdwg.mxu0
      %3966 = vmatprep.subr.bf16.mxu0 0
      %3967 = vmatpush1.bf16.msra.mxu0 0
      %3968 = vmatprep.subr.bf16.mxu0 0
      %3969 = vmatpush1.bf16.msra.mxu0 0
      %3970 = vmatprep.subr.bf16.mxu0 0
      %3971 = vmatpush1.bf16.msra.mxu0 0
      %3972 = vmatprep.subr.bf16.mxu0 0
      %3973 = vmatpush1.bf16.msra.mxu0 0
      %3974 = vmatprep.subr.bf16.mxu0 0
      %3975 = vmatpush1.bf16.msra.mxu0 0
      %3976 = vmatprep.subr.bf16.mxu0 0
      %3977 = vmatpush1.bf16.msra.mxu0 0
      %3978 = vmatprep.subr.bf16.mxu0 0
      %3979 = vmatpush1.bf16.msra.mxu0 0
      %3980 = vmatprep.subr.bf16.mxu0 %v3842
      %3981 = vmatpush1.bf16.msra.mxu0 %v3839
      %3982 = vmatprep.subr.bf16.mxu0 0
      %3983 = vmatpush2.bf16.msra.mxu0 0
      %3984 = vmatprep.subr.bf16.mxu0 0
      %3985 = vmatpush2.bf16.msra.mxu0 0
      %3986 = vmatprep.subr.bf16.mxu0 0
      %3987 = vmatpush2.bf16.msra.mxu0 0
      %3988 = vmatprep.subr.bf16.mxu0 0
      %3989 = vmatpush2.bf16.msra.mxu0 0
      %3990 = vmatprep.subr.bf16.mxu0 0
      %3991 = vmatpush2.bf16.msra.mxu0 0
      %3992 = vmatprep.subr.bf16.mxu0 0
      %3993 = vmatpush2.bf16.msra.mxu0 0
      %3994 = vmatprep.subr.bf16.mxu0 0
      %3995 = vmatpush2.bf16.msra.mxu0 0
      %3996 = vmatprep.subr.bf16.mxu0 0
      %3997 = vmatpush2.bf16.msra.mxu0 0
      %3998 = vmatprep.mubr.bf16.mxu0 0
      %3999 = vmatmul.mubr.bf16.gmra.mxu0 %v3824
      %v4000 = vpop.f32.mrf.mxu0
      %v4001 = vadd.f32 0.0, %v4000
      %v4002 = vpop.f32.mrf.mxu0
      %v4003 = vadd.f32 0.0, %v4002
      %v4004 = vpop.f32.mrf.mxu0
      %v4005 = vadd.f32 0.0, %v4004
      %v4006 = vpop.f32.mrf.mxu0
      %v4007 = vadd.f32 0.0, %v4006
      %4008 = vdwg.mxu0
      %4009 = vmatprep.subr.bf16.mxu0 0
      %4010 = vmatpush1.bf16.msra.mxu0 0
      %4011 = vmatprep.subr.bf16.mxu0 0
      %4012 = vmatpush1.bf16.msra.mxu0 0
      %4013 = vmatprep.subr.bf16.mxu0 0
      %4014 = vmatpush1.bf16.msra.mxu0 0
      %4015 = vmatprep.subr.bf16.mxu0 0
      %4016 = vmatpush1.bf16.msra.mxu0 0
      %4017 = vmatprep.subr.bf16.mxu0 0
      %4018 = vmatpush1.bf16.msra.mxu0 0
      %4019 = vmatprep.subr.bf16.mxu0 0
      %4020 = vmatpush1.bf16.msra.mxu0 0
      %4021 = vmatprep.subr.bf16.mxu0 0
      %4022 = vmatpush1.bf16.msra.mxu0 0
      %4023 = vmatprep.subr.bf16.mxu0 %v3848
      %4024 = vmatpush1.bf16.msra.mxu0 %v3845
      %4025 = vmatprep.subr.bf16.mxu0 0
      %4026 = vmatpush2.bf16.msra.mxu0 0
      %4027 = vmatprep.subr.bf16.mxu0 0
      %4028 = vmatpush2.bf16.msra.mxu0 0
      %4029 = vmatprep.subr.bf16.mxu0 0
      %4030 = vmatpush2.bf16.msra.mxu0 0
      %4031 = vmatprep.subr.bf16.mxu0 0
      %4032 = vmatpush2.bf16.msra.mxu0 0
      %4033 = vmatprep.subr.bf16.mxu0 0
      %4034 = vmatpush2.bf16.msra.mxu0 0
      %4035 = vmatprep.subr.bf16.mxu0 0
      %4036 = vmatpush2.bf16.msra.mxu0 0
      %4037 = vmatprep.subr.bf16.mxu0 0
      %4038 = vmatpush2.bf16.msra.mxu0 0
      %4039 = vmatprep.subr.bf16.mxu0 0
      %4040 = vmatpush2.bf16.msra.mxu0 0
      %4041 = vmatprep.mubr.bf16.mxu0 0
      %4042 = vmatmul.mubr.bf16.gmra.mxu0 %v3824
      %v4043 = vpop.f32.mrf.mxu0
      %v4044 = vadd.f32 0.0, %v4043
      %v4045 = vpop.f32.mrf.mxu0
      %v4046 = vadd.f32 0.0, %v4045
      %v4047 = vpop.f32.mrf.mxu0
      %v4048 = vadd.f32 0.0, %v4047
      %v4049 = vpop.f32.mrf.mxu0
      %v4050 = vadd.f32 0.0, %v4049
      %4051 = vdwg.mxu0
      %4052 = vmatprep.subr.bf16.mxu0 0
      %4053 = vmatpush1.bf16.msra.mxu0 0
      %4054 = vmatprep.subr.bf16.mxu0 0
      %4055 = vmatpush1.bf16.msra.mxu0 0
      %4056 = vmatprep.subr.bf16.mxu0 0
      %4057 = vmatpush1.bf16.msra.mxu0 0
      %4058 = vmatprep.subr.bf16.mxu0 0
      %4059 = vmatpush1.bf16.msra.mxu0 0
      %4060 = vmatprep.subr.bf16.mxu0 0
      %4061 = vmatpush1.bf16.msra.mxu0 0
      %4062 = vmatprep.subr.bf16.mxu0 0
      %4063 = vmatpush1.bf16.msra.mxu0 0
      %4064 = vmatprep.subr.bf16.mxu0 0
      %4065 = vmatpush1.bf16.msra.mxu0 0
      %4066 = vmatprep.subr.bf16.mxu0 %v3854
      %4067 = vmatpush1.bf16.msra.mxu0 %v3851
      %4068 = vmatprep.subr.bf16.mxu0 0
      %4069 = vmatpush2.bf16.msra.mxu0 0
      %4070 = vmatprep.subr.bf16.mxu0 0
      %4071 = vmatpush2.bf16.msra.mxu0 0
      %4072 = vmatprep.subr.bf16.mxu0 0
      %4073 = vmatpush2.bf16.msra.mxu0 0
      %4074 = vmatprep.subr.bf16.mxu0 0
      %4075 = vmatpush2.bf16.msra.mxu0 0
      %4076 = vmatprep.subr.bf16.mxu0 0
      %4077 = vmatpush2.bf16.msra.mxu0 0
      %4078 = vmatprep.subr.bf16.mxu0 0
      %4079 = vmatpush2.bf16.msra.mxu0 0
      %4080 = vmatprep.subr.bf16.mxu0 0
      %4081 = vmatpush2.bf16.msra.mxu0 0
      %4082 = vmatprep.subr.bf16.mxu0 0
      %4083 = vmatpush2.bf16.msra.mxu0 0
      %4084 = vmatprep.mubr.bf16.mxu0 0
      %4085 = vmatmul.mubr.bf16.gmra.mxu0 %v3824
      %v4086 = vpop.f32.mrf.mxu0
      %v4087 = vadd.f32 0.0, %v4086
      %v4088 = vpop.f32.mrf.mxu0
      %v4089 = vadd.f32 0.0, %v4088
      %v4090 = vpop.f32.mrf.mxu0
      %v4091 = vadd.f32 0.0, %v4090
      %v4092 = vpop.f32.mrf.mxu0
      %v4093 = vadd.f32 0.0, %v4092
      %4094 = vdwg.mxu0
      %4095 = vmatprep.subr.bf16.mxu0 0
      %4096 = vmatpush1.bf16.msra.mxu0 0
      %4097 = vmatprep.subr.bf16.mxu0 0
      %4098 = vmatpush1.bf16.msra.mxu0 0
      %4099 = vmatprep.subr.bf16.mxu0 0
      %4100 = vmatpush1.bf16.msra.mxu0 0
      %4101 = vmatprep.subr.bf16.mxu0 0
      %4102 = vmatpush1.bf16.msra.mxu0 0
      %4103 = vmatprep.subr.bf16.mxu0 0
      %4104 = vmatpush1.bf16.msra.mxu0 0
      %4105 = vmatprep.subr.bf16.mxu0 0
      %4106 = vmatpush1.bf16.msra.mxu0 0
      %4107 = vmatprep.subr.bf16.mxu0 0
      %4108 = vmatpush1.bf16.msra.mxu0 0
      %4109 = vmatprep.subr.bf16.mxu0 %v3860
      %4110 = vmatpush1.bf16.msra.mxu0 %v3857
      %4111 = vmatprep.subr.bf16.mxu0 0
      %4112 = vmatpush2.bf16.msra.mxu0 0
      %4113 = vmatprep.subr.bf16.mxu0 0
      %4114 = vmatpush2.bf16.msra.mxu0 0
      %4115 = vmatprep.subr.bf16.mxu0 0
      %4116 = vmatpush2.bf16.msra.mxu0 0
      %4117 = vmatprep.subr.bf16.mxu0 0
      %4118 = vmatpush2.bf16.msra.mxu0 0
      %4119 = vmatprep.subr.bf16.mxu0 0
      %4120 = vmatpush2.bf16.msra.mxu0 0
      %4121 = vmatprep.subr.bf16.mxu0 0
      %4122 = vmatpush2.bf16.msra.mxu0 0
      %4123 = vmatprep.subr.bf16.mxu0 0
      %4124 = vmatpush2.bf16.msra.mxu0 0
      %4125 = vmatprep.subr.bf16.mxu0 0
      %4126 = vmatpush2.bf16.msra.mxu0 0
      %4127 = vmatprep.mubr.bf16.mxu0 0
      %4128 = vmatmul.mubr.bf16.gmra.mxu0 %v3824
      %v4129 = vpop.f32.mrf.mxu0
      %v4130 = vadd.f32 0.0, %v4129
      %v4131 = vpop.f32.mrf.mxu0
      %v4132 = vadd.f32 0.0, %v4131
      %v4133 = vpop.f32.mrf.mxu0
      %v4134 = vadd.f32 0.0, %v4133
      %v4135 = vpop.f32.mrf.mxu0
      %v4136 = vadd.f32 0.0, %v4135
      %4137 = vdwg.mxu0
      %4138 = vmatprep.subr.bf16.mxu0 0
      %4139 = vmatpush1.bf16.msra.mxu0 0
      %4140 = vmatprep.subr.bf16.mxu0 0
      %4141 = vmatpush1.bf16.msra.mxu0 0
      %4142 = vmatprep.subr.bf16.mxu0 0
      %4143 = vmatpush1.bf16.msra.mxu0 0
      %4144 = vmatprep.subr.bf16.mxu0 0
      %4145 = vmatpush1.bf16.msra.mxu0 0
      %4146 = vmatprep.subr.bf16.mxu0 0
      %4147 = vmatpush1.bf16.msra.mxu0 0
      %4148 = vmatprep.subr.bf16.mxu0 0
      %4149 = vmatpush1.bf16.msra.mxu0 0
      %4150 = vmatprep.subr.bf16.mxu0 0
      %4151 = vmatpush1.bf16.msra.mxu0 0
      %4152 = vmatprep.subr.bf16.mxu0 %v3866
      %4153 = vmatpush1.bf16.msra.mxu0 %v3863
      %4154 = vmatprep.subr.bf16.mxu0 0
      %4155 = vmatpush2.bf16.msra.mxu0 0
      %4156 = vmatprep.subr.bf16.mxu0 0
      %4157 = vmatpush2.bf16.msra.mxu0 0
      %4158 = vmatprep.subr.bf16.mxu0 0
      %4159 = vmatpush2.bf16.msra.mxu0 0
      %4160 = vmatprep.subr.bf16.mxu0 0
      %4161 = vmatpush2.bf16.msra.mxu0 0
      %4162 = vmatprep.subr.bf16.mxu0 0
      %4163 = vmatpush2.bf16.msra.mxu0 0
      %4164 = vmatprep.subr.bf16.mxu0 0
      %4165 = vmatpush2.bf16.msra.mxu0 0
      %4166 = vmatprep.subr.bf16.mxu0 0
      %4167 = vmatpush2.bf16.msra.mxu0 0
      %4168 = vmatprep.subr.bf16.mxu0 0
      %4169 = vmatpush2.bf16.msra.mxu0 0
      %4170 = vmatprep.mubr.bf16.mxu0 0
      %4171 = vmatmul.mubr.bf16.gmra.mxu0 %v3824
      %v4172 = vpop.f32.mrf.mxu0
      %v4173 = vadd.f32 0.0, %v4172
      %v4174 = vpop.f32.mrf.mxu0
      %v4175 = vadd.f32 0.0, %v4174
      %v4176 = vpop.f32.mrf.mxu0
      %v4177 = vadd.f32 0.0, %v4176
      %v4178 = vpop.f32.mrf.mxu0
      %v4179 = vadd.f32 0.0, %v4178
      %4180 = vdwg.mxu0
      %4181 = vmatprep.subr.bf16.mxu0 0
      %4182 = vmatpush1.bf16.msra.mxu0 0
      %4183 = vmatprep.subr.bf16.mxu0 0
      %4184 = vmatpush1.bf16.msra.mxu0 0
      %4185 = vmatprep.subr.bf16.mxu0 0
      %4186 = vmatpush1.bf16.msra.mxu0 0
      %4187 = vmatprep.subr.bf16.mxu0 0
      %4188 = vmatpush1.bf16.msra.mxu0 0
      %4189 = vmatprep.subr.bf16.mxu0 0
      %4190 = vmatpush1.bf16.msra.mxu0 0
      %4191 = vmatprep.subr.bf16.mxu0 0
      %4192 = vmatpush1.bf16.msra.mxu0 0
      %4193 = vmatprep.subr.bf16.mxu0 0
      %4194 = vmatpush1.bf16.msra.mxu0 0
      %4195 = vmatprep.subr.bf16.mxu0 %v3872
      %4196 = vmatpush1.bf16.msra.mxu0 %v3869
      %4197 = vmatprep.subr.bf16.mxu0 0
      %4198 = vmatpush2.bf16.msra.mxu0 0
      %4199 = vmatprep.subr.bf16.mxu0 0
      %4200 = vmatpush2.bf16.msra.mxu0 0
      %4201 = vmatprep.subr.bf16.mxu0 0
      %4202 = vmatpush2.bf16.msra.mxu0 0
      %4203 = vmatprep.subr.bf16.mxu0 0
      %4204 = vmatpush2.bf16.msra.mxu0 0
      %4205 = vmatprep.subr.bf16.mxu0 0
      %4206 = vmatpush2.bf16.msra.mxu0 0
      %4207 = vmatprep.subr.bf16.mxu0 0
      %4208 = vmatpush2.bf16.msra.mxu0 0
      %4209 = vmatprep.subr.bf16.mxu0 0
      %4210 = vmatpush2.bf16.msra.mxu0 0
      %4211 = vmatprep.subr.bf16.mxu0 0
      %4212 = vmatpush2.bf16.msra.mxu0 0
      %4213 = vmatprep.mubr.bf16.mxu0 0
      %4214 = vmatmul.mubr.bf16.gmra.mxu0 %v3824
      %v4215 = vpop.f32.mrf.mxu0
      %v4216 = vadd.f32 0.0, %v4215
      %v4217 = vpop.f32.mrf.mxu0
      %v4218 = vadd.f32 0.0, %v4217
      %v4219 = vpop.f32.mrf.mxu0
      %v4220 = vadd.f32 0.0, %v4219
      %v4221 = vpop.f32.mrf.mxu0
      %v4222 = vadd.f32 0.0, %v4221
      %4223 = vdwg.mxu0
      %4224 = vmatprep.subr.bf16.mxu0 0
      %4225 = vmatpush1.bf16.msra.mxu0 0
      %4226 = vmatprep.subr.bf16.mxu0 0
      %4227 = vmatpush1.bf16.msra.mxu0 0
      %4228 = vmatprep.subr.bf16.mxu0 0
      %4229 = vmatpush1.bf16.msra.mxu0 0
      %4230 = vmatprep.subr.bf16.mxu0 0
      %4231 = vmatpush1.bf16.msra.mxu0 0
      %4232 = vmatprep.subr.bf16.mxu0 0
      %4233 = vmatpush1.bf16.msra.mxu0 0
      %4234 = vmatprep.subr.bf16.mxu0 0
      %4235 = vmatpush1.bf16.msra.mxu0 0
      %4236 = vmatprep.subr.bf16.mxu0 0
      %4237 = vmatpush1.bf16.msra.mxu0 0
      %4238 = vmatprep.subr.bf16.mxu0 %v3878
      %4239 = vmatpush1.bf16.msra.mxu0 %v3875
      %4240 = vmatprep.subr.bf16.mxu0 0
      %4241 = vmatpush2.bf16.msra.mxu0 0
      %4242 = vmatprep.subr.bf16.mxu0 0
      %4243 = vmatpush2.bf16.msra.mxu0 0
      %4244 = vmatprep.subr.bf16.mxu0 0
      %4245 = vmatpush2.bf16.msra.mxu0 0
      %4246 = vmatprep.subr.bf16.mxu0 0
      %4247 = vmatpush2.bf16.msra.mxu0 0
      %4248 = vmatprep.subr.bf16.mxu0 0
      %4249 = vmatpush2.bf16.msra.mxu0 0
      %4250 = vmatprep.subr.bf16.mxu0 0
      %4251 = vmatpush2.bf16.msra.mxu0 0
      %4252 = vmatprep.subr.bf16.mxu0 0
      %4253 = vmatpush2.bf16.msra.mxu0 0
      %4254 = vmatprep.subr.bf16.mxu0 0
      %4255 = vmatpush2.bf16.msra.mxu0 0
      %4256 = vmatprep.mubr.bf16.mxu0 0
      %4257 = vmatmul.mubr.bf16.gmra.mxu0 %v3824
      %v4258 = vpop.f32.mrf.mxu0
      %v4259 = vadd.f32 0.0, %v4258
      %v4260 = vpop.f32.mrf.mxu0
      %v4261 = vadd.f32 0.0, %v4260
      %v4262 = vpop.f32.mrf.mxu0
      %v4263 = vadd.f32 0.0, %v4262
      %v4264 = vpop.f32.mrf.mxu0
      %v4265 = vadd.f32 0.0, %v4264
      %4266 = vdwg.mxu0
      %v4267 = vadd.f32 %v3628, %v3915
      %v4268 = vadd.f32 %v3629, %v3917
      %v4269 = vadd.f32 %v3630, %v3958
      %v4270 = vadd.f32 %v3631, %v3960
      %v4271 = vadd.f32 %v3632, %v4001
      %v4272 = vadd.f32 %v3633, %v4003
      %v4273 = vadd.f32 %v3634, %v4044
      %v4274 = vadd.f32 %v3635, %v4046
      %v4275 = vadd.f32 %v3636, %v4087
      %v4276 = vadd.f32 %v3637, %v4089
      %v4277 = vadd.f32 %v3638, %v4130
      %v4278 = vadd.f32 %v3639, %v4132
      %v4279 = vadd.f32 %v3640, %v4173
      %v4280 = vadd.f32 %v3641, %v4175
      %v4281 = vadd.f32 %v3642, %v4216
      %v4282 = vadd.f32 %v3643, %v4218
      %v4283 = vadd.f32 %v3644, %v4259
      %v4284 = vadd.f32 %v3645, %v4261
      %v4285 = vadd.f32 %v3646, %v3919
      %v4286 = vadd.f32 %v3647, %v3921
      %v4287 = vadd.f32 %v3648, %v3962
      %v4288 = vadd.f32 %v3649, %v3964
      %v4289 = vadd.f32 %v3650, %v4005
      %v4290 = vadd.f32 %v3651, %v4007
      %v4291 = vadd.f32 %v3652, %v4048
      %v4292 = vadd.f32 %v3653, %v4050
      %v4293 = vadd.f32 %v3654, %v4091
      %v4294 = vadd.f32 %v3655, %v4093
      %v4295 = vadd.f32 %v3656, %v4134
      %v4296 = vadd.f32 %v3657, %v4136
      %v4297 = vadd.f32 %v3658, %v4177
      %v4298 = vadd.f32 %v3659, %v4179
      %v4299 = vadd.f32 %v3660, %v4220
      %v4300 = vadd.f32 %v3661, %v4222
      %v4301 = vadd.f32 %v3662, %v4263
      %v4302 = vadd.f32 %v3663, %v4265
      %4303 = vst [vmem:[#allocation2] sm:$0xff] %v4267
      %4304 = vst [vmem:[#allocation2 + $0x8] sm:$0xff] %v4268
      %4305 = vst [vmem:[#allocation2 + $0x10] sm:$0xff] %v4269
      %4306 = vst [vmem:[#allocation2 + $0x18] sm:$0xff] %v4270
      %4307 = vst [vmem:[#allocation2 + $0x20] sm:$0xff] %v4271
      %4308 = vst [vmem:[#allocation2 + $0x28] sm:$0xff] %v4272
      %4309 = vst [vmem:[#allocation2 + $0x30] sm:$0xff] %v4273
      %4310 = vst [vmem:[#allocation2 + $0x38] sm:$0xff] %v4274
      %4311 = vst [vmem:[#allocation2 + $0x40] sm:$0xff] %v4275
      %4312 = vst [vmem:[#allocation2 + $0x48] sm:$0xff] %v4276
      %4313 = vst [vmem:[#allocation2 + $0x50] sm:$0xff] %v4277
      %4314 = vst [vmem:[#allocation2 + $0x58] sm:$0xff] %v4278
      %4315 = vst [vmem:[#allocation2 + $0x60] sm:$0xff] %v4279
      %4316 = vst [vmem:[#allocation2 + $0x68] sm:$0xff] %v4280
      %4317 = vst [vmem:[#allocation2 + $0x70] sm:$0xff] %v4281
      %4318 = vst [vmem:[#allocation2 + $0x78] sm:$0xff] %v4282
      %4319 = vst [vmem:[#allocation2 + $0x80] sm:$0xff] %v4283
      %4320 = vst [vmem:[#allocation2 + $0x88] sm:$0xff] %v4284
      %4321 = vst [vmem:[#allocation2 + $0x90] sm:$0x3f] %v4285
      %4322 = vst [vmem:[#allocation2 + $0x98] sm:$0x3f] %v4286
      %4323 = vst [vmem:[#allocation2 + $0xa0] sm:$0x3f] %v4287
      %4324 = vst [vmem:[#allocation2 + $0xa8] sm:$0x3f] %v4288
      %4325 = vst [vmem:[#allocation2 + $0xb0] sm:$0x3f] %v4289
      %4326 = vst [vmem:[#allocation2 + $0xb8] sm:$0x3f] %v4290
      %4327 = vst [vmem:[#allocation2 + $0xc0] sm:$0x3f] %v4291
      %4328 = vst [vmem:[#allocation2 + $0xc8] sm:$0x3f] %v4292
      %4329 = vst [vmem:[#allocation2 + $0xd0] sm:$0x3f] %v4293
      %4330 = vst [vmem:[#allocation2 + $0xd8] sm:$0x3f] %v4294
      %4331 = vst [vmem:[#allocation2 + $0xe0] sm:$0x3f] %v4295
      %4332 = vst [vmem:[#allocation2 + $0xe8] sm:$0x3f] %v4296
      %4333 = vst [vmem:[#allocation2 + $0xf0] sm:$0x3f] %v4297
      %4334 = vst [vmem:[#allocation2 + $0xf8] sm:$0x3f] %v4298
      %4335 = vst [vmem:[#allocation2 + $0x100] sm:$0x3f] %v4299
      %4336 = vst [vmem:[#allocation2 + $0x108] sm:$0x3f] %v4300
      %4337 = vst [vmem:[#allocation2 + $0x110] sm:$0x3f] %v4301
      %4338 = vst [vmem:[#allocation2 + $0x118] sm:$0x3f] %v4302
      %v4339 = vld [vmem:[#allocation2] sm:$0xff]
      %v4340 = vld [vmem:[#allocation2 + $0x8] sm:$0xff]
      %v4341 = vld [vmem:[#allocation2 + $0x10] sm:$0xff]
      %v4342 = vld [vmem:[#allocation2 + $0x18] sm:$0xff]
      %v4343 = vld [vmem:[#allocation2 + $0x20] sm:$0xff]
      %v4344 = vld [vmem:[#allocation2 + $0x28] sm:$0xff]
      %v4345 = vld [vmem:[#allocation2 + $0x30] sm:$0xff]
      %v4346 = vld [vmem:[#allocation2 + $0x38] sm:$0xff]
      %v4347 = vld [vmem:[#allocation2 + $0x40] sm:$0xff]
      %v4348 = vld [vmem:[#allocation2 + $0x48] sm:$0xff]
      %v4349 = vld [vmem:[#allocation2 + $0x50] sm:$0xff]
      %v4350 = vld [vmem:[#allocation2 + $0x58] sm:$0xff]
      %v4351 = vld [vmem:[#allocation2 + $0x60] sm:$0xff]
      %v4352 = vld [vmem:[#allocation2 + $0x68] sm:$0xff]
      %v4353 = vld [vmem:[#allocation2 + $0x70] sm:$0xff]
      %v4354 = vld [vmem:[#allocation2 + $0x78] sm:$0xff]
      %v4355 = vld [vmem:[#allocation2 + $0x80] sm:$0xff]
      %v4356 = vld [vmem:[#allocation2 + $0x88] sm:$0xff]
      %v4357 = vld [vmem:[#allocation2 + $0x90] sm:$0x3f]
      %v4358 = vld [vmem:[#allocation2 + $0x98] sm:$0x3f]
      %v4359 = vld [vmem:[#allocation2 + $0xa0] sm:$0x3f]
      %v4360 = vld [vmem:[#allocation2 + $0xa8] sm:$0x3f]
      %v4361 = vld [vmem:[#allocation2 + $0xb0] sm:$0x3f]
      %v4362 = vld [vmem:[#allocation2 + $0xb8] sm:$0x3f]
      %v4363 = vld [vmem:[#allocation2 + $0xc0] sm:$0x3f]
      %v4364 = vld [vmem:[#allocation2 + $0xc8] sm:$0x3f]
      %v4365 = vld [vmem:[#allocation2 + $0xd0] sm:$0x3f]
      %v4366 = vld [vmem:[#allocation2 + $0xd8] sm:$0x3f]
      %v4367 = vld [vmem:[#allocation2 + $0xe0] sm:$0x3f]
      %v4368 = vld [vmem:[#allocation2 + $0xe8] sm:$0x3f]
      %v4369 = vld [vmem:[#allocation2 + $0xf0] sm:$0x3f]
      %v4370 = vld [vmem:[#allocation2 + $0xf8] sm:$0x3f]
      %v4371 = vld [vmem:[#allocation2 + $0x100] sm:$0x3f]
      %v4372 = vld [vmem:[#allocation2 + $0x108] sm:$0x3f]
      %v4373 = vld [vmem:[#allocation2 + $0x110] sm:$0x3f]
      %v4374 = vld [vmem:[#allocation2 + $0x118] sm:$0x3f]
      %s4375 = scalar_lea.vmem %s1, 48
      %v4376 = vld [vmem:[%s4375] sm:$0xf]
      %v4377 = vld [vmem:[%s4375 + $0x4] sm:$0x7]
      %v4378 = vld [vmem:[%s197] sm:$0xff]
      %v4379 = vld [vmem:[%s197 + $0x8] sm:$0xff]
      %v4380 = vld [vmem:[%s197 + $0x10] sm:$0xff]
      %v4381 = vld [vmem:[%s197 + $0x18] sm:$0xff]
      %v4382 = vld [vmem:[%s197 + $0x20] sm:$0x3f]
      %v4385 = vunpack.c.l.b16 %v4376
      %v4386 = vunpack.c.l.b16 %v4377
      %v4387 = vpack.c.b16 %v4386, %v4385
      %v4393 = vcombine.high %v4378, %v4378
      %v4395 = vunpack.c.l.s4 1983009808
      %v4396 = vunpack.c.0.s8 %v4395
      %v4397 = vlaneseq
      %v4398 = vshrl.u32 %v4397, 7
      %v4399 = vsub.s32 %v4396, %v4398
      %v4400 = vrot.slane %v4378, %v4399
      %v4402 = vunpack.c.l.s4 1983009808
      %v4403 = vunpack.c.0.s8 %v4402
      %v4404 = vlaneseq
      %v4405 = vshrl.u32 %v4404, 7
      %v4406 = vsub.s32 %v4403, %v4405
      %v4407 = vrot.slane %v4393, %v4406
      %v4408 = vcombine.high %v4400, %v4400
      %v4409 = vcombine.high %v4407, %v4407
      %v4410 = vcombine.high %v4379, %v4379
      %v4412 = vunpack.c.l.s4 1983009808
      %v4413 = vunpack.c.0.s8 %v4412
      %v4414 = vlaneseq
      %v4415 = vshrl.u32 %v4414, 7
      %v4416 = vsub.s32 %v4413, %v4415
      %v4417 = vrot.slane %v4379, %v4416
      %v4419 = vunpack.c.l.s4 1983009808
      %v4420 = vunpack.c.0.s8 %v4419
      %v4421 = vlaneseq
      %v4422 = vshrl.u32 %v4421, 7
      %v4423 = vsub.s32 %v4420, %v4422
      %v4424 = vrot.slane %v4410, %v4423
      %v4425 = vcombine.high %v4417, %v4417
      %v4426 = vcombine.high %v4424, %v4424
      %v4427 = vcombine.high %v4380, %v4380
      %v4429 = vunpack.c.l.s4 1983009808
      %v4430 = vunpack.c.0.s8 %v4429
      %v4431 = vlaneseq
      %v4432 = vshrl.u32 %v4431, 7
      %v4433 = vsub.s32 %v4430, %v4432
      %v4434 = vrot.slane %v4380, %v4433
      %v4436 = vunpack.c.l.s4 1983009808
      %v4437 = vunpack.c.0.s8 %v4436
      %v4438 = vlaneseq
      %v4439 = vshrl.u32 %v4438, 7
      %v4440 = vsub.s32 %v4437, %v4439
      %v4441 = vrot.slane %v4427, %v4440
      %v4442 = vcombine.high %v4434, %v4434
      %v4443 = vcombine.high %v4441, %v4441
      %v4444 = vcombine.high %v4381, %v4381
      %v4446 = vunpack.c.l.s4 1983009808
      %v4447 = vunpack.c.0.s8 %v4446
      %v4448 = vlaneseq
      %v4449 = vshrl.u32 %v4448, 7
      %v4450 = vsub.s32 %v4447, %v4449
      %v4451 = vrot.slane %v4381, %v4450
      %v4453 = vunpack.c.l.s4 1983009808
      %v4454 = vunpack.c.0.s8 %v4453
      %v4455 = vlaneseq
      %v4456 = vshrl.u32 %v4455, 7
      %v4457 = vsub.s32 %v4454, %v4456
      %v4458 = vrot.slane %v4444, %v4457
      %v4459 = vcombine.high %v4451, %v4451
      %v4460 = vcombine.high %v4458, %v4458
      %v4461 = vcombine.high %v4382, %v4382
      %v4463 = vunpack.c.l.s4 1983009808
      %v4464 = vunpack.c.0.s8 %v4463
      %v4465 = vlaneseq
      %v4466 = vshrl.u32 %v4465, 7
      %v4467 = vsub.s32 %v4464, %v4466
      %v4468 = vrot.slane %v4382, %v4467
      %v4470 = vunpack.c.l.s4 1983009808
      %v4471 = vunpack.c.0.s8 %v4470
      %v4472 = vlaneseq
      %v4473 = vshrl.u32 %v4472, 7
      %v4474 = vsub.s32 %v4471, %v4473
      %v4475 = vrot.slane %v4461, %v4474
      %v4476 = vcombine.high %v4468, %v4468
      %4477 = vrot.lane.b32.xlu0 %v4400, 92
      %v4478 = vpop.permute.xlu0 %4477
      %4479 = vrot.lane.b32.xlu0 %v4408, 92
      %v4480 = vpop.permute.xlu0 %4479
      %4481 = vrot.lane.b32.xlu0 %v4407, 92
      %v4482 = vpop.permute.xlu0 %4481
      %4483 = vrot.lane.b32.xlu0 %v4409, 92
      %v4484 = vpop.permute.xlu0 %4483
      %4485 = vrot.lane.b32.xlu0 %v4417, 92
      %v4486 = vpop.permute.xlu0 %4485
      %4487 = vrot.lane.b32.xlu0 %v4425, 92
      %v4488 = vpop.permute.xlu0 %4487
      %4489 = vrot.lane.b32.xlu0 %v4424, 92
      %v4490 = vpop.permute.xlu0 %4489
      %4491 = vrot.lane.b32.xlu0 %v4426, 92
      %v4492 = vpop.permute.xlu0 %4491
      %4493 = vrot.lane.b32.xlu0 %v4434, 92
      %v4494 = vpop.permute.xlu0 %4493
      %4495 = vrot.lane.b32.xlu0 %v4442, 92
      %v4496 = vpop.permute.xlu0 %4495
      %4497 = vrot.lane.b32.xlu0 %v4441, 92
      %v4498 = vpop.permute.xlu0 %4497
      %4499 = vrot.lane.b32.xlu0 %v4443, 92
      %v4500 = vpop.permute.xlu0 %4499
      %4501 = vrot.lane.b32.xlu0 %v4451, 92
      %v4502 = vpop.permute.xlu0 %4501
      %4503 = vrot.lane.b32.xlu0 %v4459, 92
      %v4504 = vpop.permute.xlu0 %4503
      %4505 = vrot.lane.b32.xlu0 %v4458, 92
      %v4506 = vpop.permute.xlu0 %4505
      %4507 = vrot.lane.b32.xlu0 %v4460, 92
      %v4508 = vpop.permute.xlu0 %4507
      %4509 = vrot.lane.b32.xlu0 %v4468, 92
      %v4510 = vpop.permute.xlu0 %4509
      %4511 = vrot.lane.b32.xlu0 %v4476, 92
      %v4512 = vpop.permute.xlu0 %4511
      %4513 = vrot.lane.b32.xlu0 %v4475, 92
      %v4514 = vpop.permute.xlu0 %4513
      %vm4515 = vcmask 752640
      %v4516 = vsel %vm4515, %v4478, %v4480
      %v4517 = vsel %vm4515, %v4480, %v4482
      %v4518 = vsel %vm4515, %v4482, %v4484
      %v4519 = vsel %vm4515, %v4484, %v4486
      %v4520 = vsel %vm4515, %v4486, %v4488
      %v4521 = vsel %vm4515, %v4488, %v4490
      %v4522 = vsel %vm4515, %v4490, %v4492
      %v4523 = vsel %vm4515, %v4492, %v4494
      %v4524 = vsel %vm4515, %v4494, %v4496
      %v4525 = vsel %vm4515, %v4496, %v4498
      %v4526 = vsel %vm4515, %v4498, %v4500
      %v4527 = vsel %vm4515, %v4500, %v4502
      %v4528 = vsel %vm4515, %v4502, %v4504
      %v4529 = vsel %vm4515, %v4504, %v4506
      %v4530 = vsel %vm4515, %v4506, %v4508
      %v4531 = vsel %vm4515, %v4508, %v4510
      %v4532 = vsel %vm4515, %v4510, %v4512
      %v4533 = vsel %vm4515, %v4512, %v4514
      %v4535 = vsel %vm302, %v4387, 0
      %v4538 = vsel %vm306, %v4516, 0
      %v4541 = vsel %vm306, %v4517, 0
      %v4544 = vsel %vm306, %v4518, 0
      %v4547 = vsel %vm306, %v4519, 0
      %v4550 = vsel %vm306, %v4520, 0
      %v4553 = vsel %vm306, %v4521, 0
      %v4556 = vsel %vm306, %v4522, 0
      %v4559 = vsel %vm306, %v4523, 0
      %v4562 = vsel %vm306, %v4524, 0
      %v4565 = vsel %vm306, %v4525, 0
      %v4568 = vsel %vm306, %v4526, 0
      %v4571 = vsel %vm306, %v4527, 0
      %v4574 = vsel %vm306, %v4528, 0
      %v4577 = vsel %vm306, %v4529, 0
      %v4580 = vsel %vm306, %v4530, 0
      %v4583 = vsel %vm306, %v4531, 0
      %v4586 = vsel %vm306, %v4532, 0
      %v4589 = vsel %vm306, %v4533, 0
      %4591 = vmatprep.subr.bf16.mxu0 0
      %4592 = vmatpush1.bf16.msra.mxu0 0
      %4593 = vmatprep.subr.bf16.mxu0 0
      %4594 = vmatpush1.bf16.msra.mxu0 0
      %4595 = vmatprep.subr.bf16.mxu0 0
      %4596 = vmatpush1.bf16.msra.mxu0 0
      %4597 = vmatprep.subr.bf16.mxu0 0
      %4598 = vmatpush1.bf16.msra.mxu0 0
      %4599 = vmatprep.subr.bf16.mxu0 0
      %4600 = vmatpush1.bf16.msra.mxu0 0
      %4601 = vmatprep.subr.bf16.mxu0 0
      %4602 = vmatpush1.bf16.msra.mxu0 0
      %4603 = vmatprep.subr.bf16.mxu0 0
      %4604 = vmatpush1.bf16.msra.mxu0 0
      %4605 = vmatprep.subr.bf16.mxu0 %v4541
      %4606 = vmatpush1.bf16.msra.mxu0 %v4538
      %4607 = vmatprep.subr.bf16.mxu0 0
      %4608 = vmatpush2.bf16.msra.mxu0 0
      %4609 = vmatprep.subr.bf16.mxu0 0
      %4610 = vmatpush2.bf16.msra.mxu0 0
      %4611 = vmatprep.subr.bf16.mxu0 0
      %4612 = vmatpush2.bf16.msra.mxu0 0
      %4613 = vmatprep.subr.bf16.mxu0 0
      %4614 = vmatpush2.bf16.msra.mxu0 0
      %4615 = vmatprep.subr.bf16.mxu0 0
      %4616 = vmatpush2.bf16.msra.mxu0 0
      %4617 = vmatprep.subr.bf16.mxu0 0
      %4618 = vmatpush2.bf16.msra.mxu0 0
      %4619 = vmatprep.subr.bf16.mxu0 0
      %4620 = vmatpush2.bf16.msra.mxu0 0
      %4621 = vmatprep.subr.bf16.mxu0 0
      %4622 = vmatpush2.bf16.msra.mxu0 0
      %4623 = vmatprep.mubr.bf16.mxu0 0
      %4624 = vmatmul.mubr.bf16.gmra.mxu0 %v4535
      %v4625 = vpop.f32.mrf.mxu0
      %v4626 = vadd.f32 0.0, %v4625
      %v4627 = vpop.f32.mrf.mxu0
      %v4628 = vadd.f32 0.0, %v4627
      %v4629 = vpop.f32.mrf.mxu0
      %v4630 = vadd.f32 0.0, %v4629
      %v4631 = vpop.f32.mrf.mxu0
      %v4632 = vadd.f32 0.0, %v4631
      %4633 = vdwg.mxu0
      %4634 = vmatprep.subr.bf16.mxu0 0
      %4635 = vmatpush1.bf16.msra.mxu0 0
      %4636 = vmatprep.subr.bf16.mxu0 0
      %4637 = vmatpush1.bf16.msra.mxu0 0
      %4638 = vmatprep.subr.bf16.mxu0 0
      %4639 = vmatpush1.bf16.msra.mxu0 0
      %4640 = vmatprep.subr.bf16.mxu0 0
      %4641 = vmatpush1.bf16.msra.mxu0 0
      %4642 = vmatprep.subr.bf16.mxu0 0
      %4643 = vmatpush1.bf16.msra.mxu0 0
      %4644 = vmatprep.subr.bf16.mxu0 0
      %4645 = vmatpush1.bf16.msra.mxu0 0
      %4646 = vmatprep.subr.bf16.mxu0 0
      %4647 = vmatpush1.bf16.msra.mxu0 0
      %4648 = vmatprep.subr.bf16.mxu0 %v4547
      %4649 = vmatpush1.bf16.msra.mxu0 %v4544
      %4650 = vmatprep.subr.bf16.mxu0 0
      %4651 = vmatpush2.bf16.msra.mxu0 0
      %4652 = vmatprep.subr.bf16.mxu0 0
      %4653 = vmatpush2.bf16.msra.mxu0 0
      %4654 = vmatprep.subr.bf16.mxu0 0
      %4655 = vmatpush2.bf16.msra.mxu0 0
      %4656 = vmatprep.subr.bf16.mxu0 0
      %4657 = vmatpush2.bf16.msra.mxu0 0
      %4658 = vmatprep.subr.bf16.mxu0 0
      %4659 = vmatpush2.bf16.msra.mxu0 0
      %4660 = vmatprep.subr.bf16.mxu0 0
      %4661 = vmatpush2.bf16.msra.mxu0 0
      %4662 = vmatprep.subr.bf16.mxu0 0
      %4663 = vmatpush2.bf16.msra.mxu0 0
      %4664 = vmatprep.subr.bf16.mxu0 0
      %4665 = vmatpush2.bf16.msra.mxu0 0
      %4666 = vmatprep.mubr.bf16.mxu0 0
      %4667 = vmatmul.mubr.bf16.gmra.mxu0 %v4535
      %v4668 = vpop.f32.mrf.mxu0
      %v4669 = vadd.f32 0.0, %v4668
      %v4670 = vpop.f32.mrf.mxu0
      %v4671 = vadd.f32 0.0, %v4670
      %v4672 = vpop.f32.mrf.mxu0
      %v4673 = vadd.f32 0.0, %v4672
      %v4674 = vpop.f32.mrf.mxu0
      %v4675 = vadd.f32 0.0, %v4674
      %4676 = vdwg.mxu0
      %4677 = vmatprep.subr.bf16.mxu0 0
      %4678 = vmatpush1.bf16.msra.mxu0 0
      %4679 = vmatprep.subr.bf16.mxu0 0
      %4680 = vmatpush1.bf16.msra.mxu0 0
      %4681 = vmatprep.subr.bf16.mxu0 0
      %4682 = vmatpush1.bf16.msra.mxu0 0
      %4683 = vmatprep.subr.bf16.mxu0 0
      %4684 = vmatpush1.bf16.msra.mxu0 0
      %4685 = vmatprep.subr.bf16.mxu0 0
      %4686 = vmatpush1.bf16.msra.mxu0 0
      %4687 = vmatprep.subr.bf16.mxu0 0
      %4688 = vmatpush1.bf16.msra.mxu0 0
      %4689 = vmatprep.subr.bf16.mxu0 0
      %4690 = vmatpush1.bf16.msra.mxu0 0
      %4691 = vmatprep.subr.bf16.mxu0 %v4553
      %4692 = vmatpush1.bf16.msra.mxu0 %v4550
      %4693 = vmatprep.subr.bf16.mxu0 0
      %4694 = vmatpush2.bf16.msra.mxu0 0
      %4695 = vmatprep.subr.bf16.mxu0 0
      %4696 = vmatpush2.bf16.msra.mxu0 0
      %4697 = vmatprep.subr.bf16.mxu0 0
      %4698 = vmatpush2.bf16.msra.mxu0 0
      %4699 = vmatprep.subr.bf16.mxu0 0
      %4700 = vmatpush2.bf16.msra.mxu0 0
      %4701 = vmatprep.subr.bf16.mxu0 0
      %4702 = vmatpush2.bf16.msra.mxu0 0
      %4703 = vmatprep.subr.bf16.mxu0 0
      %4704 = vmatpush2.bf16.msra.mxu0 0
      %4705 = vmatprep.subr.bf16.mxu0 0
      %4706 = vmatpush2.bf16.msra.mxu0 0
      %4707 = vmatprep.subr.bf16.mxu0 0
      %4708 = vmatpush2.bf16.msra.mxu0 0
      %4709 = vmatprep.mubr.bf16.mxu0 0
      %4710 = vmatmul.mubr.bf16.gmra.mxu0 %v4535
      %v4711 = vpop.f32.mrf.mxu0
      %v4712 = vadd.f32 0.0, %v4711
      %v4713 = vpop.f32.mrf.mxu0
      %v4714 = vadd.f32 0.0, %v4713
      %v4715 = vpop.f32.mrf.mxu0
      %v4716 = vadd.f32 0.0, %v4715
      %v4717 = vpop.f32.mrf.mxu0
      %v4718 = vadd.f32 0.0, %v4717
      %4719 = vdwg.mxu0
      %4720 = vmatprep.subr.bf16.mxu0 0
      %4721 = vmatpush1.bf16.msra.mxu0 0
      %4722 = vmatprep.subr.bf16.mxu0 0
      %4723 = vmatpush1.bf16.msra.mxu0 0
      %4724 = vmatprep.subr.bf16.mxu0 0
      %4725 = vmatpush1.bf16.msra.mxu0 0
      %4726 = vmatprep.subr.bf16.mxu0 0
      %4727 = vmatpush1.bf16.msra.mxu0 0
      %4728 = vmatprep.subr.bf16.mxu0 0
      %4729 = vmatpush1.bf16.msra.mxu0 0
      %4730 = vmatprep.subr.bf16.mxu0 0
      %4731 = vmatpush1.bf16.msra.mxu0 0
      %4732 = vmatprep.subr.bf16.mxu0 0
      %4733 = vmatpush1.bf16.msra.mxu0 0
      %4734 = vmatprep.subr.bf16.mxu0 %v4559
      %4735 = vmatpush1.bf16.msra.mxu0 %v4556
      %4736 = vmatprep.subr.bf16.mxu0 0
      %4737 = vmatpush2.bf16.msra.mxu0 0
      %4738 = vmatprep.subr.bf16.mxu0 0
      %4739 = vmatpush2.bf16.msra.mxu0 0
      %4740 = vmatprep.subr.bf16.mxu0 0
      %4741 = vmatpush2.bf16.msra.mxu0 0
      %4742 = vmatprep.subr.bf16.mxu0 0
      %4743 = vmatpush2.bf16.msra.mxu0 0
      %4744 = vmatprep.subr.bf16.mxu0 0
      %4745 = vmatpush2.bf16.msra.mxu0 0
      %4746 = vmatprep.subr.bf16.mxu0 0
      %4747 = vmatpush2.bf16.msra.mxu0 0
      %4748 = vmatprep.subr.bf16.mxu0 0
      %4749 = vmatpush2.bf16.msra.mxu0 0
      %4750 = vmatprep.subr.bf16.mxu0 0
      %4751 = vmatpush2.bf16.msra.mxu0 0
      %4752 = vmatprep.mubr.bf16.mxu0 0
      %4753 = vmatmul.mubr.bf16.gmra.mxu0 %v4535
      %v4754 = vpop.f32.mrf.mxu0
      %v4755 = vadd.f32 0.0, %v4754
      %v4756 = vpop.f32.mrf.mxu0
      %v4757 = vadd.f32 0.0, %v4756
      %v4758 = vpop.f32.mrf.mxu0
      %v4759 = vadd.f32 0.0, %v4758
      %v4760 = vpop.f32.mrf.mxu0
      %v4761 = vadd.f32 0.0, %v4760
      %4762 = vdwg.mxu0
      %4763 = vmatprep.subr.bf16.mxu0 0
      %4764 = vmatpush1.bf16.msra.mxu0 0
      %4765 = vmatprep.subr.bf16.mxu0 0
      %4766 = vmatpush1.bf16.msra.mxu0 0
      %4767 = vmatprep.subr.bf16.mxu0 0
      %4768 = vmatpush1.bf16.msra.mxu0 0
      %4769 = vmatprep.subr.bf16.mxu0 0
      %4770 = vmatpush1.bf16.msra.mxu0 0
      %4771 = vmatprep.subr.bf16.mxu0 0
      %4772 = vmatpush1.bf16.msra.mxu0 0
      %4773 = vmatprep.subr.bf16.mxu0 0
      %4774 = vmatpush1.bf16.msra.mxu0 0
      %4775 = vmatprep.subr.bf16.mxu0 0
      %4776 = vmatpush1.bf16.msra.mxu0 0
      %4777 = vmatprep.subr.bf16.mxu0 %v4565
      %4778 = vmatpush1.bf16.msra.mxu0 %v4562
      %4779 = vmatprep.subr.bf16.mxu0 0
      %4780 = vmatpush2.bf16.msra.mxu0 0
      %4781 = vmatprep.subr.bf16.mxu0 0
      %4782 = vmatpush2.bf16.msra.mxu0 0
      %4783 = vmatprep.subr.bf16.mxu0 0
      %4784 = vmatpush2.bf16.msra.mxu0 0
      %4785 = vmatprep.subr.bf16.mxu0 0
      %4786 = vmatpush2.bf16.msra.mxu0 0
      %4787 = vmatprep.subr.bf16.mxu0 0
      %4788 = vmatpush2.bf16.msra.mxu0 0
      %4789 = vmatprep.subr.bf16.mxu0 0
      %4790 = vmatpush2.bf16.msra.mxu0 0
      %4791 = vmatprep.subr.bf16.mxu0 0
      %4792 = vmatpush2.bf16.msra.mxu0 0
      %4793 = vmatprep.subr.bf16.mxu0 0
      %4794 = vmatpush2.bf16.msra.mxu0 0
      %4795 = vmatprep.mubr.bf16.mxu0 0
      %4796 = vmatmul.mubr.bf16.gmra.mxu0 %v4535
      %v4797 = vpop.f32.mrf.mxu0
      %v4798 = vadd.f32 0.0, %v4797
      %v4799 = vpop.f32.mrf.mxu0
      %v4800 = vadd.f32 0.0, %v4799
      %v4801 = vpop.f32.mrf.mxu0
      %v4802 = vadd.f32 0.0, %v4801
      %v4803 = vpop.f32.mrf.mxu0
      %v4804 = vadd.f32 0.0, %v4803
      %4805 = vdwg.mxu0
      %4806 = vmatprep.subr.bf16.mxu0 0
      %4807 = vmatpush1.bf16.msra.mxu0 0
      %4808 = vmatprep.subr.bf16.mxu0 0
      %4809 = vmatpush1.bf16.msra.mxu0 0
      %4810 = vmatprep.subr.bf16.mxu0 0
      %4811 = vmatpush1.bf16.msra.mxu0 0
      %4812 = vmatprep.subr.bf16.mxu0 0
      %4813 = vmatpush1.bf16.msra.mxu0 0
      %4814 = vmatprep.subr.bf16.mxu0 0
      %4815 = vmatpush1.bf16.msra.mxu0 0
      %4816 = vmatprep.subr.bf16.mxu0 0
      %4817 = vmatpush1.bf16.msra.mxu0 0
      %4818 = vmatprep.subr.bf16.mxu0 0
      %4819 = vmatpush1.bf16.msra.mxu0 0
      %4820 = vmatprep.subr.bf16.mxu0 %v4571
      %4821 = vmatpush1.bf16.msra.mxu0 %v4568
      %4822 = vmatprep.subr.bf16.mxu0 0
      %4823 = vmatpush2.bf16.msra.mxu0 0
      %4824 = vmatprep.subr.bf16.mxu0 0
      %4825 = vmatpush2.bf16.msra.mxu0 0
      %4826 = vmatprep.subr.bf16.mxu0 0
      %4827 = vmatpush2.bf16.msra.mxu0 0
      %4828 = vmatprep.subr.bf16.mxu0 0
      %4829 = vmatpush2.bf16.msra.mxu0 0
      %4830 = vmatprep.subr.bf16.mxu0 0
      %4831 = vmatpush2.bf16.msra.mxu0 0
      %4832 = vmatprep.subr.bf16.mxu0 0
      %4833 = vmatpush2.bf16.msra.mxu0 0
      %4834 = vmatprep.subr.bf16.mxu0 0
      %4835 = vmatpush2.bf16.msra.mxu0 0
      %4836 = vmatprep.subr.bf16.mxu0 0
      %4837 = vmatpush2.bf16.msra.mxu0 0
      %4838 = vmatprep.mubr.bf16.mxu0 0
      %4839 = vmatmul.mubr.bf16.gmra.mxu0 %v4535
      %v4840 = vpop.f32.mrf.mxu0
      %v4841 = vadd.f32 0.0, %v4840
      %v4842 = vpop.f32.mrf.mxu0
      %v4843 = vadd.f32 0.0, %v4842
      %v4844 = vpop.f32.mrf.mxu0
      %v4845 = vadd.f32 0.0, %v4844
      %v4846 = vpop.f32.mrf.mxu0
      %v4847 = vadd.f32 0.0, %v4846
      %4848 = vdwg.mxu0
      %4849 = vmatprep.subr.bf16.mxu0 0
      %4850 = vmatpush1.bf16.msra.mxu0 0
      %4851 = vmatprep.subr.bf16.mxu0 0
      %4852 = vmatpush1.bf16.msra.mxu0 0
      %4853 = vmatprep.subr.bf16.mxu0 0
      %4854 = vmatpush1.bf16.msra.mxu0 0
      %4855 = vmatprep.subr.bf16.mxu0 0
      %4856 = vmatpush1.bf16.msra.mxu0 0
      %4857 = vmatprep.subr.bf16.mxu0 0
      %4858 = vmatpush1.bf16.msra.mxu0 0
      %4859 = vmatprep.subr.bf16.mxu0 0
      %4860 = vmatpush1.bf16.msra.mxu0 0
      %4861 = vmatprep.subr.bf16.mxu0 0
      %4862 = vmatpush1.bf16.msra.mxu0 0
      %4863 = vmatprep.subr.bf16.mxu0 %v4577
      %4864 = vmatpush1.bf16.msra.mxu0 %v4574
      %4865 = vmatprep.subr.bf16.mxu0 0
      %4866 = vmatpush2.bf16.msra.mxu0 0
      %4867 = vmatprep.subr.bf16.mxu0 0
      %4868 = vmatpush2.bf16.msra.mxu0 0
      %4869 = vmatprep.subr.bf16.mxu0 0
      %4870 = vmatpush2.bf16.msra.mxu0 0
      %4871 = vmatprep.subr.bf16.mxu0 0
      %4872 = vmatpush2.bf16.msra.mxu0 0
      %4873 = vmatprep.subr.bf16.mxu0 0
      %4874 = vmatpush2.bf16.msra.mxu0 0
      %4875 = vmatprep.subr.bf16.mxu0 0
      %4876 = vmatpush2.bf16.msra.mxu0 0
      %4877 = vmatprep.subr.bf16.mxu0 0
      %4878 = vmatpush2.bf16.msra.mxu0 0
      %4879 = vmatprep.subr.bf16.mxu0 0
      %4880 = vmatpush2.bf16.msra.mxu0 0
      %4881 = vmatprep.mubr.bf16.mxu0 0
      %4882 = vmatmul.mubr.bf16.gmra.mxu0 %v4535
      %v4883 = vpop.f32.mrf.mxu0
      %v4884 = vadd.f32 0.0, %v4883
      %v4885 = vpop.f32.mrf.mxu0
      %v4886 = vadd.f32 0.0, %v4885
      %v4887 = vpop.f32.mrf.mxu0
      %v4888 = vadd.f32 0.0, %v4887
      %v4889 = vpop.f32.mrf.mxu0
      %v4890 = vadd.f32 0.0, %v4889
      %4891 = vdwg.mxu0
      %4892 = vmatprep.subr.bf16.mxu0 0
      %4893 = vmatpush1.bf16.msra.mxu0 0
      %4894 = vmatprep.subr.bf16.mxu0 0
      %4895 = vmatpush1.bf16.msra.mxu0 0
      %4896 = vmatprep.subr.bf16.mxu0 0
      %4897 = vmatpush1.bf16.msra.mxu0 0
      %4898 = vmatprep.subr.bf16.mxu0 0
      %4899 = vmatpush1.bf16.msra.mxu0 0
      %4900 = vmatprep.subr.bf16.mxu0 0
      %4901 = vmatpush1.bf16.msra.mxu0 0
      %4902 = vmatprep.subr.bf16.mxu0 0
      %4903 = vmatpush1.bf16.msra.mxu0 0
      %4904 = vmatprep.subr.bf16.mxu0 0
      %4905 = vmatpush1.bf16.msra.mxu0 0
      %4906 = vmatprep.subr.bf16.mxu0 %v4583
      %4907 = vmatpush1.bf16.msra.mxu0 %v4580
      %4908 = vmatprep.subr.bf16.mxu0 0
      %4909 = vmatpush2.bf16.msra.mxu0 0
      %4910 = vmatprep.subr.bf16.mxu0 0
      %4911 = vmatpush2.bf16.msra.mxu0 0
      %4912 = vmatprep.subr.bf16.mxu0 0
      %4913 = vmatpush2.bf16.msra.mxu0 0
      %4914 = vmatprep.subr.bf16.mxu0 0
      %4915 = vmatpush2.bf16.msra.mxu0 0
      %4916 = vmatprep.subr.bf16.mxu0 0
      %4917 = vmatpush2.bf16.msra.mxu0 0
      %4918 = vmatprep.subr.bf16.mxu0 0
      %4919 = vmatpush2.bf16.msra.mxu0 0
      %4920 = vmatprep.subr.bf16.mxu0 0
      %4921 = vmatpush2.bf16.msra.mxu0 0
      %4922 = vmatprep.subr.bf16.mxu0 0
      %4923 = vmatpush2.bf16.msra.mxu0 0
      %4924 = vmatprep.mubr.bf16.mxu0 0
      %4925 = vmatmul.mubr.bf16.gmra.mxu0 %v4535
      %v4926 = vpop.f32.mrf.mxu0
      %v4927 = vadd.f32 0.0, %v4926
      %v4928 = vpop.f32.mrf.mxu0
      %v4929 = vadd.f32 0.0, %v4928
      %v4930 = vpop.f32.mrf.mxu0
      %v4931 = vadd.f32 0.0, %v4930
      %v4932 = vpop.f32.mrf.mxu0
      %v4933 = vadd.f32 0.0, %v4932
      %4934 = vdwg.mxu0
      %4935 = vmatprep.subr.bf16.mxu0 0
      %4936 = vmatpush1.bf16.msra.mxu0 0
      %4937 = vmatprep.subr.bf16.mxu0 0
      %4938 = vmatpush1.bf16.msra.mxu0 0
      %4939 = vmatprep.subr.bf16.mxu0 0
      %4940 = vmatpush1.bf16.msra.mxu0 0
      %4941 = vmatprep.subr.bf16.mxu0 0
      %4942 = vmatpush1.bf16.msra.mxu0 0
      %4943 = vmatprep.subr.bf16.mxu0 0
      %4944 = vmatpush1.bf16.msra.mxu0 0
      %4945 = vmatprep.subr.bf16.mxu0 0
      %4946 = vmatpush1.bf16.msra.mxu0 0
      %4947 = vmatprep.subr.bf16.mxu0 0
      %4948 = vmatpush1.bf16.msra.mxu0 0
      %4949 = vmatprep.subr.bf16.mxu0 %v4589
      %4950 = vmatpush1.bf16.msra.mxu0 %v4586
      %4951 = vmatprep.subr.bf16.mxu0 0
      %4952 = vmatpush2.bf16.msra.mxu0 0
      %4953 = vmatprep.subr.bf16.mxu0 0
      %4954 = vmatpush2.bf16.msra.mxu0 0
      %4955 = vmatprep.subr.bf16.mxu0 0
      %4956 = vmatpush2.bf16.msra.mxu0 0
      %4957 = vmatprep.subr.bf16.mxu0 0
      %4958 = vmatpush2.bf16.msra.mxu0 0
      %4959 = vmatprep.subr.bf16.mxu0 0
      %4960 = vmatpush2.bf16.msra.mxu0 0
      %4961 = vmatprep.subr.bf16.mxu0 0
      %4962 = vmatpush2.bf16.msra.mxu0 0
      %4963 = vmatprep.subr.bf16.mxu0 0
      %4964 = vmatpush2.bf16.msra.mxu0 0
      %4965 = vmatprep.subr.bf16.mxu0 0
      %4966 = vmatpush2.bf16.msra.mxu0 0
      %4967 = vmatprep.mubr.bf16.mxu0 0
      %4968 = vmatmul.mubr.bf16.gmra.mxu0 %v4535
      %v4969 = vpop.f32.mrf.mxu0
      %v4970 = vadd.f32 0.0, %v4969
      %v4971 = vpop.f32.mrf.mxu0
      %v4972 = vadd.f32 0.0, %v4971
      %v4973 = vpop.f32.mrf.mxu0
      %v4974 = vadd.f32 0.0, %v4973
      %v4975 = vpop.f32.mrf.mxu0
      %v4976 = vadd.f32 0.0, %v4975
      %4977 = vdwg.mxu0
      %v4978 = vadd.f32 %v4339, %v4626
      %v4979 = vadd.f32 %v4340, %v4628
      %v4980 = vadd.f32 %v4341, %v4669
      %v4981 = vadd.f32 %v4342, %v4671
      %v4982 = vadd.f32 %v4343, %v4712
      %v4983 = vadd.f32 %v4344, %v4714
      %v4984 = vadd.f32 %v4345, %v4755
      %v4985 = vadd.f32 %v4346, %v4757
      %v4986 = vadd.f32 %v4347, %v4798
      %v4987 = vadd.f32 %v4348, %v4800
      %v4988 = vadd.f32 %v4349, %v4841
      %v4989 = vadd.f32 %v4350, %v4843
      %v4990 = vadd.f32 %v4351, %v4884
      %v4991 = vadd.f32 %v4352, %v4886
      %v4992 = vadd.f32 %v4353, %v4927
      %v4993 = vadd.f32 %v4354, %v4929
      %v4994 = vadd.f32 %v4355, %v4970
      %v4995 = vadd.f32 %v4356, %v4972
      %v4996 = vadd.f32 %v4357, %v4630
      %v4997 = vadd.f32 %v4358, %v4632
      %v4998 = vadd.f32 %v4359, %v4673
      %v4999 = vadd.f32 %v4360, %v4675
      %v5000 = vadd.f32 %v4361, %v4716
      %v5001 = vadd.f32 %v4362, %v4718
      %v5002 = vadd.f32 %v4363, %v4759
      %v5003 = vadd.f32 %v4364, %v4761
      %v5004 = vadd.f32 %v4365, %v4802
      %v5005 = vadd.f32 %v4366, %v4804
      %v5006 = vadd.f32 %v4367, %v4845
      %v5007 = vadd.f32 %v4368, %v4847
      %v5008 = vadd.f32 %v4369, %v4888
      %v5009 = vadd.f32 %v4370, %v4890
      %v5010 = vadd.f32 %v4371, %v4931
      %v5011 = vadd.f32 %v4372, %v4933
      %v5012 = vadd.f32 %v4373, %v4974
      %v5013 = vadd.f32 %v4374, %v4976
      %5014 = vst [vmem:[#allocation2] sm:$0xff] %v4978
      %5015 = vst [vmem:[#allocation2 + $0x8] sm:$0xff] %v4979
      %5016 = vst [vmem:[#allocation2 + $0x10] sm:$0xff] %v4980
      %5017 = vst [vmem:[#allocation2 + $0x18] sm:$0xff] %v4981
      %5018 = vst [vmem:[#allocation2 + $0x20] sm:$0xff] %v4982
      %5019 = vst [vmem:[#allocation2 + $0x28] sm:$0xff] %v4983
      %5020 = vst [vmem:[#allocation2 + $0x30] sm:$0xff] %v4984
      %5021 = vst [vmem:[#allocation2 + $0x38] sm:$0xff] %v4985
      %5022 = vst [vmem:[#allocation2 + $0x40] sm:$0xff] %v4986
      %5023 = vst [vmem:[#allocation2 + $0x48] sm:$0xff] %v4987
      %5024 = vst [vmem:[#allocation2 + $0x50] sm:$0xff] %v4988
      %5025 = vst [vmem:[#allocation2 + $0x58] sm:$0xff] %v4989
      %5026 = vst [vmem:[#allocation2 + $0x60] sm:$0xff] %v4990
      %5027 = vst [vmem:[#allocation2 + $0x68] sm:$0xff] %v4991
      %5028 = vst [vmem:[#allocation2 + $0x70] sm:$0xff] %v4992
      %5029 = vst [vmem:[#allocation2 + $0x78] sm:$0xff] %v4993
      %5030 = vst [vmem:[#allocation2 + $0x80] sm:$0xff] %v4994
      %5031 = vst [vmem:[#allocation2 + $0x88] sm:$0xff] %v4995
      %5032 = vst [vmem:[#allocation2 + $0x90] sm:$0x3f] %v4996
      %5033 = vst [vmem:[#allocation2 + $0x98] sm:$0x3f] %v4997
      %5034 = vst [vmem:[#allocation2 + $0xa0] sm:$0x3f] %v4998
      %5035 = vst [vmem:[#allocation2 + $0xa8] sm:$0x3f] %v4999
      %5036 = vst [vmem:[#allocation2 + $0xb0] sm:$0x3f] %v5000
      %5037 = vst [vmem:[#allocation2 + $0xb8] sm:$0x3f] %v5001
      %5038 = vst [vmem:[#allocation2 + $0xc0] sm:$0x3f] %v5002
      %5039 = vst [vmem:[#allocation2 + $0xc8] sm:$0x3f] %v5003
      %5040 = vst [vmem:[#allocation2 + $0xd0] sm:$0x3f] %v5004
      %5041 = vst [vmem:[#allocation2 + $0xd8] sm:$0x3f] %v5005
      %5042 = vst [vmem:[#allocation2 + $0xe0] sm:$0x3f] %v5006
      %5043 = vst [vmem:[#allocation2 + $0xe8] sm:$0x3f] %v5007
      %5044 = vst [vmem:[#allocation2 + $0xf0] sm:$0x3f] %v5008
      %5045 = vst [vmem:[#allocation2 + $0xf8] sm:$0x3f] %v5009
      %5046 = vst [vmem:[#allocation2 + $0x100] sm:$0x3f] %v5010
      %5047 = vst [vmem:[#allocation2 + $0x108] sm:$0x3f] %v5011
      %5048 = vst [vmem:[#allocation2 + $0x110] sm:$0x3f] %v5012
      %5049 = vst [vmem:[#allocation2 + $0x118] sm:$0x3f] %v5013
      %v5050 = vld [vmem:[#allocation2] sm:$0xff]
      %v5051 = vld [vmem:[#allocation2 + $0x8] sm:$0xff]
      %v5052 = vld [vmem:[#allocation2 + $0x10] sm:$0xff]
      %v5053 = vld [vmem:[#allocation2 + $0x18] sm:$0xff]
      %v5054 = vld [vmem:[#allocation2 + $0x20] sm:$0xff]
      %v5055 = vld [vmem:[#allocation2 + $0x28] sm:$0xff]
      %v5056 = vld [vmem:[#allocation2 + $0x30] sm:$0xff]
      %v5057 = vld [vmem:[#allocation2 + $0x38] sm:$0xff]
      %v5058 = vld [vmem:[#allocation2 + $0x40] sm:$0xff]
      %v5059 = vld [vmem:[#allocation2 + $0x48] sm:$0xff]
      %v5060 = vld [vmem:[#allocation2 + $0x50] sm:$0xff]
      %v5061 = vld [vmem:[#allocation2 + $0x58] sm:$0xff]
      %v5062 = vld [vmem:[#allocation2 + $0x60] sm:$0xff]
      %v5063 = vld [vmem:[#allocation2 + $0x68] sm:$0xff]
      %v5064 = vld [vmem:[#allocation2 + $0x70] sm:$0xff]
      %v5065 = vld [vmem:[#allocation2 + $0x78] sm:$0xff]
      %v5066 = vld [vmem:[#allocation2 + $0x80] sm:$0xff]
      %v5067 = vld [vmem:[#allocation2 + $0x88] sm:$0xff]
      %v5068 = vld [vmem:[#allocation2 + $0x90] sm:$0x3f]
      %v5069 = vld [vmem:[#allocation2 + $0x98] sm:$0x3f]
      %v5070 = vld [vmem:[#allocation2 + $0xa0] sm:$0x3f]
      %v5071 = vld [vmem:[#allocation2 + $0xa8] sm:$0x3f]
      %v5072 = vld [vmem:[#allocation2 + $0xb0] sm:$0x3f]
      %v5073 = vld [vmem:[#allocation2 + $0xb8] sm:$0x3f]
      %v5074 = vld [vmem:[#allocation2 + $0xc0] sm:$0x3f]
      %v5075 = vld [vmem:[#allocation2 + $0xc8] sm:$0x3f]
      %v5076 = vld [vmem:[#allocation2 + $0xd0] sm:$0x3f]
      %v5077 = vld [vmem:[#allocation2 + $0xd8] sm:$0x3f]
      %v5078 = vld [vmem:[#allocation2 + $0xe0] sm:$0x3f]
      %v5079 = vld [vmem:[#allocation2 + $0xe8] sm:$0x3f]
      %v5080 = vld [vmem:[#allocation2 + $0xf0] sm:$0x3f]
      %v5081 = vld [vmem:[#allocation2 + $0xf8] sm:$0x3f]
      %v5082 = vld [vmem:[#allocation2 + $0x100] sm:$0x3f]
      %v5083 = vld [vmem:[#allocation2 + $0x108] sm:$0x3f]
      %v5084 = vld [vmem:[#allocation2 + $0x110] sm:$0x3f]
      %v5085 = vld [vmem:[#allocation2 + $0x118] sm:$0x3f]
      %s5086 = scalar_lea.vmem %s1, 56
      %v5087 = vld [vmem:[%s5086] sm:$0xf]
      %v5088 = vld [vmem:[%s5086 + $0x4] sm:$0x7]
      %v5089 = vld [vmem:[%s197] sm:$0xff]
      %v5090 = vld [vmem:[%s197 + $0x8] sm:$0xff]
      %v5091 = vld [vmem:[%s197 + $0x10] sm:$0xff]
      %v5092 = vld [vmem:[%s197 + $0x18] sm:$0xff]
      %v5093 = vld [vmem:[%s197 + $0x20] sm:$0x3f]
      %v5096 = vunpack.c.l.b16 %v5087
      %v5097 = vunpack.c.l.b16 %v5088
      %v5098 = vpack.c.b16 %v5097, %v5096
      %v5104 = vcombine.high %v5089, %v5089
      %v5106 = vunpack.c.l.s4 1983009808
      %v5107 = vunpack.c.0.s8 %v5106
      %v5108 = vlaneseq
      %v5109 = vshrl.u32 %v5108, 7
      %v5110 = vsub.s32 %v5107, %v5109
      %v5111 = vrot.slane %v5089, %v5110
      %v5113 = vunpack.c.l.s4 1983009808
      %v5114 = vunpack.c.0.s8 %v5113
      %v5115 = vlaneseq
      %v5116 = vshrl.u32 %v5115, 7
      %v5117 = vsub.s32 %v5114, %v5116
      %v5118 = vrot.slane %v5104, %v5117
      %v5119 = vcombine.high %v5111, %v5111
      %v5120 = vcombine.high %v5118, %v5118
      %v5121 = vcombine.high %v5090, %v5090
      %v5123 = vunpack.c.l.s4 1983009808
      %v5124 = vunpack.c.0.s8 %v5123
      %v5125 = vlaneseq
      %v5126 = vshrl.u32 %v5125, 7
      %v5127 = vsub.s32 %v5124, %v5126
      %v5128 = vrot.slane %v5090, %v5127
      %v5130 = vunpack.c.l.s4 1983009808
      %v5131 = vunpack.c.0.s8 %v5130
      %v5132 = vlaneseq
      %v5133 = vshrl.u32 %v5132, 7
      %v5134 = vsub.s32 %v5131, %v5133
      %v5135 = vrot.slane %v5121, %v5134
      %v5136 = vcombine.high %v5128, %v5128
      %v5137 = vcombine.high %v5135, %v5135
      %v5138 = vcombine.high %v5091, %v5091
      %v5140 = vunpack.c.l.s4 1983009808
      %v5141 = vunpack.c.0.s8 %v5140
      %v5142 = vlaneseq
      %v5143 = vshrl.u32 %v5142, 7
      %v5144 = vsub.s32 %v5141, %v5143
      %v5145 = vrot.slane %v5091, %v5144
      %v5147 = vunpack.c.l.s4 1983009808
      %v5148 = vunpack.c.0.s8 %v5147
      %v5149 = vlaneseq
      %v5150 = vshrl.u32 %v5149, 7
      %v5151 = vsub.s32 %v5148, %v5150
      %v5152 = vrot.slane %v5138, %v5151
      %v5153 = vcombine.high %v5145, %v5145
      %v5154 = vcombine.high %v5152, %v5152
      %v5155 = vcombine.high %v5092, %v5092
      %v5157 = vunpack.c.l.s4 1983009808
      %v5158 = vunpack.c.0.s8 %v5157
      %v5159 = vlaneseq
      %v5160 = vshrl.u32 %v5159, 7
      %v5161 = vsub.s32 %v5158, %v5160
      %v5162 = vrot.slane %v5092, %v5161
      %v5164 = vunpack.c.l.s4 1983009808
      %v5165 = vunpack.c.0.s8 %v5164
      %v5166 = vlaneseq
      %v5167 = vshrl.u32 %v5166, 7
      %v5168 = vsub.s32 %v5165, %v5167
      %v5169 = vrot.slane %v5155, %v5168
      %v5170 = vcombine.high %v5162, %v5162
      %v5171 = vcombine.high %v5169, %v5169
      %v5172 = vcombine.high %v5093, %v5093
      %v5174 = vunpack.c.l.s4 1983009808
      %v5175 = vunpack.c.0.s8 %v5174
      %v5176 = vlaneseq
      %v5177 = vshrl.u32 %v5176, 7
      %v5178 = vsub.s32 %v5175, %v5177
      %v5179 = vrot.slane %v5093, %v5178
      %v5181 = vunpack.c.l.s4 1983009808
      %v5182 = vunpack.c.0.s8 %v5181
      %v5183 = vlaneseq
      %v5184 = vshrl.u32 %v5183, 7
      %v5185 = vsub.s32 %v5182, %v5184
      %v5186 = vrot.slane %v5172, %v5185
      %v5187 = vcombine.high %v5179, %v5179
      %5188 = vrot.lane.b32.xlu0 %v5111, 91
      %v5189 = vpop.permute.xlu0 %5188
      %5190 = vrot.lane.b32.xlu0 %v5119, 91
      %v5191 = vpop.permute.xlu0 %5190
      %5192 = vrot.lane.b32.xlu0 %v5118, 91
      %v5193 = vpop.permute.xlu0 %5192
      %5194 = vrot.lane.b32.xlu0 %v5120, 91
      %v5195 = vpop.permute.xlu0 %5194
      %5196 = vrot.lane.b32.xlu0 %v5128, 91
      %v5197 = vpop.permute.xlu0 %5196
      %5198 = vrot.lane.b32.xlu0 %v5136, 91
      %v5199 = vpop.permute.xlu0 %5198
      %5200 = vrot.lane.b32.xlu0 %v5135, 91
      %v5201 = vpop.permute.xlu0 %5200
      %5202 = vrot.lane.b32.xlu0 %v5137, 91
      %v5203 = vpop.permute.xlu0 %5202
      %5204 = vrot.lane.b32.xlu0 %v5145, 91
      %v5205 = vpop.permute.xlu0 %5204
      %5206 = vrot.lane.b32.xlu0 %v5153, 91
      %v5207 = vpop.permute.xlu0 %5206
      %5208 = vrot.lane.b32.xlu0 %v5152, 91
      %v5209 = vpop.permute.xlu0 %5208
      %5210 = vrot.lane.b32.xlu0 %v5154, 91
      %v5211 = vpop.permute.xlu0 %5210
      %5212 = vrot.lane.b32.xlu0 %v5162, 91
      %v5213 = vpop.permute.xlu0 %5212
      %5214 = vrot.lane.b32.xlu0 %v5170, 91
      %v5215 = vpop.permute.xlu0 %5214
      %5216 = vrot.lane.b32.xlu0 %v5169, 91
      %v5217 = vpop.permute.xlu0 %5216
      %5218 = vrot.lane.b32.xlu0 %v5171, 91
      %v5219 = vpop.permute.xlu0 %5218
      %5220 = vrot.lane.b32.xlu0 %v5179, 91
      %v5221 = vpop.permute.xlu0 %5220
      %5222 = vrot.lane.b32.xlu0 %v5187, 91
      %v5223 = vpop.permute.xlu0 %5222
      %5224 = vrot.lane.b32.xlu0 %v5186, 91
      %v5225 = vpop.permute.xlu0 %5224
      %vm5226 = vcmask 744448
      %v5227 = vsel %vm5226, %v5189, %v5191
      %v5228 = vsel %vm5226, %v5191, %v5193
      %v5229 = vsel %vm5226, %v5193, %v5195
      %v5230 = vsel %vm5226, %v5195, %v5197
      %v5231 = vsel %vm5226, %v5197, %v5199
      %v5232 = vsel %vm5226, %v5199, %v5201
      %v5233 = vsel %vm5226, %v5201, %v5203
      %v5234 = vsel %vm5226, %v5203, %v5205
      %v5235 = vsel %vm5226, %v5205, %v5207
      %v5236 = vsel %vm5226, %v5207, %v5209
      %v5237 = vsel %vm5226, %v5209, %v5211
      %v5238 = vsel %vm5226, %v5211, %v5213
      %v5239 = vsel %vm5226, %v5213, %v5215
      %v5240 = vsel %vm5226, %v5215, %v5217
      %v5241 = vsel %vm5226, %v5217, %v5219
      %v5242 = vsel %vm5226, %v5219, %v5221
      %v5243 = vsel %vm5226, %v5221, %v5223
      %v5244 = vsel %vm5226, %v5223, %v5225
      %v5246 = vsel %vm302, %v5098, 0
      %v5249 = vsel %vm306, %v5227, 0
      %v5252 = vsel %vm306, %v5228, 0
      %v5255 = vsel %vm306, %v5229, 0
      %v5258 = vsel %vm306, %v5230, 0
      %v5261 = vsel %vm306, %v5231, 0
      %v5264 = vsel %vm306, %v5232, 0
      %v5267 = vsel %vm306, %v5233, 0
      %v5270 = vsel %vm306, %v5234, 0
      %v5273 = vsel %vm306, %v5235, 0
      %v5276 = vsel %vm306, %v5236, 0
      %v5279 = vsel %vm306, %v5237, 0
      %v5282 = vsel %vm306, %v5238, 0
      %v5285 = vsel %vm306, %v5239, 0
      %v5288 = vsel %vm306, %v5240, 0
      %v5291 = vsel %vm306, %v5241, 0
      %v5294 = vsel %vm306, %v5242, 0
      %v5297 = vsel %vm306, %v5243, 0
      %v5300 = vsel %vm306, %v5244, 0
      %5302 = vmatprep.subr.bf16.mxu0 0
      %5303 = vmatpush1.bf16.msra.mxu0 0
      %5304 = vmatprep.subr.bf16.mxu0 0
      %5305 = vmatpush1.bf16.msra.mxu0 0
      %5306 = vmatprep.subr.bf16.mxu0 0
      %5307 = vmatpush1.bf16.msra.mxu0 0
      %5308 = vmatprep.subr.bf16.mxu0 0
      %5309 = vmatpush1.bf16.msra.mxu0 0
      %5310 = vmatprep.subr.bf16.mxu0 0
      %5311 = vmatpush1.bf16.msra.mxu0 0
      %5312 = vmatprep.subr.bf16.mxu0 0
      %5313 = vmatpush1.bf16.msra.mxu0 0
      %5314 = vmatprep.subr.bf16.mxu0 0
      %5315 = vmatpush1.bf16.msra.mxu0 0
      %5316 = vmatprep.subr.bf16.mxu0 %v5252
      %5317 = vmatpush1.bf16.msra.mxu0 %v5249
      %5318 = vmatprep.subr.bf16.mxu0 0
      %5319 = vmatpush2.bf16.msra.mxu0 0
      %5320 = vmatprep.subr.bf16.mxu0 0
      %5321 = vmatpush2.bf16.msra.mxu0 0
      %5322 = vmatprep.subr.bf16.mxu0 0
      %5323 = vmatpush2.bf16.msra.mxu0 0
      %5324 = vmatprep.subr.bf16.mxu0 0
      %5325 = vmatpush2.bf16.msra.mxu0 0
      %5326 = vmatprep.subr.bf16.mxu0 0
      %5327 = vmatpush2.bf16.msra.mxu0 0
      %5328 = vmatprep.subr.bf16.mxu0 0
      %5329 = vmatpush2.bf16.msra.mxu0 0
      %5330 = vmatprep.subr.bf16.mxu0 0
      %5331 = vmatpush2.bf16.msra.mxu0 0
      %5332 = vmatprep.subr.bf16.mxu0 0
      %5333 = vmatpush2.bf16.msra.mxu0 0
      %5334 = vmatprep.mubr.bf16.mxu0 0
      %5335 = vmatmul.mubr.bf16.gmra.mxu0 %v5246
      %v5336 = vpop.f32.mrf.mxu0
      %v5337 = vadd.f32 0.0, %v5336
      %v5338 = vpop.f32.mrf.mxu0
      %v5339 = vadd.f32 0.0, %v5338
      %v5340 = vpop.f32.mrf.mxu0
      %v5341 = vadd.f32 0.0, %v5340
      %v5342 = vpop.f32.mrf.mxu0
      %v5343 = vadd.f32 0.0, %v5342
      %5344 = vdwg.mxu0
      %5345 = vmatprep.subr.bf16.mxu0 0
      %5346 = vmatpush1.bf16.msra.mxu0 0
      %5347 = vmatprep.subr.bf16.mxu0 0
      %5348 = vmatpush1.bf16.msra.mxu0 0
      %5349 = vmatprep.subr.bf16.mxu0 0
      %5350 = vmatpush1.bf16.msra.mxu0 0
      %5351 = vmatprep.subr.bf16.mxu0 0
      %5352 = vmatpush1.bf16.msra.mxu0 0
      %5353 = vmatprep.subr.bf16.mxu0 0
      %5354 = vmatpush1.bf16.msra.mxu0 0
      %5355 = vmatprep.subr.bf16.mxu0 0
      %5356 = vmatpush1.bf16.msra.mxu0 0
      %5357 = vmatprep.subr.bf16.mxu0 0
      %5358 = vmatpush1.bf16.msra.mxu0 0
      %5359 = vmatprep.subr.bf16.mxu0 %v5258
      %5360 = vmatpush1.bf16.msra.mxu0 %v5255
      %5361 = vmatprep.subr.bf16.mxu0 0
      %5362 = vmatpush2.bf16.msra.mxu0 0
      %5363 = vmatprep.subr.bf16.mxu0 0
      %5364 = vmatpush2.bf16.msra.mxu0 0
      %5365 = vmatprep.subr.bf16.mxu0 0
      %5366 = vmatpush2.bf16.msra.mxu0 0
      %5367 = vmatprep.subr.bf16.mxu0 0
      %5368 = vmatpush2.bf16.msra.mxu0 0
      %5369 = vmatprep.subr.bf16.mxu0 0
      %5370 = vmatpush2.bf16.msra.mxu0 0
      %5371 = vmatprep.subr.bf16.mxu0 0
      %5372 = vmatpush2.bf16.msra.mxu0 0
      %5373 = vmatprep.subr.bf16.mxu0 0
      %5374 = vmatpush2.bf16.msra.mxu0 0
      %5375 = vmatprep.subr.bf16.mxu0 0
      %5376 = vmatpush2.bf16.msra.mxu0 0
      %5377 = vmatprep.mubr.bf16.mxu0 0
      %5378 = vmatmul.mubr.bf16.gmra.mxu0 %v5246
      %v5379 = vpop.f32.mrf.mxu0
      %v5380 = vadd.f32 0.0, %v5379
      %v5381 = vpop.f32.mrf.mxu0
      %v5382 = vadd.f32 0.0, %v5381
      %v5383 = vpop.f32.mrf.mxu0
      %v5384 = vadd.f32 0.0, %v5383
      %v5385 = vpop.f32.mrf.mxu0
      %v5386 = vadd.f32 0.0, %v5385
      %5387 = vdwg.mxu0
      %5388 = vmatprep.subr.bf16.mxu0 0
      %5389 = vmatpush1.bf16.msra.mxu0 0
      %5390 = vmatprep.subr.bf16.mxu0 0
      %5391 = vmatpush1.bf16.msra.mxu0 0
      %5392 = vmatprep.subr.bf16.mxu0 0
      %5393 = vmatpush1.bf16.msra.mxu0 0
      %5394 = vmatprep.subr.bf16.mxu0 0
      %5395 = vmatpush1.bf16.msra.mxu0 0
      %5396 = vmatprep.subr.bf16.mxu0 0
      %5397 = vmatpush1.bf16.msra.mxu0 0
      %5398 = vmatprep.subr.bf16.mxu0 0
      %5399 = vmatpush1.bf16.msra.mxu0 0
      %5400 = vmatprep.subr.bf16.mxu0 0
      %5401 = vmatpush1.bf16.msra.mxu0 0
      %5402 = vmatprep.subr.bf16.mxu0 %v5264
      %5403 = vmatpush1.bf16.msra.mxu0 %v5261
      %5404 = vmatprep.subr.bf16.mxu0 0
      %5405 = vmatpush2.bf16.msra.mxu0 0
      %5406 = vmatprep.subr.bf16.mxu0 0
      %5407 = vmatpush2.bf16.msra.mxu0 0
      %5408 = vmatprep.subr.bf16.mxu0 0
      %5409 = vmatpush2.bf16.msra.mxu0 0
      %5410 = vmatprep.subr.bf16.mxu0 0
      %5411 = vmatpush2.bf16.msra.mxu0 0
      %5412 = vmatprep.subr.bf16.mxu0 0
      %5413 = vmatpush2.bf16.msra.mxu0 0
      %5414 = vmatprep.subr.bf16.mxu0 0
      %5415 = vmatpush2.bf16.msra.mxu0 0
      %5416 = vmatprep.subr.bf16.mxu0 0
      %5417 = vmatpush2.bf16.msra.mxu0 0
      %5418 = vmatprep.subr.bf16.mxu0 0
      %5419 = vmatpush2.bf16.msra.mxu0 0
      %5420 = vmatprep.mubr.bf16.mxu0 0
      %5421 = vmatmul.mubr.bf16.gmra.mxu0 %v5246
      %v5422 = vpop.f32.mrf.mxu0
      %v5423 = vadd.f32 0.0, %v5422
      %v5424 = vpop.f32.mrf.mxu0
      %v5425 = vadd.f32 0.0, %v5424
      %v5426 = vpop.f32.mrf.mxu0
      %v5427 = vadd.f32 0.0, %v5426
      %v5428 = vpop.f32.mrf.mxu0
      %v5429 = vadd.f32 0.0, %v5428
      %5430 = vdwg.mxu0
      %5431 = vmatprep.subr.bf16.mxu0 0
      %5432 = vmatpush1.bf16.msra.mxu0 0
      %5433 = vmatprep.subr.bf16.mxu0 0
      %5434 = vmatpush1.bf16.msra.mxu0 0
      %5435 = vmatprep.subr.bf16.mxu0 0
      %5436 = vmatpush1.bf16.msra.mxu0 0
      %5437 = vmatprep.subr.bf16.mxu0 0
      %5438 = vmatpush1.bf16.msra.mxu0 0
      %5439 = vmatprep.subr.bf16.mxu0 0
      %5440 = vmatpush1.bf16.msra.mxu0 0
      %5441 = vmatprep.subr.bf16.mxu0 0
      %5442 = vmatpush1.bf16.msra.mxu0 0
      %5443 = vmatprep.subr.bf16.mxu0 0
      %5444 = vmatpush1.bf16.msra.mxu0 0
      %5445 = vmatprep.subr.bf16.mxu0 %v5270
      %5446 = vmatpush1.bf16.msra.mxu0 %v5267
      %5447 = vmatprep.subr.bf16.mxu0 0
      %5448 = vmatpush2.bf16.msra.mxu0 0
      %5449 = vmatprep.subr.bf16.mxu0 0
      %5450 = vmatpush2.bf16.msra.mxu0 0
      %5451 = vmatprep.subr.bf16.mxu0 0
      %5452 = vmatpush2.bf16.msra.mxu0 0
      %5453 = vmatprep.subr.bf16.mxu0 0
      %5454 = vmatpush2.bf16.msra.mxu0 0
      %5455 = vmatprep.subr.bf16.mxu0 0
      %5456 = vmatpush2.bf16.msra.mxu0 0
      %5457 = vmatprep.subr.bf16.mxu0 0
      %5458 = vmatpush2.bf16.msra.mxu0 0
      %5459 = vmatprep.subr.bf16.mxu0 0
      %5460 = vmatpush2.bf16.msra.mxu0 0
      %5461 = vmatprep.subr.bf16.mxu0 0
      %5462 = vmatpush2.bf16.msra.mxu0 0
      %5463 = vmatprep.mubr.bf16.mxu0 0
      %5464 = vmatmul.mubr.bf16.gmra.mxu0 %v5246
      %v5465 = vpop.f32.mrf.mxu0
      %v5466 = vadd.f32 0.0, %v5465
      %v5467 = vpop.f32.mrf.mxu0
      %v5468 = vadd.f32 0.0, %v5467
      %v5469 = vpop.f32.mrf.mxu0
      %v5470 = vadd.f32 0.0, %v5469
      %v5471 = vpop.f32.mrf.mxu0
      %v5472 = vadd.f32 0.0, %v5471
      %5473 = vdwg.mxu0
      %5474 = vmatprep.subr.bf16.mxu0 0
      %5475 = vmatpush1.bf16.msra.mxu0 0
      %5476 = vmatprep.subr.bf16.mxu0 0
      %5477 = vmatpush1.bf16.msra.mxu0 0
      %5478 = vmatprep.subr.bf16.mxu0 0
      %5479 = vmatpush1.bf16.msra.mxu0 0
      %5480 = vmatprep.subr.bf16.mxu0 0
      %5481 = vmatpush1.bf16.msra.mxu0 0
      %5482 = vmatprep.subr.bf16.mxu0 0
      %5483 = vmatpush1.bf16.msra.mxu0 0
      %5484 = vmatprep.subr.bf16.mxu0 0
      %5485 = vmatpush1.bf16.msra.mxu0 0
      %5486 = vmatprep.subr.bf16.mxu0 0
      %5487 = vmatpush1.bf16.msra.mxu0 0
      %5488 = vmatprep.subr.bf16.mxu0 %v5276
      %5489 = vmatpush1.bf16.msra.mxu0 %v5273
      %5490 = vmatprep.subr.bf16.mxu0 0
      %5491 = vmatpush2.bf16.msra.mxu0 0
      %5492 = vmatprep.subr.bf16.mxu0 0
      %5493 = vmatpush2.bf16.msra.mxu0 0
      %5494 = vmatprep.subr.bf16.mxu0 0
      %5495 = vmatpush2.bf16.msra.mxu0 0
      %5496 = vmatprep.subr.bf16.mxu0 0
      %5497 = vmatpush2.bf16.msra.mxu0 0
      %5498 = vmatprep.subr.bf16.mxu0 0
      %5499 = vmatpush2.bf16.msra.mxu0 0
      %5500 = vmatprep.subr.bf16.mxu0 0
      %5501 = vmatpush2.bf16.msra.mxu0 0
      %5502 = vmatprep.subr.bf16.mxu0 0
      %5503 = vmatpush2.bf16.msra.mxu0 0
      %5504 = vmatprep.subr.bf16.mxu0 0
      %5505 = vmatpush2.bf16.msra.mxu0 0
      %5506 = vmatprep.mubr.bf16.mxu0 0
      %5507 = vmatmul.mubr.bf16.gmra.mxu0 %v5246
      %v5508 = vpop.f32.mrf.mxu0
      %v5509 = vadd.f32 0.0, %v5508
      %v5510 = vpop.f32.mrf.mxu0
      %v5511 = vadd.f32 0.0, %v5510
      %v5512 = vpop.f32.mrf.mxu0
      %v5513 = vadd.f32 0.0, %v5512
      %v5514 = vpop.f32.mrf.mxu0
      %v5515 = vadd.f32 0.0, %v5514
      %5516 = vdwg.mxu0
      %5517 = vmatprep.subr.bf16.mxu0 0
      %5518 = vmatpush1.bf16.msra.mxu0 0
      %5519 = vmatprep.subr.bf16.mxu0 0
      %5520 = vmatpush1.bf16.msra.mxu0 0
      %5521 = vmatprep.subr.bf16.mxu0 0
      %5522 = vmatpush1.bf16.msra.mxu0 0
      %5523 = vmatprep.subr.bf16.mxu0 0
      %5524 = vmatpush1.bf16.msra.mxu0 0
      %5525 = vmatprep.subr.bf16.mxu0 0
      %5526 = vmatpush1.bf16.msra.mxu0 0
      %5527 = vmatprep.subr.bf16.mxu0 0
      %5528 = vmatpush1.bf16.msra.mxu0 0
      %5529 = vmatprep.subr.bf16.mxu0 0
      %5530 = vmatpush1.bf16.msra.mxu0 0
      %5531 = vmatprep.subr.bf16.mxu0 %v5282
      %5532 = vmatpush1.bf16.msra.mxu0 %v5279
      %5533 = vmatprep.subr.bf16.mxu0 0
      %5534 = vmatpush2.bf16.msra.mxu0 0
      %5535 = vmatprep.subr.bf16.mxu0 0
      %5536 = vmatpush2.bf16.msra.mxu0 0
      %5537 = vmatprep.subr.bf16.mxu0 0
      %5538 = vmatpush2.bf16.msra.mxu0 0
      %5539 = vmatprep.subr.bf16.mxu0 0
      %5540 = vmatpush2.bf16.msra.mxu0 0
      %5541 = vmatprep.subr.bf16.mxu0 0
      %5542 = vmatpush2.bf16.msra.mxu0 0
      %5543 = vmatprep.subr.bf16.mxu0 0
      %5544 = vmatpush2.bf16.msra.mxu0 0
      %5545 = vmatprep.subr.bf16.mxu0 0
      %5546 = vmatpush2.bf16.msra.mxu0 0
      %5547 = vmatprep.subr.bf16.mxu0 0
      %5548 = vmatpush2.bf16.msra.mxu0 0
      %5549 = vmatprep.mubr.bf16.mxu0 0
      %5550 = vmatmul.mubr.bf16.gmra.mxu0 %v5246
      %v5551 = vpop.f32.mrf.mxu0
      %v5552 = vadd.f32 0.0, %v5551
      %v5553 = vpop.f32.mrf.mxu0
      %v5554 = vadd.f32 0.0, %v5553
      %v5555 = vpop.f32.mrf.mxu0
      %v5556 = vadd.f32 0.0, %v5555
      %v5557 = vpop.f32.mrf.mxu0
      %v5558 = vadd.f32 0.0, %v5557
      %5559 = vdwg.mxu0
      %5560 = vmatprep.subr.bf16.mxu0 0
      %5561 = vmatpush1.bf16.msra.mxu0 0
      %5562 = vmatprep.subr.bf16.mxu0 0
      %5563 = vmatpush1.bf16.msra.mxu0 0
      %5564 = vmatprep.subr.bf16.mxu0 0
      %5565 = vmatpush1.bf16.msra.mxu0 0
      %5566 = vmatprep.subr.bf16.mxu0 0
      %5567 = vmatpush1.bf16.msra.mxu0 0
      %5568 = vmatprep.subr.bf16.mxu0 0
      %5569 = vmatpush1.bf16.msra.mxu0 0
      %5570 = vmatprep.subr.bf16.mxu0 0
      %5571 = vmatpush1.bf16.msra.mxu0 0
      %5572 = vmatprep.subr.bf16.mxu0 0
      %5573 = vmatpush1.bf16.msra.mxu0 0
      %5574 = vmatprep.subr.bf16.mxu0 %v5288
      %5575 = vmatpush1.bf16.msra.mxu0 %v5285
      %5576 = vmatprep.subr.bf16.mxu0 0
      %5577 = vmatpush2.bf16.msra.mxu0 0
      %5578 = vmatprep.subr.bf16.mxu0 0
      %5579 = vmatpush2.bf16.msra.mxu0 0
      %5580 = vmatprep.subr.bf16.mxu0 0
      %5581 = vmatpush2.bf16.msra.mxu0 0
      %5582 = vmatprep.subr.bf16.mxu0 0
      %5583 = vmatpush2.bf16.msra.mxu0 0
      %5584 = vmatprep.subr.bf16.mxu0 0
      %5585 = vmatpush2.bf16.msra.mxu0 0
      %5586 = vmatprep.subr.bf16.mxu0 0
      %5587 = vmatpush2.bf16.msra.mxu0 0
      %5588 = vmatprep.subr.bf16.mxu0 0
      %5589 = vmatpush2.bf16.msra.mxu0 0
      %5590 = vmatprep.subr.bf16.mxu0 0
      %5591 = vmatpush2.bf16.msra.mxu0 0
      %5592 = vmatprep.mubr.bf16.mxu0 0
      %5593 = vmatmul.mubr.bf16.gmra.mxu0 %v5246
      %v5594 = vpop.f32.mrf.mxu0
      %v5595 = vadd.f32 0.0, %v5594
      %v5596 = vpop.f32.mrf.mxu0
      %v5597 = vadd.f32 0.0, %v5596
      %v5598 = vpop.f32.mrf.mxu0
      %v5599 = vadd.f32 0.0, %v5598
      %v5600 = vpop.f32.mrf.mxu0
      %v5601 = vadd.f32 0.0, %v5600
      %5602 = vdwg.mxu0
      %5603 = vmatprep.subr.bf16.mxu0 0
      %5604 = vmatpush1.bf16.msra.mxu0 0
      %5605 = vmatprep.subr.bf16.mxu0 0
      %5606 = vmatpush1.bf16.msra.mxu0 0
      %5607 = vmatprep.subr.bf16.mxu0 0
      %5608 = vmatpush1.bf16.msra.mxu0 0
      %5609 = vmatprep.subr.bf16.mxu0 0
      %5610 = vmatpush1.bf16.msra.mxu0 0
      %5611 = vmatprep.subr.bf16.mxu0 0
      %5612 = vmatpush1.bf16.msra.mxu0 0
      %5613 = vmatprep.subr.bf16.mxu0 0
      %5614 = vmatpush1.bf16.msra.mxu0 0
      %5615 = vmatprep.subr.bf16.mxu0 0
      %5616 = vmatpush1.bf16.msra.mxu0 0
      %5617 = vmatprep.subr.bf16.mxu0 %v5294
      %5618 = vmatpush1.bf16.msra.mxu0 %v5291
      %5619 = vmatprep.subr.bf16.mxu0 0
      %5620 = vmatpush2.bf16.msra.mxu0 0
      %5621 = vmatprep.subr.bf16.mxu0 0
      %5622 = vmatpush2.bf16.msra.mxu0 0
      %5623 = vmatprep.subr.bf16.mxu0 0
      %5624 = vmatpush2.bf16.msra.mxu0 0
      %5625 = vmatprep.subr.bf16.mxu0 0
      %5626 = vmatpush2.bf16.msra.mxu0 0
      %5627 = vmatprep.subr.bf16.mxu0 0
      %5628 = vmatpush2.bf16.msra.mxu0 0
      %5629 = vmatprep.subr.bf16.mxu0 0
      %5630 = vmatpush2.bf16.msra.mxu0 0
      %5631 = vmatprep.subr.bf16.mxu0 0
      %5632 = vmatpush2.bf16.msra.mxu0 0
      %5633 = vmatprep.subr.bf16.mxu0 0
      %5634 = vmatpush2.bf16.msra.mxu0 0
      %5635 = vmatprep.mubr.bf16.mxu0 0
      %5636 = vmatmul.mubr.bf16.gmra.mxu0 %v5246
      %v5637 = vpop.f32.mrf.mxu0
      %v5638 = vadd.f32 0.0, %v5637
      %v5639 = vpop.f32.mrf.mxu0
      %v5640 = vadd.f32 0.0, %v5639
      %v5641 = vpop.f32.mrf.mxu0
      %v5642 = vadd.f32 0.0, %v5641
      %v5643 = vpop.f32.mrf.mxu0
      %v5644 = vadd.f32 0.0, %v5643
      %5645 = vdwg.mxu0
      %5646 = vmatprep.subr.bf16.mxu0 0
      %5647 = vmatpush1.bf16.msra.mxu0 0
      %5648 = vmatprep.subr.bf16.mxu0 0
      %5649 = vmatpush1.bf16.msra.mxu0 0
      %5650 = vmatprep.subr.bf16.mxu0 0
      %5651 = vmatpush1.bf16.msra.mxu0 0
      %5652 = vmatprep.subr.bf16.mxu0 0
      %5653 = vmatpush1.bf16.msra.mxu0 0
      %5654 = vmatprep.subr.bf16.mxu0 0
      %5655 = vmatpush1.bf16.msra.mxu0 0
      %5656 = vmatprep.subr.bf16.mxu0 0
      %5657 = vmatpush1.bf16.msra.mxu0 0
      %5658 = vmatprep.subr.bf16.mxu0 0
      %5659 = vmatpush1.bf16.msra.mxu0 0
      %5660 = vmatprep.subr.bf16.mxu0 %v5300
      %5661 = vmatpush1.bf16.msra.mxu0 %v5297
      %5662 = vmatprep.subr.bf16.mxu0 0
      %5663 = vmatpush2.bf16.msra.mxu0 0
      %5664 = vmatprep.subr.bf16.mxu0 0
      %5665 = vmatpush2.bf16.msra.mxu0 0
      %5666 = vmatprep.subr.bf16.mxu0 0
      %5667 = vmatpush2.bf16.msra.mxu0 0
      %5668 = vmatprep.subr.bf16.mxu0 0
      %5669 = vmatpush2.bf16.msra.mxu0 0
      %5670 = vmatprep.subr.bf16.mxu0 0
      %5671 = vmatpush2.bf16.msra.mxu0 0
      %5672 = vmatprep.subr.bf16.mxu0 0
      %5673 = vmatpush2.bf16.msra.mxu0 0
      %5674 = vmatprep.subr.bf16.mxu0 0
      %5675 = vmatpush2.bf16.msra.mxu0 0
      %5676 = vmatprep.subr.bf16.mxu0 0
      %5677 = vmatpush2.bf16.msra.mxu0 0
      %5678 = vmatprep.mubr.bf16.mxu0 0
      %5679 = vmatmul.mubr.bf16.gmra.mxu0 %v5246
      %v5680 = vpop.f32.mrf.mxu0
      %v5681 = vadd.f32 0.0, %v5680
      %v5682 = vpop.f32.mrf.mxu0
      %v5683 = vadd.f32 0.0, %v5682
      %v5684 = vpop.f32.mrf.mxu0
      %v5685 = vadd.f32 0.0, %v5684
      %v5686 = vpop.f32.mrf.mxu0
      %v5687 = vadd.f32 0.0, %v5686
      %5688 = vdwg.mxu0
      %v5689 = vadd.f32 %v5050, %v5337
      %v5690 = vadd.f32 %v5051, %v5339
      %v5691 = vadd.f32 %v5052, %v5380
      %v5692 = vadd.f32 %v5053, %v5382
      %v5693 = vadd.f32 %v5054, %v5423
      %v5694 = vadd.f32 %v5055, %v5425
      %v5695 = vadd.f32 %v5056, %v5466
      %v5696 = vadd.f32 %v5057, %v5468
      %v5697 = vadd.f32 %v5058, %v5509
      %v5698 = vadd.f32 %v5059, %v5511
      %v5699 = vadd.f32 %v5060, %v5552
      %v5700 = vadd.f32 %v5061, %v5554
      %v5701 = vadd.f32 %v5062, %v5595
      %v5702 = vadd.f32 %v5063, %v5597
      %v5703 = vadd.f32 %v5064, %v5638
      %v5704 = vadd.f32 %v5065, %v5640
      %v5705 = vadd.f32 %v5066, %v5681
      %v5706 = vadd.f32 %v5067, %v5683
      %v5707 = vadd.f32 %v5068, %v5341
      %v5708 = vadd.f32 %v5069, %v5343
      %v5709 = vadd.f32 %v5070, %v5384
      %v5710 = vadd.f32 %v5071, %v5386
      %v5711 = vadd.f32 %v5072, %v5427
      %v5712 = vadd.f32 %v5073, %v5429
      %v5713 = vadd.f32 %v5074, %v5470
      %v5714 = vadd.f32 %v5075, %v5472
      %v5715 = vadd.f32 %v5076, %v5513
      %v5716 = vadd.f32 %v5077, %v5515
      %v5717 = vadd.f32 %v5078, %v5556
      %v5718 = vadd.f32 %v5079, %v5558
      %v5719 = vadd.f32 %v5080, %v5599
      %v5720 = vadd.f32 %v5081, %v5601
      %v5721 = vadd.f32 %v5082, %v5642
      %v5722 = vadd.f32 %v5083, %v5644
      %v5723 = vadd.f32 %v5084, %v5685
      %v5724 = vadd.f32 %v5085, %v5687
      %5725 = vst [vmem:[#allocation2] sm:$0xff] %v5689
      %5726 = vst [vmem:[#allocation2 + $0x8] sm:$0xff] %v5690
      %5727 = vst [vmem:[#allocation2 + $0x10] sm:$0xff] %v5691
      %5728 = vst [vmem:[#allocation2 + $0x18] sm:$0xff] %v5692
      %5729 = vst [vmem:[#allocation2 + $0x20] sm:$0xff] %v5693
      %5730 = vst [vmem:[#allocation2 + $0x28] sm:$0xff] %v5694
      %5731 = vst [vmem:[#allocation2 + $0x30] sm:$0xff] %v5695
      %5732 = vst [vmem:[#allocation2 + $0x38] sm:$0xff] %v5696
      %5733 = vst [vmem:[#allocation2 + $0x40] sm:$0xff] %v5697
      %5734 = vst [vmem:[#allocation2 + $0x48] sm:$0xff] %v5698
      %5735 = vst [vmem:[#allocation2 + $0x50] sm:$0xff] %v5699
      %5736 = vst [vmem:[#allocation2 + $0x58] sm:$0xff] %v5700
      %5737 = vst [vmem:[#allocation2 + $0x60] sm:$0xff] %v5701
      %5738 = vst [vmem:[#allocation2 + $0x68] sm:$0xff] %v5702
      %5739 = vst [vmem:[#allocation2 + $0x70] sm:$0xff] %v5703
      %5740 = vst [vmem:[#allocation2 + $0x78] sm:$0xff] %v5704
      %5741 = vst [vmem:[#allocation2 + $0x80] sm:$0xff] %v5705
      %5742 = vst [vmem:[#allocation2 + $0x88] sm:$0xff] %v5706
      %5743 = vst [vmem:[#allocation2 + $0x90] sm:$0x3f] %v5707
      %5744 = vst [vmem:[#allocation2 + $0x98] sm:$0x3f] %v5708
      %5745 = vst [vmem:[#allocation2 + $0xa0] sm:$0x3f] %v5709
      %5746 = vst [vmem:[#allocation2 + $0xa8] sm:$0x3f] %v5710
      %5747 = vst [vmem:[#allocation2 + $0xb0] sm:$0x3f] %v5711
      %5748 = vst [vmem:[#allocation2 + $0xb8] sm:$0x3f] %v5712
      %5749 = vst [vmem:[#allocation2 + $0xc0] sm:$0x3f] %v5713
      %5750 = vst [vmem:[#allocation2 + $0xc8] sm:$0x3f] %v5714
      %5751 = vst [vmem:[#allocation2 + $0xd0] sm:$0x3f] %v5715
      %5752 = vst [vmem:[#allocation2 + $0xd8] sm:$0x3f] %v5716
      %5753 = vst [vmem:[#allocation2 + $0xe0] sm:$0x3f] %v5717
      %5754 = vst [vmem:[#allocation2 + $0xe8] sm:$0x3f] %v5718
      %5755 = vst [vmem:[#allocation2 + $0xf0] sm:$0x3f] %v5719
      %5756 = vst [vmem:[#allocation2 + $0xf8] sm:$0x3f] %v5720
      %5757 = vst [vmem:[#allocation2 + $0x100] sm:$0x3f] %v5721
      %5758 = vst [vmem:[#allocation2 + $0x108] sm:$0x3f] %v5722
      %5759 = vst [vmem:[#allocation2 + $0x110] sm:$0x3f] %v5723
      %5760 = vst [vmem:[#allocation2 + $0x118] sm:$0x3f] %v5724
      %v5761 = vld [vmem:[#allocation2] sm:$0xff]
      %v5762 = vld [vmem:[#allocation2 + $0x8] sm:$0xff]
      %v5763 = vld [vmem:[#allocation2 + $0x10] sm:$0xff]
      %v5764 = vld [vmem:[#allocation2 + $0x18] sm:$0xff]
      %v5765 = vld [vmem:[#allocation2 + $0x20] sm:$0xff]
      %v5766 = vld [vmem:[#allocation2 + $0x28] sm:$0xff]
      %v5767 = vld [vmem:[#allocation2 + $0x30] sm:$0xff]
      %v5768 = vld [vmem:[#allocation2 + $0x38] sm:$0xff]
      %v5769 = vld [vmem:[#allocation2 + $0x40] sm:$0xff]
      %v5770 = vld [vmem:[#allocation2 + $0x48] sm:$0xff]
      %v5771 = vld [vmem:[#allocation2 + $0x50] sm:$0xff]
      %v5772 = vld [vmem:[#allocation2 + $0x58] sm:$0xff]
      %v5773 = vld [vmem:[#allocation2 + $0x60] sm:$0xff]
      %v5774 = vld [vmem:[#allocation2 + $0x68] sm:$0xff]
      %v5775 = vld [vmem:[#allocation2 + $0x70] sm:$0xff]
      %v5776 = vld [vmem:[#allocation2 + $0x78] sm:$0xff]
      %v5777 = vld [vmem:[#allocation2 + $0x80] sm:$0xff]
      %v5778 = vld [vmem:[#allocation2 + $0x88] sm:$0xff]
      %v5779 = vld [vmem:[#allocation2 + $0x90] sm:$0x3f]
      %v5780 = vld [vmem:[#allocation2 + $0x98] sm:$0x3f]
      %v5781 = vld [vmem:[#allocation2 + $0xa0] sm:$0x3f]
      %v5782 = vld [vmem:[#allocation2 + $0xa8] sm:$0x3f]
      %v5783 = vld [vmem:[#allocation2 + $0xb0] sm:$0x3f]
      %v5784 = vld [vmem:[#allocation2 + $0xb8] sm:$0x3f]
      %v5785 = vld [vmem:[#allocation2 + $0xc0] sm:$0x3f]
      %v5786 = vld [vmem:[#allocation2 + $0xc8] sm:$0x3f]
      %v5787 = vld [vmem:[#allocation2 + $0xd0] sm:$0x3f]
      %v5788 = vld [vmem:[#allocation2 + $0xd8] sm:$0x3f]
      %v5789 = vld [vmem:[#allocation2 + $0xe0] sm:$0x3f]
      %v5790 = vld [vmem:[#allocation2 + $0xe8] sm:$0x3f]
      %v5791 = vld [vmem:[#allocation2 + $0xf0] sm:$0x3f]
      %v5792 = vld [vmem:[#allocation2 + $0xf8] sm:$0x3f]
      %v5793 = vld [vmem:[#allocation2 + $0x100] sm:$0x3f]
      %v5794 = vld [vmem:[#allocation2 + $0x108] sm:$0x3f]
      %v5795 = vld [vmem:[#allocation2 + $0x110] sm:$0x3f]
      %v5796 = vld [vmem:[#allocation2 + $0x118] sm:$0x3f]
      %s5797 = scalar_lea.vmem %s1, 64
      %v5798 = vld [vmem:[%s5797] sm:$0xf]
      %v5799 = vld [vmem:[%s5797 + $0x4] sm:$0x7]
      %v5800 = vld [vmem:[%s197] sm:$0xff]
      %v5801 = vld [vmem:[%s197 + $0x8] sm:$0xff]
      %v5802 = vld [vmem:[%s197 + $0x10] sm:$0xff]
      %v5803 = vld [vmem:[%s197 + $0x18] sm:$0xff]
      %v5804 = vld [vmem:[%s197 + $0x20] sm:$0x3f]
      %v5807 = vunpack.c.l.b16 %v5798
      %v5808 = vunpack.c.l.b16 %v5799
      %v5809 = vpack.c.b16 %v5808, %v5807
      %v5815 = vcombine.high %v5800, %v5800
      %v5817 = vunpack.c.l.s4 1983009808
      %v5818 = vunpack.c.0.s8 %v5817
      %v5819 = vlaneseq
      %v5820 = vshrl.u32 %v5819, 7
      %v5821 = vsub.s32 %v5818, %v5820
      %v5822 = vrot.slane %v5800, %v5821
      %v5824 = vunpack.c.l.s4 1983009808
      %v5825 = vunpack.c.0.s8 %v5824
      %v5826 = vlaneseq
      %v5827 = vshrl.u32 %v5826, 7
      %v5828 = vsub.s32 %v5825, %v5827
      %v5829 = vrot.slane %v5815, %v5828
      %v5830 = vcombine.high %v5822, %v5822
      %v5831 = vcombine.high %v5829, %v5829
      %v5832 = vcombine.high %v5801, %v5801
      %v5834 = vunpack.c.l.s4 1983009808
      %v5835 = vunpack.c.0.s8 %v5834
      %v5836 = vlaneseq
      %v5837 = vshrl.u32 %v5836, 7
      %v5838 = vsub.s32 %v5835, %v5837
      %v5839 = vrot.slane %v5801, %v5838
      %v5841 = vunpack.c.l.s4 1983009808
      %v5842 = vunpack.c.0.s8 %v5841
      %v5843 = vlaneseq
      %v5844 = vshrl.u32 %v5843, 7
      %v5845 = vsub.s32 %v5842, %v5844
      %v5846 = vrot.slane %v5832, %v5845
      %v5847 = vcombine.high %v5839, %v5839
      %v5848 = vcombine.high %v5846, %v5846
      %v5849 = vcombine.high %v5802, %v5802
      %v5851 = vunpack.c.l.s4 1983009808
      %v5852 = vunpack.c.0.s8 %v5851
      %v5853 = vlaneseq
      %v5854 = vshrl.u32 %v5853, 7
      %v5855 = vsub.s32 %v5852, %v5854
      %v5856 = vrot.slane %v5802, %v5855
      %v5858 = vunpack.c.l.s4 1983009808
      %v5859 = vunpack.c.0.s8 %v5858
      %v5860 = vlaneseq
      %v5861 = vshrl.u32 %v5860, 7
      %v5862 = vsub.s32 %v5859, %v5861
      %v5863 = vrot.slane %v5849, %v5862
      %v5864 = vcombine.high %v5856, %v5856
      %v5865 = vcombine.high %v5863, %v5863
      %v5866 = vcombine.high %v5803, %v5803
      %v5868 = vunpack.c.l.s4 1983009808
      %v5869 = vunpack.c.0.s8 %v5868
      %v5870 = vlaneseq
      %v5871 = vshrl.u32 %v5870, 7
      %v5872 = vsub.s32 %v5869, %v5871
      %v5873 = vrot.slane %v5803, %v5872
      %v5875 = vunpack.c.l.s4 1983009808
      %v5876 = vunpack.c.0.s8 %v5875
      %v5877 = vlaneseq
      %v5878 = vshrl.u32 %v5877, 7
      %v5879 = vsub.s32 %v5876, %v5878
      %v5880 = vrot.slane %v5866, %v5879
      %v5881 = vcombine.high %v5873, %v5873
      %v5882 = vcombine.high %v5880, %v5880
      %v5883 = vcombine.high %v5804, %v5804
      %v5885 = vunpack.c.l.s4 1983009808
      %v5886 = vunpack.c.0.s8 %v5885
      %v5887 = vlaneseq
      %v5888 = vshrl.u32 %v5887, 7
      %v5889 = vsub.s32 %v5886, %v5888
      %v5890 = vrot.slane %v5804, %v5889
      %v5892 = vunpack.c.l.s4 1983009808
      %v5893 = vunpack.c.0.s8 %v5892
      %v5894 = vlaneseq
      %v5895 = vshrl.u32 %v5894, 7
      %v5896 = vsub.s32 %v5893, %v5895
      %v5897 = vrot.slane %v5883, %v5896
      %v5898 = vcombine.high %v5890, %v5890
      %5899 = vrot.lane.b32.xlu0 %v5822, 90
      %v5900 = vpop.permute.xlu0 %5899
      %5901 = vrot.lane.b32.xlu0 %v5830, 90
      %v5902 = vpop.permute.xlu0 %5901
      %5903 = vrot.lane.b32.xlu0 %v5829, 90
      %v5904 = vpop.permute.xlu0 %5903
      %5905 = vrot.lane.b32.xlu0 %v5831, 90
      %v5906 = vpop.permute.xlu0 %5905
      %5907 = vrot.lane.b32.xlu0 %v5839, 90
      %v5908 = vpop.permute.xlu0 %5907
      %5909 = vrot.lane.b32.xlu0 %v5847, 90
      %v5910 = vpop.permute.xlu0 %5909
      %5911 = vrot.lane.b32.xlu0 %v5846, 90
      %v5912 = vpop.permute.xlu0 %5911
      %5913 = vrot.lane.b32.xlu0 %v5848, 90
      %v5914 = vpop.permute.xlu0 %5913
      %5915 = vrot.lane.b32.xlu0 %v5856, 90
      %v5916 = vpop.permute.xlu0 %5915
      %5917 = vrot.lane.b32.xlu0 %v5864, 90
      %v5918 = vpop.permute.xlu0 %5917
      %5919 = vrot.lane.b32.xlu0 %v5863, 90
      %v5920 = vpop.permute.xlu0 %5919
      %5921 = vrot.lane.b32.xlu0 %v5865, 90
      %v5922 = vpop.permute.xlu0 %5921
      %5923 = vrot.lane.b32.xlu0 %v5873, 90
      %v5924 = vpop.permute.xlu0 %5923
      %5925 = vrot.lane.b32.xlu0 %v5881, 90
      %v5926 = vpop.permute.xlu0 %5925
      %5927 = vrot.lane.b32.xlu0 %v5880, 90
      %v5928 = vpop.permute.xlu0 %5927
      %5929 = vrot.lane.b32.xlu0 %v5882, 90
      %v5930 = vpop.permute.xlu0 %5929
      %5931 = vrot.lane.b32.xlu0 %v5890, 90
      %v5932 = vpop.permute.xlu0 %5931
      %5933 = vrot.lane.b32.xlu0 %v5898, 90
      %v5934 = vpop.permute.xlu0 %5933
      %5935 = vrot.lane.b32.xlu0 %v5897, 90
      %v5936 = vpop.permute.xlu0 %5935
      %vm5937 = vcmask 736256
      %v5938 = vsel %vm5937, %v5900, %v5902
      %v5939 = vsel %vm5937, %v5902, %v5904
      %v5940 = vsel %vm5937, %v5904, %v5906
      %v5941 = vsel %vm5937, %v5906, %v5908
      %v5942 = vsel %vm5937, %v5908, %v5910
      %v5943 = vsel %vm5937, %v5910, %v5912
      %v5944 = vsel %vm5937, %v5912, %v5914
      %v5945 = vsel %vm5937, %v5914, %v5916
      %v5946 = vsel %vm5937, %v5916, %v5918
      %v5947 = vsel %vm5937, %v5918, %v5920
      %v5948 = vsel %vm5937, %v5920, %v5922
      %v5949 = vsel %vm5937, %v5922, %v5924
      %v5950 = vsel %vm5937, %v5924, %v5926
      %v5951 = vsel %vm5937, %v5926, %v5928
      %v5952 = vsel %vm5937, %v5928, %v5930
      %v5953 = vsel %vm5937, %v5930, %v5932
      %v5954 = vsel %vm5937, %v5932, %v5934
      %v5955 = vsel %vm5937, %v5934, %v5936
      %v5957 = vsel %vm302, %v5809, 0
      %v5960 = vsel %vm306, %v5938, 0
      %v5963 = vsel %vm306, %v5939, 0
      %v5966 = vsel %vm306, %v5940, 0
      %v5969 = vsel %vm306, %v5941, 0
      %v5972 = vsel %vm306, %v5942, 0
      %v5975 = vsel %vm306, %v5943, 0
      %v5978 = vsel %vm306, %v5944, 0
      %v5981 = vsel %vm306, %v5945, 0
      %v5984 = vsel %vm306, %v5946, 0
      %v5987 = vsel %vm306, %v5947, 0
      %v5990 = vsel %vm306, %v5948, 0
      %v5993 = vsel %vm306, %v5949, 0
      %v5996 = vsel %vm306, %v5950, 0
      %v5999 = vsel %vm306, %v5951, 0
      %v6002 = vsel %vm306, %v5952, 0
      %v6005 = vsel %vm306, %v5953, 0
      %v6008 = vsel %vm306, %v5954, 0
      %v6011 = vsel %vm306, %v5955, 0
      %6013 = vmatprep.subr.bf16.mxu0 0
      %6014 = vmatpush1.bf16.msra.mxu0 0
      %6015 = vmatprep.subr.bf16.mxu0 0
      %6016 = vmatpush1.bf16.msra.mxu0 0
      %6017 = vmatprep.subr.bf16.mxu0 0
      %6018 = vmatpush1.bf16.msra.mxu0 0
      %6019 = vmatprep.subr.bf16.mxu0 0
      %6020 = vmatpush1.bf16.msra.mxu0 0
      %6021 = vmatprep.subr.bf16.mxu0 0
      %6022 = vmatpush1.bf16.msra.mxu0 0
      %6023 = vmatprep.subr.bf16.mxu0 0
      %6024 = vmatpush1.bf16.msra.mxu0 0
      %6025 = vmatprep.subr.bf16.mxu0 0
      %6026 = vmatpush1.bf16.msra.mxu0 0
      %6027 = vmatprep.subr.bf16.mxu0 %v5963
      %6028 = vmatpush1.bf16.msra.mxu0 %v5960
      %6029 = vmatprep.subr.bf16.mxu0 0
      %6030 = vmatpush2.bf16.msra.mxu0 0
      %6031 = vmatprep.subr.bf16.mxu0 0
      %6032 = vmatpush2.bf16.msra.mxu0 0
      %6033 = vmatprep.subr.bf16.mxu0 0
      %6034 = vmatpush2.bf16.msra.mxu0 0
      %6035 = vmatprep.subr.bf16.mxu0 0
      %6036 = vmatpush2.bf16.msra.mxu0 0
      %6037 = vmatprep.subr.bf16.mxu0 0
      %6038 = vmatpush2.bf16.msra.mxu0 0
      %6039 = vmatprep.subr.bf16.mxu0 0
      %6040 = vmatpush2.bf16.msra.mxu0 0
      %6041 = vmatprep.subr.bf16.mxu0 0
      %6042 = vmatpush2.bf16.msra.mxu0 0
      %6043 = vmatprep.subr.bf16.mxu0 0
      %6044 = vmatpush2.bf16.msra.mxu0 0
      %6045 = vmatprep.mubr.bf16.mxu0 0
      %6046 = vmatmul.mubr.bf16.gmra.mxu0 %v5957
      %v6047 = vpop.f32.mrf.mxu0
      %v6048 = vadd.f32 0.0, %v6047
      %v6049 = vpop.f32.mrf.mxu0
      %v6050 = vadd.f32 0.0, %v6049
      %v6051 = vpop.f32.mrf.mxu0
      %v6052 = vadd.f32 0.0, %v6051
      %v6053 = vpop.f32.mrf.mxu0
      %v6054 = vadd.f32 0.0, %v6053
      %6055 = vdwg.mxu0
      %6056 = vmatprep.subr.bf16.mxu0 0
      %6057 = vmatpush1.bf16.msra.mxu0 0
      %6058 = vmatprep.subr.bf16.mxu0 0
      %6059 = vmatpush1.bf16.msra.mxu0 0
      %6060 = vmatprep.subr.bf16.mxu0 0
      %6061 = vmatpush1.bf16.msra.mxu0 0
      %6062 = vmatprep.subr.bf16.mxu0 0
      %6063 = vmatpush1.bf16.msra.mxu0 0
      %6064 = vmatprep.subr.bf16.mxu0 0
      %6065 = vmatpush1.bf16.msra.mxu0 0
      %6066 = vmatprep.subr.bf16.mxu0 0
      %6067 = vmatpush1.bf16.msra.mxu0 0
      %6068 = vmatprep.subr.bf16.mxu0 0
      %6069 = vmatpush1.bf16.msra.mxu0 0
      %6070 = vmatprep.subr.bf16.mxu0 %v5969
      %6071 = vmatpush1.bf16.msra.mxu0 %v5966
      %6072 = vmatprep.subr.bf16.mxu0 0
      %6073 = vmatpush2.bf16.msra.mxu0 0
      %6074 = vmatprep.subr.bf16.mxu0 0
      %6075 = vmatpush2.bf16.msra.mxu0 0
      %6076 = vmatprep.subr.bf16.mxu0 0
      %6077 = vmatpush2.bf16.msra.mxu0 0
      %6078 = vmatprep.subr.bf16.mxu0 0
      %6079 = vmatpush2.bf16.msra.mxu0 0
      %6080 = vmatprep.subr.bf16.mxu0 0
      %6081 = vmatpush2.bf16.msra.mxu0 0
      %6082 = vmatprep.subr.bf16.mxu0 0
      %6083 = vmatpush2.bf16.msra.mxu0 0
      %6084 = vmatprep.subr.bf16.mxu0 0
      %6085 = vmatpush2.bf16.msra.mxu0 0
      %6086 = vmatprep.subr.bf16.mxu0 0
      %6087 = vmatpush2.bf16.msra.mxu0 0
      %6088 = vmatprep.mubr.bf16.mxu0 0
      %6089 = vmatmul.mubr.bf16.gmra.mxu0 %v5957
      %v6090 = vpop.f32.mrf.mxu0
      %v6091 = vadd.f32 0.0, %v6090
      %v6092 = vpop.f32.mrf.mxu0
      %v6093 = vadd.f32 0.0, %v6092
      %v6094 = vpop.f32.mrf.mxu0
      %v6095 = vadd.f32 0.0, %v6094
      %v6096 = vpop.f32.mrf.mxu0
      %v6097 = vadd.f32 0.0, %v6096
      %6098 = vdwg.mxu0
      %6099 = vmatprep.subr.bf16.mxu0 0
      %6100 = vmatpush1.bf16.msra.mxu0 0
      %6101 = vmatprep.subr.bf16.mxu0 0
      %6102 = vmatpush1.bf16.msra.mxu0 0
      %6103 = vmatprep.subr.bf16.mxu0 0
      %6104 = vmatpush1.bf16.msra.mxu0 0
      %6105 = vmatprep.subr.bf16.mxu0 0
      %6106 = vmatpush1.bf16.msra.mxu0 0
      %6107 = vmatprep.subr.bf16.mxu0 0
      %6108 = vmatpush1.bf16.msra.mxu0 0
      %6109 = vmatprep.subr.bf16.mxu0 0
      %6110 = vmatpush1.bf16.msra.mxu0 0
      %6111 = vmatprep.subr.bf16.mxu0 0
      %6112 = vmatpush1.bf16.msra.mxu0 0
      %6113 = vmatprep.subr.bf16.mxu0 %v5975
      %6114 = vmatpush1.bf16.msra.mxu0 %v5972
      %6115 = vmatprep.subr.bf16.mxu0 0
      %6116 = vmatpush2.bf16.msra.mxu0 0
      %6117 = vmatprep.subr.bf16.mxu0 0
      %6118 = vmatpush2.bf16.msra.mxu0 0
      %6119 = vmatprep.subr.bf16.mxu0 0
      %6120 = vmatpush2.bf16.msra.mxu0 0
      %6121 = vmatprep.subr.bf16.mxu0 0
      %6122 = vmatpush2.bf16.msra.mxu0 0
      %6123 = vmatprep.subr.bf16.mxu0 0
      %6124 = vmatpush2.bf16.msra.mxu0 0
      %6125 = vmatprep.subr.bf16.mxu0 0
      %6126 = vmatpush2.bf16.msra.mxu0 0
      %6127 = vmatprep.subr.bf16.mxu0 0
      %6128 = vmatpush2.bf16.msra.mxu0 0
      %6129 = vmatprep.subr.bf16.mxu0 0
      %6130 = vmatpush2.bf16.msra.mxu0 0
      %6131 = vmatprep.mubr.bf16.mxu0 0
      %6132 = vmatmul.mubr.bf16.gmra.mxu0 %v5957
      %v6133 = vpop.f32.mrf.mxu0
      %v6134 = vadd.f32 0.0, %v6133
      %v6135 = vpop.f32.mrf.mxu0
      %v6136 = vadd.f32 0.0, %v6135
      %v6137 = vpop.f32.mrf.mxu0
      %v6138 = vadd.f32 0.0, %v6137
      %v6139 = vpop.f32.mrf.mxu0
      %v6140 = vadd.f32 0.0, %v6139
      %6141 = vdwg.mxu0
      %6142 = vmatprep.subr.bf16.mxu0 0
      %6143 = vmatpush1.bf16.msra.mxu0 0
      %6144 = vmatprep.subr.bf16.mxu0 0
      %6145 = vmatpush1.bf16.msra.mxu0 0
      %6146 = vmatprep.subr.bf16.mxu0 0
      %6147 = vmatpush1.bf16.msra.mxu0 0
      %6148 = vmatprep.subr.bf16.mxu0 0
      %6149 = vmatpush1.bf16.msra.mxu0 0
      %6150 = vmatprep.subr.bf16.mxu0 0
      %6151 = vmatpush1.bf16.msra.mxu0 0
      %6152 = vmatprep.subr.bf16.mxu0 0
      %6153 = vmatpush1.bf16.msra.mxu0 0
      %6154 = vmatprep.subr.bf16.mxu0 0
      %6155 = vmatpush1.bf16.msra.mxu0 0
      %6156 = vmatprep.subr.bf16.mxu0 %v5981
      %6157 = vmatpush1.bf16.msra.mxu0 %v5978
      %6158 = vmatprep.subr.bf16.mxu0 0
      %6159 = vmatpush2.bf16.msra.mxu0 0
      %6160 = vmatprep.subr.bf16.mxu0 0
      %6161 = vmatpush2.bf16.msra.mxu0 0
      %6162 = vmatprep.subr.bf16.mxu0 0
      %6163 = vmatpush2.bf16.msra.mxu0 0
      %6164 = vmatprep.subr.bf16.mxu0 0
      %6165 = vmatpush2.bf16.msra.mxu0 0
      %6166 = vmatprep.subr.bf16.mxu0 0
      %6167 = vmatpush2.bf16.msra.mxu0 0
      %6168 = vmatprep.subr.bf16.mxu0 0
      %6169 = vmatpush2.bf16.msra.mxu0 0
      %6170 = vmatprep.subr.bf16.mxu0 0
      %6171 = vmatpush2.bf16.msra.mxu0 0
      %6172 = vmatprep.subr.bf16.mxu0 0
      %6173 = vmatpush2.bf16.msra.mxu0 0
      %6174 = vmatprep.mubr.bf16.mxu0 0
      %6175 = vmatmul.mubr.bf16.gmra.mxu0 %v5957
      %v6176 = vpop.f32.mrf.mxu0
      %v6177 = vadd.f32 0.0, %v6176
      %v6178 = vpop.f32.mrf.mxu0
      %v6179 = vadd.f32 0.0, %v6178
      %v6180 = vpop.f32.mrf.mxu0
      %v6181 = vadd.f32 0.0, %v6180
      %v6182 = vpop.f32.mrf.mxu0
      %v6183 = vadd.f32 0.0, %v6182
      %6184 = vdwg.mxu0
      %6185 = vmatprep.subr.bf16.mxu0 0
      %6186 = vmatpush1.bf16.msra.mxu0 0
      %6187 = vmatprep.subr.bf16.mxu0 0
      %6188 = vmatpush1.bf16.msra.mxu0 0
      %6189 = vmatprep.subr.bf16.mxu0 0
      %6190 = vmatpush1.bf16.msra.mxu0 0
      %6191 = vmatprep.subr.bf16.mxu0 0
      %6192 = vmatpush1.bf16.msra.mxu0 0
      %6193 = vmatprep.subr.bf16.mxu0 0
      %6194 = vmatpush1.bf16.msra.mxu0 0
      %6195 = vmatprep.subr.bf16.mxu0 0
      %6196 = vmatpush1.bf16.msra.mxu0 0
      %6197 = vmatprep.subr.bf16.mxu0 0
      %6198 = vmatpush1.bf16.msra.mxu0 0
      %6199 = vmatprep.subr.bf16.mxu0 %v5987
      %6200 = vmatpush1.bf16.msra.mxu0 %v5984
      %6201 = vmatprep.subr.bf16.mxu0 0
      %6202 = vmatpush2.bf16.msra.mxu0 0
      %6203 = vmatprep.subr.bf16.mxu0 0
      %6204 = vmatpush2.bf16.msra.mxu0 0
      %6205 = vmatprep.subr.bf16.mxu0 0
      %6206 = vmatpush2.bf16.msra.mxu0 0
      %6207 = vmatprep.subr.bf16.mxu0 0
      %6208 = vmatpush2.bf16.msra.mxu0 0
      %6209 = vmatprep.subr.bf16.mxu0 0
      %6210 = vmatpush2.bf16.msra.mxu0 0
      %6211 = vmatprep.subr.bf16.mxu0 0
      %6212 = vmatpush2.bf16.msra.mxu0 0
      %6213 = vmatprep.subr.bf16.mxu0 0
      %6214 = vmatpush2.bf16.msra.mxu0 0
      %6215 = vmatprep.subr.bf16.mxu0 0
      %6216 = vmatpush2.bf16.msra.mxu0 0
      %6217 = vmatprep.mubr.bf16.mxu0 0
      %6218 = vmatmul.mubr.bf16.gmra.mxu0 %v5957
      %v6219 = vpop.f32.mrf.mxu0
      %v6220 = vadd.f32 0.0, %v6219
      %v6221 = vpop.f32.mrf.mxu0
      %v6222 = vadd.f32 0.0, %v6221
      %v6223 = vpop.f32.mrf.mxu0
      %v6224 = vadd.f32 0.0, %v6223
      %v6225 = vpop.f32.mrf.mxu0
      %v6226 = vadd.f32 0.0, %v6225
      %6227 = vdwg.mxu0
      %6228 = vmatprep.subr.bf16.mxu0 0
      %6229 = vmatpush1.bf16.msra.mxu0 0
      %6230 = vmatprep.subr.bf16.mxu0 0
      %6231 = vmatpush1.bf16.msra.mxu0 0
      %6232 = vmatprep.subr.bf16.mxu0 0
      %6233 = vmatpush1.bf16.msra.mxu0 0
      %6234 = vmatprep.subr.bf16.mxu0 0
      %6235 = vmatpush1.bf16.msra.mxu0 0
      %6236 = vmatprep.subr.bf16.mxu0 0
      %6237 = vmatpush1.bf16.msra.mxu0 0
      %6238 = vmatprep.subr.bf16.mxu0 0
      %6239 = vmatpush1.bf16.msra.mxu0 0
      %6240 = vmatprep.subr.bf16.mxu0 0
      %6241 = vmatpush1.bf16.msra.mxu0 0
      %6242 = vmatprep.subr.bf16.mxu0 %v5993
      %6243 = vmatpush1.bf16.msra.mxu0 %v5990
      %6244 = vmatprep.subr.bf16.mxu0 0
      %6245 = vmatpush2.bf16.msra.mxu0 0
      %6246 = vmatprep.subr.bf16.mxu0 0
      %6247 = vmatpush2.bf16.msra.mxu0 0
      %6248 = vmatprep.subr.bf16.mxu0 0
      %6249 = vmatpush2.bf16.msra.mxu0 0
      %6250 = vmatprep.subr.bf16.mxu0 0
      %6251 = vmatpush2.bf16.msra.mxu0 0
      %6252 = vmatprep.subr.bf16.mxu0 0
      %6253 = vmatpush2.bf16.msra.mxu0 0
      %6254 = vmatprep.subr.bf16.mxu0 0
      %6255 = vmatpush2.bf16.msra.mxu0 0
      %6256 = vmatprep.subr.bf16.mxu0 0
      %6257 = vmatpush2.bf16.msra.mxu0 0
      %6258 = vmatprep.subr.bf16.mxu0 0
      %6259 = vmatpush2.bf16.msra.mxu0 0
      %6260 = vmatprep.mubr.bf16.mxu0 0
      %6261 = vmatmul.mubr.bf16.gmra.mxu0 %v5957
      %v6262 = vpop.f32.mrf.mxu0
      %v6263 = vadd.f32 0.0, %v6262
      %v6264 = vpop.f32.mrf.mxu0
      %v6265 = vadd.f32 0.0, %v6264
      %v6266 = vpop.f32.mrf.mxu0
      %v6267 = vadd.f32 0.0, %v6266
      %v6268 = vpop.f32.mrf.mxu0
      %v6269 = vadd.f32 0.0, %v6268
      %6270 = vdwg.mxu0
      %6271 = vmatprep.subr.bf16.mxu0 0
      %6272 = vmatpush1.bf16.msra.mxu0 0
      %6273 = vmatprep.subr.bf16.mxu0 0
      %6274 = vmatpush1.bf16.msra.mxu0 0
      %6275 = vmatprep.subr.bf16.mxu0 0
      %6276 = vmatpush1.bf16.msra.mxu0 0
      %6277 = vmatprep.subr.bf16.mxu0 0
      %6278 = vmatpush1.bf16.msra.mxu0 0
      %6279 = vmatprep.subr.bf16.mxu0 0
      %6280 = vmatpush1.bf16.msra.mxu0 0
      %6281 = vmatprep.subr.bf16.mxu0 0
      %6282 = vmatpush1.bf16.msra.mxu0 0
      %6283 = vmatprep.subr.bf16.mxu0 0
      %6284 = vmatpush1.bf16.msra.mxu0 0
      %6285 = vmatprep.subr.bf16.mxu0 %v5999
      %6286 = vmatpush1.bf16.msra.mxu0 %v5996
      %6287 = vmatprep.subr.bf16.mxu0 0
      %6288 = vmatpush2.bf16.msra.mxu0 0
      %6289 = vmatprep.subr.bf16.mxu0 0
      %6290 = vmatpush2.bf16.msra.mxu0 0
      %6291 = vmatprep.subr.bf16.mxu0 0
      %6292 = vmatpush2.bf16.msra.mxu0 0
      %6293 = vmatprep.subr.bf16.mxu0 0
      %6294 = vmatpush2.bf16.msra.mxu0 0
      %6295 = vmatprep.subr.bf16.mxu0 0
      %6296 = vmatpush2.bf16.msra.mxu0 0
      %6297 = vmatprep.subr.bf16.mxu0 0
      %6298 = vmatpush2.bf16.msra.mxu0 0
      %6299 = vmatprep.subr.bf16.mxu0 0
      %6300 = vmatpush2.bf16.msra.mxu0 0
      %6301 = vmatprep.subr.bf16.mxu0 0
      %6302 = vmatpush2.bf16.msra.mxu0 0
      %6303 = vmatprep.mubr.bf16.mxu0 0
      %6304 = vmatmul.mubr.bf16.gmra.mxu0 %v5957
      %v6305 = vpop.f32.mrf.mxu0
      %v6306 = vadd.f32 0.0, %v6305
      %v6307 = vpop.f32.mrf.mxu0
      %v6308 = vadd.f32 0.0, %v6307
      %v6309 = vpop.f32.mrf.mxu0
      %v6310 = vadd.f32 0.0, %v6309
      %v6311 = vpop.f32.mrf.mxu0
      %v6312 = vadd.f32 0.0, %v6311
      %6313 = vdwg.mxu0
      %6314 = vmatprep.subr.bf16.mxu0 0
      %6315 = vmatpush1.bf16.msra.mxu0 0
      %6316 = vmatprep.subr.bf16.mxu0 0
      %6317 = vmatpush1.bf16.msra.mxu0 0
      %6318 = vmatprep.subr.bf16.mxu0 0
      %6319 = vmatpush1.bf16.msra.mxu0 0
      %6320 = vmatprep.subr.bf16.mxu0 0
      %6321 = vmatpush1.bf16.msra.mxu0 0
      %6322 = vmatprep.subr.bf16.mxu0 0
      %6323 = vmatpush1.bf16.msra.mxu0 0
      %6324 = vmatprep.subr.bf16.mxu0 0
      %6325 = vmatpush1.bf16.msra.mxu0 0
      %6326 = vmatprep.subr.bf16.mxu0 0
      %6327 = vmatpush1.bf16.msra.mxu0 0
      %6328 = vmatprep.subr.bf16.mxu0 %v6005
      %6329 = vmatpush1.bf16.msra.mxu0 %v6002
      %6330 = vmatprep.subr.bf16.mxu0 0
      %6331 = vmatpush2.bf16.msra.mxu0 0
      %6332 = vmatprep.subr.bf16.mxu0 0
      %6333 = vmatpush2.bf16.msra.mxu0 0
      %6334 = vmatprep.subr.bf16.mxu0 0
      %6335 = vmatpush2.bf16.msra.mxu0 0
      %6336 = vmatprep.subr.bf16.mxu0 0
      %6337 = vmatpush2.bf16.msra.mxu0 0
      %6338 = vmatprep.subr.bf16.mxu0 0
      %6339 = vmatpush2.bf16.msra.mxu0 0
      %6340 = vmatprep.subr.bf16.mxu0 0
      %6341 = vmatpush2.bf16.msra.mxu0 0
      %6342 = vmatprep.subr.bf16.mxu0 0
      %6343 = vmatpush2.bf16.msra.mxu0 0
      %6344 = vmatprep.subr.bf16.mxu0 0
      %6345 = vmatpush2.bf16.msra.mxu0 0
      %6346 = vmatprep.mubr.bf16.mxu0 0
      %6347 = vmatmul.mubr.bf16.gmra.mxu0 %v5957
      %v6348 = vpop.f32.mrf.mxu0
      %v6349 = vadd.f32 0.0, %v6348
      %v6350 = vpop.f32.mrf.mxu0
      %v6351 = vadd.f32 0.0, %v6350
      %v6352 = vpop.f32.mrf.mxu0
      %v6353 = vadd.f32 0.0, %v6352
      %v6354 = vpop.f32.mrf.mxu0
      %v6355 = vadd.f32 0.0, %v6354
      %6356 = vdwg.mxu0
      %6357 = vmatprep.subr.bf16.mxu0 0
      %6358 = vmatpush1.bf16.msra.mxu0 0
      %6359 = vmatprep.subr.bf16.mxu0 0
      %6360 = vmatpush1.bf16.msra.mxu0 0
      %6361 = vmatprep.subr.bf16.mxu0 0
      %6362 = vmatpush1.bf16.msra.mxu0 0
      %6363 = vmatprep.subr.bf16.mxu0 0
      %6364 = vmatpush1.bf16.msra.mxu0 0
      %6365 = vmatprep.subr.bf16.mxu0 0
      %6366 = vmatpush1.bf16.msra.mxu0 0
      %6367 = vmatprep.subr.bf16.mxu0 0
      %6368 = vmatpush1.bf16.msra.mxu0 0
      %6369 = vmatprep.subr.bf16.mxu0 0
      %6370 = vmatpush1.bf16.msra.mxu0 0
      %6371 = vmatprep.subr.bf16.mxu0 %v6011
      %6372 = vmatpush1.bf16.msra.mxu0 %v6008
      %6373 = vmatprep.subr.bf16.mxu0 0
      %6374 = vmatpush2.bf16.msra.mxu0 0
      %6375 = vmatprep.subr.bf16.mxu0 0
      %6376 = vmatpush2.bf16.msra.mxu0 0
      %6377 = vmatprep.subr.bf16.mxu0 0
      %6378 = vmatpush2.bf16.msra.mxu0 0
      %6379 = vmatprep.subr.bf16.mxu0 0
      %6380 = vmatpush2.bf16.msra.mxu0 0
      %6381 = vmatprep.subr.bf16.mxu0 0
      %6382 = vmatpush2.bf16.msra.mxu0 0
      %6383 = vmatprep.subr.bf16.mxu0 0
      %6384 = vmatpush2.bf16.msra.mxu0 0
      %6385 = vmatprep.subr.bf16.mxu0 0
      %6386 = vmatpush2.bf16.msra.mxu0 0
      %6387 = vmatprep.subr.bf16.mxu0 0
      %6388 = vmatpush2.bf16.msra.mxu0 0
      %6389 = vmatprep.mubr.bf16.mxu0 0
      %6390 = vmatmul.mubr.bf16.gmra.mxu0 %v5957
      %v6391 = vpop.f32.mrf.mxu0
      %v6392 = vadd.f32 0.0, %v6391
      %v6393 = vpop.f32.mrf.mxu0
      %v6394 = vadd.f32 0.0, %v6393
      %v6395 = vpop.f32.mrf.mxu0
      %v6396 = vadd.f32 0.0, %v6395
      %v6397 = vpop.f32.mrf.mxu0
      %v6398 = vadd.f32 0.0, %v6397
      %6399 = vdwg.mxu0
      %v6400 = vadd.f32 %v5761, %v6048
      %v6401 = vadd.f32 %v5762, %v6050
      %v6402 = vadd.f32 %v5763, %v6091
      %v6403 = vadd.f32 %v5764, %v6093
      %v6404 = vadd.f32 %v5765, %v6134
      %v6405 = vadd.f32 %v5766, %v6136
      %v6406 = vadd.f32 %v5767, %v6177
      %v6407 = vadd.f32 %v5768, %v6179
      %v6408 = vadd.f32 %v5769, %v6220
      %v6409 = vadd.f32 %v5770, %v6222
      %v6410 = vadd.f32 %v5771, %v6263
      %v6411 = vadd.f32 %v5772, %v6265
      %v6412 = vadd.f32 %v5773, %v6306
      %v6413 = vadd.f32 %v5774, %v6308
      %v6414 = vadd.f32 %v5775, %v6349
      %v6415 = vadd.f32 %v5776, %v6351
      %v6416 = vadd.f32 %v5777, %v6392
      %v6417 = vadd.f32 %v5778, %v6394
      %v6418 = vadd.f32 %v5779, %v6052
      %v6419 = vadd.f32 %v5780, %v6054
      %v6420 = vadd.f32 %v5781, %v6095
      %v6421 = vadd.f32 %v5782, %v6097
      %v6422 = vadd.f32 %v5783, %v6138
      %v6423 = vadd.f32 %v5784, %v6140
      %v6424 = vadd.f32 %v5785, %v6181
      %v6425 = vadd.f32 %v5786, %v6183
      %v6426 = vadd.f32 %v5787, %v6224
      %v6427 = vadd.f32 %v5788, %v6226
      %v6428 = vadd.f32 %v5789, %v6267
      %v6429 = vadd.f32 %v5790, %v6269
      %v6430 = vadd.f32 %v5791, %v6310
      %v6431 = vadd.f32 %v5792, %v6312
      %v6432 = vadd.f32 %v5793, %v6353
      %v6433 = vadd.f32 %v5794, %v6355
      %v6434 = vadd.f32 %v5795, %v6396
      %v6435 = vadd.f32 %v5796, %v6398
      %6436 = vst [vmem:[#allocation2] sm:$0xff] %v6400
      %6437 = vst [vmem:[#allocation2 + $0x8] sm:$0xff] %v6401
      %6438 = vst [vmem:[#allocation2 + $0x10] sm:$0xff] %v6402
      %6439 = vst [vmem:[#allocation2 + $0x18] sm:$0xff] %v6403
      %6440 = vst [vmem:[#allocation2 + $0x20] sm:$0xff] %v6404
      %6441 = vst [vmem:[#allocation2 + $0x28] sm:$0xff] %v6405
      %6442 = vst [vmem:[#allocation2 + $0x30] sm:$0xff] %v6406
      %6443 = vst [vmem:[#allocation2 + $0x38] sm:$0xff] %v6407
      %6444 = vst [vmem:[#allocation2 + $0x40] sm:$0xff] %v6408
      %6445 = vst [vmem:[#allocation2 + $0x48] sm:$0xff] %v6409
      %6446 = vst [vmem:[#allocation2 + $0x50] sm:$0xff] %v6410
      %6447 = vst [vmem:[#allocation2 + $0x58] sm:$0xff] %v6411
      %6448 = vst [vmem:[#allocation2 + $0x60] sm:$0xff] %v6412
      %6449 = vst [vmem:[#allocation2 + $0x68] sm:$0xff] %v6413
      %6450 = vst [vmem:[#allocation2 + $0x70] sm:$0xff] %v6414
      %6451 = vst [vmem:[#allocation2 + $0x78] sm:$0xff] %v6415
      %6452 = vst [vmem:[#allocation2 + $0x80] sm:$0xff] %v6416
      %6453 = vst [vmem:[#allocation2 + $0x88] sm:$0xff] %v6417
      %6454 = vst [vmem:[#allocation2 + $0x90] sm:$0x3f] %v6418
      %6455 = vst [vmem:[#allocation2 + $0x98] sm:$0x3f] %v6419
      %6456 = vst [vmem:[#allocation2 + $0xa0] sm:$0x3f] %v6420
      %6457 = vst [vmem:[#allocation2 + $0xa8] sm:$0x3f] %v6421
      %6458 = vst [vmem:[#allocation2 + $0xb0] sm:$0x3f] %v6422
      %6459 = vst [vmem:[#allocation2 + $0xb8] sm:$0x3f] %v6423
      %6460 = vst [vmem:[#allocation2 + $0xc0] sm:$0x3f] %v6424
      %6461 = vst [vmem:[#allocation2 + $0xc8] sm:$0x3f] %v6425
      %6462 = vst [vmem:[#allocation2 + $0xd0] sm:$0x3f] %v6426
      %6463 = vst [vmem:[#allocation2 + $0xd8] sm:$0x3f] %v6427
      %6464 = vst [vmem:[#allocation2 + $0xe0] sm:$0x3f] %v6428
      %6465 = vst [vmem:[#allocation2 + $0xe8] sm:$0x3f] %v6429
      %6466 = vst [vmem:[#allocation2 + $0xf0] sm:$0x3f] %v6430
      %6467 = vst [vmem:[#allocation2 + $0xf8] sm:$0x3f] %v6431
      %6468 = vst [vmem:[#allocation2 + $0x100] sm:$0x3f] %v6432
      %6469 = vst [vmem:[#allocation2 + $0x108] sm:$0x3f] %v6433
      %6470 = vst [vmem:[#allocation2 + $0x110] sm:$0x3f] %v6434
      %6471 = vst [vmem:[#allocation2 + $0x118] sm:$0x3f] %v6435
      %v6472 = vld [vmem:[#allocation2] sm:$0xff]
      %v6473 = vld [vmem:[#allocation2 + $0x8] sm:$0xff]
      %v6474 = vld [vmem:[#allocation2 + $0x10] sm:$0xff]
      %v6475 = vld [vmem:[#allocation2 + $0x18] sm:$0xff]
      %v6476 = vld [vmem:[#allocation2 + $0x20] sm:$0xff]
      %v6477 = vld [vmem:[#allocation2 + $0x28] sm:$0xff]
      %v6478 = vld [vmem:[#allocation2 + $0x30] sm:$0xff]
      %v6479 = vld [vmem:[#allocation2 + $0x38] sm:$0xff]
      %v6480 = vld [vmem:[#allocation2 + $0x40] sm:$0xff]
      %v6481 = vld [vmem:[#allocation2 + $0x48] sm:$0xff]
      %v6482 = vld [vmem:[#allocation2 + $0x50] sm:$0xff]
      %v6483 = vld [vmem:[#allocation2 + $0x58] sm:$0xff]
      %v6484 = vld [vmem:[#allocation2 + $0x60] sm:$0xff]
      %v6485 = vld [vmem:[#allocation2 + $0x68] sm:$0xff]
      %v6486 = vld [vmem:[#allocation2 + $0x70] sm:$0xff]
      %v6487 = vld [vmem:[#allocation2 + $0x78] sm:$0xff]
      %v6488 = vld [vmem:[#allocation2 + $0x80] sm:$0xff]
      %v6489 = vld [vmem:[#allocation2 + $0x88] sm:$0xff]
      %v6490 = vld [vmem:[#allocation2 + $0x90] sm:$0x3f]
      %v6491 = vld [vmem:[#allocation2 + $0x98] sm:$0x3f]
      %v6492 = vld [vmem:[#allocation2 + $0xa0] sm:$0x3f]
      %v6493 = vld [vmem:[#allocation2 + $0xa8] sm:$0x3f]
      %v6494 = vld [vmem:[#allocation2 + $0xb0] sm:$0x3f]
      %v6495 = vld [vmem:[#allocation2 + $0xb8] sm:$0x3f]
      %v6496 = vld [vmem:[#allocation2 + $0xc0] sm:$0x3f]
      %v6497 = vld [vmem:[#allocation2 + $0xc8] sm:$0x3f]
      %v6498 = vld [vmem:[#allocation2 + $0xd0] sm:$0x3f]
      %v6499 = vld [vmem:[#allocation2 + $0xd8] sm:$0x3f]
      %v6500 = vld [vmem:[#allocation2 + $0xe0] sm:$0x3f]
      %v6501 = vld [vmem:[#allocation2 + $0xe8] sm:$0x3f]
      %v6502 = vld [vmem:[#allocation2 + $0xf0] sm:$0x3f]
      %v6503 = vld [vmem:[#allocation2 + $0xf8] sm:$0x3f]
      %v6504 = vld [vmem:[#allocation2 + $0x100] sm:$0x3f]
      %v6505 = vld [vmem:[#allocation2 + $0x108] sm:$0x3f]
      %v6506 = vld [vmem:[#allocation2 + $0x110] sm:$0x3f]
      %v6507 = vld [vmem:[#allocation2 + $0x118] sm:$0x3f]
      %v6508 = vmax.f32 %v6472, 0.0
      %v6509 = vmax.f32 %v6473, 0.0
      %v6510 = vmax.f32 %v6474, 0.0
      %v6511 = vmax.f32 %v6475, 0.0
      %v6512 = vmax.f32 %v6476, 0.0
      %v6513 = vmax.f32 %v6477, 0.0
      %v6514 = vmax.f32 %v6478, 0.0
      %v6515 = vmax.f32 %v6479, 0.0
      %v6516 = vmax.f32 %v6480, 0.0
      %v6517 = vmax.f32 %v6481, 0.0
      %v6518 = vmax.f32 %v6482, 0.0
      %v6519 = vmax.f32 %v6483, 0.0
      %v6520 = vmax.f32 %v6484, 0.0
      %v6521 = vmax.f32 %v6485, 0.0
      %v6522 = vmax.f32 %v6486, 0.0
      %v6523 = vmax.f32 %v6487, 0.0
      %v6524 = vmax.f32 %v6488, 0.0
      %v6525 = vmax.f32 %v6489, 0.0
      %v6526 = vmax.f32 %v6490, 0.0
      %v6527 = vmax.f32 %v6491, 0.0
      %v6528 = vmax.f32 %v6492, 0.0
      %v6529 = vmax.f32 %v6493, 0.0
      %v6530 = vmax.f32 %v6494, 0.0
      %v6531 = vmax.f32 %v6495, 0.0
      %v6532 = vmax.f32 %v6496, 0.0
      %v6533 = vmax.f32 %v6497, 0.0
      %v6534 = vmax.f32 %v6498, 0.0
      %v6535 = vmax.f32 %v6499, 0.0
      %v6536 = vmax.f32 %v6500, 0.0
      %v6537 = vmax.f32 %v6501, 0.0
      %v6538 = vmax.f32 %v6502, 0.0
      %v6539 = vmax.f32 %v6503, 0.0
      %v6540 = vmax.f32 %v6504, 0.0
      %v6541 = vmax.f32 %v6505, 0.0
      %v6542 = vmax.f32 %v6506, 0.0
      %v6543 = vmax.f32 %v6507, 0.0
      %v6544 = vpack.c.bf16 %v6526, %v6508
      %v6545 = vpack.c.bf16 %v6527, %v6509
      %v6546 = vpack.c.bf16 %v6528, %v6510
      %v6547 = vpack.c.bf16 %v6529, %v6511
      %v6548 = vpack.c.bf16 %v6530, %v6512
      %v6549 = vpack.c.bf16 %v6531, %v6513
      %v6550 = vpack.c.bf16 %v6532, %v6514
      %v6551 = vpack.c.bf16 %v6533, %v6515
      %v6552 = vpack.c.bf16 %v6534, %v6516
      %v6553 = vpack.c.bf16 %v6535, %v6517
      %v6554 = vpack.c.bf16 %v6536, %v6518
      %v6555 = vpack.c.bf16 %v6537, %v6519
      %v6556 = vpack.c.bf16 %v6538, %v6520
      %v6557 = vpack.c.bf16 %v6539, %v6521
      %v6558 = vpack.c.bf16 %v6540, %v6522
      %v6559 = vpack.c.bf16 %v6541, %v6523
      %v6560 = vpack.c.bf16 %v6542, %v6524
      %v6561 = vpack.c.bf16 %v6543, %v6525
      %v6580 = vunpack.c.l.b16 %v6544
      %v6581 = vunpack.c.l.b16 %v6545
      %v6582 = vunpack.c.l.b16 %v6546
      %v6583 = vunpack.c.l.b16 %v6547
      %v6584 = vunpack.c.l.b16 %v6548
      %v6585 = vunpack.c.l.b16 %v6549
      %v6586 = vunpack.c.l.b16 %v6550
      %v6587 = vunpack.c.l.b16 %v6551
      %v6588 = vunpack.c.l.b16 %v6552
      %v6589 = vunpack.c.l.b16 %v6553
      %v6590 = vunpack.c.l.b16 %v6554
      %v6591 = vunpack.c.l.b16 %v6555
      %v6592 = vunpack.c.l.b16 %v6556
      %v6593 = vunpack.c.l.b16 %v6557
      %v6594 = vunpack.c.l.b16 %v6558
      %v6595 = vunpack.c.l.b16 %v6559
      %v6596 = vunpack.c.l.b16 %v6560
      %v6597 = vunpack.c.l.b16 %v6561
      %v6598 = vunpack.c.h.b16 %v6544
      %v6599 = vunpack.c.h.b16 %v6545
      %v6600 = vunpack.c.h.b16 %v6546
      %v6601 = vunpack.c.h.b16 %v6547
      %v6602 = vunpack.c.h.b16 %v6548
      %v6603 = vunpack.c.h.b16 %v6549
      %v6604 = vunpack.c.h.b16 %v6550
      %v6605 = vunpack.c.h.b16 %v6551
      %v6606 = vunpack.c.h.b16 %v6552
      %v6607 = vunpack.c.h.b16 %v6553
      %v6608 = vunpack.c.h.b16 %v6554
      %v6609 = vunpack.c.h.b16 %v6555
      %v6610 = vunpack.c.h.b16 %v6556
      %v6611 = vunpack.c.h.b16 %v6557
      %v6612 = vunpack.c.h.b16 %v6558
      %v6613 = vunpack.c.h.b16 %v6559
      %v6614 = vunpack.c.h.b16 %v6560
      %v6615 = vunpack.c.h.b16 %v6561
      %v6616 = vpack.c.b16 %v6581, %v6580
      %v6617 = vpack.c.b16 %v6583, %v6582
      %v6618 = vpack.c.b16 %v6585, %v6584
      %v6619 = vpack.c.b16 %v6587, %v6586
      %v6620 = vpack.c.b16 %v6589, %v6588
      %v6621 = vpack.c.b16 %v6591, %v6590
      %v6622 = vpack.c.b16 %v6593, %v6592
      %v6623 = vpack.c.b16 %v6595, %v6594
      %v6624 = vpack.c.b16 %v6597, %v6596
      %v6625 = vpack.c.b16 %v6599, %v6598
      %v6626 = vpack.c.b16 %v6601, %v6600
      %v6627 = vpack.c.b16 %v6603, %v6602
      %v6628 = vpack.c.b16 %v6605, %v6604
      %v6629 = vpack.c.b16 %v6607, %v6606
      %v6630 = vpack.c.b16 %v6609, %v6608
      %v6631 = vpack.c.b16 %v6611, %v6610
      %v6632 = vpack.c.b16 %v6613, %v6612
      %v6633 = vpack.c.b16 %v6615, %v6614
      %6652 = vst [vmem:[#allocation3] sm:$0xff] %v6616
      %6653 = vst [vmem:[#allocation3 + $0x8] sm:$0xff] %v6617
      %6654 = vst [vmem:[#allocation3 + $0x10] sm:$0xff] %v6618
      %6655 = vst [vmem:[#allocation3 + $0x18] sm:$0xff] %v6619
      %6656 = vst [vmem:[#allocation3 + $0x20] sm:$0xff] %v6620
      %6657 = vst [vmem:[#allocation3 + $0x28] sm:$0xff] %v6621
      %6658 = vst [vmem:[#allocation3 + $0x30] sm:$0xff] %v6622
      %6659 = vst [vmem:[#allocation3 + $0x38] sm:$0xff] %v6623
      %6660 = vst [vmem:[#allocation3 + $0x40] sm:$0xff] %v6624
      %6661 = vst [vmem:[#allocation3 + $0x48] sm:$0x77] %v6625
      %6662 = vst [vmem:[#allocation3 + $0x50] sm:$0x77] %v6626
      %6663 = vst [vmem:[#allocation3 + $0x58] sm:$0x77] %v6627
      %6664 = vst [vmem:[#allocation3 + $0x60] sm:$0x77] %v6628
      %6665 = vst [vmem:[#allocation3 + $0x68] sm:$0x77] %v6629
      %6666 = vst [vmem:[#allocation3 + $0x70] sm:$0x77] %v6630
      %6667 = vst [vmem:[#allocation3 + $0x78] sm:$0x77] %v6631
      %6668 = vst [vmem:[#allocation3 + $0x80] sm:$0x77] %v6632
      %6669 = vst [vmem:[#allocation3 + $0x88] sm:$0x77] %v6633
      %v6670 = vld [vmem:[%s2] sm:$0xf]
      %v6671 = vld [vmem:[#allocation3] sm:$0xff]
      %v6672 = vld [vmem:[#allocation3 + $0x8] sm:$0xff]
      %v6673 = vld [vmem:[#allocation3 + $0x10] sm:$0xff]
      %v6674 = vld [vmem:[#allocation3 + $0x18] sm:$0xff]
      %v6675 = vld [vmem:[#allocation3 + $0x20] sm:$0xff]
      %v6676 = vld [vmem:[#allocation3 + $0x28] sm:$0xff]
      %v6677 = vld [vmem:[#allocation3 + $0x48] sm:$0x77]
      %v6678 = vld [vmem:[#allocation3 + $0x50] sm:$0x77]
      %v6679 = vld [vmem:[#allocation3 + $0x58] sm:$0x77]
      %v6680 = vld [vmem:[#allocation3 + $0x60] sm:$0x77]
      %v6681 = vld [vmem:[#allocation3 + $0x68] sm:$0x77]
      %v6682 = vld [vmem:[#allocation3 + $0x70] sm:$0x77]
      %s6683 = scalar_lea.vmem %s2, 4
      %v6684 = vld [vmem:[%s6683] sm:$0xf]
      %v6685 = vld [vmem:[#allocation3 + $0xc] sm:$0xff]
      %v6686 = vld [vmem:[#allocation3 + $0x14] sm:$0xff]
      %v6687 = vld [vmem:[#allocation3 + $0x1c] sm:$0xff]
      %v6688 = vld [vmem:[#allocation3 + $0x24] sm:$0xff]
      %v6689 = vld [vmem:[#allocation3 + $0x2c] sm:$0xff]
      %v6690 = vld [vmem:[#allocation3 + $0x34] sm:$0xff]
      %v6691 = vld [vmem:[#allocation3 + $0x54] sm:$0x77]
      %v6692 = vld [vmem:[#allocation3 + $0x5c] sm:$0x77]
      %v6693 = vld [vmem:[#allocation3 + $0x64] sm:$0x77]
      %v6694 = vld [vmem:[#allocation3 + $0x6c] sm:$0x77]
      %v6695 = vld [vmem:[#allocation3 + $0x74] sm:$0x77]
      %v6696 = vld [vmem:[#allocation3 + $0x7c] sm:$0x77]
      %v6709 = vunpack.c.l.b16 %v6685
      %v6710 = vunpack.c.h.b16 %v6685
      %v6711 = vunpack.c.l.b16 %v6686
      %v6712 = vunpack.c.h.b16 %v6686
      %v6713 = vunpack.c.l.b16 %v6687
      %v6714 = vunpack.c.h.b16 %v6687
      %v6715 = vunpack.c.l.b16 %v6688
      %v6716 = vunpack.c.h.b16 %v6688
      %v6717 = vunpack.c.l.b16 %v6689
      %v6718 = vunpack.c.h.b16 %v6689
      %v6719 = vunpack.c.l.b16 %v6690
      %v6720 = vunpack.c.h.b16 %v6690
      %v6721 = vunpack.c.l.b16 %v6691
      %v6722 = vunpack.c.h.b16 %v6691
      %v6723 = vunpack.c.l.b16 %v6692
      %v6724 = vunpack.c.h.b16 %v6692
      %v6725 = vunpack.c.l.b16 %v6693
      %v6726 = vunpack.c.h.b16 %v6693
      %v6727 = vunpack.c.l.b16 %v6694
      %v6728 = vunpack.c.h.b16 %v6694
      %v6729 = vunpack.c.l.b16 %v6695
      %v6730 = vunpack.c.h.b16 %v6695
      %v6731 = vunpack.c.l.b16 %v6696
      %v6732 = vunpack.c.h.b16 %v6696
      %v6733 = vpack.c.b16 %v6721, %v6709
      %v6734 = vpack.c.b16 %v6722, %v6710
      %v6735 = vpack.c.b16 %v6723, %v6711
      %v6736 = vpack.c.b16 %v6724, %v6712
      %v6737 = vpack.c.b16 %v6725, %v6713
      %v6738 = vpack.c.b16 %v6726, %v6714
      %v6739 = vpack.c.b16 %v6727, %v6715
      %v6740 = vpack.c.b16 %v6728, %v6716
      %v6741 = vpack.c.b16 %v6729, %v6717
      %v6742 = vpack.c.b16 %v6730, %v6718
      %v6743 = vpack.c.b16 %v6731, %v6719
      %v6744 = vpack.c.b16 %v6732, %v6720
      %vm6745 = vcmask 113664
      %v6747 = vsel %vm6745, %v6684, 0
      %vm6749 = vcmask 1046528
      %v6751 = vsel %vm6749, %v6733, 0
      %v6754 = vsel %vm6749, %v6734, 0
      %v6757 = vsel %vm6749, %v6735, 0
      %v6760 = vsel %vm6749, %v6736, 0
      %v6763 = vsel %vm6749, %v6737, 0
      %v6766 = vsel %vm6749, %v6738, 0
      %v6769 = vsel %vm6749, %v6739, 0
      %v6772 = vsel %vm6749, %v6740, 0
      %v6775 = vsel %vm6749, %v6741, 0
      %v6778 = vsel %vm6749, %v6742, 0
      %v6781 = vsel %vm6749, %v6743, 0
      %v6784 = vsel %vm6749, %v6744, 0
      %6786 = vmatprep.subr.bf16.mxu0 0
      %6787 = vmatpush1.bf16.msra.mxu0 0
      %6788 = vmatprep.subr.bf16.mxu0 0
      %6789 = vmatpush1.bf16.msra.mxu0 0
      %6790 = vmatprep.subr.bf16.mxu0 0
      %6791 = vmatpush1.bf16.msra.mxu0 0
      %6792 = vmatprep.subr.bf16.mxu0 0
      %6793 = vmatpush1.bf16.msra.mxu0 0
      %6794 = vmatprep.subr.bf16.mxu0 0
      %6795 = vmatpush1.bf16.msra.mxu0 0
      %6796 = vmatprep.subr.bf16.mxu0 0
      %6797 = vmatpush1.bf16.msra.mxu0 0
      %6798 = vmatprep.subr.bf16.mxu0 0
      %6799 = vmatpush1.bf16.msra.mxu0 0
      %6800 = vmatprep.subr.bf16.mxu0 %v6754
      %6801 = vmatpush1.bf16.msra.mxu0 %v6751
      %6802 = vmatprep.subr.bf16.mxu0 0
      %6803 = vmatpush2.bf16.msra.mxu0 0
      %6804 = vmatprep.subr.bf16.mxu0 0
      %6805 = vmatpush2.bf16.msra.mxu0 0
      %6806 = vmatprep.subr.bf16.mxu0 0
      %6807 = vmatpush2.bf16.msra.mxu0 0
      %6808 = vmatprep.subr.bf16.mxu0 0
      %6809 = vmatpush2.bf16.msra.mxu0 0
      %6810 = vmatprep.subr.bf16.mxu0 0
      %6811 = vmatpush2.bf16.msra.mxu0 0
      %6812 = vmatprep.subr.bf16.mxu0 0
      %6813 = vmatpush2.bf16.msra.mxu0 0
      %6814 = vmatprep.subr.bf16.mxu0 0
      %6815 = vmatpush2.bf16.msra.mxu0 0
      %6816 = vmatprep.subr.bf16.mxu0 0
      %6817 = vmatpush2.bf16.msra.mxu0 0
      %6818 = vmatprep.mubr.bf16.mxu0 0
      %6819 = vmatmul.mubr.bf16.gmra.mxu0 %v6747
      %v6820 = vpop.f32.mrf.mxu0
      %v6821 = vadd.f32 0.0, %v6820
      %v6822 = vpop.f32.mrf.mxu0
      %v6823 = vadd.f32 0.0, %v6822
      %v6824 = vpop.f32.mrf.mxu0
      %v6825 = vpop.f32.mrf.mxu0
      %6826 = vdwg.mxu0
      %6827 = vmatprep.subr.bf16.mxu0 0
      %6828 = vmatpush1.bf16.msra.mxu0 0
      %6829 = vmatprep.subr.bf16.mxu0 0
      %6830 = vmatpush1.bf16.msra.mxu0 0
      %6831 = vmatprep.subr.bf16.mxu0 0
      %6832 = vmatpush1.bf16.msra.mxu0 0
      %6833 = vmatprep.subr.bf16.mxu0 0
      %6834 = vmatpush1.bf16.msra.mxu0 0
      %6835 = vmatprep.subr.bf16.mxu0 0
      %6836 = vmatpush1.bf16.msra.mxu0 0
      %6837 = vmatprep.subr.bf16.mxu0 0
      %6838 = vmatpush1.bf16.msra.mxu0 0
      %6839 = vmatprep.subr.bf16.mxu0 0
      %6840 = vmatpush1.bf16.msra.mxu0 0
      %6841 = vmatprep.subr.bf16.mxu0 %v6760
      %6842 = vmatpush1.bf16.msra.mxu0 %v6757
      %6843 = vmatprep.subr.bf16.mxu0 0
      %6844 = vmatpush2.bf16.msra.mxu0 0
      %6845 = vmatprep.subr.bf16.mxu0 0
      %6846 = vmatpush2.bf16.msra.mxu0 0
      %6847 = vmatprep.subr.bf16.mxu0 0
      %6848 = vmatpush2.bf16.msra.mxu0 0
      %6849 = vmatprep.subr.bf16.mxu0 0
      %6850 = vmatpush2.bf16.msra.mxu0 0
      %6851 = vmatprep.subr.bf16.mxu0 0
      %6852 = vmatpush2.bf16.msra.mxu0 0
      %6853 = vmatprep.subr.bf16.mxu0 0
      %6854 = vmatpush2.bf16.msra.mxu0 0
      %6855 = vmatprep.subr.bf16.mxu0 0
      %6856 = vmatpush2.bf16.msra.mxu0 0
      %6857 = vmatprep.subr.bf16.mxu0 0
      %6858 = vmatpush2.bf16.msra.mxu0 0
      %6859 = vmatprep.mubr.bf16.mxu0 0
      %6860 = vmatmul.mubr.bf16.gmra.mxu0 %v6747
      %v6861 = vpop.f32.mrf.mxu0
      %v6862 = vadd.f32 0.0, %v6861
      %v6863 = vpop.f32.mrf.mxu0
      %v6864 = vadd.f32 0.0, %v6863
      %v6865 = vpop.f32.mrf.mxu0
      %v6866 = vpop.f32.mrf.mxu0
      %6867 = vdwg.mxu0
      %6868 = vmatprep.subr.bf16.mxu0 0
      %6869 = vmatpush1.bf16.msra.mxu0 0
      %6870 = vmatprep.subr.bf16.mxu0 0
      %6871 = vmatpush1.bf16.msra.mxu0 0
      %6872 = vmatprep.subr.bf16.mxu0 0
      %6873 = vmatpush1.bf16.msra.mxu0 0
      %6874 = vmatprep.subr.bf16.mxu0 0
      %6875 = vmatpush1.bf16.msra.mxu0 0
      %6876 = vmatprep.subr.bf16.mxu0 0
      %6877 = vmatpush1.bf16.msra.mxu0 0
      %6878 = vmatprep.subr.bf16.mxu0 0
      %6879 = vmatpush1.bf16.msra.mxu0 0
      %6880 = vmatprep.subr.bf16.mxu0 0
      %6881 = vmatpush1.bf16.msra.mxu0 0
      %6882 = vmatprep.subr.bf16.mxu0 %v6766
      %6883 = vmatpush1.bf16.msra.mxu0 %v6763
      %6884 = vmatprep.subr.bf16.mxu0 0
      %6885 = vmatpush2.bf16.msra.mxu0 0
      %6886 = vmatprep.subr.bf16.mxu0 0
      %6887 = vmatpush2.bf16.msra.mxu0 0
      %6888 = vmatprep.subr.bf16.mxu0 0
      %6889 = vmatpush2.bf16.msra.mxu0 0
      %6890 = vmatprep.subr.bf16.mxu0 0
      %6891 = vmatpush2.bf16.msra.mxu0 0
      %6892 = vmatprep.subr.bf16.mxu0 0
      %6893 = vmatpush2.bf16.msra.mxu0 0
      %6894 = vmatprep.subr.bf16.mxu0 0
      %6895 = vmatpush2.bf16.msra.mxu0 0
      %6896 = vmatprep.subr.bf16.mxu0 0
      %6897 = vmatpush2.bf16.msra.mxu0 0
      %6898 = vmatprep.subr.bf16.mxu0 0
      %6899 = vmatpush2.bf16.msra.mxu0 0
      %6900 = vmatprep.mubr.bf16.mxu0 0
      %6901 = vmatmul.mubr.bf16.gmra.mxu0 %v6747
      %v6902 = vpop.f32.mrf.mxu0
      %v6903 = vadd.f32 0.0, %v6902
      %v6904 = vpop.f32.mrf.mxu0
      %v6905 = vadd.f32 0.0, %v6904
      %v6906 = vpop.f32.mrf.mxu0
      %v6907 = vpop.f32.mrf.mxu0
      %6908 = vdwg.mxu0
      %6909 = vmatprep.subr.bf16.mxu0 0
      %6910 = vmatpush1.bf16.msra.mxu0 0
      %6911 = vmatprep.subr.bf16.mxu0 0
      %6912 = vmatpush1.bf16.msra.mxu0 0
      %6913 = vmatprep.subr.bf16.mxu0 0
      %6914 = vmatpush1.bf16.msra.mxu0 0
      %6915 = vmatprep.subr.bf16.mxu0 0
      %6916 = vmatpush1.bf16.msra.mxu0 0
      %6917 = vmatprep.subr.bf16.mxu0 0
      %6918 = vmatpush1.bf16.msra.mxu0 0
      %6919 = vmatprep.subr.bf16.mxu0 0
      %6920 = vmatpush1.bf16.msra.mxu0 0
      %6921 = vmatprep.subr.bf16.mxu0 0
      %6922 = vmatpush1.bf16.msra.mxu0 0
      %6923 = vmatprep.subr.bf16.mxu0 %v6772
      %6924 = vmatpush1.bf16.msra.mxu0 %v6769
      %6925 = vmatprep.subr.bf16.mxu0 0
      %6926 = vmatpush2.bf16.msra.mxu0 0
      %6927 = vmatprep.subr.bf16.mxu0 0
      %6928 = vmatpush2.bf16.msra.mxu0 0
      %6929 = vmatprep.subr.bf16.mxu0 0
      %6930 = vmatpush2.bf16.msra.mxu0 0
      %6931 = vmatprep.subr.bf16.mxu0 0
      %6932 = vmatpush2.bf16.msra.mxu0 0
      %6933 = vmatprep.subr.bf16.mxu0 0
      %6934 = vmatpush2.bf16.msra.mxu0 0
      %6935 = vmatprep.subr.bf16.mxu0 0
      %6936 = vmatpush2.bf16.msra.mxu0 0
      %6937 = vmatprep.subr.bf16.mxu0 0
      %6938 = vmatpush2.bf16.msra.mxu0 0
      %6939 = vmatprep.subr.bf16.mxu0 0
      %6940 = vmatpush2.bf16.msra.mxu0 0
      %6941 = vmatprep.mubr.bf16.mxu0 0
      %6942 = vmatmul.mubr.bf16.gmra.mxu0 %v6747
      %v6943 = vpop.f32.mrf.mxu0
      %v6944 = vadd.f32 0.0, %v6943
      %v6945 = vpop.f32.mrf.mxu0
      %v6946 = vadd.f32 0.0, %v6945
      %v6947 = vpop.f32.mrf.mxu0
      %v6948 = vpop.f32.mrf.mxu0
      %6949 = vdwg.mxu0
      %6950 = vmatprep.subr.bf16.mxu0 0
      %6951 = vmatpush1.bf16.msra.mxu0 0
      %6952 = vmatprep.subr.bf16.mxu0 0
      %6953 = vmatpush1.bf16.msra.mxu0 0
      %6954 = vmatprep.subr.bf16.mxu0 0
      %6955 = vmatpush1.bf16.msra.mxu0 0
      %6956 = vmatprep.subr.bf16.mxu0 0
      %6957 = vmatpush1.bf16.msra.mxu0 0
      %6958 = vmatprep.subr.bf16.mxu0 0
      %6959 = vmatpush1.bf16.msra.mxu0 0
      %6960 = vmatprep.subr.bf16.mxu0 0
      %6961 = vmatpush1.bf16.msra.mxu0 0
      %6962 = vmatprep.subr.bf16.mxu0 0
      %6963 = vmatpush1.bf16.msra.mxu0 0
      %6964 = vmatprep.subr.bf16.mxu0 %v6778
      %6965 = vmatpush1.bf16.msra.mxu0 %v6775
      %6966 = vmatprep.subr.bf16.mxu0 0
      %6967 = vmatpush2.bf16.msra.mxu0 0
      %6968 = vmatprep.subr.bf16.mxu0 0
      %6969 = vmatpush2.bf16.msra.mxu0 0
      %6970 = vmatprep.subr.bf16.mxu0 0
      %6971 = vmatpush2.bf16.msra.mxu0 0
      %6972 = vmatprep.subr.bf16.mxu0 0
      %6973 = vmatpush2.bf16.msra.mxu0 0
      %6974 = vmatprep.subr.bf16.mxu0 0
      %6975 = vmatpush2.bf16.msra.mxu0 0
      %6976 = vmatprep.subr.bf16.mxu0 0
      %6977 = vmatpush2.bf16.msra.mxu0 0
      %6978 = vmatprep.subr.bf16.mxu0 0
      %6979 = vmatpush2.bf16.msra.mxu0 0
      %6980 = vmatprep.subr.bf16.mxu0 0
      %6981 = vmatpush2.bf16.msra.mxu0 0
      %6982 = vmatprep.mubr.bf16.mxu0 0
      %6983 = vmatmul.mubr.bf16.gmra.mxu0 %v6747
      %v6984 = vpop.f32.mrf.mxu0
      %v6985 = vadd.f32 0.0, %v6984
      %v6986 = vpop.f32.mrf.mxu0
      %v6987 = vadd.f32 0.0, %v6986
      %v6988 = vpop.f32.mrf.mxu0
      %v6989 = vpop.f32.mrf.mxu0
      %6990 = vdwg.mxu0
      %6991 = vmatprep.subr.bf16.mxu0 0
      %6992 = vmatpush1.bf16.msra.mxu0 0
      %6993 = vmatprep.subr.bf16.mxu0 0
      %6994 = vmatpush1.bf16.msra.mxu0 0
      %6995 = vmatprep.subr.bf16.mxu0 0
      %6996 = vmatpush1.bf16.msra.mxu0 0
      %6997 = vmatprep.subr.bf16.mxu0 0
      %6998 = vmatpush1.bf16.msra.mxu0 0
      %6999 = vmatprep.subr.bf16.mxu0 0
      %7000 = vmatpush1.bf16.msra.mxu0 0
      %7001 = vmatprep.subr.bf16.mxu0 0
      %7002 = vmatpush1.bf16.msra.mxu0 0
      %7003 = vmatprep.subr.bf16.mxu0 0
      %7004 = vmatpush1.bf16.msra.mxu0 0
      %7005 = vmatprep.subr.bf16.mxu0 %v6784
      %7006 = vmatpush1.bf16.msra.mxu0 %v6781
      %7007 = vmatprep.subr.bf16.mxu0 0
      %7008 = vmatpush2.bf16.msra.mxu0 0
      %7009 = vmatprep.subr.bf16.mxu0 0
      %7010 = vmatpush2.bf16.msra.mxu0 0
      %7011 = vmatprep.subr.bf16.mxu0 0
      %7012 = vmatpush2.bf16.msra.mxu0 0
      %7013 = vmatprep.subr.bf16.mxu0 0
      %7014 = vmatpush2.bf16.msra.mxu0 0
      %7015 = vmatprep.subr.bf16.mxu0 0
      %7016 = vmatpush2.bf16.msra.mxu0 0
      %7017 = vmatprep.subr.bf16.mxu0 0
      %7018 = vmatpush2.bf16.msra.mxu0 0
      %7019 = vmatprep.subr.bf16.mxu0 0
      %7020 = vmatpush2.bf16.msra.mxu0 0
      %7021 = vmatprep.subr.bf16.mxu0 0
      %7022 = vmatpush2.bf16.msra.mxu0 0
      %7023 = vmatprep.mubr.bf16.mxu0 0
      %7024 = vmatmul.mubr.bf16.gmra.mxu0 %v6747
      %v7025 = vpop.f32.mrf.mxu0
      %v7026 = vadd.f32 0.0, %v7025
      %v7027 = vpop.f32.mrf.mxu0
      %v7028 = vadd.f32 0.0, %v7027
      %v7029 = vpop.f32.mrf.mxu0
      %v7030 = vpop.f32.mrf.mxu0
      %7031 = vdwg.mxu0
      %v7044 = vunpack.c.l.b16 %v6671
      %v7045 = vunpack.c.h.b16 %v6671
      %v7046 = vunpack.c.l.b16 %v6672
      %v7047 = vunpack.c.h.b16 %v6672
      %v7048 = vunpack.c.l.b16 %v6673
      %v7049 = vunpack.c.h.b16 %v6673
      %v7050 = vunpack.c.l.b16 %v6674
      %v7051 = vunpack.c.h.b16 %v6674
      %v7052 = vunpack.c.l.b16 %v6675
      %v7053 = vunpack.c.h.b16 %v6675
      %v7054 = vunpack.c.l.b16 %v6676
      %v7055 = vunpack.c.h.b16 %v6676
      %v7056 = vunpack.c.l.b16 %v6677
      %v7057 = vunpack.c.h.b16 %v6677
      %v7058 = vunpack.c.l.b16 %v6678
      %v7059 = vunpack.c.h.b16 %v6678
      %v7060 = vunpack.c.l.b16 %v6679
      %v7061 = vunpack.c.h.b16 %v6679
      %v7062 = vunpack.c.l.b16 %v6680
      %v7063 = vunpack.c.h.b16 %v6680
      %v7064 = vunpack.c.l.b16 %v6681
      %v7065 = vunpack.c.h.b16 %v6681
      %v7066 = vunpack.c.l.b16 %v6682
      %v7067 = vunpack.c.h.b16 %v6682
      %v7068 = vpack.c.b16 %v7056, %v7044
      %v7069 = vpack.c.b16 %v7057, %v7045
      %v7070 = vpack.c.b16 %v7058, %v7046
      %v7071 = vpack.c.b16 %v7059, %v7047
      %v7072 = vpack.c.b16 %v7060, %v7048
      %v7073 = vpack.c.b16 %v7061, %v7049
      %v7074 = vpack.c.b16 %v7062, %v7050
      %v7075 = vpack.c.b16 %v7063, %v7051
      %v7076 = vpack.c.b16 %v7064, %v7052
      %v7077 = vpack.c.b16 %v7065, %v7053
      %v7078 = vpack.c.b16 %v7066, %v7054
      %v7079 = vpack.c.b16 %v7067, %v7055
      %v7081 = vsel %vm6745, %v6670, 0
      %v7084 = vsel %vm6749, %v7068, 0
      %v7087 = vsel %vm6749, %v7069, 0
      %v7090 = vsel %vm6749, %v7070, 0
      %v7093 = vsel %vm6749, %v7071, 0
      %v7096 = vsel %vm6749, %v7072, 0
      %v7099 = vsel %vm6749, %v7073, 0
      %v7102 = vsel %vm6749, %v7074, 0
      %v7105 = vsel %vm6749, %v7075, 0
      %v7108 = vsel %vm6749, %v7076, 0
      %v7111 = vsel %vm6749, %v7077, 0
      %v7114 = vsel %vm6749, %v7078, 0
      %v7117 = vsel %vm6749, %v7079, 0
      %7119 = vmatprep.subr.bf16.mxu0 0
      %7120 = vmatpush1.bf16.msra.mxu0 0
      %7121 = vmatprep.subr.bf16.mxu0 0
      %7122 = vmatpush1.bf16.msra.mxu0 0
      %7123 = vmatprep.subr.bf16.mxu0 0
      %7124 = vmatpush1.bf16.msra.mxu0 0
      %7125 = vmatprep.subr.bf16.mxu0 0
      %7126 = vmatpush1.bf16.msra.mxu0 0
      %7127 = vmatprep.subr.bf16.mxu0 0
      %7128 = vmatpush1.bf16.msra.mxu0 0
      %7129 = vmatprep.subr.bf16.mxu0 0
      %7130 = vmatpush1.bf16.msra.mxu0 0
      %7131 = vmatprep.subr.bf16.mxu0 0
      %7132 = vmatpush1.bf16.msra.mxu0 0
      %7133 = vmatprep.subr.bf16.mxu0 %v7087
      %7134 = vmatpush1.bf16.msra.mxu0 %v7084
      %7135 = vmatprep.subr.bf16.mxu0 0
      %7136 = vmatpush2.bf16.msra.mxu0 0
      %7137 = vmatprep.subr.bf16.mxu0 0
      %7138 = vmatpush2.bf16.msra.mxu0 0
      %7139 = vmatprep.subr.bf16.mxu0 0
      %7140 = vmatpush2.bf16.msra.mxu0 0
      %7141 = vmatprep.subr.bf16.mxu0 0
      %7142 = vmatpush2.bf16.msra.mxu0 0
      %7143 = vmatprep.subr.bf16.mxu0 0
      %7144 = vmatpush2.bf16.msra.mxu0 0
      %7145 = vmatprep.subr.bf16.mxu0 0
      %7146 = vmatpush2.bf16.msra.mxu0 0
      %7147 = vmatprep.subr.bf16.mxu0 0
      %7148 = vmatpush2.bf16.msra.mxu0 0
      %7149 = vmatprep.subr.bf16.mxu0 0
      %7150 = vmatpush2.bf16.msra.mxu0 0
      %7151 = vmatprep.mubr.bf16.mxu0 0
      %7152 = vmatmul.mubr.bf16.gmra.mxu0 %v7081
      %v7153 = vpop.f32.mrf.mxu0
      %v7154 = vadd.f32 %v6821, %v7153
      %v7155 = vpop.f32.mrf.mxu0
      %v7156 = vadd.f32 %v6823, %v7155
      %v7157 = vpop.f32.mrf.mxu0
      %v7158 = vpop.f32.mrf.mxu0
      %7159 = vdwg.mxu0
      %7160 = vmatprep.subr.bf16.mxu0 0
      %7161 = vmatpush1.bf16.msra.mxu0 0
      %7162 = vmatprep.subr.bf16.mxu0 0
      %7163 = vmatpush1.bf16.msra.mxu0 0
      %7164 = vmatprep.subr.bf16.mxu0 0
      %7165 = vmatpush1.bf16.msra.mxu0 0
      %7166 = vmatprep.subr.bf16.mxu0 0
      %7167 = vmatpush1.bf16.msra.mxu0 0
      %7168 = vmatprep.subr.bf16.mxu0 0
      %7169 = vmatpush1.bf16.msra.mxu0 0
      %7170 = vmatprep.subr.bf16.mxu0 0
      %7171 = vmatpush1.bf16.msra.mxu0 0
      %7172 = vmatprep.subr.bf16.mxu0 0
      %7173 = vmatpush1.bf16.msra.mxu0 0
      %7174 = vmatprep.subr.bf16.mxu0 %v7093
      %7175 = vmatpush1.bf16.msra.mxu0 %v7090
      %7176 = vmatprep.subr.bf16.mxu0 0
      %7177 = vmatpush2.bf16.msra.mxu0 0
      %7178 = vmatprep.subr.bf16.mxu0 0
      %7179 = vmatpush2.bf16.msra.mxu0 0
      %7180 = vmatprep.subr.bf16.mxu0 0
      %7181 = vmatpush2.bf16.msra.mxu0 0
      %7182 = vmatprep.subr.bf16.mxu0 0
      %7183 = vmatpush2.bf16.msra.mxu0 0
      %7184 = vmatprep.subr.bf16.mxu0 0
      %7185 = vmatpush2.bf16.msra.mxu0 0
      %7186 = vmatprep.subr.bf16.mxu0 0
      %7187 = vmatpush2.bf16.msra.mxu0 0
      %7188 = vmatprep.subr.bf16.mxu0 0
      %7189 = vmatpush2.bf16.msra.mxu0 0
      %7190 = vmatprep.subr.bf16.mxu0 0
      %7191 = vmatpush2.bf16.msra.mxu0 0
      %7192 = vmatprep.mubr.bf16.mxu0 0
      %7193 = vmatmul.mubr.bf16.gmra.mxu0 %v7081
      %v7194 = vpop.f32.mrf.mxu0
      %v7195 = vadd.f32 %v6862, %v7194
      %v7196 = vpop.f32.mrf.mxu0
      %v7197 = vadd.f32 %v6864, %v7196
      %v7198 = vpop.f32.mrf.mxu0
      %v7199 = vpop.f32.mrf.mxu0
      %7200 = vdwg.mxu0
      %7201 = vmatprep.subr.bf16.mxu0 0
      %7202 = vmatpush1.bf16.msra.mxu0 0
      %7203 = vmatprep.subr.bf16.mxu0 0
      %7204 = vmatpush1.bf16.msra.mxu0 0
      %7205 = vmatprep.subr.bf16.mxu0 0
      %7206 = vmatpush1.bf16.msra.mxu0 0
      %7207 = vmatprep.subr.bf16.mxu0 0
      %7208 = vmatpush1.bf16.msra.mxu0 0
      %7209 = vmatprep.subr.bf16.mxu0 0
      %7210 = vmatpush1.bf16.msra.mxu0 0
      %7211 = vmatprep.subr.bf16.mxu0 0
      %7212 = vmatpush1.bf16.msra.mxu0 0
      %7213 = vmatprep.subr.bf16.mxu0 0
      %7214 = vmatpush1.bf16.msra.mxu0 0
      %7215 = vmatprep.subr.bf16.mxu0 %v7099
      %7216 = vmatpush1.bf16.msra.mxu0 %v7096
      %7217 = vmatprep.subr.bf16.mxu0 0
      %7218 = vmatpush2.bf16.msra.mxu0 0
      %7219 = vmatprep.subr.bf16.mxu0 0
      %7220 = vmatpush2.bf16.msra.mxu0 0
      %7221 = vmatprep.subr.bf16.mxu0 0
      %7222 = vmatpush2.bf16.msra.mxu0 0
      %7223 = vmatprep.subr.bf16.mxu0 0
      %7224 = vmatpush2.bf16.msra.mxu0 0
      %7225 = vmatprep.subr.bf16.mxu0 0
      %7226 = vmatpush2.bf16.msra.mxu0 0
      %7227 = vmatprep.subr.bf16.mxu0 0
      %7228 = vmatpush2.bf16.msra.mxu0 0
      %7229 = vmatprep.subr.bf16.mxu0 0
      %7230 = vmatpush2.bf16.msra.mxu0 0
      %7231 = vmatprep.subr.bf16.mxu0 0
      %7232 = vmatpush2.bf16.msra.mxu0 0
      %7233 = vmatprep.mubr.bf16.mxu0 0
      %7234 = vmatmul.mubr.bf16.gmra.mxu0 %v7081
      %v7235 = vpop.f32.mrf.mxu0
      %v7236 = vadd.f32 %v6903, %v7235
      %v7237 = vpop.f32.mrf.mxu0
      %v7238 = vadd.f32 %v6905, %v7237
      %v7239 = vpop.f32.mrf.mxu0
      %v7240 = vpop.f32.mrf.mxu0
      %7241 = vdwg.mxu0
      %7242 = vmatprep.subr.bf16.mxu0 0
      %7243 = vmatpush1.bf16.msra.mxu0 0
      %7244 = vmatprep.subr.bf16.mxu0 0
      %7245 = vmatpush1.bf16.msra.mxu0 0
      %7246 = vmatprep.subr.bf16.mxu0 0
      %7247 = vmatpush1.bf16.msra.mxu0 0
      %7248 = vmatprep.subr.bf16.mxu0 0
      %7249 = vmatpush1.bf16.msra.mxu0 0
      %7250 = vmatprep.subr.bf16.mxu0 0
      %7251 = vmatpush1.bf16.msra.mxu0 0
      %7252 = vmatprep.subr.bf16.mxu0 0
      %7253 = vmatpush1.bf16.msra.mxu0 0
      %7254 = vmatprep.subr.bf16.mxu0 0
      %7255 = vmatpush1.bf16.msra.mxu0 0
      %7256 = vmatprep.subr.bf16.mxu0 %v7105
      %7257 = vmatpush1.bf16.msra.mxu0 %v7102
      %7258 = vmatprep.subr.bf16.mxu0 0
      %7259 = vmatpush2.bf16.msra.mxu0 0
      %7260 = vmatprep.subr.bf16.mxu0 0
      %7261 = vmatpush2.bf16.msra.mxu0 0
      %7262 = vmatprep.subr.bf16.mxu0 0
      %7263 = vmatpush2.bf16.msra.mxu0 0
      %7264 = vmatprep.subr.bf16.mxu0 0
      %7265 = vmatpush2.bf16.msra.mxu0 0
      %7266 = vmatprep.subr.bf16.mxu0 0
      %7267 = vmatpush2.bf16.msra.mxu0 0
      %7268 = vmatprep.subr.bf16.mxu0 0
      %7269 = vmatpush2.bf16.msra.mxu0 0
      %7270 = vmatprep.subr.bf16.mxu0 0
      %7271 = vmatpush2.bf16.msra.mxu0 0
      %7272 = vmatprep.subr.bf16.mxu0 0
      %7273 = vmatpush2.bf16.msra.mxu0 0
      %7274 = vmatprep.mubr.bf16.mxu0 0
      %7275 = vmatmul.mubr.bf16.gmra.mxu0 %v7081
      %v7276 = vpop.f32.mrf.mxu0
      %v7277 = vadd.f32 %v6944, %v7276
      %v7278 = vpop.f32.mrf.mxu0
      %v7279 = vadd.f32 %v6946, %v7278
      %v7280 = vpop.f32.mrf.mxu0
      %v7281 = vpop.f32.mrf.mxu0
      %7282 = vdwg.mxu0
      %7283 = vmatprep.subr.bf16.mxu0 0
      %7284 = vmatpush1.bf16.msra.mxu0 0
      %7285 = vmatprep.subr.bf16.mxu0 0
      %7286 = vmatpush1.bf16.msra.mxu0 0
      %7287 = vmatprep.subr.bf16.mxu0 0
      %7288 = vmatpush1.bf16.msra.mxu0 0
      %7289 = vmatprep.subr.bf16.mxu0 0
      %7290 = vmatpush1.bf16.msra.mxu0 0
      %7291 = vmatprep.subr.bf16.mxu0 0
      %7292 = vmatpush1.bf16.msra.mxu0 0
      %7293 = vmatprep.subr.bf16.mxu0 0
      %7294 = vmatpush1.bf16.msra.mxu0 0
      %7295 = vmatprep.subr.bf16.mxu0 0
      %7296 = vmatpush1.bf16.msra.mxu0 0
      %7297 = vmatprep.subr.bf16.mxu0 %v7111
      %7298 = vmatpush1.bf16.msra.mxu0 %v7108
      %7299 = vmatprep.subr.bf16.mxu0 0
      %7300 = vmatpush2.bf16.msra.mxu0 0
      %7301 = vmatprep.subr.bf16.mxu0 0
      %7302 = vmatpush2.bf16.msra.mxu0 0
      %7303 = vmatprep.subr.bf16.mxu0 0
      %7304 = vmatpush2.bf16.msra.mxu0 0
      %7305 = vmatprep.subr.bf16.mxu0 0
      %7306 = vmatpush2.bf16.msra.mxu0 0
      %7307 = vmatprep.subr.bf16.mxu0 0
      %7308 = vmatpush2.bf16.msra.mxu0 0
      %7309 = vmatprep.subr.bf16.mxu0 0
      %7310 = vmatpush2.bf16.msra.mxu0 0
      %7311 = vmatprep.subr.bf16.mxu0 0
      %7312 = vmatpush2.bf16.msra.mxu0 0
      %7313 = vmatprep.subr.bf16.mxu0 0
      %7314 = vmatpush2.bf16.msra.mxu0 0
      %7315 = vmatprep.mubr.bf16.mxu0 0
      %7316 = vmatmul.mubr.bf16.gmra.mxu0 %v7081
      %v7317 = vpop.f32.mrf.mxu0
      %v7318 = vadd.f32 %v6985, %v7317
      %v7319 = vpop.f32.mrf.mxu0
      %v7320 = vadd.f32 %v6987, %v7319
      %v7321 = vpop.f32.mrf.mxu0
      %v7322 = vpop.f32.mrf.mxu0
      %7323 = vdwg.mxu0
      %7324 = vmatprep.subr.bf16.mxu0 0
      %7325 = vmatpush1.bf16.msra.mxu0 0
      %7326 = vmatprep.subr.bf16.mxu0 0
      %7327 = vmatpush1.bf16.msra.mxu0 0
      %7328 = vmatprep.subr.bf16.mxu0 0
      %7329 = vmatpush1.bf16.msra.mxu0 0
      %7330 = vmatprep.subr.bf16.mxu0 0
      %7331 = vmatpush1.bf16.msra.mxu0 0
      %7332 = vmatprep.subr.bf16.mxu0 0
      %7333 = vmatpush1.bf16.msra.mxu0 0
      %7334 = vmatprep.subr.bf16.mxu0 0
      %7335 = vmatpush1.bf16.msra.mxu0 0
      %7336 = vmatprep.subr.bf16.mxu0 0
      %7337 = vmatpush1.bf16.msra.mxu0 0
      %7338 = vmatprep.subr.bf16.mxu0 %v7117
      %7339 = vmatpush1.bf16.msra.mxu0 %v7114
      %7340 = vmatprep.subr.bf16.mxu0 0
      %7341 = vmatpush2.bf16.msra.mxu0 0
      %7342 = vmatprep.subr.bf16.mxu0 0
      %7343 = vmatpush2.bf16.msra.mxu0 0
      %7344 = vmatprep.subr.bf16.mxu0 0
      %7345 = vmatpush2.bf16.msra.mxu0 0
      %7346 = vmatprep.subr.bf16.mxu0 0
      %7347 = vmatpush2.bf16.msra.mxu0 0
      %7348 = vmatprep.subr.bf16.mxu0 0
      %7349 = vmatpush2.bf16.msra.mxu0 0
      %7350 = vmatprep.subr.bf16.mxu0 0
      %7351 = vmatpush2.bf16.msra.mxu0 0
      %7352 = vmatprep.subr.bf16.mxu0 0
      %7353 = vmatpush2.bf16.msra.mxu0 0
      %7354 = vmatprep.subr.bf16.mxu0 0
      %7355 = vmatpush2.bf16.msra.mxu0 0
      %7356 = vmatprep.mubr.bf16.mxu0 0
      %7357 = vmatmul.mubr.bf16.gmra.mxu0 %v7081
      %v7358 = vpop.f32.mrf.mxu0
      %v7359 = vadd.f32 %v7026, %v7358
      %v7360 = vpop.f32.mrf.mxu0
      %v7361 = vadd.f32 %v7028, %v7360
      %v7362 = vpop.f32.mrf.mxu0
      %v7363 = vpop.f32.mrf.mxu0
      %7364 = vdwg.mxu0
      %s7365 = scalar_lea.vmem %s2, 8
      %v7366 = vld [vmem:[%s7365] sm:$0xf]
      %v7367 = vld [vmem:[#allocation3 + $0x18] sm:$0xff]
      %v7368 = vld [vmem:[#allocation3 + $0x20] sm:$0xff]
      %v7369 = vld [vmem:[#allocation3 + $0x28] sm:$0xff]
      %v7370 = vld [vmem:[#allocation3 + $0x30] sm:$0xff]
      %v7371 = vld [vmem:[#allocation3 + $0x38] sm:$0xff]
      %v7372 = vld [vmem:[#allocation3 + $0x40] sm:$0xff]
      %v7373 = vld [vmem:[#allocation3 + $0x60] sm:$0x77]
      %v7374 = vld [vmem:[#allocation3 + $0x68] sm:$0x77]
      %v7375 = vld [vmem:[#allocation3 + $0x70] sm:$0x77]
      %v7376 = vld [vmem:[#allocation3 + $0x78] sm:$0x77]
      %v7377 = vld [vmem:[#allocation3 + $0x80] sm:$0x77]
      %v7378 = vld [vmem:[#allocation3 + $0x88] sm:$0x77]
      %v7391 = vunpack.c.l.b16 %v7367
      %v7392 = vunpack.c.h.b16 %v7367
      %v7393 = vunpack.c.l.b16 %v7368
      %v7394 = vunpack.c.h.b16 %v7368
      %v7395 = vunpack.c.l.b16 %v7369
      %v7396 = vunpack.c.h.b16 %v7369
      %v7397 = vunpack.c.l.b16 %v7370
      %v7398 = vunpack.c.h.b16 %v7370
      %v7399 = vunpack.c.l.b16 %v7371
      %v7400 = vunpack.c.h.b16 %v7371
      %v7401 = vunpack.c.l.b16 %v7372
      %v7402 = vunpack.c.h.b16 %v7372
      %v7403 = vunpack.c.l.b16 %v7373
      %v7404 = vunpack.c.h.b16 %v7373
      %v7405 = vunpack.c.l.b16 %v7374
      %v7406 = vunpack.c.h.b16 %v7374
      %v7407 = vunpack.c.l.b16 %v7375
      %v7408 = vunpack.c.h.b16 %v7375
      %v7409 = vunpack.c.l.b16 %v7376
      %v7410 = vunpack.c.h.b16 %v7376
      %v7411 = vunpack.c.l.b16 %v7377
      %v7412 = vunpack.c.h.b16 %v7377
      %v7413 = vunpack.c.l.b16 %v7378
      %v7414 = vunpack.c.h.b16 %v7378
      %v7415 = vpack.c.b16 %v7403, %v7391
      %v7416 = vpack.c.b16 %v7404, %v7392
      %v7417 = vpack.c.b16 %v7405, %v7393
      %v7418 = vpack.c.b16 %v7406, %v7394
      %v7419 = vpack.c.b16 %v7407, %v7395
      %v7420 = vpack.c.b16 %v7408, %v7396
      %v7421 = vpack.c.b16 %v7409, %v7397
      %v7422 = vpack.c.b16 %v7410, %v7398
      %v7423 = vpack.c.b16 %v7411, %v7399
      %v7424 = vpack.c.b16 %v7412, %v7400
      %v7425 = vpack.c.b16 %v7413, %v7401
      %v7426 = vpack.c.b16 %v7414, %v7402
      %v7428 = vsel %vm6745, %v7366, 0
      %v7431 = vsel %vm6749, %v7415, 0
      %v7434 = vsel %vm6749, %v7416, 0
      %v7437 = vsel %vm6749, %v7417, 0
      %v7440 = vsel %vm6749, %v7418, 0
      %v7443 = vsel %vm6749, %v7419, 0
      %v7446 = vsel %vm6749, %v7420, 0
      %v7449 = vsel %vm6749, %v7421, 0
      %v7452 = vsel %vm6749, %v7422, 0
      %v7455 = vsel %vm6749, %v7423, 0
      %v7458 = vsel %vm6749, %v7424, 0
      %v7461 = vsel %vm6749, %v7425, 0
      %v7464 = vsel %vm6749, %v7426, 0
      %7466 = vmatprep.subr.bf16.mxu0 0
      %7467 = vmatpush1.bf16.msra.mxu0 0
      %7468 = vmatprep.subr.bf16.mxu0 0
      %7469 = vmatpush1.bf16.msra.mxu0 0
      %7470 = vmatprep.subr.bf16.mxu0 0
      %7471 = vmatpush1.bf16.msra.mxu0 0
      %7472 = vmatprep.subr.bf16.mxu0 0
      %7473 = vmatpush1.bf16.msra.mxu0 0
      %7474 = vmatprep.subr.bf16.mxu0 0
      %7475 = vmatpush1.bf16.msra.mxu0 0
      %7476 = vmatprep.subr.bf16.mxu0 0
      %7477 = vmatpush1.bf16.msra.mxu0 0
      %7478 = vmatprep.subr.bf16.mxu0 0
      %7479 = vmatpush1.bf16.msra.mxu0 0
      %7480 = vmatprep.subr.bf16.mxu0 %v7434
      %7481 = vmatpush1.bf16.msra.mxu0 %v7431
      %7482 = vmatprep.subr.bf16.mxu0 0
      %7483 = vmatpush2.bf16.msra.mxu0 0
      %7484 = vmatprep.subr.bf16.mxu0 0
      %7485 = vmatpush2.bf16.msra.mxu0 0
      %7486 = vmatprep.subr.bf16.mxu0 0
      %7487 = vmatpush2.bf16.msra.mxu0 0
      %7488 = vmatprep.subr.bf16.mxu0 0
      %7489 = vmatpush2.bf16.msra.mxu0 0
      %7490 = vmatprep.subr.bf16.mxu0 0
      %7491 = vmatpush2.bf16.msra.mxu0 0
      %7492 = vmatprep.subr.bf16.mxu0 0
      %7493 = vmatpush2.bf16.msra.mxu0 0
      %7494 = vmatprep.subr.bf16.mxu0 0
      %7495 = vmatpush2.bf16.msra.mxu0 0
      %7496 = vmatprep.subr.bf16.mxu0 0
      %7497 = vmatpush2.bf16.msra.mxu0 0
      %7498 = vmatprep.mubr.bf16.mxu0 0
      %7499 = vmatmul.mubr.bf16.gmra.mxu0 %v7428
      %v7500 = vpop.f32.mrf.mxu0
      %v7501 = vadd.f32 0.0, %v7500
      %v7502 = vpop.f32.mrf.mxu0
      %v7503 = vadd.f32 0.0, %v7502
      %v7504 = vpop.f32.mrf.mxu0
      %v7505 = vpop.f32.mrf.mxu0
      %7506 = vdwg.mxu0
      %7507 = vmatprep.subr.bf16.mxu0 0
      %7508 = vmatpush1.bf16.msra.mxu0 0
      %7509 = vmatprep.subr.bf16.mxu0 0
      %7510 = vmatpush1.bf16.msra.mxu0 0
      %7511 = vmatprep.subr.bf16.mxu0 0
      %7512 = vmatpush1.bf16.msra.mxu0 0
      %7513 = vmatprep.subr.bf16.mxu0 0
      %7514 = vmatpush1.bf16.msra.mxu0 0
      %7515 = vmatprep.subr.bf16.mxu0 0
      %7516 = vmatpush1.bf16.msra.mxu0 0
      %7517 = vmatprep.subr.bf16.mxu0 0
      %7518 = vmatpush1.bf16.msra.mxu0 0
      %7519 = vmatprep.subr.bf16.mxu0 0
      %7520 = vmatpush1.bf16.msra.mxu0 0
      %7521 = vmatprep.subr.bf16.mxu0 %v7440
      %7522 = vmatpush1.bf16.msra.mxu0 %v7437
      %7523 = vmatprep.subr.bf16.mxu0 0
      %7524 = vmatpush2.bf16.msra.mxu0 0
      %7525 = vmatprep.subr.bf16.mxu0 0
      %7526 = vmatpush2.bf16.msra.mxu0 0
      %7527 = vmatprep.subr.bf16.mxu0 0
      %7528 = vmatpush2.bf16.msra.mxu0 0
      %7529 = vmatprep.subr.bf16.mxu0 0
      %7530 = vmatpush2.bf16.msra.mxu0 0
      %7531 = vmatprep.subr.bf16.mxu0 0
      %7532 = vmatpush2.bf16.msra.mxu0 0
      %7533 = vmatprep.subr.bf16.mxu0 0
      %7534 = vmatpush2.bf16.msra.mxu0 0
      %7535 = vmatprep.subr.bf16.mxu0 0
      %7536 = vmatpush2.bf16.msra.mxu0 0
      %7537 = vmatprep.subr.bf16.mxu0 0
      %7538 = vmatpush2.bf16.msra.mxu0 0
      %7539 = vmatprep.mubr.bf16.mxu0 0
      %7540 = vmatmul.mubr.bf16.gmra.mxu0 %v7428
      %v7541 = vpop.f32.mrf.mxu0
      %v7542 = vadd.f32 0.0, %v7541
      %v7543 = vpop.f32.mrf.mxu0
      %v7544 = vadd.f32 0.0, %v7543
      %v7545 = vpop.f32.mrf.mxu0
      %v7546 = vpop.f32.mrf.mxu0
      %7547 = vdwg.mxu0
      %7548 = vmatprep.subr.bf16.mxu0 0
      %7549 = vmatpush1.bf16.msra.mxu0 0
      %7550 = vmatprep.subr.bf16.mxu0 0
      %7551 = vmatpush1.bf16.msra.mxu0 0
      %7552 = vmatprep.subr.bf16.mxu0 0
      %7553 = vmatpush1.bf16.msra.mxu0 0
      %7554 = vmatprep.subr.bf16.mxu0 0
      %7555 = vmatpush1.bf16.msra.mxu0 0
      %7556 = vmatprep.subr.bf16.mxu0 0
      %7557 = vmatpush1.bf16.msra.mxu0 0
      %7558 = vmatprep.subr.bf16.mxu0 0
      %7559 = vmatpush1.bf16.msra.mxu0 0
      %7560 = vmatprep.subr.bf16.mxu0 0
      %7561 = vmatpush1.bf16.msra.mxu0 0
      %7562 = vmatprep.subr.bf16.mxu0 %v7446
      %7563 = vmatpush1.bf16.msra.mxu0 %v7443
      %7564 = vmatprep.subr.bf16.mxu0 0
      %7565 = vmatpush2.bf16.msra.mxu0 0
      %7566 = vmatprep.subr.bf16.mxu0 0
      %7567 = vmatpush2.bf16.msra.mxu0 0
      %7568 = vmatprep.subr.bf16.mxu0 0
      %7569 = vmatpush2.bf16.msra.mxu0 0
      %7570 = vmatprep.subr.bf16.mxu0 0
      %7571 = vmatpush2.bf16.msra.mxu0 0
      %7572 = vmatprep.subr.bf16.mxu0 0
      %7573 = vmatpush2.bf16.msra.mxu0 0
      %7574 = vmatprep.subr.bf16.mxu0 0
      %7575 = vmatpush2.bf16.msra.mxu0 0
      %7576 = vmatprep.subr.bf16.mxu0 0
      %7577 = vmatpush2.bf16.msra.mxu0 0
      %7578 = vmatprep.subr.bf16.mxu0 0
      %7579 = vmatpush2.bf16.msra.mxu0 0
      %7580 = vmatprep.mubr.bf16.mxu0 0
      %7581 = vmatmul.mubr.bf16.gmra.mxu0 %v7428
      %v7582 = vpop.f32.mrf.mxu0
      %v7583 = vadd.f32 0.0, %v7582
      %v7584 = vpop.f32.mrf.mxu0
      %v7585 = vadd.f32 0.0, %v7584
      %v7586 = vpop.f32.mrf.mxu0
      %v7587 = vpop.f32.mrf.mxu0
      %7588 = vdwg.mxu0
      %7589 = vmatprep.subr.bf16.mxu0 0
      %7590 = vmatpush1.bf16.msra.mxu0 0
      %7591 = vmatprep.subr.bf16.mxu0 0
      %7592 = vmatpush1.bf16.msra.mxu0 0
      %7593 = vmatprep.subr.bf16.mxu0 0
      %7594 = vmatpush1.bf16.msra.mxu0 0
      %7595 = vmatprep.subr.bf16.mxu0 0
      %7596 = vmatpush1.bf16.msra.mxu0 0
      %7597 = vmatprep.subr.bf16.mxu0 0
      %7598 = vmatpush1.bf16.msra.mxu0 0
      %7599 = vmatprep.subr.bf16.mxu0 0
      %7600 = vmatpush1.bf16.msra.mxu0 0
      %7601 = vmatprep.subr.bf16.mxu0 0
      %7602 = vmatpush1.bf16.msra.mxu0 0
      %7603 = vmatprep.subr.bf16.mxu0 %v7452
      %7604 = vmatpush1.bf16.msra.mxu0 %v7449
      %7605 = vmatprep.subr.bf16.mxu0 0
      %7606 = vmatpush2.bf16.msra.mxu0 0
      %7607 = vmatprep.subr.bf16.mxu0 0
      %7608 = vmatpush2.bf16.msra.mxu0 0
      %7609 = vmatprep.subr.bf16.mxu0 0
      %7610 = vmatpush2.bf16.msra.mxu0 0
      %7611 = vmatprep.subr.bf16.mxu0 0
      %7612 = vmatpush2.bf16.msra.mxu0 0
      %7613 = vmatprep.subr.bf16.mxu0 0
      %7614 = vmatpush2.bf16.msra.mxu0 0
      %7615 = vmatprep.subr.bf16.mxu0 0
      %7616 = vmatpush2.bf16.msra.mxu0 0
      %7617 = vmatprep.subr.bf16.mxu0 0
      %7618 = vmatpush2.bf16.msra.mxu0 0
      %7619 = vmatprep.subr.bf16.mxu0 0
      %7620 = vmatpush2.bf16.msra.mxu0 0
      %7621 = vmatprep.mubr.bf16.mxu0 0
      %7622 = vmatmul.mubr.bf16.gmra.mxu0 %v7428
      %v7623 = vpop.f32.mrf.mxu0
      %v7624 = vadd.f32 0.0, %v7623
      %v7625 = vpop.f32.mrf.mxu0
      %v7626 = vadd.f32 0.0, %v7625
      %v7627 = vpop.f32.mrf.mxu0
      %v7628 = vpop.f32.mrf.mxu0
      %7629 = vdwg.mxu0
      %7630 = vmatprep.subr.bf16.mxu0 0
      %7631 = vmatpush1.bf16.msra.mxu0 0
      %7632 = vmatprep.subr.bf16.mxu0 0
      %7633 = vmatpush1.bf16.msra.mxu0 0
      %7634 = vmatprep.subr.bf16.mxu0 0
      %7635 = vmatpush1.bf16.msra.mxu0 0
      %7636 = vmatprep.subr.bf16.mxu0 0
      %7637 = vmatpush1.bf16.msra.mxu0 0
      %7638 = vmatprep.subr.bf16.mxu0 0
      %7639 = vmatpush1.bf16.msra.mxu0 0
      %7640 = vmatprep.subr.bf16.mxu0 0
      %7641 = vmatpush1.bf16.msra.mxu0 0
      %7642 = vmatprep.subr.bf16.mxu0 0
      %7643 = vmatpush1.bf16.msra.mxu0 0
      %7644 = vmatprep.subr.bf16.mxu0 %v7458
      %7645 = vmatpush1.bf16.msra.mxu0 %v7455
      %7646 = vmatprep.subr.bf16.mxu0 0
      %7647 = vmatpush2.bf16.msra.mxu0 0
      %7648 = vmatprep.subr.bf16.mxu0 0
      %7649 = vmatpush2.bf16.msra.mxu0 0
      %7650 = vmatprep.subr.bf16.mxu0 0
      %7651 = vmatpush2.bf16.msra.mxu0 0
      %7652 = vmatprep.subr.bf16.mxu0 0
      %7653 = vmatpush2.bf16.msra.mxu0 0
      %7654 = vmatprep.subr.bf16.mxu0 0
      %7655 = vmatpush2.bf16.msra.mxu0 0
      %7656 = vmatprep.subr.bf16.mxu0 0
      %7657 = vmatpush2.bf16.msra.mxu0 0
      %7658 = vmatprep.subr.bf16.mxu0 0
      %7659 = vmatpush2.bf16.msra.mxu0 0
      %7660 = vmatprep.subr.bf16.mxu0 0
      %7661 = vmatpush2.bf16.msra.mxu0 0
      %7662 = vmatprep.mubr.bf16.mxu0 0
      %7663 = vmatmul.mubr.bf16.gmra.mxu0 %v7428
      %v7664 = vpop.f32.mrf.mxu0
      %v7665 = vadd.f32 0.0, %v7664
      %v7666 = vpop.f32.mrf.mxu0
      %v7667 = vadd.f32 0.0, %v7666
      %v7668 = vpop.f32.mrf.mxu0
      %v7669 = vpop.f32.mrf.mxu0
      %7670 = vdwg.mxu0
      %7671 = vmatprep.subr.bf16.mxu0 0
      %7672 = vmatpush1.bf16.msra.mxu0 0
      %7673 = vmatprep.subr.bf16.mxu0 0
      %7674 = vmatpush1.bf16.msra.mxu0 0
      %7675 = vmatprep.subr.bf16.mxu0 0
      %7676 = vmatpush1.bf16.msra.mxu0 0
      %7677 = vmatprep.subr.bf16.mxu0 0
      %7678 = vmatpush1.bf16.msra.mxu0 0
      %7679 = vmatprep.subr.bf16.mxu0 0
      %7680 = vmatpush1.bf16.msra.mxu0 0
      %7681 = vmatprep.subr.bf16.mxu0 0
      %7682 = vmatpush1.bf16.msra.mxu0 0
      %7683 = vmatprep.subr.bf16.mxu0 0
      %7684 = vmatpush1.bf16.msra.mxu0 0
      %7685 = vmatprep.subr.bf16.mxu0 %v7464
      %7686 = vmatpush1.bf16.msra.mxu0 %v7461
      %7687 = vmatprep.subr.bf16.mxu0 0
      %7688 = vmatpush2.bf16.msra.mxu0 0
      %7689 = vmatprep.subr.bf16.mxu0 0
      %7690 = vmatpush2.bf16.msra.mxu0 0
      %7691 = vmatprep.subr.bf16.mxu0 0
      %7692 = vmatpush2.bf16.msra.mxu0 0
      %7693 = vmatprep.subr.bf16.mxu0 0
      %7694 = vmatpush2.bf16.msra.mxu0 0
      %7695 = vmatprep.subr.bf16.mxu0 0
      %7696 = vmatpush2.bf16.msra.mxu0 0
      %7697 = vmatprep.subr.bf16.mxu0 0
      %7698 = vmatpush2.bf16.msra.mxu0 0
      %7699 = vmatprep.subr.bf16.mxu0 0
      %7700 = vmatpush2.bf16.msra.mxu0 0
      %7701 = vmatprep.subr.bf16.mxu0 0
      %7702 = vmatpush2.bf16.msra.mxu0 0
      %7703 = vmatprep.mubr.bf16.mxu0 0
      %7704 = vmatmul.mubr.bf16.gmra.mxu0 %v7428
      %v7705 = vpop.f32.mrf.mxu0
      %v7706 = vadd.f32 0.0, %v7705
      %v7707 = vpop.f32.mrf.mxu0
      %v7708 = vadd.f32 0.0, %v7707
      %v7709 = vpop.f32.mrf.mxu0
      %v7710 = vpop.f32.mrf.mxu0
      %7711 = vdwg.mxu0
      %v7712 = vadd.f32 %v7154, %v7501
      %v7713 = vadd.f32 %v7156, %v7503
      %v7714 = vadd.f32 %v7195, %v7542
      %v7715 = vadd.f32 %v7197, %v7544
      %v7716 = vadd.f32 %v7236, %v7583
      %v7717 = vadd.f32 %v7238, %v7585
      %v7718 = vadd.f32 %v7277, %v7624
      %v7719 = vadd.f32 %v7279, %v7626
      %v7720 = vadd.f32 %v7318, %v7665
      %v7721 = vadd.f32 %v7320, %v7667
      %v7722 = vadd.f32 %v7359, %v7706
      %v7723 = vadd.f32 %v7361, %v7708
      %7724 = vst [vmem:[%s206] sm:$0xff] %v7712
      %7725 = vst [vmem:[%s206 + $0x8] sm:$0xff] %v7713
      %7726 = vst [vmem:[%s206 + $0x10] sm:$0xff] %v7714
      %7727 = vst [vmem:[%s206 + $0x18] sm:$0xff] %v7715
      %7728 = vst [vmem:[%s206 + $0x20] sm:$0xff] %v7716
      %7729 = vst [vmem:[%s206 + $0x28] sm:$0xff] %v7717
      %7730 = vst [vmem:[%s206 + $0x30] sm:$0xff] %v7718
      %7731 = vst [vmem:[%s206 + $0x38] sm:$0xff] %v7719
      %7732 = vst [vmem:[%s206 + $0x40] sm:$0xff] %v7720
      %7733 = vst [vmem:[%s206 + $0x48] sm:$0xff] %v7721
      %7734 = vst [vmem:[%s206 + $0x50] sm:$0xff] %v7722
      %7735 = vst [vmem:[%s206 + $0x58] sm:$0xff] %v7723
      %s7736 = smul.u32 12, %s19
      %p7737 = scmp.lt.s32.totalorder %s18, 1
      %s7738 = scalar_select %p7737, %s18, 1
      %p7739 = scmp.lt.s32.totalorder %s7736, 23
      %s7740 = scalar_select %p7739, %s7736, 23
      %s7741 = smul.addr %s7738, 24
      %s7742 = sadd.s32 %s7740, %s7741
      %s7743 = smul.addr %s7742, 8
      %s7744 = scalar_lea.vmem %s3, %s7743
      // Predicated region
      $region33: #{conv2p1d_forward.1} parent=31 // pred_check
        %p7745 = pneg %p116
      $region34: #{conv2p1d_forward.1} parent=31 // pred_check_branch
        %7747 = sbr.rel (%p7745) target = $region36
      $region35: #{conv2p1d_forward.1} parent=31 // pred_region
        %s7748 = smul.u32 12, %s19
      $region36: #{conv2p1d_forward.1} parent=31 // pred_fallthru
        _
    $region32: #{conv2p1d_forward.1} parent=5 // pred_fallthru
      _
    %p7749 = scmp.le.s32.totalorder 2, %s9
    // Predicated region
    $region37: #{conv2p1d_forward.1} parent=5 // pred_check
      %p7750 = pneg %p7749
    $region38: #{conv2p1d_forward.1} parent=5 // pred_check_branch
      %7752 = sbr.rel (%p7750) target = $region40
    $region39: #{conv2p1d_forward.1} parent=5 // pred_region
      %s7753 = ssub.s32 %s9, 2
      // Predicated region
      $region41: #{conv2p1d_forward.1} parent=39 // pred_check
        %p7754 = pneg %p122
      $region42: #{conv2p1d_forward.1} parent=39 // pred_check_branch
        %7756 = sbr.rel (%p7754) target = $region44
      $region43: #{conv2p1d_forward.1} parent=39 // pred_region
        %s7757 = smul.u32 12, %s21
        %p7758 = scmp.lt.s32.totalorder %s20, 1
        %s7759 = scalar_select %p7758, %s20, 1
        %p7760 = scmp.lt.s32.totalorder %s7757, 23
        %s7761 = scalar_select %p7760, %s7757, 23
        %s7762 = smul.addr %s7759, 24
        %s7763 = sadd.s32 %s7761, %s7762
        %s7764 = smul.addr %s7763, 8
        %s7765 = scalar_lea.vmem %s3, %s7764
      $region44: #{conv2p1d_forward.1} parent=39 // pred_fallthru
        _
    $region40: #{conv2p1d_forward.1} parent=5 // pred_fallthru
      _
  $region6: #{conv2p1d_forward.1} parent=0 // loop_footer
    %s13 = sadd.s32 1, %s9
  $region7: #{conv2p1d_forward.1} parent=0 // loop_footer_branch
    %8 = sbr.rel target = $region3
  $region8: #{conv2p1d_forward.1} parent=0 // loop_exit
    _

</llo_original>
